<compile_context>
chip_gen: v6e
topology: v6e:2x2x1
jax: 0.10.0
libtpu: 0.0.40
codegen_flags: <defaults>
</compile_context>

<pallas_src>
import functools
import math

import numpy as np
import jax
import jax.numpy as jnp
from jax import lax
from jax.experimental import pallas as pl
from jax.experimental.pallas import tpu as pltpu

# ----------------------------- configuration -------------------------------
D_MODEL = 64                      # fc_o maps h*d_v -> d_model // 8
D_K = 16
D_V = 16
NQ = 49                           # 7x7 tokens, fixed by the dilate mask
NQP = 56                          # 49 padded up to a multiple of 8 sublanes
DILATION = [0, 2, 2, 3, 1, 2, 2, 3]
NUM_D = len(DILATION)
D_O = D_MODEL // 8                # per-branch output width; NUM_D * D_O == D_MODEL
QK = NUM_D * D_K                  # 128 packed q/k lanes
VW = NUM_D * D_V                  # 128 packed v lanes
LN_EPS = 1e-5


# ----------------------------- dilate masks ---------------------------------
def _dilate_masks(dilation):
    """Reproduces the (49, 49) R mask from ScaledDotProductdilateAttention."""
    ii, jj = np.meshgrid(np.arange(7), np.arange(7), indexing="ij")
    idx = np.stack([ii.flatten(), jj.flatten()])                 # (2, 49)
    diff = np.abs(idx.T[:, :, None] - idx[None, :, :])           # (49, 2, 49)
    cheb = diff.max(axis=1)                                      # Chebyshev distance
    manh = diff.sum(axis=1)                                      # Manhattan distance
    masks = []
    for p in dilation:
        r = (cheb == p) & ((manh == p) | (manh == 2 * p))
        masks.append(r.astype(np.float32))
    return np.stack(masks)                                       # (NUM_D, 49, 49)


# ----------------------------- fused kernel ---------------------------------
def _fused_kernel(q_ref, k_ref, v_ref, masks_ref, wqkv_ref, bqkv_ref,
                  wo_ref, vec_ref, out_ref):
    # One block of BB batch elements per grid step, flattened to (BB*56, 64).
    # Weights/masks have constant index_maps -> resident in VMEM across grid.
    rows = q_ref.shape[0]
    bb = rows // NQP
    bf16 = jnp.bfloat16

    bqkv = bqkv_ref[...]                                         # (3, 128) f32
    vec = vec_ref[...]                                           # (3, 64)  f32

    xq = q_ref[...]                                              # (rows, 64) f32

    # Packed projections: one (rows,64)@(64,128) bf16 MXU matmul each,
    # f32 accumulation.  1/sqrt(d_k) is folded into wqkv[0] / bqkv[0].
    q_all = jnp.dot(xq.astype(bf16), wqkv_ref[0],
                    preferred_element_type=jnp.float32) + bqkv[0:1, :]
    k_all = jnp.dot(k_ref[...].astype(bf16), wqkv_ref[1],
                    preferred_element_type=jnp.float32) + bqkv[1:2, :]
    v_all = jnp.dot(v_ref[...].astype(bf16), wqkv_ref[2],
                    preferred_element_type=jnp.float32) + bqkv[2:3, :]

    # (rows, 128) -> (bb, 56, 128): 56 % 8 == 0 so the f32 split is
    # sublane-tile aligned (no relayout); cast to bf16 afterwards.
    q3 = q_all.reshape(bb, NQP, QK).astype(bf16)
    k3 = k_all.reshape(bb, NQP, QK).astype(bf16)
    v3 = v_all.reshape(bb, NQP, VW).astype(bf16)

    # Padded key columns (>= 49) must get exactly zero softmax mass.
    col_valid = lax.broadcasted_iota(jnp.int32, (1, 1, NQP), 2) < NQ

    # 8 dilation branches, batched over bb per einsum.  Branch results are
    # concatenated in registers (no masked 16-lane partial stores).
    outs = []
    for d in range(NUM_D):
        qd = q3[:, :, d * D_K:(d + 1) * D_K]                     # (bb, 56, 16)
        kd = k3[:, :, d * D_K:(d + 1) * D_K]
        vd = v3[:, :, d * D_V:(d + 1) * D_V]
        s = jnp.einsum("bqk,bnk->bqn", qd, kd,
                       preferred_element_type=jnp.float32)       # (bb, 56, 56)
        s = s * masks_ref[d]                                     # multiplicative dilate mask
        m = jnp.max(s, axis=-1, keepdims=True)
        e = jnp.where(col_valid, jnp.exp(s - m), 0.0)            # drop padded cols
        p = e * pl.reciprocal(jnp.sum(e, axis=-1, keepdims=True), approx=True)
        outs.append(jnp.einsum("bqn,bnv->bqv", p.astype(bf16), vd,
                               preferred_element_type=jnp.float32))

    o2 = jnp.concatenate(outs, axis=-1).reshape(rows, VW).astype(bf16)

    # Block-diagonal fc_o == all 8 per-branch fc_o's + torch.cat in one matmul.
    y = (jnp.dot(o2, wo_ref[...], preferred_element_type=jnp.float32)
         + vec[0:1, :])                                          # (rows, 64)

    # residual + LayerNorm in f32 (dropout = identity in eval mode)
    x = xq + y
    mu = jnp.mean(x, axis=-1, keepdims=True)
    xc = x - mu
    var = jnp.mean(xc * xc, axis=-1, keepdims=True)
    out_ref[...] = xc * lax.rsqrt(var + LN_EPS) * vec[1:2, :] + vec[2:3, :]


@functools.partial(jax.jit, static_argnames=("block_b",))
def multi_head_dilate_attention(queries, keys, values, packed, *, block_b=16):
    b_s = queries.shape[0]
    bb = min(block_b, b_s)                      # batch elements per grid step
    b_pad = pl.cdiv(b_s, bb) * bb
    grid_b = b_pad // bb
    rows = bb * NQP                             # rows fed to the MXU per step

    def prep(x):
        # pad batch to a multiple of bb and seq 49 -> 56, flatten to 2-D
        x = jnp.pad(x, ((0, b_pad - b_s), (0, NQP - NQ), (0, 0)))
        return x.reshape(b_pad * NQP, D_MODEL)

    q2, k2, v2 = prep(queries), prep(keys), prep(values)

    out2 = pl.pallas_call(
        _fused_kernel,
        out_shape=jax.ShapeDtypeStruct((b_pad * NQP, D_MODEL), jnp.float32),
        grid_spec=pltpu.PrefetchScalarGridSpec(
            num_scalar_prefetch=0,
            grid=(grid_b,),
            in_specs=[
                pl.BlockSpec((rows, D_MODEL), lambda b: (b, 0)),     # queries
                pl.BlockSpec((rows, D_MODEL), lambda b: (b, 0)),     # keys
                pl.BlockSpec((rows, D_MODEL), lambda b: (b, 0)),     # values
                pl.BlockSpec((NUM_D, NQP, NQP), lambda b: (0, 0, 0)),  # dilate masks
                pl.BlockSpec((3, D_MODEL, QK), lambda b: (0, 0, 0)),   # Wq|Wk|Wv packed (bf16)
                pl.BlockSpec((3, QK), lambda b: (0, 0)),               # bq|bk|bv packed
                pl.BlockSpec((VW, NUM_D * D_O), lambda b: (0, 0)),     # block-diag Wo (bf16)
                pl.BlockSpec((3, D_MODEL), lambda b: (0, 0)),          # bo|gamma|beta
            ],
            out_specs=pl.BlockSpec((rows, D_MODEL), lambda b: (b, 0)),
        ),
        compiler_params=pltpu.CompilerParams(
            dimension_semantics=("parallel",)),   # v7x: shard grid steps across 2 TCs
    )(q2, k2, v2, packed["masks"],
      packed["wqkv"], packed["bqkv"], packed["wo_bd"], packed["vec"])

    return out2.reshape(b_pad, NQP, D_MODEL)[:b_s, :NQ, :]


# ----------------------------- parameter init -------------------------------
def init_params(key):
    def xavier(k, shape):
        fan_in, fan_out = shape[-2], shape[-1]
        bound = math.sqrt(6.0 / (fan_in + fan_out))
        return jax.random.uniform(k, shape, jnp.float32, -bound, bound)

    ks = jax.random.split(key, 4)
    params = {
        "wq": xavier(ks[0], (NUM_D, D_MODEL, D_K)),
        "wk": xavier(ks[1], (NUM_D, D_MODEL, D_K)),
        "wv": xavier(ks[2], (NUM_D, D_MODEL, D_V)),
        "wo": xavier(ks[3], (NUM_D, D_V, D_O)),
        # init_weights() sets all linear biases to zero
        "bq": jnp.zeros((NUM_D, 1, D_K), jnp.float32),
        "bk": jnp.zeros((NUM_D, 1, D_K), jnp.float32),
        "bv": jnp.zeros((NUM_D, 1, D_V), jnp.float32),
        "bo": jnp.zeros((NUM_D, 1, D_O), jnp.float32),
        # nn.LayerNorm default init
        "ln_gamma": jnp.ones((1, D_MODEL), jnp.float32),
        "ln_beta": jnp.zeros((1, D_MODEL), jnp.float32),
        "masks": jnp.asarray(_dilate_masks(DILATION)),            # (NUM_D, 49, 49)
    }
    return params


def pack_params(params):
    """Repack per-branch weights into the kernel's lane-packed bf16 layout."""
    scale = jnp.float32(1.0 / math.sqrt(D_K))
    # branch d occupies lanes [d*16, (d+1)*16) of the packed projection output
    wq = jnp.transpose(params["wq"], (1, 0, 2)).reshape(D_MODEL, QK) * scale
    wk = jnp.transpose(params["wk"], (1, 0, 2)).reshape(D_MODEL, QK)
    wv = jnp.transpose(params["wv"], (1, 0, 2)).reshape(D_MODEL, VW)
    wqkv = jnp.stack([wq, wk, wv]).astype(jnp.bfloat16)          # (3, 64, 128) bf16

    bq = params["bq"].reshape(QK) * scale
    bk = params["bk"].reshape(QK)
    bv = params["bv"].reshape(VW)
    bqkv = jnp.stack([bq, bk, bv])                               # (3, 128) f32

    # block-diagonal fc_o: (128, 64); branch d: rows [16d,16d+16) -> cols [8d,8d+8)
    wo_bd = jnp.zeros((VW, NUM_D * D_O), jnp.float32)
    for d in range(NUM_D):
        wo_bd = wo_bd.at[d * D_V:(d + 1) * D_V, d * D_O:(d + 1) * D_O].set(
            params["wo"][d])
    wo_bd = wo_bd.astype(jnp.bfloat16)

    vec = jnp.stack([params["bo"].reshape(NUM_D * D_O),          # concatenated fc_o bias
                     params["ln_gamma"].reshape(D_MODEL),
                     params["ln_beta"].reshape(D_MODEL)])        # (3, 64) f32

    # dilate masks padded to (NUM_D, 56, 56); padded rows/cols are zero
    masks_p = jnp.zeros((NUM_D, NQP, NQP), jnp.float32)
    masks_p = masks_p.at[:, :NQ, :NQ].set(params["masks"])

    return {"wqkv": wqkv, "bqkv": bqkv, "wo_bd": wo_bd, "vec": vec,
            "masks": masks_p}


# ----------------------------- pure-JAX reference ---------------------------
def reference(queries, keys, values, params):
    outs = []
    for d in range(NUM_D):
        q = queries @ params["wq"][d] + params["bq"][d]
        k = keys @ params["wk"][d] + params["bk"][d]
        v = values @ params["wv"][d] + params["bv"][d]
        att = jnp.einsum("bqd,bkd->bqk", q, k)
        att = att * params["masks"][d] / math.sqrt(D_K)
        att = jax.nn.softmax(att, axis=-1)
        o = jnp.einsum("bqk,bkd->bqd", att, v) @ params["wo"][d] + params["bo"][d]
        outs.append(o)
    cat = jnp.concatenate(outs, axis=-1)
    x = queries + cat
    mu = x.mean(-1, keepdims=True)
    var = ((x - mu) ** 2).mean(-1, keepdims=True)
    return (x - mu) / jnp.sqrt(var + LN_EPS) * params["ln_gamma"] + params["ln_beta"]


# ----------------------------------- main ------------------------------------
if __name__ == "__main__":
    key = jax.random.PRNGKey(0)
    k_p, k_q, k_k, k_v = jax.random.split(key, 4)

    params = init_params(k_p)
    packed = pack_params(params)

    # b_s=5 with block_b=2 exercises a multi-step grid AND the batch-padding
    # path (b_pad=6) while staying tiny.  Realistic deployments should use the
    # default block_b=16 (or larger, within the per-generation VMEM budget).
    b_s = 5
    queries = jax.random.normal(k_q, (b_s, NQ, D_MODEL), jnp.float32)
    keys = jax.random.normal(k_k, (b_s, NQ, D_MODEL), jnp.float32)
    values = jax.random.normal(k_v, (b_s, NQ, D_MODEL), jnp.float32)

    out = multi_head_dilate_attention(queries, keys, values, packed, block_b=2)
    out = jax.block_until_ready(out)

    ref = jax.block_until_ready(reference(queries, keys, values, params))
    assert out.shape == (b_s, NQ, D_MODEL)
    # Tolerance accounts for bf16 MXU operands (f32 accumulation), the EUP
    # approximate reciprocal in the softmax denominator, and 1/sqrt(d_k)
    # folded into Wq; the reference is pure f32.
    np.testing.assert_allclose(np.asarray(out), np.asarray(ref), rtol=2e-2, atol=2e-2)

    print("KERNEL_OK")
</pallas_src>

<mosaic_0001>
module attributes {stable_mosaic.version = 11 : i64} {
  func.func @_fused_kernel(%arg0: i32, %arg1: memref<112x64xf32, #tpu.memory_space<vmem>>, %arg2: memref<112x64xf32, #tpu.memory_space<vmem>>, %arg3: memref<112x64xf32, #tpu.memory_space<vmem>>, %arg4: memref<8x56x56xf32, #tpu.memory_space<vmem>>, %arg5: memref<3x64x128xbf16, #tpu.memory_space<vmem>>, %arg6: memref<3x128xf32, #tpu.memory_space<vmem>>, %arg7: memref<128x64xbf16, #tpu.memory_space<vmem>>, %arg8: memref<3x64xf32, #tpu.memory_space<vmem>>, %arg9: memref<112x64xf32, #tpu.memory_space<vmem>>) attributes {dimension_semantics = [#tpu.dimension_semantics<parallel>], iteration_bounds = array<i64: 3>, scalar_prefetch = 0 : i64, scratch_operands = 0 : i64, tpu.core_type = #tpu.core_type<tc>, window_params = [{transform_indices = @transform_0, window_bounds = array<i64: 112, 64>}, {transform_indices = @transform_1, window_bounds = array<i64: 112, 64>}, {transform_indices = @transform_2, window_bounds = array<i64: 112, 64>}, {pipeline_mode = #tpu.pipeline_mode<synchronous>, transform_indices = @transform_3, window_bounds = array<i64: 8, 56, 56>}, {pipeline_mode = #tpu.pipeline_mode<synchronous>, transform_indices = @transform_4, window_bounds = array<i64: 3, 64, 128>}, {pipeline_mode = #tpu.pipeline_mode<synchronous>, transform_indices = @transform_5, window_bounds = array<i64: 3, 128>}, {pipeline_mode = #tpu.pipeline_mode<synchronous>, transform_indices = @transform_6, window_bounds = array<i64: 128, 64>}, {pipeline_mode = #tpu.pipeline_mode<synchronous>, transform_indices = @transform_7, window_bounds = array<i64: 3, 64>}, {transform_indices = @transform_8, window_bounds = array<i64: 112, 64>}]} {
    %c0 = arith.constant 0 : index
    %c0_0 = arith.constant 0 : index
    %0 = vector.load %arg6[%c0, %c0_0] : memref<3x128xf32, #tpu.memory_space<vmem>>, vector<3x128xf32>
    %c0_1 = arith.constant 0 : index
    %c0_2 = arith.constant 0 : index
    %1 = vector.load %arg8[%c0_1, %c0_2] : memref<3x64xf32, #tpu.memory_space<vmem>>, vector<3x64xf32>
    %c0_3 = arith.constant 0 : index
    %c0_4 = arith.constant 0 : index
    %2 = vector.load %arg1[%c0_3, %c0_4] : memref<112x64xf32, #tpu.memory_space<vmem>>, vector<112x64xf32>
    %3 = arith.truncf %2 : vector<112x64xf32> to vector<112x64xbf16>
    %c0_5 = arith.constant 0 : index
    %c0_6 = arith.constant 0 : index
    %c0_7 = arith.constant 0 : index
    %4 = vector.load %arg5[%c0_5, %c0_6, %c0_7] : memref<3x64x128xbf16, #tpu.memory_space<vmem>>, vector<1x64x128xbf16>
    %5 = vector.shape_cast %4 : vector<1x64x128xbf16> to vector<64x128xbf16>
    %cst = arith.constant dense<0.000000e+00> : vector<112x128xf32>
    %6 = tpu.matmul %3, %5, %cst {dimension_numbers = #tpu.dot_dimension_numbers<[1], [0], [0], [1], [0, 0, 1, 1], [], []>} : vector<112x64xbf16>, vector<64x128xbf16>, vector<112x128xf32> -> vector<112x128xf32>
    %7 = vector.extract_strided_slice %0 {offsets = [0, 0], sizes = [1, 128], strides = [1, 1]} : vector<3x128xf32> to vector<1x128xf32>
    %8 = vector.broadcast %7 : vector<1x128xf32> to vector<112x128xf32>
    %9 = arith.addf %6, %8 : vector<112x128xf32>
    %c0_8 = arith.constant 0 : index
    %c0_9 = arith.constant 0 : index
    %10 = vector.load %arg2[%c0_8, %c0_9] : memref<112x64xf32, #tpu.memory_space<vmem>>, vector<112x64xf32>
    %11 = arith.truncf %10 : vector<112x64xf32> to vector<112x64xbf16>
    %c1 = arith.constant 1 : index
    %c0_10 = arith.constant 0 : index
    %c0_11 = arith.constant 0 : index
    %12 = vector.load %arg5[%c1, %c0_10, %c0_11] : memref<3x64x128xbf16, #tpu.memory_space<vmem>>, vector<1x64x128xbf16>
    %13 = vector.shape_cast %12 : vector<1x64x128xbf16> to vector<64x128xbf16>
    %cst_12 = arith.constant dense<0.000000e+00> : vector<112x128xf32>
    %14 = tpu.matmul %11, %13, %cst_12 {dimension_numbers = #tpu.dot_dimension_numbers<[1], [0], [0], [1], [0, 0, 1, 1], [], []>} : vector<112x64xbf16>, vector<64x128xbf16>, vector<112x128xf32> -> vector<112x128xf32>
    %15 = vector.extract_strided_slice %0 {offsets = [1, 0], sizes = [1, 128], strides = [1, 1]} : vector<3x128xf32> to vector<1x128xf32>
    %16 = vector.broadcast %15 : vector<1x128xf32> to vector<112x128xf32>
    %17 = arith.addf %14, %16 : vector<112x128xf32>
    %c0_13 = arith.constant 0 : index
    %c0_14 = arith.constant 0 : index
    %18 = vector.load %arg3[%c0_13, %c0_14] : memref<112x64xf32, #tpu.memory_space<vmem>>, vector<112x64xf32>
    %19 = arith.truncf %18 : vector<112x64xf32> to vector<112x64xbf16>
    %c2 = arith.constant 2 : index
    %c0_15 = arith.constant 0 : index
    %c0_16 = arith.constant 0 : index
    %20 = vector.load %arg5[%c2, %c0_15, %c0_16] : memref<3x64x128xbf16, #tpu.memory_space<vmem>>, vector<1x64x128xbf16>
    %21 = vector.shape_cast %20 : vector<1x64x128xbf16> to vector<64x128xbf16>
    %cst_17 = arith.constant dense<0.000000e+00> : vector<112x128xf32>
    %22 = tpu.matmul %19, %21, %cst_17 {dimension_numbers = #tpu.dot_dimension_numbers<[1], [0], [0], [1], [0, 0, 1, 1], [], []>} : vector<112x64xbf16>, vector<64x128xbf16>, vector<112x128xf32> -> vector<112x128xf32>
    %23 = vector.extract_strided_slice %0 {offsets = [2, 0], sizes = [1, 128], strides = [1, 1]} : vector<3x128xf32> to vector<1x128xf32>
    %24 = vector.broadcast %23 : vector<1x128xf32> to vector<112x128xf32>
    %25 = arith.addf %22, %24 : vector<112x128xf32>
    %26 = vector.shape_cast %9 : vector<112x128xf32> to vector<2x56x128xf32>
    %27 = arith.truncf %26 : vector<2x56x128xf32> to vector<2x56x128xbf16>
    %28 = vector.shape_cast %17 : vector<112x128xf32> to vector<2x56x128xf32>
    %29 = arith.truncf %28 : vector<2x56x128xf32> to vector<2x56x128xbf16>
    %30 = vector.shape_cast %25 : vector<112x128xf32> to vector<2x56x128xf32>
    %31 = arith.truncf %30 : vector<2x56x128xf32> to vector<2x56x128xbf16>
    %32 = tpu.iota {dimensions = array<i32: 2>} : vector<1x1x56xi32>
    %c49_i32 = arith.constant 49 : i32
    %33 = vector.broadcast %c49_i32 : i32 to vector<1x1x56xi32>
    %34 = arith.cmpi slt, %32, %33 : vector<1x1x56xi32>
    %35 = vector.extract_strided_slice %27 {offsets = [0, 0, 0], sizes = [2, 56, 16], strides = [1, 1, 1]} : vector<2x56x128xbf16> to vector<2x56x16xbf16>
    %36 = vector.extract_strided_slice %29 {offsets = [0, 0, 0], sizes = [2, 56, 16], strides = [1, 1, 1]} : vector<2x56x128xbf16> to vector<2x56x16xbf16>
    %37 = vector.extract_strided_slice %31 {offsets = [0, 0, 0], sizes = [2, 56, 16], strides = [1, 1, 1]} : vector<2x56x128xbf16> to vector<2x56x16xbf16>
    "tpu.trace_start"() <{level = 10 : i32, message = "bqk,bnk->bqn"}> : () -> ()
    %cst_18 = arith.constant dense<0.000000e+00> : vector<2x56x56xf32>
    %38 = tpu.matmul %35, %36, %cst_18 {dimension_numbers = #tpu.dot_dimension_numbers<[2], [2], [1], [1], [0, 0, 0, 1, 1, 1], [0], [0]>} : vector<2x56x16xbf16>, vector<2x56x16xbf16>, vector<2x56x56xf32> -> vector<2x56x56xf32>
    "tpu.trace_stop"() : () -> ()
    %c0_19 = arith.constant 0 : index
    %c0_20 = arith.constant 0 : index
    %c0_21 = arith.constant 0 : index
    %39 = vector.load %arg4[%c0_19, %c0_20, %c0_21] : memref<8x56x56xf32, #tpu.memory_space<vmem>>, vector<1x56x56xf32>
    %40 = vector.shape_cast %39 : vector<1x56x56xf32> to vector<56x56xf32>
    %41 = vector.shape_cast %40 : vector<56x56xf32> to vector<1x56x56xf32>
    %42 = vector.broadcast %41 : vector<1x56x56xf32> to vector<2x56x56xf32>
    %43 = arith.mulf %38, %42 : vector<2x56x56xf32>
    %cst_22 = arith.constant dense<0xFF800000> : vector<2x56xf32>
    %44 = vector.multi_reduction <maximumf>, %43, %cst_22 [2] : vector<2x56x56xf32> to vector<2x56xf32>
    %45 = vector.shape_cast %44 : vector<2x56xf32> to vector<2x56x1xf32>
    %46 = vector.broadcast %45 : vector<2x56x1xf32> to vector<2x56x56xf32>
    %47 = arith.subf %43, %46 : vector<2x56x56xf32>
    %48 = math.exp %47 : vector<2x56x56xf32>
    %cst_23 = arith.constant 0.000000e+00 : f32
    %49 = vector.shape_cast %34 : vector<1x1x56xi1> to vector<1x1x56xi1>
    %50 = vector.broadcast %49 : vector<1x1x56xi1> to vector<2x56x56xi1>
    %51 = vector.broadcast %cst_23 : f32 to vector<2x56x56xf32>
    %52 = arith.select %50, %48, %51 : vector<2x56x56xi1>, vector<2x56x56xf32>
    %cst_24 = arith.constant dense<0.000000e+00> : vector<2x56xf32>
    %53 = vector.multi_reduction <add>, %52, %cst_24 [2] : vector<2x56x56xf32> to vector<2x56xf32>
    %54 = vector.shape_cast %53 : vector<2x56xf32> to vector<2x56x1xf32>
    %55 = tpu.reciprocal %54 {approx = true} : vector<2x56x1xf32> -> vector<2x56x1xf32>
    %56 = vector.broadcast %55 : vector<2x56x1xf32> to vector<2x56x56xf32>
    %57 = arith.mulf %52, %56 : vector<2x56x56xf32>
    %58 = arith.truncf %57 : vector<2x56x56xf32> to vector<2x56x56xbf16>
    "tpu.trace_start"() <{level = 10 : i32, message = "bqn,bnv->bqv"}> : () -> ()
    %cst_25 = arith.constant dense<0.000000e+00> : vector<2x56x16xf32>
    %59 = tpu.matmul %58, %37, %cst_25 {dimension_numbers = #tpu.dot_dimension_numbers<[2], [1], [1], [2], [0, 0, 0, 1, 1, 2], [0], [0]>} : vector<2x56x56xbf16>, vector<2x56x16xbf16>, vector<2x56x16xf32> -> vector<2x56x16xf32>
    "tpu.trace_stop"() : () -> ()
    %60 = vector.extract_strided_slice %27 {offsets = [0, 0, 16], sizes = [2, 56, 16], strides = [1, 1, 1]} : vector<2x56x128xbf16> to vector<2x56x16xbf16>
    %61 = vector.extract_strided_slice %29 {offsets = [0, 0, 16], sizes = [2, 56, 16], strides = [1, 1, 1]} : vector<2x56x128xbf16> to vector<2x56x16xbf16>
    %62 = vector.extract_strided_slice %31 {offsets = [0, 0, 16], sizes = [2, 56, 16], strides = [1, 1, 1]} : vector<2x56x128xbf16> to vector<2x56x16xbf16>
    "tpu.trace_start"() <{level = 10 : i32, message = "bqk,bnk->bqn"}> : () -> ()
    %cst_26 = arith.constant dense<0.000000e+00> : vector<2x56x56xf32>
    %63 = tpu.matmul %60, %61, %cst_26 {dimension_numbers = #tpu.dot_dimension_numbers<[2], [2], [1], [1], [0, 0, 0, 1, 1, 1], [0], [0]>} : vector<2x56x16xbf16>, vector<2x56x16xbf16>, vector<2x56x56xf32> -> vector<2x56x56xf32>
    "tpu.trace_stop"() : () -> ()
    %c1_27 = arith.constant 1 : index
    %c0_28 = arith.constant 0 : index
    %c0_29 = arith.constant 0 : index
    %64 = vector.load %arg4[%c1_27, %c0_28, %c0_29] : memref<8x56x56xf32, #tpu.memory_space<vmem>>, vector<1x56x56xf32>
    %65 = vector.shape_cast %64 : vector<1x56x56xf32> to vector<56x56xf32>
    %66 = vector.shape_cast %65 : vector<56x56xf32> to vector<1x56x56xf32>
    %67 = vector.broadcast %66 : vector<1x56x56xf32> to vector<2x56x56xf32>
    %68 = arith.mulf %63, %67 : vector<2x56x56xf32>
    %cst_30 = arith.constant dense<0xFF800000> : vector<2x56xf32>
    %69 = vector.multi_reduction <maximumf>, %68, %cst_30 [2] : vector<2x56x56xf32> to vector<2x56xf32>
    %70 = vector.shape_cast %69 : vector<2x56xf32> to vector<2x56x1xf32>
    %71 = vector.broadcast %70 : vector<2x56x1xf32> to vector<2x56x56xf32>
    %72 = arith.subf %68, %71 : vector<2x56x56xf32>
    %73 = math.exp %72 : vector<2x56x56xf32>
    %cst_31 = arith.constant 0.000000e+00 : f32
    %74 = vector.shape_cast %34 : vector<1x1x56xi1> to vector<1x1x56xi1>
    %75 = vector.broadcast %74 : vector<1x1x56xi1> to vector<2x56x56xi1>
    %76 = vector.broadcast %cst_31 : f32 to vector<2x56x56xf32>
    %77 = arith.select %75, %73, %76 : vector<2x56x56xi1>, vector<2x56x56xf32>
    %cst_32 = arith.constant dense<0.000000e+00> : vector<2x56xf32>
    %78 = vector.multi_reduction <add>, %77, %cst_32 [2] : vector<2x56x56xf32> to vector<2x56xf32>
    %79 = vector.shape_cast %78 : vector<2x56xf32> to vector<2x56x1xf32>
    %80 = tpu.reciprocal %79 {approx = true} : vector<2x56x1xf32> -> vector<2x56x1xf32>
    %81 = vector.broadcast %80 : vector<2x56x1xf32> to vector<2x56x56xf32>
    %82 = arith.mulf %77, %81 : vector<2x56x56xf32>
    %83 = arith.truncf %82 : vector<2x56x56xf32> to vector<2x56x56xbf16>
    "tpu.trace_start"() <{level = 10 : i32, message = "bqn,bnv->bqv"}> : () -> ()
    %cst_33 = arith.constant dense<0.000000e+00> : vector<2x56x16xf32>
    %84 = tpu.matmul %83, %62, %cst_33 {dimension_numbers = #tpu.dot_dimension_numbers<[2], [1], [1], [2], [0, 0, 0, 1, 1, 2], [0], [0]>} : vector<2x56x56xbf16>, vector<2x56x16xbf16>, vector<2x56x16xf32> -> vector<2x56x16xf32>
    "tpu.trace_stop"() : () -> ()
    %85 = vector.extract_strided_slice %27 {offsets = [0, 0, 32], sizes = [2, 56, 16], strides = [1, 1, 1]} : vector<2x56x128xbf16> to vector<2x56x16xbf16>
    %86 = vector.extract_strided_slice %29 {offsets = [0, 0, 32], sizes = [2, 56, 16], strides = [1, 1, 1]} : vector<2x56x128xbf16> to vector<2x56x16xbf16>
    %87 = vector.extract_strided_slice %31 {offsets = [0, 0, 32], sizes = [2, 56, 16], strides = [1, 1, 1]} : vector<2x56x128xbf16> to vector<2x56x16xbf16>
    "tpu.trace_start"() <{level = 10 : i32, message = "bqk,bnk->bqn"}> : () -> ()
    %cst_34 = arith.constant dense<0.000000e+00> : vector<2x56x56xf32>
    %88 = tpu.matmul %85, %86, %cst_34 {dimension_numbers = #tpu.dot_dimension_numbers<[2], [2], [1], [1], [0, 0, 0, 1, 1, 1], [0], [0]>} : vector<2x56x16xbf16>, vector<2x56x16xbf16>, vector<2x56x56xf32> -> vector<2x56x56xf32>
    "tpu.trace_stop"() : () -> ()
    %c2_35 = arith.constant 2 : index
    %c0_36 = arith.constant 0 : index
    %c0_37 = arith.constant 0 : index
    %89 = vector.load %arg4[%c2_35, %c0_36, %c0_37] : memref<8x56x56xf32, #tpu.memory_space<vmem>>, vector<1x56x56xf32>
    %90 = vector.shape_cast %89 : vector<1x56x56xf32> to vector<56x56xf32>
    %91 = vector.shape_cast %90 : vector<56x56xf32> to vector<1x56x56xf32>
    %92 = vector.broadcast %91 : vector<1x56x56xf32> to vector<2x56x56xf32>
    %93 = arith.mulf %88, %92 : vector<2x56x56xf32>
    %cst_38 = arith.constant dense<0xFF800000> : vector<2x56xf32>
    %94 = vector.multi_reduction <maximumf>, %93, %cst_38 [2] : vector<2x56x56xf32> to vector<2x56xf32>
    %95 = vector.shape_cast %94 : vector<2x56xf32> to vector<2x56x1xf32>
    %96 = vector.broadcast %95 : vector<2x56x1xf32> to vector<2x56x56xf32>
    %97 = arith.subf %93, %96 : vector<2x56x56xf32>
    %98 = math.exp %97 : vector<2x56x56xf32>
    %cst_39 = arith.constant 0.000000e+00 : f32
    %99 = vector.shape_cast %34 : vector<1x1x56xi1> to vector<1x1x56xi1>
    %100 = vector.broadcast %99 : vector<1x1x56xi1> to vector<2x56x56xi1>
    %101 = vector.broadcast %cst_39 : f32 to vector<2x56x56xf32>
    %102 = arith.select %100, %98, %101 : vector<2x56x56xi1>, vector<2x56x56xf32>
    %cst_40 = arith.constant dense<0.000000e+00> : vector<2x56xf32>
    %103 = vector.multi_reduction <add>, %102, %cst_40 [2] : vector<2x56x56xf32> to vector<2x56xf32>
    %104 = vector.shape_cast %103 : vector<2x56xf32> to vector<2x56x1xf32>
    %105 = tpu.reciprocal %104 {approx = true} : vector<2x56x1xf32> -> vector<2x56x1xf32>
    %106 = vector.broadcast %105 : vector<2x56x1xf32> to vector<2x56x56xf32>
    %107 = arith.mulf %102, %106 : vector<2x56x56xf32>
    %108 = arith.truncf %107 : vector<2x56x56xf32> to vector<2x56x56xbf16>
    "tpu.trace_start"() <{level = 10 : i32, message = "bqn,bnv->bqv"}> : () -> ()
    %cst_41 = arith.constant dense<0.000000e+00> : vector<2x56x16xf32>
    %109 = tpu.matmul %108, %87, %cst_41 {dimension_numbers = #tpu.dot_dimension_numbers<[2], [1], [1], [2], [0, 0, 0, 1, 1, 2], [0], [0]>} : vector<2x56x56xbf16>, vector<2x56x16xbf16>, vector<2x56x16xf32> -> vector<2x56x16xf32>
    "tpu.trace_stop"() : () -> ()
    %110 = vector.extract_strided_slice %27 {offsets = [0, 0, 48], sizes = [2, 56, 16], strides = [1, 1, 1]} : vector<2x56x128xbf16> to vector<2x56x16xbf16>
    %111 = vector.extract_strided_slice %29 {offsets = [0, 0, 48], sizes = [2, 56, 16], strides = [1, 1, 1]} : vector<2x56x128xbf16> to vector<2x56x16xbf16>
    %112 = vector.extract_strided_slice %31 {offsets = [0, 0, 48], sizes = [2, 56, 16], strides = [1, 1, 1]} : vector<2x56x128xbf16> to vector<2x56x16xbf16>
    "tpu.trace_start"() <{level = 10 : i32, message = "bqk,bnk->bqn"}> : () -> ()
    %cst_42 = arith.constant dense<0.000000e+00> : vector<2x56x56xf32>
    %113 = tpu.matmul %110, %111, %cst_42 {dimension_numbers = #tpu.dot_dimension_numbers<[2], [2], [1], [1], [0, 0, 0, 1, 1, 1], [0], [0]>} : vector<2x56x16xbf16>, vector<2x56x16xbf16>, vector<2x56x56xf32> -> vector<2x56x56xf32>
    "tpu.trace_stop"() : () -> ()
    %c3 = arith.constant 3 : index
    %c0_43 = arith.constant 0 : index
    %c0_44 = arith.constant 0 : index
    %114 = vector.load %arg4[%c3, %c0_43, %c0_44] : memref<8x56x56xf32, #tpu.memory_space<vmem>>, vector<1x56x56xf32>
    %115 = vector.shape_cast %114 : vector<1x56x56xf32> to vector<56x56xf32>
    %116 = vector.shape_cast %115 : vector<56x56xf32> to vector<1x56x56xf32>
    %117 = vector.broadcast %116 : vector<1x56x56xf32> to vector<2x56x56xf32>
    %118 = arith.mulf %113, %117 : vector<2x56x56xf32>
    %cst_45 = arith.constant dense<0xFF800000> : vector<2x56xf32>
    %119 = vector.multi_reduction <maximumf>, %118, %cst_45 [2] : vector<2x56x56xf32> to vector<2x56xf32>
    %120 = vector.shape_cast %119 : vector<2x56xf32> to vector<2x56x1xf32>
    %121 = vector.broadcast %120 : vector<2x56x1xf32> to vector<2x56x56xf32>
    %122 = arith.subf %118, %121 : vector<2x56x56xf32>
    %123 = math.exp %122 : vector<2x56x56xf32>
    %cst_46 = arith.constant 0.000000e+00 : f32
    %124 = vector.shape_cast %34 : vector<1x1x56xi1> to vector<1x1x56xi1>
    %125 = vector.broadcast %124 : vector<1x1x56xi1> to vector<2x56x56xi1>
    %126 = vector.broadcast %cst_46 : f32 to vector<2x56x56xf32>
    %127 = arith.select %125, %123, %126 : vector<2x56x56xi1>, vector<2x56x56xf32>
    %cst_47 = arith.constant dense<0.000000e+00> : vector<2x56xf32>
    %128 = vector.multi_reduction <add>, %127, %cst_47 [2] : vector<2x56x56xf32> to vector<2x56xf32>
    %129 = vector.shape_cast %128 : vector<2x56xf32> to vector<2x56x1xf32>
    %130 = tpu.reciprocal %129 {approx = true} : vector<2x56x1xf32> -> vector<2x56x1xf32>
    %131 = vector.broadcast %130 : vector<2x56x1xf32> to vector<2x56x56xf32>
    %132 = arith.mulf %127, %131 : vector<2x56x56xf32>
    %133 = arith.truncf %132 : vector<2x56x56xf32> to vector<2x56x56xbf16>
    "tpu.trace_start"() <{level = 10 : i32, message = "bqn,bnv->bqv"}> : () -> ()
    %cst_48 = arith.constant dense<0.000000e+00> : vector<2x56x16xf32>
    %134 = tpu.matmul %133, %112, %cst_48 {dimension_numbers = #tpu.dot_dimension_numbers<[2], [1], [1], [2], [0, 0, 0, 1, 1, 2], [0], [0]>} : vector<2x56x56xbf16>, vector<2x56x16xbf16>, vector<2x56x16xf32> -> vector<2x56x16xf32>
    "tpu.trace_stop"() : () -> ()
    %135 = vector.extract_strided_slice %27 {offsets = [0, 0, 64], sizes = [2, 56, 16], strides = [1, 1, 1]} : vector<2x56x128xbf16> to vector<2x56x16xbf16>
    %136 = vector.extract_strided_slice %29 {offsets = [0, 0, 64], sizes = [2, 56, 16], strides = [1, 1, 1]} : vector<2x56x128xbf16> to vector<2x56x16xbf16>
    %137 = vector.extract_strided_slice %31 {offsets = [0, 0, 64], sizes = [2, 56, 16], strides = [1, 1, 1]} : vector<2x56x128xbf16> to vector<2x56x16xbf16>
    "tpu.trace_start"() <{level = 10 : i32, message = "bqk,bnk->bqn"}> : () -> ()
    %cst_49 = arith.constant dense<0.000000e+00> : vector<2x56x56xf32>
    %138 = tpu.matmul %135, %136, %cst_49 {dimension_numbers = #tpu.dot_dimension_numbers<[2], [2], [1], [1], [0, 0, 0, 1, 1, 1], [0], [0]>} : vector<2x56x16xbf16>, vector<2x56x16xbf16>, vector<2x56x56xf32> -> vector<2x56x56xf32>
    "tpu.trace_stop"() : () -> ()
    %c4 = arith.constant 4 : index
    %c0_50 = arith.constant 0 : index
    %c0_51 = arith.constant 0 : index
    %139 = vector.load %arg4[%c4, %c0_50, %c0_51] : memref<8x56x56xf32, #tpu.memory_space<vmem>>, vector<1x56x56xf32>
    %140 = vector.shape_cast %139 : vector<1x56x56xf32> to vector<56x56xf32>
    %141 = vector.shape_cast %140 : vector<56x56xf32> to vector<1x56x56xf32>
    %142 = vector.broadcast %141 : vector<1x56x56xf32> to vector<2x56x56xf32>
    %143 = arith.mulf %138, %142 : vector<2x56x56xf32>
    %cst_52 = arith.constant dense<0xFF800000> : vector<2x56xf32>
    %144 = vector.multi_reduction <maximumf>, %143, %cst_52 [2] : vector<2x56x56xf32> to vector<2x56xf32>
    %145 = vector.shape_cast %144 : vector<2x56xf32> to vector<2x56x1xf32>
    %146 = vector.broadcast %145 : vector<2x56x1xf32> to vector<2x56x56xf32>
    %147 = arith.subf %143, %146 : vector<2x56x56xf32>
    %148 = math.exp %147 : vector<2x56x56xf32>
    %cst_53 = arith.constant 0.000000e+00 : f32
    %149 = vector.shape_cast %34 : vector<1x1x56xi1> to vector<1x1x56xi1>
    %150 = vector.broadcast %149 : vector<1x1x56xi1> to vector<2x56x56xi1>
    %151 = vector.broadcast %cst_53 : f32 to vector<2x56x56xf32>
    %152 = arith.select %150, %148, %151 : vector<2x56x56xi1>, vector<2x56x56xf32>
    %cst_54 = arith.constant dense<0.000000e+00> : vector<2x56xf32>
    %153 = vector.multi_reduction <add>, %152, %cst_54 [2] : vector<2x56x56xf32> to vector<2x56xf32>
    %154 = vector.shape_cast %153 : vector<2x56xf32> to vector<2x56x1xf32>
    %155 = tpu.reciprocal %154 {approx = true} : vector<2x56x1xf32> -> vector<2x56x1xf32>
    %156 = vector.broadcast %155 : vector<2x56x1xf32> to vector<2x56x56xf32>
    %157 = arith.mulf %152, %156 : vector<2x56x56xf32>
    %158 = arith.truncf %157 : vector<2x56x56xf32> to vector<2x56x56xbf16>
    "tpu.trace_start"() <{level = 10 : i32, message = "bqn,bnv->bqv"}> : () -> ()
    %cst_55 = arith.constant dense<0.000000e+00> : vector<2x56x16xf32>
    %159 = tpu.matmul %158, %137, %cst_55 {dimension_numbers = #tpu.dot_dimension_numbers<[2], [1], [1], [2], [0, 0, 0, 1, 1, 2], [0], [0]>} : vector<2x56x56xbf16>, vector<2x56x16xbf16>, vector<2x56x16xf32> -> vector<2x56x16xf32>
    "tpu.trace_stop"() : () -> ()
    %160 = vector.extract_strided_slice %27 {offsets = [0, 0, 80], sizes = [2, 56, 16], strides = [1, 1, 1]} : vector<2x56x128xbf16> to vector<2x56x16xbf16>
    %161 = vector.extract_strided_slice %29 {offsets = [0, 0, 80], sizes = [2, 56, 16], strides = [1, 1, 1]} : vector<2x56x128xbf16> to vector<2x56x16xbf16>
    %162 = vector.extract_strided_slice %31 {offsets = [0, 0, 80], sizes = [2, 56, 16], strides = [1, 1, 1]} : vector<2x56x128xbf16> to vector<2x56x16xbf16>
    "tpu.trace_start"() <{level = 10 : i32, message = "bqk,bnk->bqn"}> : () -> ()
    %cst_56 = arith.constant dense<0.000000e+00> : vector<2x56x56xf32>
    %163 = tpu.matmul %160, %161, %cst_56 {dimension_numbers = #tpu.dot_dimension_numbers<[2], [2], [1], [1], [0, 0, 0, 1, 1, 1], [0], [0]>} : vector<2x56x16xbf16>, vector<2x56x16xbf16>, vector<2x56x56xf32> -> vector<2x56x56xf32>
    "tpu.trace_stop"() : () -> ()
    %c5 = arith.constant 5 : index
    %c0_57 = arith.constant 0 : index
    %c0_58 = arith.constant 0 : index
    %164 = vector.load %arg4[%c5, %c0_57, %c0_58] : memref<8x56x56xf32, #tpu.memory_space<vmem>>, vector<1x56x56xf32>
    %165 = vector.shape_cast %164 : vector<1x56x56xf32> to vector<56x56xf32>
    %166 = vector.shape_cast %165 : vector<56x56xf32> to vector<1x56x56xf32>
    %167 = vector.broadcast %166 : vector<1x56x56xf32> to vector<2x56x56xf32>
    %168 = arith.mulf %163, %167 : vector<2x56x56xf32>
    %cst_59 = arith.constant dense<0xFF800000> : vector<2x56xf32>
    %169 = vector.multi_reduction <maximumf>, %168, %cst_59 [2] : vector<2x56x56xf32> to vector<2x56xf32>
    %170 = vector.shape_cast %169 : vector<2x56xf32> to vector<2x56x1xf32>
    %171 = vector.broadcast %170 : vector<2x56x1xf32> to vector<2x56x56xf32>
    %172 = arith.subf %168, %171 : vector<2x56x56xf32>
    %173 = math.exp %172 : vector<2x56x56xf32>
    %cst_60 = arith.constant 0.000000e+00 : f32
    %174 = vector.shape_cast %34 : vector<1x1x56xi1> to vector<1x1x56xi1>
    %175 = vector.broadcast %174 : vector<1x1x56xi1> to vector<2x56x56xi1>
    %176 = vector.broadcast %cst_60 : f32 to vector<2x56x56xf32>
    %177 = arith.select %175, %173, %176 : vector<2x56x56xi1>, vector<2x56x56xf32>
    %cst_61 = arith.constant dense<0.000000e+00> : vector<2x56xf32>
    %178 = vector.multi_reduction <add>, %177, %cst_61 [2] : vector<2x56x56xf32> to vector<2x56xf32>
    %179 = vector.shape_cast %178 : vector<2x56xf32> to vector<2x56x1xf32>
    %180 = tpu.reciprocal %179 {approx = true} : vector<2x56x1xf32> -> vector<2x56x1xf32>
    %181 = vector.broadcast %180 : vector<2x56x1xf32> to vector<2x56x56xf32>
    %182 = arith.mulf %177, %181 : vector<2x56x56xf32>
    %183 = arith.truncf %182 : vector<2x56x56xf32> to vector<2x56x56xbf16>
    "tpu.trace_start"() <{level = 10 : i32, message = "bqn,bnv->bqv"}> : () -> ()
    %cst_62 = arith.constant dense<0.000000e+00> : vector<2x56x16xf32>
    %184 = tpu.matmul %183, %162, %cst_62 {dimension_numbers = #tpu.dot_dimension_numbers<[2], [1], [1], [2], [0, 0, 0, 1, 1, 2], [0], [0]>} : vector<2x56x56xbf16>, vector<2x56x16xbf16>, vector<2x56x16xf32> -> vector<2x56x16xf32>
    "tpu.trace_stop"() : () -> ()
    %185 = vector.extract_strided_slice %27 {offsets = [0, 0, 96], sizes = [2, 56, 16], strides = [1, 1, 1]} : vector<2x56x128xbf16> to vector<2x56x16xbf16>
    %186 = vector.extract_strided_slice %29 {offsets = [0, 0, 96], sizes = [2, 56, 16], strides = [1, 1, 1]} : vector<2x56x128xbf16> to vector<2x56x16xbf16>
    %187 = vector.extract_strided_slice %31 {offsets = [0, 0, 96], sizes = [2, 56, 16], strides = [1, 1, 1]} : vector<2x56x128xbf16> to vector<2x56x16xbf16>
    "tpu.trace_start"() <{level = 10 : i32, message = "bqk,bnk->bqn"}> : () -> ()
    %cst_63 = arith.constant dense<0.000000e+00> : vector<2x56x56xf32>
    %188 = tpu.matmul %185, %186, %cst_63 {dimension_numbers = #tpu.dot_dimension_numbers<[2], [2], [1], [1], [0, 0, 0, 1, 1, 1], [0], [0]>} : vector<2x56x16xbf16>, vector<2x56x16xbf16>, vector<2x56x56xf32> -> vector<2x56x56xf32>
    "tpu.trace_stop"() : () -> ()
    %c6 = arith.constant 6 : index
    %c0_64 = arith.constant 0 : index
    %c0_65 = arith.constant 0 : index
    %189 = vector.load %arg4[%c6, %c0_64, %c0_65] : memref<8x56x56xf32, #tpu.memory_space<vmem>>, vector<1x56x56xf32>
    %190 = vector.shape_cast %189 : vector<1x56x56xf32> to vector<56x56xf32>
    %191 = vector.shape_cast %190 : vector<56x56xf32> to vector<1x56x56xf32>
    %192 = vector.broadcast %191 : vector<1x56x56xf32> to vector<2x56x56xf32>
    %193 = arith.mulf %188, %192 : vector<2x56x56xf32>
    %cst_66 = arith.constant dense<0xFF800000> : vector<2x56xf32>
    %194 = vector.multi_reduction <maximumf>, %193, %cst_66 [2] : vector<2x56x56xf32> to vector<2x56xf32>
    %195 = vector.shape_cast %194 : vector<2x56xf32> to vector<2x56x1xf32>
    %196 = vector.broadcast %195 : vector<2x56x1xf32> to vector<2x56x56xf32>
    %197 = arith.subf %193, %196 : vector<2x56x56xf32>
    %198 = math.exp %197 : vector<2x56x56xf32>
    %cst_67 = arith.constant 0.000000e+00 : f32
    %199 = vector.shape_cast %34 : vector<1x1x56xi1> to vector<1x1x56xi1>
    %200 = vector.broadcast %199 : vector<1x1x56xi1> to vector<2x56x56xi1>
    %201 = vector.broadcast %cst_67 : f32 to vector<2x56x56xf32>
    %202 = arith.select %200, %198, %201 : vector<2x56x56xi1>, vector<2x56x56xf32>
    %cst_68 = arith.constant dense<0.000000e+00> : vector<2x56xf32>
    %203 = vector.multi_reduction <add>, %202, %cst_68 [2] : vector<2x56x56xf32> to vector<2x56xf32>
    %204 = vector.shape_cast %203 : vector<2x56xf32> to vector<2x56x1xf32>
    %205 = tpu.reciprocal %204 {approx = true} : vector<2x56x1xf32> -> vector<2x56x1xf32>
    %206 = vector.broadcast %205 : vector<2x56x1xf32> to vector<2x56x56xf32>
    %207 = arith.mulf %202, %206 : vector<2x56x56xf32>
    %208 = arith.truncf %207 : vector<2x56x56xf32> to vector<2x56x56xbf16>
    "tpu.trace_start"() <{level = 10 : i32, message = "bqn,bnv->bqv"}> : () -> ()
    %cst_69 = arith.constant dense<0.000000e+00> : vector<2x56x16xf32>
    %209 = tpu.matmul %208, %187, %cst_69 {dimension_numbers = #tpu.dot_dimension_numbers<[2], [1], [1], [2], [0, 0, 0, 1, 1, 2], [0], [0]>} : vector<2x56x56xbf16>, vector<2x56x16xbf16>, vector<2x56x16xf32> -> vector<2x56x16xf32>
    "tpu.trace_stop"() : () -> ()
    %210 = vector.extract_strided_slice %27 {offsets = [0, 0, 112], sizes = [2, 56, 16], strides = [1, 1, 1]} : vector<2x56x128xbf16> to vector<2x56x16xbf16>
    %211 = vector.extract_strided_slice %29 {offsets = [0, 0, 112], sizes = [2, 56, 16], strides = [1, 1, 1]} : vector<2x56x128xbf16> to vector<2x56x16xbf16>
    %212 = vector.extract_strided_slice %31 {offsets = [0, 0, 112], sizes = [2, 56, 16], strides = [1, 1, 1]} : vector<2x56x128xbf16> to vector<2x56x16xbf16>
    "tpu.trace_start"() <{level = 10 : i32, message = "bqk,bnk->bqn"}> : () -> ()
    %cst_70 = arith.constant dense<0.000000e+00> : vector<2x56x56xf32>
    %213 = tpu.matmul %210, %211, %cst_70 {dimension_numbers = #tpu.dot_dimension_numbers<[2], [2], [1], [1], [0, 0, 0, 1, 1, 1], [0], [0]>} : vector<2x56x16xbf16>, vector<2x56x16xbf16>, vector<2x56x56xf32> -> vector<2x56x56xf32>
    "tpu.trace_stop"() : () -> ()
    %c7 = arith.constant 7 : index
    %c0_71 = arith.constant 0 : index
    %c0_72 = arith.constant 0 : index
    %214 = vector.load %arg4[%c7, %c0_71, %c0_72] : memref<8x56x56xf32, #tpu.memory_space<vmem>>, vector<1x56x56xf32>
    %215 = vector.shape_cast %214 : vector<1x56x56xf32> to vector<56x56xf32>
    %216 = vector.shape_cast %215 : vector<56x56xf32> to vector<1x56x56xf32>
    %217 = vector.broadcast %216 : vector<1x56x56xf32> to vector<2x56x56xf32>
    %218 = arith.mulf %213, %217 : vector<2x56x56xf32>
    %cst_73 = arith.constant dense<0xFF800000> : vector<2x56xf32>
    %219 = vector.multi_reduction <maximumf>, %218, %cst_73 [2] : vector<2x56x56xf32> to vector<2x56xf32>
    %220 = vector.shape_cast %219 : vector<2x56xf32> to vector<2x56x1xf32>
    %221 = vector.broadcast %220 : vector<2x56x1xf32> to vector<2x56x56xf32>
    %222 = arith.subf %218, %221 : vector<2x56x56xf32>
    %223 = math.exp %222 : vector<2x56x56xf32>
    %cst_74 = arith.constant 0.000000e+00 : f32
    %224 = vector.shape_cast %34 : vector<1x1x56xi1> to vector<1x1x56xi1>
    %225 = vector.broadcast %224 : vector<1x1x56xi1> to vector<2x56x56xi1>
    %226 = vector.broadcast %cst_74 : f32 to vector<2x56x56xf32>
    %227 = arith.select %225, %223, %226 : vector<2x56x56xi1>, vector<2x56x56xf32>
    %cst_75 = arith.constant dense<0.000000e+00> : vector<2x56xf32>
    %228 = vector.multi_reduction <add>, %227, %cst_75 [2] : vector<2x56x56xf32> to vector<2x56xf32>
    %229 = vector.shape_cast %228 : vector<2x56xf32> to vector<2x56x1xf32>
    %230 = tpu.reciprocal %229 {approx = true} : vector<2x56x1xf32> -> vector<2x56x1xf32>
    %231 = vector.broadcast %230 : vector<2x56x1xf32> to vector<2x56x56xf32>
    %232 = arith.mulf %227, %231 : vector<2x56x56xf32>
    %233 = arith.truncf %232 : vector<2x56x56xf32> to vector<2x56x56xbf16>
    "tpu.trace_start"() <{level = 10 : i32, message = "bqn,bnv->bqv"}> : () -> ()
    %cst_76 = arith.constant dense<0.000000e+00> : vector<2x56x16xf32>
    %234 = tpu.matmul %233, %212, %cst_76 {dimension_numbers = #tpu.dot_dimension_numbers<[2], [1], [1], [2], [0, 0, 0, 1, 1, 2], [0], [0]>} : vector<2x56x56xbf16>, vector<2x56x16xbf16>, vector<2x56x16xf32> -> vector<2x56x16xf32>
    "tpu.trace_stop"() : () -> ()
    %235 = tpu.concatenate %59, %84, %109, %134, %159, %184, %209, %234 in 2 : vector<2x56x16xf32>, vector<2x56x16xf32>, vector<2x56x16xf32>, vector<2x56x16xf32>, vector<2x56x16xf32>, vector<2x56x16xf32>, vector<2x56x16xf32>, vector<2x56x16xf32> -> vector<2x56x128xf32>
    %236 = vector.shape_cast %235 : vector<2x56x128xf32> to vector<112x128xf32>
    %237 = arith.truncf %236 : vector<112x128xf32> to vector<112x128xbf16>
    %c0_77 = arith.constant 0 : index
    %c0_78 = arith.constant 0 : index
    %238 = vector.load %arg7[%c0_77, %c0_78] : memref<128x64xbf16, #tpu.memory_space<vmem>>, vector<128x64xbf16>
    %cst_79 = arith.constant dense<0.000000e+00> : vector<112x64xf32>
    %239 = tpu.matmul %237, %238, %cst_79 {dimension_numbers = #tpu.dot_dimension_numbers<[1], [0], [0], [1], [0, 0, 1, 1], [], []>} : vector<112x128xbf16>, vector<128x64xbf16>, vector<112x64xf32> -> vector<112x64xf32>
    %240 = vector.extract_strided_slice %1 {offsets = [0, 0], sizes = [1, 64], strides = [1, 1]} : vector<3x64xf32> to vector<1x64xf32>
    %241 = vector.broadcast %240 : vector<1x64xf32> to vector<112x64xf32>
    %242 = arith.addf %239, %241 : vector<112x64xf32>
    %243 = arith.addf %2, %242 : vector<112x64xf32>
    %cst_80 = arith.constant dense<0.000000e+00> : vector<112xf32>
    %244 = vector.multi_reduction <add>, %243, %cst_80 [1] : vector<112x64xf32> to vector<112xf32>
    %245 = vector.shape_cast %244 : vector<112xf32> to vector<112x1xf32>
    %cst_81 = arith.constant 6.400000e+01 : f32
    %246 = vector.broadcast %cst_81 : f32 to vector<112x1xf32>
    %247 = arith.divf %245, %246 : vector<112x1xf32>
    %248 = vector.broadcast %247 : vector<112x1xf32> to vector<112x64xf32>
    %249 = arith.subf %243, %248 : vector<112x64xf32>
    %250 = arith.mulf %249, %249 : vector<112x64xf32>
    %cst_82 = arith.constant dense<0.000000e+00> : vector<112xf32>
    %251 = vector.multi_reduction <add>, %250, %cst_82 [1] : vector<112x64xf32> to vector<112xf32>
    %252 = vector.shape_cast %251 : vector<112xf32> to vector<112x1xf32>
    %cst_83 = arith.constant 6.400000e+01 : f32
    %253 = vector.broadcast %cst_83 : f32 to vector<112x1xf32>
    %254 = arith.divf %252, %253 : vector<112x1xf32>
    %cst_84 = arith.constant 9.99999974E-6 : f32
    %255 = vector.broadcast %cst_84 : f32 to vector<112x1xf32>
    %256 = arith.addf %254, %255 : vector<112x1xf32>
    %257 = math.rsqrt %256 : vector<112x1xf32>
    %258 = vector.broadcast %257 : vector<112x1xf32> to vector<112x64xf32>
    %259 = arith.mulf %249, %258 : vector<112x64xf32>
    %260 = vector.extract_strided_slice %1 {offsets = [1, 0], sizes = [1, 64], strides = [1, 1]} : vector<3x64xf32> to vector<1x64xf32>
    %261 = vector.broadcast %260 : vector<1x64xf32> to vector<112x64xf32>
    %262 = arith.mulf %259, %261 : vector<112x64xf32>
    %263 = vector.extract_strided_slice %1 {offsets = [2, 0], sizes = [1, 64], strides = [1, 1]} : vector<3x64xf32> to vector<1x64xf32>
    %264 = vector.broadcast %263 : vector<1x64xf32> to vector<112x64xf32>
    %265 = arith.addf %262, %264 : vector<112x64xf32>
    %c0_85 = arith.constant 0 : index
    %c0_86 = arith.constant 0 : index
    %266 = vector.load %arg9[%c0_85, %c0_86] : memref<112x64xf32, #tpu.memory_space<vmem>>, vector<112x64xf32>
    tpu.vector_store %arg9[%c0_85, %c0_86], %265 {strides = array<i32>} : memref<112x64xf32, #tpu.memory_space<vmem>>, vector<112x64xf32>,
    return
  }
  func.func @transform_0(%arg0: i32) -> (i32, i32) {
    %c0_i32 = arith.constant 0 : i32
    %c0_i32_0 = arith.constant 0 : i32
    return %arg0, %c0_i32 : i32, i32
  }
  func.func @transform_1(%arg0: i32) -> (i32, i32) {
    %c0_i32 = arith.constant 0 : i32
    %c0_i32_0 = arith.constant 0 : i32
    return %arg0, %c0_i32 : i32, i32
  }
  func.func @transform_2(%arg0: i32) -> (i32, i32) {
    %c0_i32 = arith.constant 0 : i32
    %c0_i32_0 = arith.constant 0 : i32
    return %arg0, %c0_i32 : i32, i32
  }
  func.func @transform_3(%arg0: i32) -> (i32, i32, i32) {
    %c0_i32 = arith.constant 0 : i32
    %c0_i32_0 = arith.constant 0 : i32
    %c0_i32_1 = arith.constant 0 : i32
    %c0_i32_2 = arith.constant 0 : i32
    return %c0_i32, %c0_i32_0, %c0_i32_1 : i32, i32, i32
  }
  func.func @transform_4(%arg0: i32) -> (i32, i32, i32) {
    %c0_i32 = arith.constant 0 : i32
    %c0_i32_0 = arith.constant 0 : i32
    %c0_i32_1 = arith.constant 0 : i32
    %c0_i32_2 = arith.constant 0 : i32
    return %c0_i32, %c0_i32_0, %c0_i32_1 : i32, i32, i32
  }
  func.func @transform_5(%arg0: i32) -> (i32, i32) {
    %c0_i32 = arith.constant 0 : i32
    %c0_i32_0 = arith.constant 0 : i32
    %c0_i32_1 = arith.constant 0 : i32
    return %c0_i32, %c0_i32_0 : i32, i32
  }
  func.func @transform_6(%arg0: i32) -> (i32, i32) {
    %c0_i32 = arith.constant 0 : i32
    %c0_i32_0 = arith.constant 0 : i32
    %c0_i32_1 = arith.constant 0 : i32
    return %c0_i32, %c0_i32_0 : i32, i32
  }
  func.func @transform_7(%arg0: i32) -> (i32, i32) {
    %c0_i32 = arith.constant 0 : i32
    %c0_i32_0 = arith.constant 0 : i32
    %c0_i32_1 = arith.constant 0 : i32
    return %c0_i32, %c0_i32_0 : i32, i32
  }
  func.func @transform_8(%arg0: i32) -> (i32, i32) {
    %c0_i32 = arith.constant 0 : i32
    %c0_i32_0 = arith.constant 0 : i32
    return %arg0, %c0_i32 : i32, i32
  }
}

</mosaic_0001>

<llo_original>
// kernel: multi_head_dilate_attention.1
$region0: #{multi_head_dilate_attention.1}
  #allocation0 [shape = 'u32[]', space=smem, size = 0x4, offset = 0x4, fixed_abs, tag = 'smem constant byte address 0x4 - core index']
  #allocation1 [shape = 'u32[144,128]{1,0:T(1,128)}', space=vmem, size = 0x12000, scoped, tag = 'internal scratch']
  %s0 = inlined_call_operand.vmem [shape: f32[336,64], index: 0, kind: input, shape index: {}]
  %s1 = inlined_call_operand.vmem [shape: f32[336,64], index: 1, kind: input, shape index: {}]
  %s2 = inlined_call_operand.vmem [shape: f32[336,64], index: 2, kind: input, shape index: {}]
  %s3 = inlined_call_operand.vmem [shape: f32[8,56,56], index: 3, kind: input, shape index: {}]
  %s4 = inlined_call_operand.vmem [shape: bf16[3,64,128], index: 4, kind: input, shape index: {}]
  %s5 = inlined_call_operand.vmem [shape: f32[3,128], index: 5, kind: input, shape index: {}]
  %s6 = inlined_call_operand.vmem [shape: bf16[128,64], index: 6, kind: input, shape index: {}]
  %s7 = inlined_call_operand.vmem [shape: f32[3,64], index: 7, kind: input, shape index: {}]
  %s8 = inlined_call_operand.vmem [shape: f32[336,64], index: 8, kind: output, shape index: {}]
  %s9 = sld [smem:[#allocation0]]
  $region65: #{multi_head_dilate_attention.1} parent=0
    _
  %s11 = ssub.s32 1, %s9
  %s12 = scalar_select 0, %s11, %s9
  loop: start=0, step=1, limit=5
  $region2: #{multi_head_dilate_attention.1} parent=0 // loop_pre_header
    _
  $region3: #{multi_head_dilate_attention.1} parent=0 // loop_header
    %s14 = sphi 0, %s18
    %p15 = scmp.ge.s32.totalorder %s14, 5
    %s24 = sphi 0, %s26
    %s27 = sphi 0, %s24
    %s28 = sphi 0, %s27
    %s44 = sphi 0, %s28
    %s50 = sphi 0, %s52
    %s53 = sphi 0, %s50
    %s54 = sphi 0, %s53
    %s70 = sphi 0, %s54
    %s76 = sphi 0, %s78
    %s79 = sphi 0, %s76
    %s80 = sphi 0, %s79
    %s96 = sphi 0, %s80
    %s100 = sphi 0, %s100
    %s102 = sphi 0, %s100
    %s103 = sphi 0, %s102
    %s117 = sphi 0, %s103
    %s121 = sphi 0, %s121
    %s123 = sphi 0, %s121
    %s124 = sphi 0, %s123
    %s138 = sphi 0, %s124
    %s142 = sphi 0, %s142
    %s144 = sphi 0, %s142
    %s145 = sphi 0, %s144
    %s159 = sphi 0, %s145
    %s163 = sphi 0, %s163
    %s165 = sphi 0, %s163
    %s166 = sphi 0, %s165
    %s180 = sphi 0, %s166
    %s184 = sphi 0, %s184
    %s186 = sphi 0, %s184
    %s187 = sphi 0, %s186
    %s201 = sphi 0, %s187
    %s207 = sphi 0, %s209
    %s210 = sphi 0, %s207
    %s211 = sphi 0, %s210
    %s227 = sphi 0, %s211
  $region4: #{multi_head_dilate_attention.1} parent=0 // loop_header_branch
    %17 = sbr.rel (%p15) target = $region8
  $region5: #{multi_head_dilate_attention.1} parent=0 // loop_body
    %s19 = ssub.s32 %s14, 1
    %s20 = ssub.s32 %s14, 2
    %s21 = sadd.s32 %s14, 1
    %s22 = ssub.s32 %s14, %s21
    %p23 = scmp.eq.s32.totalorder %s22, 0
    %s25 = sadd.s32 %s24, 1
    %s26 = scalar_select %p23, %s24, %s25
    %p29 = pneg %p23
    %p30 = scmp.eq.s32.totalorder %s14, 2
    %p31 = por %p29, %p30
    %p32 = scmp.ne.s32.totalorder %s24, %s27
    %p33 = scmp.eq.s32.totalorder %s14, 0
    %p34 = por %p32, %p33
    %p35 = scmp.ne.s32.totalorder %s24, %s27
    %p36 = scmp.eq.s32.totalorder %s19, 2
    %p37 = por %p35, %p36
    %p38 = scmp.ne.s32.totalorder %s27, %s28
    %p39 = scmp.eq.s32.totalorder %s19, 0
    %p40 = por %p38, %p39
    %p41 = scmp.ne.s32.totalorder %s27, %s28
    %p42 = scmp.eq.s32.totalorder %s20, 2
    %p43 = por %p41, %p42
    %p45 = scmp.ne.s32.totalorder %s28, %s44
    %p46 = scmp.eq.s32.totalorder %s20, 0
    %p47 = por %p45, %p46
    %s48 = ssub.s32 %s14, %s21
    %p49 = scmp.eq.s32.totalorder %s48, 0
    %s51 = sadd.s32 %s50, 1
    %s52 = scalar_select %p49, %s50, %s51
    %p55 = pneg %p49
    %p56 = scmp.eq.s32.totalorder %s14, 2
    %p57 = por %p55, %p56
    %p58 = scmp.ne.s32.totalorder %s50, %s53
    %p59 = scmp.eq.s32.totalorder %s14, 0
    %p60 = por %p58, %p59
    %p61 = scmp.ne.s32.totalorder %s50, %s53
    %p62 = scmp.eq.s32.totalorder %s19, 2
    %p63 = por %p61, %p62
    %p64 = scmp.ne.s32.totalorder %s53, %s54
    %p65 = scmp.eq.s32.totalorder %s19, 0
    %p66 = por %p64, %p65
    %p67 = scmp.ne.s32.totalorder %s53, %s54
    %p68 = scmp.eq.s32.totalorder %s20, 2
    %p69 = por %p67, %p68
    %p71 = scmp.ne.s32.totalorder %s54, %s70
    %p72 = scmp.eq.s32.totalorder %s20, 0
    %p73 = por %p71, %p72
    %s74 = ssub.s32 %s14, %s21
    %p75 = scmp.eq.s32.totalorder %s74, 0
    %s77 = sadd.s32 %s76, 1
    %s78 = scalar_select %p75, %s76, %s77
    %p81 = pneg %p75
    %p82 = scmp.eq.s32.totalorder %s14, 2
    %p83 = por %p81, %p82
    %p84 = scmp.ne.s32.totalorder %s76, %s79
    %p85 = scmp.eq.s32.totalorder %s14, 0
    %p86 = por %p84, %p85
    %p87 = scmp.ne.s32.totalorder %s76, %s79
    %p88 = scmp.eq.s32.totalorder %s19, 2
    %p89 = por %p87, %p88
    %p90 = scmp.ne.s32.totalorder %s79, %s80
    %p91 = scmp.eq.s32.totalorder %s19, 0
    %p92 = por %p90, %p91
    %p93 = scmp.ne.s32.totalorder %s79, %s80
    %p94 = scmp.eq.s32.totalorder %s20, 2
    %p95 = por %p93, %p94
    %p97 = scmp.ne.s32.totalorder %s80, %s96
    %p98 = scmp.eq.s32.totalorder %s20, 0
    %p99 = por %p97, %p98
    %s101 = sadd.s32 %s100, 1
    %p104 = scmp.eq.s32.totalorder %s14, 2
    %p105 = scmp.ne.s32.totalorder %s100, %s102
    %p106 = scmp.eq.s32.totalorder %s14, 0
    %p107 = por %p105, %p106
    %p108 = scmp.ne.s32.totalorder %s100, %s102
    %p109 = scmp.eq.s32.totalorder %s19, 2
    %p110 = por %p108, %p109
    %p111 = scmp.ne.s32.totalorder %s102, %s103
    %p112 = scmp.eq.s32.totalorder %s19, 0
    %p113 = por %p111, %p112
    %p114 = scmp.ne.s32.totalorder %s102, %s103
    %p115 = scmp.eq.s32.totalorder %s20, 2
    %p116 = por %p114, %p115
    %p118 = scmp.ne.s32.totalorder %s103, %s117
    %p119 = scmp.eq.s32.totalorder %s20, 0
    %p120 = por %p118, %p119
    %s122 = sadd.s32 %s121, 1
    %p125 = scmp.eq.s32.totalorder %s14, 2
    %p126 = scmp.ne.s32.totalorder %s121, %s123
    %p127 = scmp.eq.s32.totalorder %s14, 0
    %p128 = por %p126, %p127
    %p129 = scmp.ne.s32.totalorder %s121, %s123
    %p130 = scmp.eq.s32.totalorder %s19, 2
    %p131 = por %p129, %p130
    %p132 = scmp.ne.s32.totalorder %s123, %s124
    %p133 = scmp.eq.s32.totalorder %s19, 0
    %p134 = por %p132, %p133
    %p135 = scmp.ne.s32.totalorder %s123, %s124
    %p136 = scmp.eq.s32.totalorder %s20, 2
    %p137 = por %p135, %p136
    %p139 = scmp.ne.s32.totalorder %s124, %s138
    %p140 = scmp.eq.s32.totalorder %s20, 0
    %p141 = por %p139, %p140
    %s143 = sadd.s32 %s142, 1
    %p146 = scmp.eq.s32.totalorder %s14, 2
    %p147 = scmp.ne.s32.totalorder %s142, %s144
    %p148 = scmp.eq.s32.totalorder %s14, 0
    %p149 = por %p147, %p148
    %p150 = scmp.ne.s32.totalorder %s142, %s144
    %p151 = scmp.eq.s32.totalorder %s19, 2
    %p152 = por %p150, %p151
    %p153 = scmp.ne.s32.totalorder %s144, %s145
    %p154 = scmp.eq.s32.totalorder %s19, 0
    %p155 = por %p153, %p154
    %p156 = scmp.ne.s32.totalorder %s144, %s145
    %p157 = scmp.eq.s32.totalorder %s20, 2
    %p158 = por %p156, %p157
    %p160 = scmp.ne.s32.totalorder %s145, %s159
    %p161 = scmp.eq.s32.totalorder %s20, 0
    %p162 = por %p160, %p161
    %s164 = sadd.s32 %s163, 1
    %p167 = scmp.eq.s32.totalorder %s14, 2
    %p168 = scmp.ne.s32.totalorder %s163, %s165
    %p169 = scmp.eq.s32.totalorder %s14, 0
    %p170 = por %p168, %p169
    %p171 = scmp.ne.s32.totalorder %s163, %s165
    %p172 = scmp.eq.s32.totalorder %s19, 2
    %p173 = por %p171, %p172
    %p174 = scmp.ne.s32.totalorder %s165, %s166
    %p175 = scmp.eq.s32.totalorder %s19, 0
    %p176 = por %p174, %p175
    %p177 = scmp.ne.s32.totalorder %s165, %s166
    %p178 = scmp.eq.s32.totalorder %s20, 2
    %p179 = por %p177, %p178
    %p181 = scmp.ne.s32.totalorder %s166, %s180
    %p182 = scmp.eq.s32.totalorder %s20, 0
    %p183 = por %p181, %p182
    %s185 = sadd.s32 %s184, 1
    %p188 = scmp.eq.s32.totalorder %s14, 2
    %p189 = scmp.ne.s32.totalorder %s184, %s186
    %p190 = scmp.eq.s32.totalorder %s14, 0
    %p191 = por %p189, %p190
    %p192 = scmp.ne.s32.totalorder %s184, %s186
    %p193 = scmp.eq.s32.totalorder %s19, 2
    %p194 = por %p192, %p193
    %p195 = scmp.ne.s32.totalorder %s186, %s187
    %p196 = scmp.eq.s32.totalorder %s19, 0
    %p197 = por %p195, %p196
    %p198 = scmp.ne.s32.totalorder %s186, %s187
    %p199 = scmp.eq.s32.totalorder %s20, 2
    %p200 = por %p198, %p199
    %p202 = scmp.ne.s32.totalorder %s187, %s201
    %p203 = scmp.eq.s32.totalorder %s20, 0
    %p204 = por %p202, %p203
    %s205 = ssub.s32 %s14, %s21
    %p206 = scmp.eq.s32.totalorder %s205, 0
    %s208 = sadd.s32 %s207, 1
    %s209 = scalar_select %p206, %s207, %s208
    %p212 = pneg %p206
    %p213 = scmp.eq.s32.totalorder %s14, 2
    %p214 = por %p212, %p213
    %p215 = scmp.ne.s32.totalorder %s207, %s210
    %p216 = scmp.eq.s32.totalorder %s14, 0
    %p217 = por %p215, %p216
    %p218 = scmp.ne.s32.totalorder %s207, %s210
    %p219 = scmp.eq.s32.totalorder %s19, 2
    %p220 = por %p218, %p219
    %p221 = scmp.ne.s32.totalorder %s210, %s211
    %p222 = scmp.eq.s32.totalorder %s19, 0
    %p223 = por %p221, %p222
    %p224 = scmp.ne.s32.totalorder %s210, %s211
    %p225 = scmp.eq.s32.totalorder %s20, 2
    %p226 = por %p224, %p225
    %p228 = scmp.ne.s32.totalorder %s211, %s227
    %p229 = scmp.eq.s32.totalorder %s20, 0
    %p230 = por %p228, %p229
    %p231 = scmp.le.s32.totalorder 1, %s14
    %p232 = scmp.lt.s32.totalorder %s14, 4
    %p233 = pnand %p231, %p232
    %p234 = pneg %p233
    // Predicated region
    $region9: #{multi_head_dilate_attention.1} parent=5 // pred_check
      _
    $region10: #{multi_head_dilate_attention.1} parent=5 // pred_check_branch
      %236 = sbr.rel (%p233) target = $region12
    $region11: #{multi_head_dilate_attention.1} parent=5 // pred_region
      %s237 = ssub.s32 %s14, 1
      // Predicated region
      $region13: #{multi_head_dilate_attention.1} parent=11 // pred_check
        %p238 = pneg %p113
      $region14: #{multi_head_dilate_attention.1} parent=11 // pred_check_branch
        %240 = sbr.rel (%p238) target = $region16
      $region15: #{multi_head_dilate_attention.1} parent=11 // pred_region
        _
      $region16: #{multi_head_dilate_attention.1} parent=11 // pred_fallthru
        _
      // Predicated region
      $region17: #{multi_head_dilate_attention.1} parent=11 // pred_check
        %p241 = pneg %p134
      $region18: #{multi_head_dilate_attention.1} parent=11 // pred_check_branch
        %243 = sbr.rel (%p241) target = $region20
      $region19: #{multi_head_dilate_attention.1} parent=11 // pred_region
        _
      $region20: #{multi_head_dilate_attention.1} parent=11 // pred_fallthru
        _
      // Predicated region
      $region21: #{multi_head_dilate_attention.1} parent=11 // pred_check
        %p244 = pneg %p155
      $region22: #{multi_head_dilate_attention.1} parent=11 // pred_check_branch
        %246 = sbr.rel (%p244) target = $region24
      $region23: #{multi_head_dilate_attention.1} parent=11 // pred_region
        _
      $region24: #{multi_head_dilate_attention.1} parent=11 // pred_fallthru
        _
      // Predicated region
      $region25: #{multi_head_dilate_attention.1} parent=11 // pred_check
        %p247 = pneg %p176
      $region26: #{multi_head_dilate_attention.1} parent=11 // pred_check_branch
        %249 = sbr.rel (%p247) target = $region28
      $region27: #{multi_head_dilate_attention.1} parent=11 // pred_region
        _
      $region28: #{multi_head_dilate_attention.1} parent=11 // pred_fallthru
        _
      // Predicated region
      $region29: #{multi_head_dilate_attention.1} parent=11 // pred_check
        %p250 = pneg %p197
      $region30: #{multi_head_dilate_attention.1} parent=11 // pred_check_branch
        %252 = sbr.rel (%p250) target = $region32
      $region31: #{multi_head_dilate_attention.1} parent=11 // pred_region
        _
      $region32: #{multi_head_dilate_attention.1} parent=11 // pred_fallthru
        _
    $region12: #{multi_head_dilate_attention.1} parent=5 // pred_fallthru
      _
    %p253 = scmp.lt.s32.totalorder %s14, 3
    // Predicated region
    $region33: #{multi_head_dilate_attention.1} parent=5 // pred_check
      %p254 = pneg %p253
    $region34: #{multi_head_dilate_attention.1} parent=5 // pred_check_branch
      %256 = sbr.rel (%p254) target = $region36
    $region35: #{multi_head_dilate_attention.1} parent=5 // pred_region
      // Predicated region
      $region37: #{multi_head_dilate_attention.1} parent=35 // pred_check
        %p257 = pneg %p34
      $region38: #{multi_head_dilate_attention.1} parent=35 // pred_check_branch
        %259 = sbr.rel (%p257) target = $region40
      $region39: #{multi_head_dilate_attention.1} parent=35 // pred_region
        %s260 = smul.u32 14, %s14
        %p261 = scmp.lt.s32.totalorder %s260, 41
        %s262 = scalar_select %p261, %s260, 41
        %s263 = smul.addr %s262, 8
        %s264 = scalar_lea.vmem %s0, %s263
        %s265 = smul.u32 14, %s14
      $region40: #{multi_head_dilate_attention.1} parent=35 // pred_fallthru
        _
      // Predicated region
      $region41: #{multi_head_dilate_attention.1} parent=35 // pred_check
        %p266 = pneg %p60
      $region42: #{multi_head_dilate_attention.1} parent=35 // pred_check_branch
        %268 = sbr.rel (%p266) target = $region44
      $region43: #{multi_head_dilate_attention.1} parent=35 // pred_region
        %s269 = smul.u32 14, %s14
        %p270 = scmp.lt.s32.totalorder %s269, 41
        %s271 = scalar_select %p270, %s269, 41
        %s272 = smul.addr %s271, 8
        %s273 = scalar_lea.vmem %s1, %s272
        %s274 = smul.u32 14, %s14
      $region44: #{multi_head_dilate_attention.1} parent=35 // pred_fallthru
        _
      // Predicated region
      $region45: #{multi_head_dilate_attention.1} parent=35 // pred_check
        %p275 = pneg %p86
      $region46: #{multi_head_dilate_attention.1} parent=35 // pred_check_branch
        %277 = sbr.rel (%p275) target = $region48
      $region47: #{multi_head_dilate_attention.1} parent=35 // pred_region
        %s278 = smul.u32 14, %s14
        %p279 = scmp.lt.s32.totalorder %s278, 41
        %s280 = scalar_select %p279, %s278, 41
        %s281 = smul.addr %s280, 8
        %s282 = scalar_lea.vmem %s2, %s281
        %s283 = smul.u32 14, %s14
      $region48: #{multi_head_dilate_attention.1} parent=35 // pred_fallthru
        _
    $region36: #{multi_head_dilate_attention.1} parent=5 // pred_fallthru
      _
    %p284 = scmp.le.s32.totalorder 1, %s14
    %p285 = scmp.lt.s32.totalorder %s14, 4
    %p286 = pnand %p284, %p285
    %p287 = pneg %p286
    // Predicated region
    $region49: #{multi_head_dilate_attention.1} parent=5 // pred_check
      _
    $region50: #{multi_head_dilate_attention.1} parent=5 // pred_check_branch
      %289 = sbr.rel (%p286) target = $region52
    $region51: #{multi_head_dilate_attention.1} parent=5 // pred_region
      %s290 = ssub.s32 %s14, 1
      %s291 = smul.u32 14, %s19
      %p292 = scmp.lt.s32.totalorder %s291, 41
      %s293 = scalar_select %p292, %s291, 41
      %s294 = smul.addr %s293, 8
      %s295 = scalar_lea.vmem %s0, %s294
      %p296 = pneg %p40
      %p297 = pneg %p37
      %s298 = smul.u32 14, %s19
      %p299 = scmp.lt.s32.totalorder %s298, 41
      %s300 = scalar_select %p299, %s298, 41
      %s301 = smul.addr %s300, 8
      %s302 = scalar_lea.vmem %s1, %s301
      %p303 = pneg %p66
      %p304 = pneg %p63
      %s305 = smul.u32 14, %s19
      %p306 = scmp.lt.s32.totalorder %s305, 41
      %s307 = scalar_select %p306, %s305, 41
      %s308 = smul.addr %s307, 8
      %s309 = scalar_lea.vmem %s2, %s308
      %p310 = pneg %p92
      %p311 = pneg %p89
      %p312 = pneg %p113
      %p313 = pneg %p110
      %p314 = pneg %p134
      %p315 = pneg %p131
      %p316 = pneg %p155
      %p317 = pneg %p152
      %p318 = pneg %p176
      %p319 = pneg %p173
      %p320 = pneg %p197
      %p321 = pneg %p194
      %p322 = pneg %p223
      %p323 = pneg %p220
      %s324 = smul.u32 14, %s19
      %p325 = scmp.lt.s32.totalorder %s324, 41
      %s326 = scalar_select %p325, %s324, 41
      %s327 = smul.addr %s326, 8
      %s328 = scalar_lea.vmem %s8, %s327
      %s329 = smul.u32 14, %s19
      %p330 = scmp.lt.s32.totalorder %s329, 41
      %s331 = scalar_select %p330, %s329, 41
      %s332 = smul.addr %s331, 8
      %s333 = scalar_lea.vmem %s0, %s332
      %s334 = smul.u32 14, %s19
      %s335 = smul.u32 14, %s19
      %p336 = scmp.lt.s32.totalorder %s335, 41
      %s337 = scalar_select %p336, %s335, 41
      %s338 = smul.addr %s337, 8
      %s339 = scalar_lea.vmem %s1, %s338
      %s340 = smul.u32 14, %s19
      %s341 = smul.u32 14, %s19
      %p342 = scmp.lt.s32.totalorder %s341, 41
      %s343 = scalar_select %p342, %s341, 41
      %s344 = smul.addr %s343, 8
      %s345 = scalar_lea.vmem %s2, %s344
      %s346 = smul.u32 14, %s19
      %s347 = smul.u32 14, %s19
      %p348 = scmp.lt.s32.totalorder %s347, 41
      %s349 = scalar_select %p348, %s347, 41
      %s350 = smul.addr %s349, 8
      %s351 = scalar_lea.vmem %s8, %s350
      %s352 = smul.u32 14, %s19
      %v354 = vld [vmem:[%s5] sm:$0x7]
      %v355 = vld [vmem:[%s7] sm:$0x7]
      %v356 = vld [vmem:[%s333] sm:$0xff]
      %v357 = vld [vmem:[%s333 + $0x8] sm:$0xff]
      %v358 = vld [vmem:[%s333 + $0x10] sm:$0xff]
      %v359 = vld [vmem:[%s333 + $0x18] sm:$0xff]
      %v360 = vld [vmem:[%s333 + $0x20] sm:$0xff]
      %v361 = vld [vmem:[%s333 + $0x28] sm:$0xff]
      %v362 = vld [vmem:[%s333 + $0x30] sm:$0xff]
      %v363 = vld [vmem:[%s333 + $0x38] sm:$0xff]
      %v364 = vld [vmem:[%s333 + $0x40] sm:$0xff]
      %v365 = vld [vmem:[%s333 + $0x48] sm:$0xff]
      %v366 = vld [vmem:[%s333 + $0x50] sm:$0xff]
      %v367 = vld [vmem:[%s333 + $0x58] sm:$0xff]
      %v368 = vld [vmem:[%s333 + $0x60] sm:$0xff]
      %v369 = vld [vmem:[%s333 + $0x68] sm:$0xff]
      %v370 = vpack.c.bf16 %v357, %v356
      %v371 = vpack.c.bf16 %v359, %v358
      %v372 = vpack.c.bf16 %v361, %v360
      %v373 = vpack.c.bf16 %v363, %v362
      %v374 = vpack.c.bf16 %v365, %v364
      %v375 = vpack.c.bf16 %v367, %v366
      %v376 = vpack.c.bf16 %v369, %v368
      %v377 = vld [vmem:[%s4] sm:$0xf]
      %v378 = vld [vmem:[%s4 + $0x4] sm:$0xf]
      %v379 = vld [vmem:[%s4 + $0x8] sm:$0xf]
      %v380 = vld [vmem:[%s4 + $0xc] sm:$0xf]
      %v381 = vld [vmem:[%s4 + $0x10] sm:$0xf]
      %v382 = vld [vmem:[%s4 + $0x14] sm:$0xf]
      %v383 = vld [vmem:[%s4 + $0x18] sm:$0xf]
      %v384 = vld [vmem:[%s4 + $0x1c] sm:$0xf]
      %v385 = vlaneseq
      %v386 = vshrl.u32 %v385, 7
      %v387 = vsub.s32 0, %v386
      %v388 = vrot.slane %v354, %v387
      %v397 = vunpack.c.l.b16 %v377
      %v398 = vunpack.c.l.b16 %v378
      %v399 = vunpack.c.l.b16 %v379
      %v400 = vunpack.c.l.b16 %v380
      %v401 = vunpack.c.l.b16 %v381
      %v402 = vunpack.c.l.b16 %v382
      %v403 = vunpack.c.l.b16 %v383
      %v404 = vunpack.c.l.b16 %v384
      %v405 = vpack.c.b16 %v398, %v397
      %v406 = vpack.c.b16 %v400, %v399
      %v407 = vpack.c.b16 %v402, %v401
      %v408 = vpack.c.b16 %v404, %v403
      %vm413 = vcmask 523264
      %v415 = vsel %vm413, %v370, 0
      %v418 = vsel %vm413, %v371, 0
      %v421 = vsel %vm413, %v372, 0
      %v424 = vsel %vm413, %v373, 0
      %v427 = vsel %vm413, %v374, 0
      %v430 = vsel %vm413, %v375, 0
      %v433 = vsel %vm413, %v376, 0
      %435 = vmatprep.subr.bf16.mxu0 0
      %436 = vmatpush1.bf16.msra.mxu0 0
      %437 = vmatprep.subr.bf16.mxu0 0
      %438 = vmatpush1.bf16.msra.mxu0 0
      %439 = vmatprep.subr.bf16.mxu0 0
      %440 = vmatpush1.bf16.msra.mxu0 0
      %441 = vmatprep.subr.bf16.mxu0 0
      %442 = vmatpush1.bf16.msra.mxu0 0
      %443 = vmatprep.subr.bf16.mxu0 0
      %444 = vmatpush1.bf16.msra.mxu0 %v408
      %445 = vmatprep.subr.bf16.mxu0 0
      %446 = vmatpush1.bf16.msra.mxu0 %v407
      %447 = vmatprep.subr.bf16.mxu0 0
      %448 = vmatpush1.bf16.msra.mxu0 %v406
      %449 = vmatprep.subr.bf16.mxu0 0
      %450 = vmatpush1.bf16.msra.mxu0 %v405
      %451 = vmatprep.subr.bf16.mxu0 0
      %452 = vmatpush2.bf16.msra.mxu0 0
      %453 = vmatprep.subr.bf16.mxu0 0
      %454 = vmatpush2.bf16.msra.mxu0 0
      %455 = vmatprep.subr.bf16.mxu0 0
      %456 = vmatpush2.bf16.msra.mxu0 0
      %457 = vmatprep.subr.bf16.mxu0 0
      %458 = vmatpush2.bf16.msra.mxu0 0
      %459 = vmatprep.subr.bf16.mxu0 0
      %460 = vmatpush2.bf16.msra.mxu0 0
      %461 = vmatprep.subr.bf16.mxu0 0
      %462 = vmatpush2.bf16.msra.mxu0 0
      %463 = vmatprep.subr.bf16.mxu0 0
      %464 = vmatpush2.bf16.msra.mxu0 0
      %465 = vmatprep.subr.bf16.mxu0 0
      %466 = vmatpush2.bf16.msra.mxu0 0
      %467 = vmatprep.mubr.bf16.mxu0 0
      %468 = vmatmul.mubr.bf16.gmra.mxu0 %v415
      %v469 = vpop.f32.mrf.mxu0
      %v470 = vadd.f32 %v388, %v469
      %v471 = vpop.f32.mrf.mxu0
      %v472 = vpop.f32.mrf.mxu0
      %v473 = vadd.f32 %v388, %v472
      %v474 = vpop.f32.mrf.mxu0
      %475 = vmatprep.mubr.bf16.mxu0 0
      %476 = vmatmul.mubr.bf16.gmra.mxu0 %v418
      %v477 = vpop.f32.mrf.mxu0
      %v478 = vadd.f32 %v388, %v477
      %v479 = vpop.f32.mrf.mxu0
      %v480 = vpop.f32.mrf.mxu0
      %v481 = vadd.f32 %v388, %v480
      %v482 = vpop.f32.mrf.mxu0
      %483 = vmatprep.mubr.bf16.mxu0 0
      %484 = vmatmul.mubr.bf16.gmra.mxu0 %v421
      %v485 = vpop.f32.mrf.mxu0
      %v486 = vadd.f32 %v388, %v485
      %v487 = vpop.f32.mrf.mxu0
      %v488 = vpop.f32.mrf.mxu0
      %v489 = vadd.f32 %v388, %v488
      %v490 = vpop.f32.mrf.mxu0
      %491 = vmatprep.mubr.bf16.mxu0 0
      %492 = vmatmul.mubr.bf16.gmra.mxu0 %v424
      %v493 = vpop.f32.mrf.mxu0
      %v494 = vadd.f32 %v388, %v493
      %v495 = vpop.f32.mrf.mxu0
      %v496 = vpop.f32.mrf.mxu0
      %v497 = vadd.f32 %v388, %v496
      %v498 = vpop.f32.mrf.mxu0
      %499 = vmatprep.mubr.bf16.mxu0 0
      %500 = vmatmul.mubr.bf16.gmra.mxu0 %v427
      %v501 = vpop.f32.mrf.mxu0
      %v502 = vadd.f32 %v388, %v501
      %v503 = vpop.f32.mrf.mxu0
      %v504 = vpop.f32.mrf.mxu0
      %v505 = vadd.f32 %v388, %v504
      %v506 = vpop.f32.mrf.mxu0
      %507 = vmatprep.mubr.bf16.mxu0 0
      %508 = vmatmul.mubr.bf16.gmra.mxu0 %v430
      %v509 = vpop.f32.mrf.mxu0
      %v510 = vadd.f32 %v388, %v509
      %v511 = vpop.f32.mrf.mxu0
      %v512 = vpop.f32.mrf.mxu0
      %v513 = vadd.f32 %v388, %v512
      %v514 = vpop.f32.mrf.mxu0
      %515 = vmatprep.mubr.bf16.mxu0 0
      %516 = vmatmul.mubr.bf16.gmra.mxu0 %v433
      %v517 = vpop.f32.mrf.mxu0
      %v518 = vadd.f32 %v388, %v517
      %v519 = vpop.f32.mrf.mxu0
      %v520 = vpop.f32.mrf.mxu0
      %v521 = vadd.f32 %v388, %v520
      %v522 = vpop.f32.mrf.mxu0
      %523 = vdwg.mxu0
      %v524 = vld [vmem:[%s339] sm:$0xff]
      %v525 = vld [vmem:[%s339 + $0x8] sm:$0xff]
      %v526 = vld [vmem:[%s339 + $0x10] sm:$0xff]
      %v527 = vld [vmem:[%s339 + $0x18] sm:$0xff]
      %v528 = vld [vmem:[%s339 + $0x20] sm:$0xff]
      %v529 = vld [vmem:[%s339 + $0x28] sm:$0xff]
      %v530 = vld [vmem:[%s339 + $0x30] sm:$0xff]
      %v531 = vld [vmem:[%s339 + $0x38] sm:$0xff]
      %v532 = vld [vmem:[%s339 + $0x40] sm:$0xff]
      %v533 = vld [vmem:[%s339 + $0x48] sm:$0xff]
      %v534 = vld [vmem:[%s339 + $0x50] sm:$0xff]
      %v535 = vld [vmem:[%s339 + $0x58] sm:$0xff]
      %v536 = vld [vmem:[%s339 + $0x60] sm:$0xff]
      %v537 = vld [vmem:[%s339 + $0x68] sm:$0xff]
      %v538 = vpack.c.bf16 %v525, %v524
      %v539 = vpack.c.bf16 %v527, %v526
      %v540 = vpack.c.bf16 %v529, %v528
      %v541 = vpack.c.bf16 %v531, %v530
      %v542 = vpack.c.bf16 %v533, %v532
      %v543 = vpack.c.bf16 %v535, %v534
      %v544 = vpack.c.bf16 %v537, %v536
      %s545 = scalar_lea.vmem %s4, 32
      %v546 = vld [vmem:[%s545] sm:$0xf]
      %v547 = vld [vmem:[%s545 + $0x4] sm:$0xf]
      %v548 = vld [vmem:[%s545 + $0x8] sm:$0xf]
      %v549 = vld [vmem:[%s545 + $0xc] sm:$0xf]
      %v550 = vld [vmem:[%s545 + $0x10] sm:$0xf]
      %v551 = vld [vmem:[%s545 + $0x14] sm:$0xf]
      %v552 = vld [vmem:[%s545 + $0x18] sm:$0xf]
      %v553 = vld [vmem:[%s545 + $0x1c] sm:$0xf]
      %v554 = vlaneseq
      %v555 = vshrl.u32 %v554, 7
      %v556 = vsub.s32 1, %v555
      %v557 = vrot.slane %v354, %v556
      %v566 = vunpack.c.l.b16 %v546
      %v567 = vunpack.c.l.b16 %v547
      %v568 = vunpack.c.l.b16 %v548
      %v569 = vunpack.c.l.b16 %v549
      %v570 = vunpack.c.l.b16 %v550
      %v571 = vunpack.c.l.b16 %v551
      %v572 = vunpack.c.l.b16 %v552
      %v573 = vunpack.c.l.b16 %v553
      %v574 = vpack.c.b16 %v567, %v566
      %v575 = vpack.c.b16 %v569, %v568
      %v576 = vpack.c.b16 %v571, %v570
      %v577 = vpack.c.b16 %v573, %v572
      %v583 = vsel %vm413, %v538, 0
      %v586 = vsel %vm413, %v539, 0
      %v589 = vsel %vm413, %v540, 0
      %v592 = vsel %vm413, %v541, 0
      %v595 = vsel %vm413, %v542, 0
      %v598 = vsel %vm413, %v543, 0
      %v601 = vsel %vm413, %v544, 0
      %603 = vmatprep.subr.bf16.mxu0 0
      %604 = vmatpush1.bf16.msra.mxu0 0
      %605 = vmatprep.subr.bf16.mxu0 0
      %606 = vmatpush1.bf16.msra.mxu0 0
      %607 = vmatprep.subr.bf16.mxu0 0
      %608 = vmatpush1.bf16.msra.mxu0 0
      %609 = vmatprep.subr.bf16.mxu0 0
      %610 = vmatpush1.bf16.msra.mxu0 0
      %611 = vmatprep.subr.bf16.mxu0 0
      %612 = vmatpush1.bf16.msra.mxu0 %v577
      %613 = vmatprep.subr.bf16.mxu0 0
      %614 = vmatpush1.bf16.msra.mxu0 %v576
      %615 = vmatprep.subr.bf16.mxu0 0
      %616 = vmatpush1.bf16.msra.mxu0 %v575
      %617 = vmatprep.subr.bf16.mxu0 0
      %618 = vmatpush1.bf16.msra.mxu0 %v574
      %619 = vmatprep.subr.bf16.mxu0 0
      %620 = vmatpush2.bf16.msra.mxu0 0
      %621 = vmatprep.subr.bf16.mxu0 0
      %622 = vmatpush2.bf16.msra.mxu0 0
      %623 = vmatprep.subr.bf16.mxu0 0
      %624 = vmatpush2.bf16.msra.mxu0 0
      %625 = vmatprep.subr.bf16.mxu0 0
      %626 = vmatpush2.bf16.msra.mxu0 0
      %627 = vmatprep.subr.bf16.mxu0 0
      %628 = vmatpush2.bf16.msra.mxu0 0
      %629 = vmatprep.subr.bf16.mxu0 0
      %630 = vmatpush2.bf16.msra.mxu0 0
      %631 = vmatprep.subr.bf16.mxu0 0
      %632 = vmatpush2.bf16.msra.mxu0 0
      %633 = vmatprep.subr.bf16.mxu0 0
      %634 = vmatpush2.bf16.msra.mxu0 0
      %635 = vmatprep.mubr.bf16.mxu0 0
      %636 = vmatmul.mubr.bf16.gmra.mxu0 %v583
      %v637 = vpop.f32.mrf.mxu0
      %v638 = vadd.f32 %v557, %v637
      %v639 = vpop.f32.mrf.mxu0
      %v640 = vpop.f32.mrf.mxu0
      %v641 = vadd.f32 %v557, %v640
      %v642 = vpop.f32.mrf.mxu0
      %643 = vmatprep.mubr.bf16.mxu0 0
      %644 = vmatmul.mubr.bf16.gmra.mxu0 %v586
      %v645 = vpop.f32.mrf.mxu0
      %v646 = vadd.f32 %v557, %v645
      %v647 = vpop.f32.mrf.mxu0
      %v648 = vpop.f32.mrf.mxu0
      %v649 = vadd.f32 %v557, %v648
      %v650 = vpop.f32.mrf.mxu0
      %651 = vmatprep.mubr.bf16.mxu0 0
      %652 = vmatmul.mubr.bf16.gmra.mxu0 %v589
      %v653 = vpop.f32.mrf.mxu0
      %v654 = vadd.f32 %v557, %v653
      %v655 = vpop.f32.mrf.mxu0
      %v656 = vpop.f32.mrf.mxu0
      %v657 = vadd.f32 %v557, %v656
      %v658 = vpop.f32.mrf.mxu0
      %659 = vmatprep.mubr.bf16.mxu0 0
      %660 = vmatmul.mubr.bf16.gmra.mxu0 %v592
      %v661 = vpop.f32.mrf.mxu0
      %v662 = vadd.f32 %v557, %v661
      %v663 = vpop.f32.mrf.mxu0
      %v664 = vpop.f32.mrf.mxu0
      %v665 = vadd.f32 %v557, %v664
      %v666 = vpop.f32.mrf.mxu0
      %667 = vmatprep.mubr.bf16.mxu0 0
      %668 = vmatmul.mubr.bf16.gmra.mxu0 %v595
      %v669 = vpop.f32.mrf.mxu0
      %v670 = vadd.f32 %v557, %v669
      %v671 = vpop.f32.mrf.mxu0
      %v672 = vpop.f32.mrf.mxu0
      %v673 = vadd.f32 %v557, %v672
      %v674 = vpop.f32.mrf.mxu0
      %675 = vmatprep.mubr.bf16.mxu0 0
      %676 = vmatmul.mubr.bf16.gmra.mxu0 %v598
      %v677 = vpop.f32.mrf.mxu0
      %v678 = vadd.f32 %v557, %v677
      %v679 = vpop.f32.mrf.mxu0
      %v680 = vpop.f32.mrf.mxu0
      %v681 = vadd.f32 %v557, %v680
      %v682 = vpop.f32.mrf.mxu0
      %683 = vmatprep.mubr.bf16.mxu0 0
      %684 = vmatmul.mubr.bf16.gmra.mxu0 %v601
      %v685 = vpop.f32.mrf.mxu0
      %v686 = vadd.f32 %v557, %v685
      %v687 = vpop.f32.mrf.mxu0
      %v688 = vpop.f32.mrf.mxu0
      %v689 = vadd.f32 %v557, %v688
      %v690 = vpop.f32.mrf.mxu0
      %691 = vdwg.mxu0
      %v692 = vld [vmem:[%s345] sm:$0xff]
      %v693 = vld [vmem:[%s345 + $0x8] sm:$0xff]
      %v694 = vld [vmem:[%s345 + $0x10] sm:$0xff]
      %v695 = vld [vmem:[%s345 + $0x18] sm:$0xff]
      %v696 = vld [vmem:[%s345 + $0x20] sm:$0xff]
      %v697 = vld [vmem:[%s345 + $0x28] sm:$0xff]
      %v698 = vld [vmem:[%s345 + $0x30] sm:$0xff]
      %v699 = vld [vmem:[%s345 + $0x38] sm:$0xff]
      %v700 = vld [vmem:[%s345 + $0x40] sm:$0xff]
      %v701 = vld [vmem:[%s345 + $0x48] sm:$0xff]
      %v702 = vld [vmem:[%s345 + $0x50] sm:$0xff]
      %v703 = vld [vmem:[%s345 + $0x58] sm:$0xff]
      %v704 = vld [vmem:[%s345 + $0x60] sm:$0xff]
      %v705 = vld [vmem:[%s345 + $0x68] sm:$0xff]
      %v706 = vpack.c.bf16 %v693, %v692
      %v707 = vpack.c.bf16 %v695, %v694
      %v708 = vpack.c.bf16 %v697, %v696
      %v709 = vpack.c.bf16 %v699, %v698
      %v710 = vpack.c.bf16 %v701, %v700
      %v711 = vpack.c.bf16 %v703, %v702
      %v712 = vpack.c.bf16 %v705, %v704
      %s713 = scalar_lea.vmem %s4, 64
      %v714 = vld [vmem:[%s713] sm:$0xf]
      %v715 = vld [vmem:[%s713 + $0x4] sm:$0xf]
      %v716 = vld [vmem:[%s713 + $0x8] sm:$0xf]
      %v717 = vld [vmem:[%s713 + $0xc] sm:$0xf]
      %v718 = vld [vmem:[%s713 + $0x10] sm:$0xf]
      %v719 = vld [vmem:[%s713 + $0x14] sm:$0xf]
      %v720 = vld [vmem:[%s713 + $0x18] sm:$0xf]
      %v721 = vld [vmem:[%s713 + $0x1c] sm:$0xf]
      %v722 = vlaneseq
      %v723 = vshrl.u32 %v722, 7
      %v724 = vsub.s32 2, %v723
      %v725 = vrot.slane %v354, %v724
      %v734 = vunpack.c.l.b16 %v714
      %v735 = vunpack.c.l.b16 %v715
      %v736 = vunpack.c.l.b16 %v716
      %v737 = vunpack.c.l.b16 %v717
      %v738 = vunpack.c.l.b16 %v718
      %v739 = vunpack.c.l.b16 %v719
      %v740 = vunpack.c.l.b16 %v720
      %v741 = vunpack.c.l.b16 %v721
      %v742 = vpack.c.b16 %v735, %v734
      %v743 = vpack.c.b16 %v737, %v736
      %v744 = vpack.c.b16 %v739, %v738
      %v745 = vpack.c.b16 %v741, %v740
      %v751 = vsel %vm413, %v706, 0
      %v754 = vsel %vm413, %v707, 0
      %v757 = vsel %vm413, %v708, 0
      %v760 = vsel %vm413, %v709, 0
      %v763 = vsel %vm413, %v710, 0
      %v766 = vsel %vm413, %v711, 0
      %v769 = vsel %vm413, %v712, 0
      %771 = vmatprep.subr.bf16.mxu0 0
      %772 = vmatpush1.bf16.msra.mxu0 0
      %773 = vmatprep.subr.bf16.mxu0 0
      %774 = vmatpush1.bf16.msra.mxu0 0
      %775 = vmatprep.subr.bf16.mxu0 0
      %776 = vmatpush1.bf16.msra.mxu0 0
      %777 = vmatprep.subr.bf16.mxu0 0
      %778 = vmatpush1.bf16.msra.mxu0 0
      %779 = vmatprep.subr.bf16.mxu0 0
      %780 = vmatpush1.bf16.msra.mxu0 %v745
      %781 = vmatprep.subr.bf16.mxu0 0
      %782 = vmatpush1.bf16.msra.mxu0 %v744
      %783 = vmatprep.subr.bf16.mxu0 0
      %784 = vmatpush1.bf16.msra.mxu0 %v743
      %785 = vmatprep.subr.bf16.mxu0 0
      %786 = vmatpush1.bf16.msra.mxu0 %v742
      %787 = vmatprep.subr.bf16.mxu0 0
      %788 = vmatpush2.bf16.msra.mxu0 0
      %789 = vmatprep.subr.bf16.mxu0 0
      %790 = vmatpush2.bf16.msra.mxu0 0
      %791 = vmatprep.subr.bf16.mxu0 0
      %792 = vmatpush2.bf16.msra.mxu0 0
      %793 = vmatprep.subr.bf16.mxu0 0
      %794 = vmatpush2.bf16.msra.mxu0 0
      %795 = vmatprep.subr.bf16.mxu0 0
      %796 = vmatpush2.bf16.msra.mxu0 0
      %797 = vmatprep.subr.bf16.mxu0 0
      %798 = vmatpush2.bf16.msra.mxu0 0
      %799 = vmatprep.subr.bf16.mxu0 0
      %800 = vmatpush2.bf16.msra.mxu0 0
      %801 = vmatprep.subr.bf16.mxu0 0
      %802 = vmatpush2.bf16.msra.mxu0 0
      %803 = vmatprep.mubr.bf16.mxu0 0
      %804 = vmatmul.mubr.bf16.gmra.mxu0 %v751
      %v805 = vpop.f32.mrf.mxu0
      %v806 = vadd.f32 %v725, %v805
      %v807 = vpop.f32.mrf.mxu0
      %v808 = vpop.f32.mrf.mxu0
      %v809 = vadd.f32 %v725, %v808
      %v810 = vpop.f32.mrf.mxu0
      %811 = vmatprep.mubr.bf16.mxu0 0
      %812 = vmatmul.mubr.bf16.gmra.mxu0 %v754
      %v813 = vpop.f32.mrf.mxu0
      %v814 = vadd.f32 %v725, %v813
      %v815 = vpop.f32.mrf.mxu0
      %v816 = vpop.f32.mrf.mxu0
      %v817 = vadd.f32 %v725, %v816
      %v818 = vpop.f32.mrf.mxu0
      %819 = vmatprep.mubr.bf16.mxu0 0
      %820 = vmatmul.mubr.bf16.gmra.mxu0 %v757
      %v821 = vpop.f32.mrf.mxu0
      %v822 = vadd.f32 %v725, %v821
      %v823 = vpop.f32.mrf.mxu0
      %v824 = vpop.f32.mrf.mxu0
      %v825 = vadd.f32 %v725, %v824
      %v826 = vpop.f32.mrf.mxu0
      %827 = vmatprep.mubr.bf16.mxu0 0
      %828 = vmatmul.mubr.bf16.gmra.mxu0 %v760
      %v829 = vpop.f32.mrf.mxu0
      %v830 = vadd.f32 %v725, %v829
      %v831 = vpop.f32.mrf.mxu0
      %v832 = vpop.f32.mrf.mxu0
      %v833 = vadd.f32 %v725, %v832
      %v834 = vpop.f32.mrf.mxu0
      %835 = vmatprep.mubr.bf16.mxu0 0
      %836 = vmatmul.mubr.bf16.gmra.mxu0 %v763
      %v837 = vpop.f32.mrf.mxu0
      %v838 = vadd.f32 %v725, %v837
      %v839 = vpop.f32.mrf.mxu0
      %v840 = vpop.f32.mrf.mxu0
      %v841 = vadd.f32 %v725, %v840
      %v842 = vpop.f32.mrf.mxu0
      %843 = vmatprep.mubr.bf16.mxu0 0
      %844 = vmatmul.mubr.bf16.gmra.mxu0 %v766
      %v845 = vpop.f32.mrf.mxu0
      %v846 = vadd.f32 %v725, %v845
      %v847 = vpop.f32.mrf.mxu0
      %v848 = vpop.f32.mrf.mxu0
      %v849 = vadd.f32 %v725, %v848
      %v850 = vpop.f32.mrf.mxu0
      %851 = vmatprep.mubr.bf16.mxu0 0
      %852 = vmatmul.mubr.bf16.gmra.mxu0 %v769
      %v853 = vpop.f32.mrf.mxu0
      %v854 = vadd.f32 %v725, %v853
      %v855 = vpop.f32.mrf.mxu0
      %v856 = vpop.f32.mrf.mxu0
      %v857 = vadd.f32 %v725, %v856
      %v858 = vpop.f32.mrf.mxu0
      %859 = vdwg.mxu0
      %v860 = vpack.c.bf16 %v473, %v470
      %v861 = vpack.c.bf16 %v481, %v478
      %v862 = vpack.c.bf16 %v489, %v486
      %v863 = vpack.c.bf16 %v494, %v494
      %v864 = vpack.c.bf16 %v502, %v497
      %v865 = vpack.c.bf16 %v510, %v505
      %v866 = vpack.c.bf16 %v518, %v513
      %v867 = vpack.c.bf16 %v521, %v521
      %v868 = vpack.c.bf16 %v641, %v638
      %v869 = vpack.c.bf16 %v649, %v646
      %v870 = vpack.c.bf16 %v657, %v654
      %v871 = vpack.c.bf16 %v662, %v662
      %v872 = vpack.c.bf16 %v670, %v665
      %v873 = vpack.c.bf16 %v678, %v673
      %v874 = vpack.c.bf16 %v686, %v681
      %v875 = vpack.c.bf16 %v689, %v689
      %v876 = vpack.c.bf16 %v809, %v806
      %v877 = vpack.c.bf16 %v817, %v814
      %v878 = vpack.c.bf16 %v825, %v822
      %v879 = vpack.c.bf16 %v830, %v830
      %v880 = vpack.c.bf16 %v838, %v833
      %v881 = vpack.c.bf16 %v846, %v841
      %v882 = vpack.c.bf16 %v854, %v849
      %v883 = vpack.c.bf16 %v857, %v857
      %v884 = vlaneseq
      %v885 = vand.u32 %v884, 127
      %vm886 = vcmp.lt.s32.totalorder %v885, 49
      %vm887 = vcmask 130048
      %v889 = vsel %vm887, %v860, 0
      %v892 = vsel %vm887, %v861, 0
      %v895 = vsel %vm887, %v862, 0
      %v898 = vsel %vm887, %v863, 0
      %v901 = vsel %vm887, %v868, 0
      %v904 = vsel %vm887, %v869, 0
      %v907 = vsel %vm887, %v870, 0
      %v910 = vsel %vm887, %v871, 0
      %912 = vmatprep.subr.bf16.mxu0 0
      %913 = vmatpush1.bf16.xpose.msra.mxu0 0
      %914 = vmatprep.subr.bf16.mxu0 0
      %915 = vmatpush1.bf16.xpose.msra.mxu0 0
      %916 = vmatprep.subr.bf16.mxu0 0
      %917 = vmatpush1.bf16.xpose.msra.mxu0 0
      %918 = vmatprep.subr.bf16.mxu0 0
      %919 = vmatpush1.bf16.xpose.msra.mxu0 0
      %920 = vmatprep.subr.bf16.mxu0 0
      %921 = vmatpush1.bf16.xpose.msra.mxu0 %v910
      %922 = vmatprep.subr.bf16.mxu0 0
      %923 = vmatpush1.bf16.xpose.msra.mxu0 %v907
      %924 = vmatprep.subr.bf16.mxu0 0
      %925 = vmatpush1.bf16.xpose.msra.mxu0 %v904
      %926 = vmatprep.subr.bf16.mxu0 0
      %927 = vmatpush1.bf16.xpose.msra.mxu0 %v901
      %928 = vmatprep.subr.bf16.mxu0 0
      %929 = vmatpush2.bf16.xpose.msra.mxu0 0
      %930 = vmatprep.subr.bf16.mxu0 0
      %931 = vmatpush2.bf16.xpose.msra.mxu0 0
      %932 = vmatprep.subr.bf16.mxu0 0
      %933 = vmatpush2.bf16.xpose.msra.mxu0 0
      %934 = vmatprep.subr.bf16.mxu0 0
      %935 = vmatpush2.bf16.xpose.msra.mxu0 0
      %936 = vmatprep.subr.bf16.mxu0 0
      %937 = vmatpush2.bf16.xpose.msra.mxu0 0
      %938 = vmatprep.subr.bf16.mxu0 0
      %939 = vmatpush2.bf16.xpose.msra.mxu0 0
      %940 = vmatprep.subr.bf16.mxu0 0
      %941 = vmatpush2.bf16.xpose.msra.mxu0 0
      %942 = vmatprep.subr.bf16.mxu0 0
      %943 = vmatpush2.bf16.xpose.msra.mxu0 0
      %944 = vmatprep.mubr.bf16.mxu0 0
      %945 = vmatmul.mubr.bf16.gmra.mxu0 %v889
      %v946 = vpop.f32.mrf.mxu0
      %v947 = vadd.f32 0.0, %v946
      %v948 = vpop.f32.mrf.mxu0
      %v949 = vpop.f32.mrf.mxu0
      %v950 = vadd.f32 0.0, %v949
      %v951 = vpop.f32.mrf.mxu0
      %952 = vmatprep.mubr.bf16.mxu0 0
      %953 = vmatmul.mubr.bf16.gmra.mxu0 %v892
      %v954 = vpop.f32.mrf.mxu0
      %v955 = vadd.f32 0.0, %v954
      %v956 = vpop.f32.mrf.mxu0
      %v957 = vpop.f32.mrf.mxu0
      %v958 = vadd.f32 0.0, %v957
      %v959 = vpop.f32.mrf.mxu0
      %960 = vmatprep.mubr.bf16.mxu0 0
      %961 = vmatmul.mubr.bf16.gmra.mxu0 %v895
      %v962 = vpop.f32.mrf.mxu0
      %v963 = vadd.f32 0.0, %v962
      %v964 = vpop.f32.mrf.mxu0
      %v965 = vpop.f32.mrf.mxu0
      %v966 = vadd.f32 0.0, %v965
      %v967 = vpop.f32.mrf.mxu0
      %968 = vmatprep.mubr.bf16.mxu0 0
      %969 = vmatmul.mubr.bf16.gmra.mxu0 %v898
      %v970 = vpop.f32.mrf.mxu0
      %v971 = vadd.f32 0.0, %v970
      %v972 = vpop.f32.mrf.mxu0
      %v973 = vpop.f32.mrf.mxu0
      %v974 = vpop.f32.mrf.mxu0
      %975 = vdwg.mxu0
      %v977 = vsel %vm887, %v864, 0
      %v980 = vsel %vm887, %v865, 0
      %v983 = vsel %vm887, %v866, 0
      %v986 = vsel %vm887, %v867, 0
      %v989 = vsel %vm887, %v872, 0
      %v992 = vsel %vm887, %v873, 0
      %v995 = vsel %vm887, %v874, 0
      %v998 = vsel %vm887, %v875, 0
      %1000 = vmatprep.subr.bf16.mxu0 0
      %1001 = vmatpush1.bf16.xpose.msra.mxu0 0
      %1002 = vmatprep.subr.bf16.mxu0 0
      %1003 = vmatpush1.bf16.xpose.msra.mxu0 0
      %1004 = vmatprep.subr.bf16.mxu0 0
      %1005 = vmatpush1.bf16.xpose.msra.mxu0 0
      %1006 = vmatprep.subr.bf16.mxu0 0
      %1007 = vmatpush1.bf16.xpose.msra.mxu0 0
      %1008 = vmatprep.subr.bf16.mxu0 0
      %1009 = vmatpush1.bf16.xpose.msra.mxu0 %v998
      %1010 = vmatprep.subr.bf16.mxu0 0
      %1011 = vmatpush1.bf16.xpose.msra.mxu0 %v995
      %1012 = vmatprep.subr.bf16.mxu0 0
      %1013 = vmatpush1.bf16.xpose.msra.mxu0 %v992
      %1014 = vmatprep.subr.bf16.mxu0 0
      %1015 = vmatpush1.bf16.xpose.msra.mxu0 %v989
      %1016 = vmatprep.subr.bf16.mxu0 0
      %1017 = vmatpush2.bf16.xpose.msra.mxu0 0
      %1018 = vmatprep.subr.bf16.mxu0 0
      %1019 = vmatpush2.bf16.xpose.msra.mxu0 0
      %1020 = vmatprep.subr.bf16.mxu0 0
      %1021 = vmatpush2.bf16.xpose.msra.mxu0 0
      %1022 = vmatprep.subr.bf16.mxu0 0
      %1023 = vmatpush2.bf16.xpose.msra.mxu0 0
      %1024 = vmatprep.subr.bf16.mxu0 0
      %1025 = vmatpush2.bf16.xpose.msra.mxu0 0
      %1026 = vmatprep.subr.bf16.mxu0 0
      %1027 = vmatpush2.bf16.xpose.msra.mxu0 0
      %1028 = vmatprep.subr.bf16.mxu0 0
      %1029 = vmatpush2.bf16.xpose.msra.mxu0 0
      %1030 = vmatprep.subr.bf16.mxu0 0
      %1031 = vmatpush2.bf16.xpose.msra.mxu0 0
      %1032 = vmatprep.mubr.bf16.mxu0 0
      %1033 = vmatmul.mubr.bf16.gmra.mxu0 %v977
      %v1034 = vpop.f32.mrf.mxu0
      %v1035 = vadd.f32 0.0, %v1034
      %v1036 = vpop.f32.mrf.mxu0
      %v1037 = vpop.f32.mrf.mxu0
      %v1038 = vadd.f32 0.0, %v1037
      %v1039 = vpop.f32.mrf.mxu0
      %1040 = vmatprep.mubr.bf16.mxu0 0
      %1041 = vmatmul.mubr.bf16.gmra.mxu0 %v980
      %v1042 = vpop.f32.mrf.mxu0
      %v1043 = vadd.f32 0.0, %v1042
      %v1044 = vpop.f32.mrf.mxu0
      %v1045 = vpop.f32.mrf.mxu0
      %v1046 = vadd.f32 0.0, %v1045
      %v1047 = vpop.f32.mrf.mxu0
      %1048 = vmatprep.mubr.bf16.mxu0 0
      %1049 = vmatmul.mubr.bf16.gmra.mxu0 %v983
      %v1050 = vpop.f32.mrf.mxu0
      %v1051 = vadd.f32 0.0, %v1050
      %v1052 = vpop.f32.mrf.mxu0
      %v1053 = vpop.f32.mrf.mxu0
      %v1054 = vadd.f32 0.0, %v1053
      %v1055 = vpop.f32.mrf.mxu0
      %1056 = vmatprep.mubr.bf16.mxu0 0
      %1057 = vmatmul.mubr.bf16.gmra.mxu0 %v986
      %v1058 = vpop.f32.mrf.mxu0
      %v1059 = vadd.f32 0.0, %v1058
      %v1060 = vpop.f32.mrf.mxu0
      %v1061 = vpop.f32.mrf.mxu0
      %v1062 = vpop.f32.mrf.mxu0
      %1063 = vdwg.mxu0
      %v1064 = vld [vmem:[%s3] sm:$0xff]
      %v1065 = vld [vmem:[%s3 + $0x8] sm:$0xff]
      %v1066 = vld [vmem:[%s3 + $0x10] sm:$0xff]
      %v1067 = vld [vmem:[%s3 + $0x18] sm:$0xff]
      %v1068 = vld [vmem:[%s3 + $0x20] sm:$0xff]
      %v1069 = vld [vmem:[%s3 + $0x28] sm:$0xff]
      %v1070 = vld [vmem:[%s3 + $0x30] sm:$0xff]
      %v1071 = vmul.f32 %v947, %v1064
      %v1072 = vmul.f32 %v950, %v1065
      %v1073 = vmul.f32 %v955, %v1066
      %v1074 = vmul.f32 %v958, %v1067
      %v1075 = vmul.f32 %v963, %v1068
      %v1076 = vmul.f32 %v966, %v1069
      %v1077 = vmul.f32 %v971, %v1070
      %v1078 = vmul.f32 %v1035, %v1064
      %v1079 = vmul.f32 %v1038, %v1065
      %v1080 = vmul.f32 %v1043, %v1066
      %v1081 = vmul.f32 %v1046, %v1067
      %v1082 = vmul.f32 %v1051, %v1068
      %v1083 = vmul.f32 %v1054, %v1069
      %v1084 = vmul.f32 %v1059, %v1070
      %vm1085 = vcmask 457728
      %v1086 = vsel %vm1085, %v1071, -inf
      %1087 = vmax.xlane.f32.xlu0 %v1086
      %v1088 = vpop.xlane.xlu0 %1087
      %v1089 = vsel %vm1085, %v1072, -inf
      %1090 = vmax.xlane.f32.xlu0 %v1089
      %v1091 = vpop.xlane.xlu0 %1090
      %v1092 = vsel %vm1085, %v1073, -inf
      %1093 = vmax.xlane.f32.xlu0 %v1092
      %v1094 = vpop.xlane.xlu0 %1093
      %v1095 = vsel %vm1085, %v1074, -inf
      %1096 = vmax.xlane.f32.xlu0 %v1095
      %v1097 = vpop.xlane.xlu0 %1096
      %v1098 = vsel %vm1085, %v1075, -inf
      %1099 = vmax.xlane.f32.xlu0 %v1098
      %v1100 = vpop.xlane.xlu0 %1099
      %v1101 = vsel %vm1085, %v1076, -inf
      %1102 = vmax.xlane.f32.xlu0 %v1101
      %v1103 = vpop.xlane.xlu0 %1102
      %v1104 = vsel %vm1085, %v1077, -inf
      %1105 = vmax.xlane.f32.xlu0 %v1104
      %v1106 = vpop.xlane.xlu0 %1105
      %v1107 = vsel %vm1085, %v1078, -inf
      %1108 = vmax.xlane.f32.xlu0 %v1107
      %v1109 = vpop.xlane.xlu0 %1108
      %v1110 = vsel %vm1085, %v1079, -inf
      %1111 = vmax.xlane.f32.xlu0 %v1110
      %v1112 = vpop.xlane.xlu0 %1111
      %v1113 = vsel %vm1085, %v1080, -inf
      %1114 = vmax.xlane.f32.xlu0 %v1113
      %v1115 = vpop.xlane.xlu0 %1114
      %v1116 = vsel %vm1085, %v1081, -inf
      %1117 = vmax.xlane.f32.xlu0 %v1116
      %v1118 = vpop.xlane.xlu0 %1117
      %v1119 = vsel %vm1085, %v1082, -inf
      %1120 = vmax.xlane.f32.xlu0 %v1119
      %v1121 = vpop.xlane.xlu0 %1120
      %v1122 = vsel %vm1085, %v1083, -inf
      %1123 = vmax.xlane.f32.xlu0 %v1122
      %v1124 = vpop.xlane.xlu0 %1123
      %v1125 = vsel %vm1085, %v1084, -inf
      %1126 = vmax.xlane.f32.xlu0 %v1125
      %v1127 = vpop.xlane.xlu0 %1126
      %v1128 = vsub.f32 %v1071, %v1088
      %v1129 = vsub.f32 %v1072, %v1091
      %v1130 = vsub.f32 %v1073, %v1094
      %v1131 = vsub.f32 %v1074, %v1097
      %v1132 = vsub.f32 %v1075, %v1100
      %v1133 = vsub.f32 %v1076, %v1103
      %v1134 = vsub.f32 %v1077, %v1106
      %v1135 = vsub.f32 %v1078, %v1109
      %v1136 = vsub.f32 %v1079, %v1112
      %v1137 = vsub.f32 %v1080, %v1115
      %v1138 = vsub.f32 %v1081, %v1118
      %v1139 = vsub.f32 %v1082, %v1121
      %v1140 = vsub.f32 %v1083, %v1124
      %v1141 = vsub.f32 %v1084, %v1127
      %v1142 = vmul.f32 %v1128, 1.442695
      %v1143 = vpow.pop %v1142
      %v1144 = vmul.f32 %v1129, 1.442695
      %v1145 = vpow.pop %v1144
      %v1146 = vmul.f32 %v1130, 1.442695
      %v1147 = vpow.pop %v1146
      %v1148 = vmul.f32 %v1131, 1.442695
      %v1149 = vpow.pop %v1148
      %v1150 = vmul.f32 %v1132, 1.442695
      %v1151 = vpow.pop %v1150
      %v1152 = vmul.f32 %v1133, 1.442695
      %v1153 = vpow.pop %v1152
      %v1154 = vmul.f32 %v1134, 1.442695
      %v1155 = vpow.pop %v1154
      %v1156 = vmul.f32 %v1135, 1.442695
      %v1157 = vpow.pop %v1156
      %v1158 = vmul.f32 %v1136, 1.442695
      %v1159 = vpow.pop %v1158
      %v1160 = vmul.f32 %v1137, 1.442695
      %v1161 = vpow.pop %v1160
      %v1162 = vmul.f32 %v1138, 1.442695
      %v1163 = vpow.pop %v1162
      %v1164 = vmul.f32 %v1139, 1.442695
      %v1165 = vpow.pop %v1164
      %v1166 = vmul.f32 %v1140, 1.442695
      %v1167 = vpow.pop %v1166
      %v1168 = vmul.f32 %v1141, 1.442695
      %v1169 = vpow.pop %v1168
      %v1170 = vsel %vm886, 1, 0
      %vm1171 = vcmp.eq.s32.totalorder %v1170, 1
      %v1172 = vsel %vm1171, %v1143, 0.0
      %v1173 = vsel %vm1171, %v1145, 0.0
      %v1174 = vsel %vm1171, %v1147, 0.0
      %v1175 = vsel %vm1171, %v1149, 0.0
      %v1176 = vsel %vm1171, %v1151, 0.0
      %v1177 = vsel %vm1171, %v1153, 0.0
      %v1178 = vsel %vm1171, %v1155, 0.0
      %v1179 = vsel %vm1171, %v1157, 0.0
      %v1180 = vsel %vm1171, %v1159, 0.0
      %v1181 = vsel %vm1171, %v1161, 0.0
      %v1182 = vsel %vm1171, %v1163, 0.0
      %v1183 = vsel %vm1171, %v1165, 0.0
      %v1184 = vsel %vm1171, %v1167, 0.0
      %v1185 = vsel %vm1171, %v1169, 0.0
      %v1186 = vsel %vm1085, %v1172, 0.0
      %1187 = vadd.xlane.f32.xlu0 %v1186
      %v1188 = vpop.xlane.xlu0 %1187
      %v1189 = vsel %vm1085, %v1173, 0.0
      %1190 = vadd.xlane.f32.xlu0 %v1189
      %v1191 = vpop.xlane.xlu0 %1190
      %v1192 = vsel %vm1085, %v1174, 0.0
      %1193 = vadd.xlane.f32.xlu0 %v1192
      %v1194 = vpop.xlane.xlu0 %1193
      %v1195 = vsel %vm1085, %v1175, 0.0
      %1196 = vadd.xlane.f32.xlu0 %v1195
      %v1197 = vpop.xlane.xlu0 %1196
      %v1198 = vsel %vm1085, %v1176, 0.0
      %1199 = vadd.xlane.f32.xlu0 %v1198
      %v1200 = vpop.xlane.xlu0 %1199
      %v1201 = vsel %vm1085, %v1177, 0.0
      %1202 = vadd.xlane.f32.xlu0 %v1201
      %v1203 = vpop.xlane.xlu0 %1202
      %v1204 = vsel %vm1085, %v1178, 0.0
      %1205 = vadd.xlane.f32.xlu0 %v1204
      %v1206 = vpop.xlane.xlu0 %1205
      %v1207 = vsel %vm1085, %v1179, 0.0
      %1208 = vadd.xlane.f32.xlu0 %v1207
      %v1209 = vpop.xlane.xlu0 %1208
      %v1210 = vsel %vm1085, %v1180, 0.0
      %1211 = vadd.xlane.f32.xlu0 %v1210
      %v1212 = vpop.xlane.xlu0 %1211
      %v1213 = vsel %vm1085, %v1181, 0.0
      %1214 = vadd.xlane.f32.xlu0 %v1213
      %v1215 = vpop.xlane.xlu0 %1214
      %v1216 = vsel %vm1085, %v1182, 0.0
      %1217 = vadd.xlane.f32.xlu0 %v1216
      %v1218 = vpop.xlane.xlu0 %1217
      %v1219 = vsel %vm1085, %v1183, 0.0
      %1220 = vadd.xlane.f32.xlu0 %v1219
      %v1221 = vpop.xlane.xlu0 %1220
      %v1222 = vsel %vm1085, %v1184, 0.0
      %1223 = vadd.xlane.f32.xlu0 %v1222
      %v1224 = vpop.xlane.xlu0 %1223
      %v1225 = vsel %vm1085, %v1185, 0.0
      %1226 = vadd.xlane.f32.xlu0 %v1225
      %v1227 = vpop.xlane.xlu0 %1226
      %v1228 = vrcp.pop %v1188
      %v1229 = vrcp.pop %v1191
      %v1230 = vrcp.pop %v1194
      %v1231 = vrcp.pop %v1197
      %v1232 = vrcp.pop %v1200
      %v1233 = vrcp.pop %v1203
      %v1234 = vrcp.pop %v1206
      %v1235 = vrcp.pop %v1209
      %v1236 = vrcp.pop %v1212
      %v1237 = vrcp.pop %v1215
      %v1238 = vrcp.pop %v1218
      %v1239 = vrcp.pop %v1221
      %v1240 = vrcp.pop %v1224
      %v1241 = vrcp.pop %v1227
      %v1242 = vmul.f32 %v1172, %v1228
      %v1243 = vmul.f32 %v1173, %v1229
      %v1244 = vmul.f32 %v1174, %v1230
      %v1245 = vmul.f32 %v1175, %v1231
      %v1246 = vmul.f32 %v1176, %v1232
      %v1247 = vmul.f32 %v1177, %v1233
      %v1248 = vmul.f32 %v1178, %v1234
      %v1249 = vmul.f32 %v1179, %v1235
      %v1250 = vmul.f32 %v1180, %v1236
      %v1251 = vmul.f32 %v1181, %v1237
      %v1252 = vmul.f32 %v1182, %v1238
      %v1253 = vmul.f32 %v1183, %v1239
      %v1254 = vmul.f32 %v1184, %v1240
      %v1255 = vmul.f32 %v1185, %v1241
      %v1256 = vpack.c.bf16 %v1243, %v1242
      %v1257 = vpack.c.bf16 %v1245, %v1244
      %v1258 = vpack.c.bf16 %v1247, %v1246
      %v1259 = vpack.c.bf16 %v1248, %v1248
      %v1260 = vpack.c.bf16 %v1250, %v1249
      %v1261 = vpack.c.bf16 %v1252, %v1251
      %v1262 = vpack.c.bf16 %v1254, %v1253
      %v1263 = vpack.c.bf16 %v1255, %v1255
      %v1265 = vsel %vm1085, %v1256, 0
      %v1268 = vsel %vm1085, %v1257, 0
      %v1271 = vsel %vm1085, %v1258, 0
      %v1274 = vsel %vm1085, %v1259, 0
      %vm1276 = vcmask 1043456
      %v1278 = vsel %vm1276, %v879, 0
      %1280 = vmatprep.subr.bf16.mxu0 0
      %1281 = vmatpush1.bf16.msra.mxu0 0
      %1282 = vmatprep.subr.bf16.mxu0 0
      %1283 = vmatpush1.bf16.msra.mxu0 0
      %1284 = vmatprep.subr.bf16.mxu0 0
      %1285 = vmatpush1.bf16.msra.mxu0 0
      %1286 = vmatprep.subr.bf16.mxu0 0
      %1287 = vmatpush1.bf16.msra.mxu0 0
      %1288 = vmatprep.subr.bf16.mxu0 0
      %1289 = vmatpush1.bf16.msra.mxu0 %v1278
      %1290 = vmatprep.subr.bf16.mxu0 0
      %1291 = vmatpush1.bf16.msra.mxu0 %v878
      %1292 = vmatprep.subr.bf16.mxu0 0
      %1293 = vmatpush1.bf16.msra.mxu0 %v877
      %1294 = vmatprep.subr.bf16.mxu0 0
      %1295 = vmatpush1.bf16.msra.mxu0 %v876
      %1296 = vmatprep.subr.bf16.mxu0 0
      %1297 = vmatpush2.bf16.msra.mxu0 0
      %1298 = vmatprep.subr.bf16.mxu0 0
      %1299 = vmatpush2.bf16.msra.mxu0 0
      %1300 = vmatprep.subr.bf16.mxu0 0
      %1301 = vmatpush2.bf16.msra.mxu0 0
      %1302 = vmatprep.subr.bf16.mxu0 0
      %1303 = vmatpush2.bf16.msra.mxu0 0
      %1304 = vmatprep.subr.bf16.mxu0 0
      %1305 = vmatpush2.bf16.msra.mxu0 0
      %1306 = vmatprep.subr.bf16.mxu0 0
      %1307 = vmatpush2.bf16.msra.mxu0 0
      %1308 = vmatprep.subr.bf16.mxu0 0
      %1309 = vmatpush2.bf16.msra.mxu0 0
      %1310 = vmatprep.subr.bf16.mxu0 0
      %1311 = vmatpush2.bf16.msra.mxu0 0
      %1312 = vmatprep.mubr.bf16.mxu0 0
      %1313 = vmatmul.mubr.bf16.gmra.mxu0 %v1265
      %v1314 = vpop.f32.mrf.mxu0
      %v1315 = vadd.f32 0.0, %v1314
      %v1316 = vpop.f32.mrf.mxu0
      %v1317 = vpop.f32.mrf.mxu0
      %v1318 = vadd.f32 0.0, %v1317
      %v1319 = vpop.f32.mrf.mxu0
      %1320 = vmatprep.mubr.bf16.mxu0 0
      %1321 = vmatmul.mubr.bf16.gmra.mxu0 %v1268
      %v1322 = vpop.f32.mrf.mxu0
      %v1323 = vadd.f32 0.0, %v1322
      %v1324 = vpop.f32.mrf.mxu0
      %v1325 = vpop.f32.mrf.mxu0
      %v1326 = vadd.f32 0.0, %v1325
      %v1327 = vpop.f32.mrf.mxu0
      %1328 = vmatprep.mubr.bf16.mxu0 0
      %1329 = vmatmul.mubr.bf16.gmra.mxu0 %v1271
      %v1330 = vpop.f32.mrf.mxu0
      %v1331 = vadd.f32 0.0, %v1330
      %v1332 = vpop.f32.mrf.mxu0
      %v1333 = vpop.f32.mrf.mxu0
      %v1334 = vadd.f32 0.0, %v1333
      %v1335 = vpop.f32.mrf.mxu0
      %1336 = vmatprep.mubr.bf16.mxu0 0
      %1337 = vmatmul.mubr.bf16.gmra.mxu0 %v1274
      %v1338 = vpop.f32.mrf.mxu0
      %v1339 = vadd.f32 0.0, %v1338
      %v1340 = vpop.f32.mrf.mxu0
      %v1341 = vpop.f32.mrf.mxu0
      %v1342 = vpop.f32.mrf.mxu0
      %1343 = vdwg.mxu0
      %v1345 = vsel %vm1085, %v1260, 0
      %v1348 = vsel %vm1085, %v1261, 0
      %v1351 = vsel %vm1085, %v1262, 0
      %v1354 = vsel %vm1085, %v1263, 0
      %v1357 = vsel %vm1276, %v883, 0
      %1359 = vmatprep.subr.bf16.mxu0 0
      %1360 = vmatpush1.bf16.msra.mxu0 0
      %1361 = vmatprep.subr.bf16.mxu0 0
      %1362 = vmatpush1.bf16.msra.mxu0 0
      %1363 = vmatprep.subr.bf16.mxu0 0
      %1364 = vmatpush1.bf16.msra.mxu0 0
      %1365 = vmatprep.subr.bf16.mxu0 0
      %1366 = vmatpush1.bf16.msra.mxu0 0
      %1367 = vmatprep.subr.bf16.mxu0 0
      %1368 = vmatpush1.bf16.msra.mxu0 %v1357
      %1369 = vmatprep.subr.bf16.mxu0 0
      %1370 = vmatpush1.bf16.msra.mxu0 %v882
      %1371 = vmatprep.subr.bf16.mxu0 0
      %1372 = vmatpush1.bf16.msra.mxu0 %v881
      %1373 = vmatprep.subr.bf16.mxu0 0
      %1374 = vmatpush1.bf16.msra.mxu0 %v880
      %1375 = vmatprep.subr.bf16.mxu0 0
      %1376 = vmatpush2.bf16.msra.mxu0 0
      %1377 = vmatprep.subr.bf16.mxu0 0
      %1378 = vmatpush2.bf16.msra.mxu0 0
      %1379 = vmatprep.subr.bf16.mxu0 0
      %1380 = vmatpush2.bf16.msra.mxu0 0
      %1381 = vmatprep.subr.bf16.mxu0 0
      %1382 = vmatpush2.bf16.msra.mxu0 0
      %1383 = vmatprep.subr.bf16.mxu0 0
      %1384 = vmatpush2.bf16.msra.mxu0 0
      %1385 = vmatprep.subr.bf16.mxu0 0
      %1386 = vmatpush2.bf16.msra.mxu0 0
      %1387 = vmatprep.subr.bf16.mxu0 0
      %1388 = vmatpush2.bf16.msra.mxu0 0
      %1389 = vmatprep.subr.bf16.mxu0 0
      %1390 = vmatpush2.bf16.msra.mxu0 0
      %1391 = vmatprep.mubr.bf16.mxu0 0
      %1392 = vmatmul.mubr.bf16.gmra.mxu0 %v1345
      %v1393 = vpop.f32.mrf.mxu0
      %v1394 = vadd.f32 0.0, %v1393
      %v1395 = vpop.f32.mrf.mxu0
      %v1396 = vpop.f32.mrf.mxu0
      %v1397 = vadd.f32 0.0, %v1396
      %v1398 = vpop.f32.mrf.mxu0
      %1399 = vmatprep.mubr.bf16.mxu0 0
      %1400 = vmatmul.mubr.bf16.gmra.mxu0 %v1348
      %v1401 = vpop.f32.mrf.mxu0
      %v1402 = vadd.f32 0.0, %v1401
      %v1403 = vpop.f32.mrf.mxu0
      %v1404 = vpop.f32.mrf.mxu0
      %v1405 = vadd.f32 0.0, %v1404
      %v1406 = vpop.f32.mrf.mxu0
      %1407 = vmatprep.mubr.bf16.mxu0 0
      %1408 = vmatmul.mubr.bf16.gmra.mxu0 %v1351
      %v1409 = vpop.f32.mrf.mxu0
      %v1410 = vadd.f32 0.0, %v1409
      %v1411 = vpop.f32.mrf.mxu0
      %v1412 = vpop.f32.mrf.mxu0
      %v1413 = vadd.f32 0.0, %v1412
      %v1414 = vpop.f32.mrf.mxu0
      %1415 = vmatprep.mubr.bf16.mxu0 0
      %1416 = vmatmul.mubr.bf16.gmra.mxu0 %v1354
      %v1417 = vpop.f32.mrf.mxu0
      %v1418 = vadd.f32 0.0, %v1417
      %v1419 = vpop.f32.mrf.mxu0
      %v1420 = vpop.f32.mrf.mxu0
      %v1421 = vpop.f32.mrf.mxu0
      %1422 = vdwg.mxu0
      %1427 = vrot.lane.b32.xlu0 %v860, 112
      %v1428 = vpop.permute.xlu0 %1427
      %1429 = vrot.lane.b32.xlu0 %v861, 112
      %v1430 = vpop.permute.xlu0 %1429
      %1431 = vrot.lane.b32.xlu0 %v862, 112
      %v1432 = vpop.permute.xlu0 %1431
      %1433 = vrot.lane.b32.xlu0 %v863, 112
      %v1434 = vpop.permute.xlu0 %1433
      %1439 = vrot.lane.b32.xlu0 %v868, 112
      %v1440 = vpop.permute.xlu0 %1439
      %1441 = vrot.lane.b32.xlu0 %v869, 112
      %v1442 = vpop.permute.xlu0 %1441
      %1443 = vrot.lane.b32.xlu0 %v870, 112
      %v1444 = vpop.permute.xlu0 %1443
      %1445 = vrot.lane.b32.xlu0 %v871, 112
      %v1446 = vpop.permute.xlu0 %1445
      %v1448 = vsel %vm887, %v1428, 0
      %v1451 = vsel %vm887, %v1430, 0
      %v1454 = vsel %vm887, %v1432, 0
      %v1457 = vsel %vm887, %v1434, 0
      %v1460 = vsel %vm887, %v1440, 0
      %v1463 = vsel %vm887, %v1442, 0
      %v1466 = vsel %vm887, %v1444, 0
      %v1469 = vsel %vm887, %v1446, 0
      %1471 = vmatprep.subr.bf16.mxu0 0
      %1472 = vmatpush1.bf16.xpose.msra.mxu0 0
      %1473 = vmatprep.subr.bf16.mxu0 0
      %1474 = vmatpush1.bf16.xpose.msra.mxu0 0
      %1475 = vmatprep.subr.bf16.mxu0 0
      %1476 = vmatpush1.bf16.xpose.msra.mxu0 0
      %1477 = vmatprep.subr.bf16.mxu0 0
      %1478 = vmatpush1.bf16.xpose.msra.mxu0 0
      %1479 = vmatprep.subr.bf16.mxu0 0
      %1480 = vmatpush1.bf16.xpose.msra.mxu0 %v1469
      %1481 = vmatprep.subr.bf16.mxu0 0
      %1482 = vmatpush1.bf16.xpose.msra.mxu0 %v1466
      %1483 = vmatprep.subr.bf16.mxu0 0
      %1484 = vmatpush1.bf16.xpose.msra.mxu0 %v1463
      %1485 = vmatprep.subr.bf16.mxu0 0
      %1486 = vmatpush1.bf16.xpose.msra.mxu0 %v1460
      %1487 = vmatprep.subr.bf16.mxu0 0
      %1488 = vmatpush2.bf16.xpose.msra.mxu0 0
      %1489 = vmatprep.subr.bf16.mxu0 0
      %1490 = vmatpush2.bf16.xpose.msra.mxu0 0
      %1491 = vmatprep.subr.bf16.mxu0 0
      %1492 = vmatpush2.bf16.xpose.msra.mxu0 0
      %1493 = vmatprep.subr.bf16.mxu0 0
      %1494 = vmatpush2.bf16.xpose.msra.mxu0 0
      %1495 = vmatprep.subr.bf16.mxu0 0
      %1496 = vmatpush2.bf16.xpose.msra.mxu0 0
      %1497 = vmatprep.subr.bf16.mxu0 0
      %1498 = vmatpush2.bf16.xpose.msra.mxu0 0
      %1499 = vmatprep.subr.bf16.mxu0 0
      %1500 = vmatpush2.bf16.xpose.msra.mxu0 0
      %1501 = vmatprep.subr.bf16.mxu0 0
      %1502 = vmatpush2.bf16.xpose.msra.mxu0 0
      %1503 = vmatprep.mubr.bf16.mxu0 0
      %1504 = vmatmul.mubr.bf16.gmra.mxu0 %v1448
      %v1505 = vpop.f32.mrf.mxu0
      %v1506 = vadd.f32 0.0, %v1505
      %v1507 = vpop.f32.mrf.mxu0
      %v1508 = vpop.f32.mrf.mxu0
      %v1509 = vadd.f32 0.0, %v1508
      %v1510 = vpop.f32.mrf.mxu0
      %1511 = vmatprep.mubr.bf16.mxu0 0
      %1512 = vmatmul.mubr.bf16.gmra.mxu0 %v1451
      %v1513 = vpop.f32.mrf.mxu0
      %v1514 = vadd.f32 0.0, %v1513
      %v1515 = vpop.f32.mrf.mxu0
      %v1516 = vpop.f32.mrf.mxu0
      %v1517 = vadd.f32 0.0, %v1516
      %v1518 = vpop.f32.mrf.mxu0
      %1519 = vmatprep.mubr.bf16.mxu0 0
      %1520 = vmatmul.mubr.bf16.gmra.mxu0 %v1454
      %v1521 = vpop.f32.mrf.mxu0
      %v1522 = vadd.f32 0.0, %v1521
      %v1523 = vpop.f32.mrf.mxu0
      %v1524 = vpop.f32.mrf.mxu0
      %v1525 = vadd.f32 0.0, %v1524
      %v1526 = vpop.f32.mrf.mxu0
      %1527 = vmatprep.mubr.bf16.mxu0 0
      %1528 = vmatmul.mubr.bf16.gmra.mxu0 %v1457
      %v1529 = vpop.f32.mrf.mxu0
      %v1530 = vadd.f32 0.0, %v1529
      %v1531 = vpop.f32.mrf.mxu0
      %v1532 = vpop.f32.mrf.mxu0
      %v1533 = vpop.f32.mrf.mxu0
      %1534 = vdwg.mxu0
      %1539 = vrot.lane.b32.xlu0 %v864, 112
      %v1540 = vpop.permute.xlu0 %1539
      %1541 = vrot.lane.b32.xlu0 %v865, 112
      %v1542 = vpop.permute.xlu0 %1541
      %1543 = vrot.lane.b32.xlu0 %v866, 112
      %v1544 = vpop.permute.xlu0 %1543
      %1545 = vrot.lane.b32.xlu0 %v867, 112
      %v1546 = vpop.permute.xlu0 %1545
      %1551 = vrot.lane.b32.xlu0 %v872, 112
      %v1552 = vpop.permute.xlu0 %1551
      %1553 = vrot.lane.b32.xlu0 %v873, 112
      %v1554 = vpop.permute.xlu0 %1553
      %1555 = vrot.lane.b32.xlu0 %v874, 112
      %v1556 = vpop.permute.xlu0 %1555
      %1557 = vrot.lane.b32.xlu0 %v875, 112
      %v1558 = vpop.permute.xlu0 %1557
      %v1560 = vsel %vm887, %v1540, 0
      %v1563 = vsel %vm887, %v1542, 0
      %v1566 = vsel %vm887, %v1544, 0
      %v1569 = vsel %vm887, %v1546, 0
      %v1572 = vsel %vm887, %v1552, 0
      %v1575 = vsel %vm887, %v1554, 0
      %v1578 = vsel %vm887, %v1556, 0
      %v1581 = vsel %vm887, %v1558, 0
      %1583 = vmatprep.subr.bf16.mxu0 0
      %1584 = vmatpush1.bf16.xpose.msra.mxu0 0
      %1585 = vmatprep.subr.bf16.mxu0 0
      %1586 = vmatpush1.bf16.xpose.msra.mxu0 0
      %1587 = vmatprep.subr.bf16.mxu0 0
      %1588 = vmatpush1.bf16.xpose.msra.mxu0 0
      %1589 = vmatprep.subr.bf16.mxu0 0
      %1590 = vmatpush1.bf16.xpose.msra.mxu0 0
      %1591 = vmatprep.subr.bf16.mxu0 0
      %1592 = vmatpush1.bf16.xpose.msra.mxu0 %v1581
      %1593 = vmatprep.subr.bf16.mxu0 0
      %1594 = vmatpush1.bf16.xpose.msra.mxu0 %v1578
      %1595 = vmatprep.subr.bf16.mxu0 0
      %1596 = vmatpush1.bf16.xpose.msra.mxu0 %v1575
      %1597 = vmatprep.subr.bf16.mxu0 0
      %1598 = vmatpush1.bf16.xpose.msra.mxu0 %v1572
      %1599 = vmatprep.subr.bf16.mxu0 0
      %1600 = vmatpush2.bf16.xpose.msra.mxu0 0
      %1601 = vmatprep.subr.bf16.mxu0 0
      %1602 = vmatpush2.bf16.xpose.msra.mxu0 0
      %1603 = vmatprep.subr.bf16.mxu0 0
      %1604 = vmatpush2.bf16.xpose.msra.mxu0 0
      %1605 = vmatprep.subr.bf16.mxu0 0
      %1606 = vmatpush2.bf16.xpose.msra.mxu0 0
      %1607 = vmatprep.subr.bf16.mxu0 0
      %1608 = vmatpush2.bf16.xpose.msra.mxu0 0
      %1609 = vmatprep.subr.bf16.mxu0 0
      %1610 = vmatpush2.bf16.xpose.msra.mxu0 0
      %1611 = vmatprep.subr.bf16.mxu0 0
      %1612 = vmatpush2.bf16.xpose.msra.mxu0 0
      %1613 = vmatprep.subr.bf16.mxu0 0
      %1614 = vmatpush2.bf16.xpose.msra.mxu0 0
      %1615 = vmatprep.mubr.bf16.mxu0 0
      %1616 = vmatmul.mubr.bf16.gmra.mxu0 %v1560
      %v1617 = vpop.f32.mrf.mxu0
      %v1618 = vadd.f32 0.0, %v1617
      %v1619 = vpop.f32.mrf.mxu0
      %v1620 = vpop.f32.mrf.mxu0
      %v1621 = vadd.f32 0.0, %v1620
      %v1622 = vpop.f32.mrf.mxu0
      %1623 = vmatprep.mubr.bf16.mxu0 0
      %1624 = vmatmul.mubr.bf16.gmra.mxu0 %v1563
      %v1625 = vpop.f32.mrf.mxu0
      %v1626 = vadd.f32 0.0, %v1625
      %v1627 = vpop.f32.mrf.mxu0
      %v1628 = vpop.f32.mrf.mxu0
      %v1629 = vadd.f32 0.0, %v1628
      %v1630 = vpop.f32.mrf.mxu0
      %1631 = vmatprep.mubr.bf16.mxu0 0
      %1632 = vmatmul.mubr.bf16.gmra.mxu0 %v1566
      %v1633 = vpop.f32.mrf.mxu0
      %v1634 = vadd.f32 0.0, %v1633
      %v1635 = vpop.f32.mrf.mxu0
      %v1636 = vpop.f32.mrf.mxu0
      %v1637 = vadd.f32 0.0, %v1636
      %v1638 = vpop.f32.mrf.mxu0
      %1639 = vmatprep.mubr.bf16.mxu0 0
      %1640 = vmatmul.mubr.bf16.gmra.mxu0 %v1569
      %v1641 = vpop.f32.mrf.mxu0
      %v1642 = vadd.f32 0.0, %v1641
      %v1643 = vpop.f32.mrf.mxu0
      %v1644 = vpop.f32.mrf.mxu0
      %v1645 = vpop.f32.mrf.mxu0
      %1646 = vdwg.mxu0
      %s1647 = scalar_lea.vmem %s3, 56
      %v1648 = vld [vmem:[%s1647] sm:$0xff]
      %v1649 = vld [vmem:[%s1647 + $0x8] sm:$0xff]
      %v1650 = vld [vmem:[%s1647 + $0x10] sm:$0xff]
      %v1651 = vld [vmem:[%s1647 + $0x18] sm:$0xff]
      %v1652 = vld [vmem:[%s1647 + $0x20] sm:$0xff]
      %v1653 = vld [vmem:[%s1647 + $0x28] sm:$0xff]
      %v1654 = vld [vmem:[%s1647 + $0x30] sm:$0xff]
      %v1655 = vmul.f32 %v1506, %v1648
      %v1656 = vmul.f32 %v1509, %v1649
      %v1657 = vmul.f32 %v1514, %v1650
      %v1658 = vmul.f32 %v1517, %v1651
      %v1659 = vmul.f32 %v1522, %v1652
      %v1660 = vmul.f32 %v1525, %v1653
      %v1661 = vmul.f32 %v1530, %v1654
      %v1662 = vmul.f32 %v1618, %v1648
      %v1663 = vmul.f32 %v1621, %v1649
      %v1664 = vmul.f32 %v1626, %v1650
      %v1665 = vmul.f32 %v1629, %v1651
      %v1666 = vmul.f32 %v1634, %v1652
      %v1667 = vmul.f32 %v1637, %v1653
      %v1668 = vmul.f32 %v1642, %v1654
      %v1669 = vsel %vm1085, %v1655, -inf
      %1670 = vmax.xlane.f32.xlu0 %v1669
      %v1671 = vpop.xlane.xlu0 %1670
      %v1672 = vsel %vm1085, %v1656, -inf
      %1673 = vmax.xlane.f32.xlu0 %v1672
      %v1674 = vpop.xlane.xlu0 %1673
      %v1675 = vsel %vm1085, %v1657, -inf
      %1676 = vmax.xlane.f32.xlu0 %v1675
      %v1677 = vpop.xlane.xlu0 %1676
      %v1678 = vsel %vm1085, %v1658, -inf
      %1679 = vmax.xlane.f32.xlu0 %v1678
      %v1680 = vpop.xlane.xlu0 %1679
      %v1681 = vsel %vm1085, %v1659, -inf
      %1682 = vmax.xlane.f32.xlu0 %v1681
      %v1683 = vpop.xlane.xlu0 %1682
      %v1684 = vsel %vm1085, %v1660, -inf
      %1685 = vmax.xlane.f32.xlu0 %v1684
      %v1686 = vpop.xlane.xlu0 %1685
      %v1687 = vsel %vm1085, %v1661, -inf
      %1688 = vmax.xlane.f32.xlu0 %v1687
      %v1689 = vpop.xlane.xlu0 %1688
      %v1690 = vsel %vm1085, %v1662, -inf
      %1691 = vmax.xlane.f32.xlu0 %v1690
      %v1692 = vpop.xlane.xlu0 %1691
      %v1693 = vsel %vm1085, %v1663, -inf
      %1694 = vmax.xlane.f32.xlu0 %v1693
      %v1695 = vpop.xlane.xlu0 %1694
      %v1696 = vsel %vm1085, %v1664, -inf
      %1697 = vmax.xlane.f32.xlu0 %v1696
      %v1698 = vpop.xlane.xlu0 %1697
      %v1699 = vsel %vm1085, %v1665, -inf
      %1700 = vmax.xlane.f32.xlu0 %v1699
      %v1701 = vpop.xlane.xlu0 %1700
      %v1702 = vsel %vm1085, %v1666, -inf
      %1703 = vmax.xlane.f32.xlu0 %v1702
      %v1704 = vpop.xlane.xlu0 %1703
      %v1705 = vsel %vm1085, %v1667, -inf
      %1706 = vmax.xlane.f32.xlu0 %v1705
      %v1707 = vpop.xlane.xlu0 %1706
      %v1708 = vsel %vm1085, %v1668, -inf
      %1709 = vmax.xlane.f32.xlu0 %v1708
      %v1710 = vpop.xlane.xlu0 %1709
      %v1711 = vsub.f32 %v1655, %v1671
      %v1712 = vsub.f32 %v1656, %v1674
      %v1713 = vsub.f32 %v1657, %v1677
      %v1714 = vsub.f32 %v1658, %v1680
      %v1715 = vsub.f32 %v1659, %v1683
      %v1716 = vsub.f32 %v1660, %v1686
      %v1717 = vsub.f32 %v1661, %v1689
      %v1718 = vsub.f32 %v1662, %v1692
      %v1719 = vsub.f32 %v1663, %v1695
      %v1720 = vsub.f32 %v1664, %v1698
      %v1721 = vsub.f32 %v1665, %v1701
      %v1722 = vsub.f32 %v1666, %v1704
      %v1723 = vsub.f32 %v1667, %v1707
      %v1724 = vsub.f32 %v1668, %v1710
      %v1725 = vmul.f32 %v1711, 1.442695
      %v1726 = vpow.pop %v1725
      %v1727 = vmul.f32 %v1712, 1.442695
      %v1728 = vpow.pop %v1727
      %v1729 = vmul.f32 %v1713, 1.442695
      %v1730 = vpow.pop %v1729
      %v1731 = vmul.f32 %v1714, 1.442695
      %v1732 = vpow.pop %v1731
      %v1733 = vmul.f32 %v1715, 1.442695
      %v1734 = vpow.pop %v1733
      %v1735 = vmul.f32 %v1716, 1.442695
      %v1736 = vpow.pop %v1735
      %v1737 = vmul.f32 %v1717, 1.442695
      %v1738 = vpow.pop %v1737
      %v1739 = vmul.f32 %v1718, 1.442695
      %v1740 = vpow.pop %v1739
      %v1741 = vmul.f32 %v1719, 1.442695
      %v1742 = vpow.pop %v1741
      %v1743 = vmul.f32 %v1720, 1.442695
      %v1744 = vpow.pop %v1743
      %v1745 = vmul.f32 %v1721, 1.442695
      %v1746 = vpow.pop %v1745
      %v1747 = vmul.f32 %v1722, 1.442695
      %v1748 = vpow.pop %v1747
      %v1749 = vmul.f32 %v1723, 1.442695
      %v1750 = vpow.pop %v1749
      %v1751 = vmul.f32 %v1724, 1.442695
      %v1752 = vpow.pop %v1751
      %v1753 = vsel %vm1171, %v1726, 0.0
      %v1754 = vsel %vm1171, %v1728, 0.0
      %v1755 = vsel %vm1171, %v1730, 0.0
      %v1756 = vsel %vm1171, %v1732, 0.0
      %v1757 = vsel %vm1171, %v1734, 0.0
      %v1758 = vsel %vm1171, %v1736, 0.0
      %v1759 = vsel %vm1171, %v1738, 0.0
      %v1760 = vsel %vm1171, %v1740, 0.0
      %v1761 = vsel %vm1171, %v1742, 0.0
      %v1762 = vsel %vm1171, %v1744, 0.0
      %v1763 = vsel %vm1171, %v1746, 0.0
      %v1764 = vsel %vm1171, %v1748, 0.0
      %v1765 = vsel %vm1171, %v1750, 0.0
      %v1766 = vsel %vm1171, %v1752, 0.0
      %v1767 = vsel %vm1085, %v1753, 0.0
      %1768 = vadd.xlane.f32.xlu0 %v1767
      %v1769 = vpop.xlane.xlu0 %1768
      %v1770 = vsel %vm1085, %v1754, 0.0
      %1771 = vadd.xlane.f32.xlu0 %v1770
      %v1772 = vpop.xlane.xlu0 %1771
      %v1773 = vsel %vm1085, %v1755, 0.0
      %1774 = vadd.xlane.f32.xlu0 %v1773
      %v1775 = vpop.xlane.xlu0 %1774
      %v1776 = vsel %vm1085, %v1756, 0.0
      %1777 = vadd.xlane.f32.xlu0 %v1776
      %v1778 = vpop.xlane.xlu0 %1777
      %v1779 = vsel %vm1085, %v1757, 0.0
      %1780 = vadd.xlane.f32.xlu0 %v1779
      %v1781 = vpop.xlane.xlu0 %1780
      %v1782 = vsel %vm1085, %v1758, 0.0
      %1783 = vadd.xlane.f32.xlu0 %v1782
      %v1784 = vpop.xlane.xlu0 %1783
      %v1785 = vsel %vm1085, %v1759, 0.0
      %1786 = vadd.xlane.f32.xlu0 %v1785
      %v1787 = vpop.xlane.xlu0 %1786
      %v1788 = vsel %vm1085, %v1760, 0.0
      %1789 = vadd.xlane.f32.xlu0 %v1788
      %v1790 = vpop.xlane.xlu0 %1789
      %v1791 = vsel %vm1085, %v1761, 0.0
      %1792 = vadd.xlane.f32.xlu0 %v1791
      %v1793 = vpop.xlane.xlu0 %1792
      %v1794 = vsel %vm1085, %v1762, 0.0
      %1795 = vadd.xlane.f32.xlu0 %v1794
      %v1796 = vpop.xlane.xlu0 %1795
      %v1797 = vsel %vm1085, %v1763, 0.0
      %1798 = vadd.xlane.f32.xlu0 %v1797
      %v1799 = vpop.xlane.xlu0 %1798
      %v1800 = vsel %vm1085, %v1764, 0.0
      %1801 = vadd.xlane.f32.xlu0 %v1800
      %v1802 = vpop.xlane.xlu0 %1801
      %v1803 = vsel %vm1085, %v1765, 0.0
      %1804 = vadd.xlane.f32.xlu0 %v1803
      %v1805 = vpop.xlane.xlu0 %1804
      %v1806 = vsel %vm1085, %v1766, 0.0
      %1807 = vadd.xlane.f32.xlu0 %v1806
      %v1808 = vpop.xlane.xlu0 %1807
      %v1809 = vrcp.pop %v1769
      %v1810 = vrcp.pop %v1772
      %v1811 = vrcp.pop %v1775
      %v1812 = vrcp.pop %v1778
      %v1813 = vrcp.pop %v1781
      %v1814 = vrcp.pop %v1784
      %v1815 = vrcp.pop %v1787
      %v1816 = vrcp.pop %v1790
      %v1817 = vrcp.pop %v1793
      %v1818 = vrcp.pop %v1796
      %v1819 = vrcp.pop %v1799
      %v1820 = vrcp.pop %v1802
      %v1821 = vrcp.pop %v1805
      %v1822 = vrcp.pop %v1808
      %v1823 = vmul.f32 %v1753, %v1809
      %v1824 = vmul.f32 %v1754, %v1810
      %v1825 = vmul.f32 %v1755, %v1811
      %v1826 = vmul.f32 %v1756, %v1812
      %v1827 = vmul.f32 %v1757, %v1813
      %v1828 = vmul.f32 %v1758, %v1814
      %v1829 = vmul.f32 %v1759, %v1815
      %v1830 = vmul.f32 %v1760, %v1816
      %v1831 = vmul.f32 %v1761, %v1817
      %v1832 = vmul.f32 %v1762, %v1818
      %v1833 = vmul.f32 %v1763, %v1819
      %v1834 = vmul.f32 %v1764, %v1820
      %v1835 = vmul.f32 %v1765, %v1821
      %v1836 = vmul.f32 %v1766, %v1822
      %v1837 = vpack.c.bf16 %v1824, %v1823
      %v1838 = vpack.c.bf16 %v1826, %v1825
      %v1839 = vpack.c.bf16 %v1828, %v1827
      %v1840 = vpack.c.bf16 %v1829, %v1829
      %v1841 = vpack.c.bf16 %v1831, %v1830
      %v1842 = vpack.c.bf16 %v1833, %v1832
      %v1843 = vpack.c.bf16 %v1835, %v1834
      %v1844 = vpack.c.bf16 %v1836, %v1836
      %1849 = vrot.lane.b32.xlu0 %v876, 112
      %v1850 = vpop.permute.xlu0 %1849
      %1851 = vrot.lane.b32.xlu0 %v877, 112
      %v1852 = vpop.permute.xlu0 %1851
      %1853 = vrot.lane.b32.xlu0 %v878, 112
      %v1854 = vpop.permute.xlu0 %1853
      %1855 = vrot.lane.b32.xlu0 %v879, 112
      %v1856 = vpop.permute.xlu0 %1855
      %v1861 = vsel %vm1085, %v1837, 0
      %v1864 = vsel %vm1085, %v1838, 0
      %v1867 = vsel %vm1085, %v1839, 0
      %v1870 = vsel %vm1085, %v1840, 0
      %v1873 = vsel %vm1276, %v1856, 0
      %1875 = vmatprep.subr.bf16.mxu0 0
      %1876 = vmatpush1.bf16.msra.mxu0 0
      %1877 = vmatprep.subr.bf16.mxu0 0
      %1878 = vmatpush1.bf16.msra.mxu0 0
      %1879 = vmatprep.subr.bf16.mxu0 0
      %1880 = vmatpush1.bf16.msra.mxu0 0
      %1881 = vmatprep.subr.bf16.mxu0 0
      %1882 = vmatpush1.bf16.msra.mxu0 0
      %1883 = vmatprep.subr.bf16.mxu0 0
      %1884 = vmatpush1.bf16.msra.mxu0 %v1873
      %1885 = vmatprep.subr.bf16.mxu0 0
      %1886 = vmatpush1.bf16.msra.mxu0 %v1854
      %1887 = vmatprep.subr.bf16.mxu0 0
      %1888 = vmatpush1.bf16.msra.mxu0 %v1852
      %1889 = vmatprep.subr.bf16.mxu0 0
      %1890 = vmatpush1.bf16.msra.mxu0 %v1850
      %1891 = vmatprep.subr.bf16.mxu0 0
      %1892 = vmatpush2.bf16.msra.mxu0 0
      %1893 = vmatprep.subr.bf16.mxu0 0
      %1894 = vmatpush2.bf16.msra.mxu0 0
      %1895 = vmatprep.subr.bf16.mxu0 0
      %1896 = vmatpush2.bf16.msra.mxu0 0
      %1897 = vmatprep.subr.bf16.mxu0 0
      %1898 = vmatpush2.bf16.msra.mxu0 0
      %1899 = vmatprep.subr.bf16.mxu0 0
      %1900 = vmatpush2.bf16.msra.mxu0 0
      %1901 = vmatprep.subr.bf16.mxu0 0
      %1902 = vmatpush2.bf16.msra.mxu0 0
      %1903 = vmatprep.subr.bf16.mxu0 0
      %1904 = vmatpush2.bf16.msra.mxu0 0
      %1905 = vmatprep.subr.bf16.mxu0 0
      %1906 = vmatpush2.bf16.msra.mxu0 0
      %1907 = vmatprep.mubr.bf16.mxu0 0
      %1908 = vmatmul.mubr.bf16.gmra.mxu0 %v1861
      %v1909 = vpop.f32.mrf.mxu0
      %v1910 = vadd.f32 0.0, %v1909
      %v1911 = vpop.f32.mrf.mxu0
      %v1912 = vpop.f32.mrf.mxu0
      %v1913 = vadd.f32 0.0, %v1912
      %v1914 = vpop.f32.mrf.mxu0
      %1915 = vmatprep.mubr.bf16.mxu0 0
      %1916 = vmatmul.mubr.bf16.gmra.mxu0 %v1864
      %v1917 = vpop.f32.mrf.mxu0
      %v1918 = vadd.f32 0.0, %v1917
      %v1919 = vpop.f32.mrf.mxu0
      %v1920 = vpop.f32.mrf.mxu0
      %v1921 = vadd.f32 0.0, %v1920
      %v1922 = vpop.f32.mrf.mxu0
      %1923 = vmatprep.mubr.bf16.mxu0 0
      %1924 = vmatmul.mubr.bf16.gmra.mxu0 %v1867
      %v1925 = vpop.f32.mrf.mxu0
      %v1926 = vadd.f32 0.0, %v1925
      %v1927 = vpop.f32.mrf.mxu0
      %v1928 = vpop.f32.mrf.mxu0
      %v1929 = vadd.f32 0.0, %v1928
      %v1930 = vpop.f32.mrf.mxu0
      %1931 = vmatprep.mubr.bf16.mxu0 0
      %1932 = vmatmul.mubr.bf16.gmra.mxu0 %v1870
      %v1933 = vpop.f32.mrf.mxu0
      %v1934 = vadd.f32 0.0, %v1933
      %v1935 = vpop.f32.mrf.mxu0
      %v1936 = vpop.f32.mrf.mxu0
      %v1937 = vpop.f32.mrf.mxu0
      %1938 = vdwg.mxu0
      %1943 = vrot.lane.b32.xlu0 %v880, 112
      %v1944 = vpop.permute.xlu0 %1943
      %1945 = vrot.lane.b32.xlu0 %v881, 112
      %v1946 = vpop.permute.xlu0 %1945
      %1947 = vrot.lane.b32.xlu0 %v882, 112
      %v1948 = vpop.permute.xlu0 %1947
      %1949 = vrot.lane.b32.xlu0 %v883, 112
      %v1950 = vpop.permute.xlu0 %1949
      %v1955 = vsel %vm1085, %v1841, 0
      %v1958 = vsel %vm1085, %v1842, 0
      %v1961 = vsel %vm1085, %v1843, 0
      %v1964 = vsel %vm1085, %v1844, 0
      %v1967 = vsel %vm1276, %v1950, 0
      %1969 = vmatprep.subr.bf16.mxu0 0
      %1970 = vmatpush1.bf16.msra.mxu0 0
      %1971 = vmatprep.subr.bf16.mxu0 0
      %1972 = vmatpush1.bf16.msra.mxu0 0
      %1973 = vmatprep.subr.bf16.mxu0 0
      %1974 = vmatpush1.bf16.msra.mxu0 0
      %1975 = vmatprep.subr.bf16.mxu0 0
      %1976 = vmatpush1.bf16.msra.mxu0 0
      %1977 = vmatprep.subr.bf16.mxu0 0
      %1978 = vmatpush1.bf16.msra.mxu0 %v1967
      %1979 = vmatprep.subr.bf16.mxu0 0
      %1980 = vmatpush1.bf16.msra.mxu0 %v1948
      %1981 = vmatprep.subr.bf16.mxu0 0
      %1982 = vmatpush1.bf16.msra.mxu0 %v1946
      %1983 = vmatprep.subr.bf16.mxu0 0
      %1984 = vmatpush1.bf16.msra.mxu0 %v1944
      %1985 = vmatprep.subr.bf16.mxu0 0
      %1986 = vmatpush2.bf16.msra.mxu0 0
      %1987 = vmatprep.subr.bf16.mxu0 0
      %1988 = vmatpush2.bf16.msra.mxu0 0
      %1989 = vmatprep.subr.bf16.mxu0 0
      %1990 = vmatpush2.bf16.msra.mxu0 0
      %1991 = vmatprep.subr.bf16.mxu0 0
      %1992 = vmatpush2.bf16.msra.mxu0 0
      %1993 = vmatprep.subr.bf16.mxu0 0
      %1994 = vmatpush2.bf16.msra.mxu0 0
      %1995 = vmatprep.subr.bf16.mxu0 0
      %1996 = vmatpush2.bf16.msra.mxu0 0
      %1997 = vmatprep.subr.bf16.mxu0 0
      %1998 = vmatpush2.bf16.msra.mxu0 0
      %1999 = vmatprep.subr.bf16.mxu0 0
      %2000 = vmatpush2.bf16.msra.mxu0 0
      %2001 = vmatprep.mubr.bf16.mxu0 0
      %2002 = vmatmul.mubr.bf16.gmra.mxu0 %v1955
      %v2003 = vpop.f32.mrf.mxu0
      %v2004 = vadd.f32 0.0, %v2003
      %v2005 = vpop.f32.mrf.mxu0
      %v2006 = vpop.f32.mrf.mxu0
      %v2007 = vadd.f32 0.0, %v2006
      %v2008 = vpop.f32.mrf.mxu0
      %2009 = vmatprep.mubr.bf16.mxu0 0
      %2010 = vmatmul.mubr.bf16.gmra.mxu0 %v1958
      %v2011 = vpop.f32.mrf.mxu0
      %v2012 = vadd.f32 0.0, %v2011
      %v2013 = vpop.f32.mrf.mxu0
      %v2014 = vpop.f32.mrf.mxu0
      %v2015 = vadd.f32 0.0, %v2014
      %v2016 = vpop.f32.mrf.mxu0
      %2017 = vmatprep.mubr.bf16.mxu0 0
      %2018 = vmatmul.mubr.bf16.gmra.mxu0 %v1961
      %v2019 = vpop.f32.mrf.mxu0
      %v2020 = vadd.f32 0.0, %v2019
      %v2021 = vpop.f32.mrf.mxu0
      %v2022 = vpop.f32.mrf.mxu0
      %v2023 = vadd.f32 0.0, %v2022
      %v2024 = vpop.f32.mrf.mxu0
      %2025 = vmatprep.mubr.bf16.mxu0 0
      %2026 = vmatmul.mubr.bf16.gmra.mxu0 %v1964
      %v2027 = vpop.f32.mrf.mxu0
      %v2028 = vadd.f32 0.0, %v2027
      %v2029 = vpop.f32.mrf.mxu0
      %v2030 = vpop.f32.mrf.mxu0
      %v2031 = vpop.f32.mrf.mxu0
      %2032 = vdwg.mxu0
      %2033 = vrot.lane.b32.xlu0 %v860, 96
      %v2034 = vpop.permute.xlu0 %2033
      %2035 = vrot.lane.b32.xlu0 %v861, 96
      %v2036 = vpop.permute.xlu0 %2035
      %2037 = vrot.lane.b32.xlu0 %v862, 96
      %v2038 = vpop.permute.xlu0 %2037
      %2039 = vrot.lane.b32.xlu0 %v863, 96
      %v2040 = vpop.permute.xlu0 %2039
      %2041 = vrot.lane.b32.xlu0 %v868, 96
      %v2042 = vpop.permute.xlu0 %2041
      %2043 = vrot.lane.b32.xlu0 %v869, 96
      %v2044 = vpop.permute.xlu0 %2043
      %2045 = vrot.lane.b32.xlu0 %v870, 96
      %v2046 = vpop.permute.xlu0 %2045
      %2047 = vrot.lane.b32.xlu0 %v871, 96
      %v2048 = vpop.permute.xlu0 %2047
      %v2050 = vsel %vm887, %v2034, 0
      %v2053 = vsel %vm887, %v2036, 0
      %v2056 = vsel %vm887, %v2038, 0
      %v2059 = vsel %vm887, %v2040, 0
      %v2062 = vsel %vm887, %v2042, 0
      %v2065 = vsel %vm887, %v2044, 0
      %v2068 = vsel %vm887, %v2046, 0
      %v2071 = vsel %vm887, %v2048, 0
      %2073 = vmatprep.subr.bf16.mxu0 0
      %2074 = vmatpush1.bf16.xpose.msra.mxu0 0
      %2075 = vmatprep.subr.bf16.mxu0 0
      %2076 = vmatpush1.bf16.xpose.msra.mxu0 0
      %2077 = vmatprep.subr.bf16.mxu0 0
      %2078 = vmatpush1.bf16.xpose.msra.mxu0 0
      %2079 = vmatprep.subr.bf16.mxu0 0
      %2080 = vmatpush1.bf16.xpose.msra.mxu0 0
      %2081 = vmatprep.subr.bf16.mxu0 0
      %2082 = vmatpush1.bf16.xpose.msra.mxu0 %v2071
      %2083 = vmatprep.subr.bf16.mxu0 0
      %2084 = vmatpush1.bf16.xpose.msra.mxu0 %v2068
      %2085 = vmatprep.subr.bf16.mxu0 0
      %2086 = vmatpush1.bf16.xpose.msra.mxu0 %v2065
      %2087 = vmatprep.subr.bf16.mxu0 0
      %2088 = vmatpush1.bf16.xpose.msra.mxu0 %v2062
      %2089 = vmatprep.subr.bf16.mxu0 0
      %2090 = vmatpush2.bf16.xpose.msra.mxu0 0
      %2091 = vmatprep.subr.bf16.mxu0 0
      %2092 = vmatpush2.bf16.xpose.msra.mxu0 0
      %2093 = vmatprep.subr.bf16.mxu0 0
      %2094 = vmatpush2.bf16.xpose.msra.mxu0 0
      %2095 = vmatprep.subr.bf16.mxu0 0
      %2096 = vmatpush2.bf16.xpose.msra.mxu0 0
      %2097 = vmatprep.subr.bf16.mxu0 0
      %2098 = vmatpush2.bf16.xpose.msra.mxu0 0
      %2099 = vmatprep.subr.bf16.mxu0 0
      %2100 = vmatpush2.bf16.xpose.msra.mxu0 0
      %2101 = vmatprep.subr.bf16.mxu0 0
      %2102 = vmatpush2.bf16.xpose.msra.mxu0 0
      %2103 = vmatprep.subr.bf16.mxu0 0
      %2104 = vmatpush2.bf16.xpose.msra.mxu0 0
      %2105 = vmatprep.mubr.bf16.mxu0 0
      %2106 = vmatmul.mubr.bf16.gmra.mxu0 %v2050
      %v2107 = vpop.f32.mrf.mxu0
      %v2108 = vadd.f32 0.0, %v2107
      %v2109 = vpop.f32.mrf.mxu0
      %v2110 = vpop.f32.mrf.mxu0
      %v2111 = vadd.f32 0.0, %v2110
      %v2112 = vpop.f32.mrf.mxu0
      %2113 = vmatprep.mubr.bf16.mxu0 0
      %2114 = vmatmul.mubr.bf16.gmra.mxu0 %v2053
      %v2115 = vpop.f32.mrf.mxu0
      %v2116 = vadd.f32 0.0, %v2115
      %v2117 = vpop.f32.mrf.mxu0
      %v2118 = vpop.f32.mrf.mxu0
      %v2119 = vadd.f32 0.0, %v2118
      %v2120 = vpop.f32.mrf.mxu0
      %2121 = vmatprep.mubr.bf16.mxu0 0
      %2122 = vmatmul.mubr.bf16.gmra.mxu0 %v2056
      %v2123 = vpop.f32.mrf.mxu0
      %v2124 = vadd.f32 0.0, %v2123
      %v2125 = vpop.f32.mrf.mxu0
      %v2126 = vpop.f32.mrf.mxu0
      %v2127 = vadd.f32 0.0, %v2126
      %v2128 = vpop.f32.mrf.mxu0
      %2129 = vmatprep.mubr.bf16.mxu0 0
      %2130 = vmatmul.mubr.bf16.gmra.mxu0 %v2059
      %v2131 = vpop.f32.mrf.mxu0
      %v2132 = vadd.f32 0.0, %v2131
      %v2133 = vpop.f32.mrf.mxu0
      %v2134 = vpop.f32.mrf.mxu0
      %v2135 = vpop.f32.mrf.mxu0
      %2136 = vdwg.mxu0
      %2137 = vrot.lane.b32.xlu0 %v864, 96
      %v2138 = vpop.permute.xlu0 %2137
      %2139 = vrot.lane.b32.xlu0 %v865, 96
      %v2140 = vpop.permute.xlu0 %2139
      %2141 = vrot.lane.b32.xlu0 %v866, 96
      %v2142 = vpop.permute.xlu0 %2141
      %2143 = vrot.lane.b32.xlu0 %v867, 96
      %v2144 = vpop.permute.xlu0 %2143
      %2145 = vrot.lane.b32.xlu0 %v872, 96
      %v2146 = vpop.permute.xlu0 %2145
      %2147 = vrot.lane.b32.xlu0 %v873, 96
      %v2148 = vpop.permute.xlu0 %2147
      %2149 = vrot.lane.b32.xlu0 %v874, 96
      %v2150 = vpop.permute.xlu0 %2149
      %2151 = vrot.lane.b32.xlu0 %v875, 96
      %v2152 = vpop.permute.xlu0 %2151
      %v2154 = vsel %vm887, %v2138, 0
      %v2157 = vsel %vm887, %v2140, 0
      %v2160 = vsel %vm887, %v2142, 0
      %v2163 = vsel %vm887, %v2144, 0
      %v2166 = vsel %vm887, %v2146, 0
      %v2169 = vsel %vm887, %v2148, 0
      %v2172 = vsel %vm887, %v2150, 0
      %v2175 = vsel %vm887, %v2152, 0
      %2177 = vmatprep.subr.bf16.mxu0 0
      %2178 = vmatpush1.bf16.xpose.msra.mxu0 0
      %2179 = vmatprep.subr.bf16.mxu0 0
      %2180 = vmatpush1.bf16.xpose.msra.mxu0 0
      %2181 = vmatprep.subr.bf16.mxu0 0
      %2182 = vmatpush1.bf16.xpose.msra.mxu0 0
      %2183 = vmatprep.subr.bf16.mxu0 0
      %2184 = vmatpush1.bf16.xpose.msra.mxu0 0
      %2185 = vmatprep.subr.bf16.mxu0 0
      %2186 = vmatpush1.bf16.xpose.msra.mxu0 %v2175
      %2187 = vmatprep.subr.bf16.mxu0 0
      %2188 = vmatpush1.bf16.xpose.msra.mxu0 %v2172
      %2189 = vmatprep.subr.bf16.mxu0 0
      %2190 = vmatpush1.bf16.xpose.msra.mxu0 %v2169
      %2191 = vmatprep.subr.bf16.mxu0 0
      %2192 = vmatpush1.bf16.xpose.msra.mxu0 %v2166
      %2193 = vmatprep.subr.bf16.mxu0 0
      %2194 = vmatpush2.bf16.xpose.msra.mxu0 0
      %2195 = vmatprep.subr.bf16.mxu0 0
      %2196 = vmatpush2.bf16.xpose.msra.mxu0 0
      %2197 = vmatprep.subr.bf16.mxu0 0
      %2198 = vmatpush2.bf16.xpose.msra.mxu0 0
      %2199 = vmatprep.subr.bf16.mxu0 0
      %2200 = vmatpush2.bf16.xpose.msra.mxu0 0
      %2201 = vmatprep.subr.bf16.mxu0 0
      %2202 = vmatpush2.bf16.xpose.msra.mxu0 0
      %2203 = vmatprep.subr.bf16.mxu0 0
      %2204 = vmatpush2.bf16.xpose.msra.mxu0 0
      %2205 = vmatprep.subr.bf16.mxu0 0
      %2206 = vmatpush2.bf16.xpose.msra.mxu0 0
      %2207 = vmatprep.subr.bf16.mxu0 0
      %2208 = vmatpush2.bf16.xpose.msra.mxu0 0
      %2209 = vmatprep.mubr.bf16.mxu0 0
      %2210 = vmatmul.mubr.bf16.gmra.mxu0 %v2154
      %v2211 = vpop.f32.mrf.mxu0
      %v2212 = vadd.f32 0.0, %v2211
      %v2213 = vpop.f32.mrf.mxu0
      %v2214 = vpop.f32.mrf.mxu0
      %v2215 = vadd.f32 0.0, %v2214
      %v2216 = vpop.f32.mrf.mxu0
      %2217 = vmatprep.mubr.bf16.mxu0 0
      %2218 = vmatmul.mubr.bf16.gmra.mxu0 %v2157
      %v2219 = vpop.f32.mrf.mxu0
      %v2220 = vadd.f32 0.0, %v2219
      %v2221 = vpop.f32.mrf.mxu0
      %v2222 = vpop.f32.mrf.mxu0
      %v2223 = vadd.f32 0.0, %v2222
      %v2224 = vpop.f32.mrf.mxu0
      %2225 = vmatprep.mubr.bf16.mxu0 0
      %2226 = vmatmul.mubr.bf16.gmra.mxu0 %v2160
      %v2227 = vpop.f32.mrf.mxu0
      %v2228 = vadd.f32 0.0, %v2227
      %v2229 = vpop.f32.mrf.mxu0
      %v2230 = vpop.f32.mrf.mxu0
      %v2231 = vadd.f32 0.0, %v2230
      %v2232 = vpop.f32.mrf.mxu0
      %2233 = vmatprep.mubr.bf16.mxu0 0
      %2234 = vmatmul.mubr.bf16.gmra.mxu0 %v2163
      %v2235 = vpop.f32.mrf.mxu0
      %v2236 = vadd.f32 0.0, %v2235
      %v2237 = vpop.f32.mrf.mxu0
      %v2238 = vpop.f32.mrf.mxu0
      %v2239 = vpop.f32.mrf.mxu0
      %2240 = vdwg.mxu0
      %s2241 = scalar_lea.vmem %s3, 112
      %v2242 = vld [vmem:[%s2241] sm:$0xff]
      %v2243 = vld [vmem:[%s2241 + $0x8] sm:$0xff]
      %v2244 = vld [vmem:[%s2241 + $0x10] sm:$0xff]
      %v2245 = vld [vmem:[%s2241 + $0x18] sm:$0xff]
      %v2246 = vld [vmem:[%s2241 + $0x20] sm:$0xff]
      %v2247 = vld [vmem:[%s2241 + $0x28] sm:$0xff]
      %v2248 = vld [vmem:[%s2241 + $0x30] sm:$0xff]
      %v2249 = vmul.f32 %v2108, %v2242
      %v2250 = vmul.f32 %v2111, %v2243
      %v2251 = vmul.f32 %v2116, %v2244
      %v2252 = vmul.f32 %v2119, %v2245
      %v2253 = vmul.f32 %v2124, %v2246
      %v2254 = vmul.f32 %v2127, %v2247
      %v2255 = vmul.f32 %v2132, %v2248
      %v2256 = vmul.f32 %v2212, %v2242
      %v2257 = vmul.f32 %v2215, %v2243
      %v2258 = vmul.f32 %v2220, %v2244
      %v2259 = vmul.f32 %v2223, %v2245
      %v2260 = vmul.f32 %v2228, %v2246
      %v2261 = vmul.f32 %v2231, %v2247
      %v2262 = vmul.f32 %v2236, %v2248
      %v2263 = vsel %vm1085, %v2249, -inf
      %2264 = vmax.xlane.f32.xlu0 %v2263
      %v2265 = vpop.xlane.xlu0 %2264
      %v2266 = vsel %vm1085, %v2250, -inf
      %2267 = vmax.xlane.f32.xlu0 %v2266
      %v2268 = vpop.xlane.xlu0 %2267
      %v2269 = vsel %vm1085, %v2251, -inf
      %2270 = vmax.xlane.f32.xlu0 %v2269
      %v2271 = vpop.xlane.xlu0 %2270
      %v2272 = vsel %vm1085, %v2252, -inf
      %2273 = vmax.xlane.f32.xlu0 %v2272
      %v2274 = vpop.xlane.xlu0 %2273
      %v2275 = vsel %vm1085, %v2253, -inf
      %2276 = vmax.xlane.f32.xlu0 %v2275
      %v2277 = vpop.xlane.xlu0 %2276
      %v2278 = vsel %vm1085, %v2254, -inf
      %2279 = vmax.xlane.f32.xlu0 %v2278
      %v2280 = vpop.xlane.xlu0 %2279
      %v2281 = vsel %vm1085, %v2255, -inf
      %2282 = vmax.xlane.f32.xlu0 %v2281
      %v2283 = vpop.xlane.xlu0 %2282
      %v2284 = vsel %vm1085, %v2256, -inf
      %2285 = vmax.xlane.f32.xlu0 %v2284
      %v2286 = vpop.xlane.xlu0 %2285
      %v2287 = vsel %vm1085, %v2257, -inf
      %2288 = vmax.xlane.f32.xlu0 %v2287
      %v2289 = vpop.xlane.xlu0 %2288
      %v2290 = vsel %vm1085, %v2258, -inf
      %2291 = vmax.xlane.f32.xlu0 %v2290
      %v2292 = vpop.xlane.xlu0 %2291
      %v2293 = vsel %vm1085, %v2259, -inf
      %2294 = vmax.xlane.f32.xlu0 %v2293
      %v2295 = vpop.xlane.xlu0 %2294
      %v2296 = vsel %vm1085, %v2260, -inf
      %2297 = vmax.xlane.f32.xlu0 %v2296
      %v2298 = vpop.xlane.xlu0 %2297
      %v2299 = vsel %vm1085, %v2261, -inf
      %2300 = vmax.xlane.f32.xlu0 %v2299
      %v2301 = vpop.xlane.xlu0 %2300
      %v2302 = vsel %vm1085, %v2262, -inf
      %2303 = vmax.xlane.f32.xlu0 %v2302
      %v2304 = vpop.xlane.xlu0 %2303
      %v2305 = vsub.f32 %v2249, %v2265
      %v2306 = vsub.f32 %v2250, %v2268
      %v2307 = vsub.f32 %v2251, %v2271
      %v2308 = vsub.f32 %v2252, %v2274
      %v2309 = vsub.f32 %v2253, %v2277
      %v2310 = vsub.f32 %v2254, %v2280
      %v2311 = vsub.f32 %v2255, %v2283
      %v2312 = vsub.f32 %v2256, %v2286
      %v2313 = vsub.f32 %v2257, %v2289
      %v2314 = vsub.f32 %v2258, %v2292
      %v2315 = vsub.f32 %v2259, %v2295
      %v2316 = vsub.f32 %v2260, %v2298
      %v2317 = vsub.f32 %v2261, %v2301
      %v2318 = vsub.f32 %v2262, %v2304
      %v2319 = vmul.f32 %v2305, 1.442695
      %v2320 = vpow.pop %v2319
      %v2321 = vmul.f32 %v2306, 1.442695
      %v2322 = vpow.pop %v2321
      %v2323 = vmul.f32 %v2307, 1.442695
      %v2324 = vpow.pop %v2323
      %v2325 = vmul.f32 %v2308, 1.442695
      %v2326 = vpow.pop %v2325
      %v2327 = vmul.f32 %v2309, 1.442695
      %v2328 = vpow.pop %v2327
      %v2329 = vmul.f32 %v2310, 1.442695
      %v2330 = vpow.pop %v2329
      %v2331 = vmul.f32 %v2311, 1.442695
      %v2332 = vpow.pop %v2331
      %v2333 = vmul.f32 %v2312, 1.442695
      %v2334 = vpow.pop %v2333
      %v2335 = vmul.f32 %v2313, 1.442695
      %v2336 = vpow.pop %v2335
      %v2337 = vmul.f32 %v2314, 1.442695
      %v2338 = vpow.pop %v2337
      %v2339 = vmul.f32 %v2315, 1.442695
      %v2340 = vpow.pop %v2339
      %v2341 = vmul.f32 %v2316, 1.442695
      %v2342 = vpow.pop %v2341
      %v2343 = vmul.f32 %v2317, 1.442695
      %v2344 = vpow.pop %v2343
      %v2345 = vmul.f32 %v2318, 1.442695
      %v2346 = vpow.pop %v2345
      %v2347 = vsel %vm1171, %v2320, 0.0
      %v2348 = vsel %vm1171, %v2322, 0.0
      %v2349 = vsel %vm1171, %v2324, 0.0
      %v2350 = vsel %vm1171, %v2326, 0.0
      %v2351 = vsel %vm1171, %v2328, 0.0
      %v2352 = vsel %vm1171, %v2330, 0.0
      %v2353 = vsel %vm1171, %v2332, 0.0
      %v2354 = vsel %vm1171, %v2334, 0.0
      %v2355 = vsel %vm1171, %v2336, 0.0
      %v2356 = vsel %vm1171, %v2338, 0.0
      %v2357 = vsel %vm1171, %v2340, 0.0
      %v2358 = vsel %vm1171, %v2342, 0.0
      %v2359 = vsel %vm1171, %v2344, 0.0
      %v2360 = vsel %vm1171, %v2346, 0.0
      %v2361 = vsel %vm1085, %v2347, 0.0
      %2362 = vadd.xlane.f32.xlu0 %v2361
      %v2363 = vpop.xlane.xlu0 %2362
      %v2364 = vsel %vm1085, %v2348, 0.0
      %2365 = vadd.xlane.f32.xlu0 %v2364
      %v2366 = vpop.xlane.xlu0 %2365
      %v2367 = vsel %vm1085, %v2349, 0.0
      %2368 = vadd.xlane.f32.xlu0 %v2367
      %v2369 = vpop.xlane.xlu0 %2368
      %v2370 = vsel %vm1085, %v2350, 0.0
      %2371 = vadd.xlane.f32.xlu0 %v2370
      %v2372 = vpop.xlane.xlu0 %2371
      %v2373 = vsel %vm1085, %v2351, 0.0
      %2374 = vadd.xlane.f32.xlu0 %v2373
      %v2375 = vpop.xlane.xlu0 %2374
      %v2376 = vsel %vm1085, %v2352, 0.0
      %2377 = vadd.xlane.f32.xlu0 %v2376
      %v2378 = vpop.xlane.xlu0 %2377
      %v2379 = vsel %vm1085, %v2353, 0.0
      %2380 = vadd.xlane.f32.xlu0 %v2379
      %v2381 = vpop.xlane.xlu0 %2380
      %v2382 = vsel %vm1085, %v2354, 0.0
      %2383 = vadd.xlane.f32.xlu0 %v2382
      %v2384 = vpop.xlane.xlu0 %2383
      %v2385 = vsel %vm1085, %v2355, 0.0
      %2386 = vadd.xlane.f32.xlu0 %v2385
      %v2387 = vpop.xlane.xlu0 %2386
      %v2388 = vsel %vm1085, %v2356, 0.0
      %2389 = vadd.xlane.f32.xlu0 %v2388
      %v2390 = vpop.xlane.xlu0 %2389
      %v2391 = vsel %vm1085, %v2357, 0.0
      %2392 = vadd.xlane.f32.xlu0 %v2391
      %v2393 = vpop.xlane.xlu0 %2392
      %v2394 = vsel %vm1085, %v2358, 0.0
      %2395 = vadd.xlane.f32.xlu0 %v2394
      %v2396 = vpop.xlane.xlu0 %2395
      %v2397 = vsel %vm1085, %v2359, 0.0
      %2398 = vadd.xlane.f32.xlu0 %v2397
      %v2399 = vpop.xlane.xlu0 %2398
      %v2400 = vsel %vm1085, %v2360, 0.0
      %2401 = vadd.xlane.f32.xlu0 %v2400
      %v2402 = vpop.xlane.xlu0 %2401
      %v2403 = vrcp.pop %v2363
      %v2404 = vrcp.pop %v2366
      %v2405 = vrcp.pop %v2369
      %v2406 = vrcp.pop %v2372
      %v2407 = vrcp.pop %v2375
      %v2408 = vrcp.pop %v2378
      %v2409 = vrcp.pop %v2381
      %v2410 = vrcp.pop %v2384
      %v2411 = vrcp.pop %v2387
      %v2412 = vrcp.pop %v2390
      %v2413 = vrcp.pop %v2393
      %v2414 = vrcp.pop %v2396
      %v2415 = vrcp.pop %v2399
      %v2416 = vrcp.pop %v2402
      %v2417 = vmul.f32 %v2347, %v2403
      %v2418 = vmul.f32 %v2348, %v2404
      %v2419 = vmul.f32 %v2349, %v2405
      %v2420 = vmul.f32 %v2350, %v2406
      %v2421 = vmul.f32 %v2351, %v2407
      %v2422 = vmul.f32 %v2352, %v2408
      %v2423 = vmul.f32 %v2353, %v2409
      %v2424 = vmul.f32 %v2354, %v2410
      %v2425 = vmul.f32 %v2355, %v2411
      %v2426 = vmul.f32 %v2356, %v2412
      %v2427 = vmul.f32 %v2357, %v2413
      %v2428 = vmul.f32 %v2358, %v2414
      %v2429 = vmul.f32 %v2359, %v2415
      %v2430 = vmul.f32 %v2360, %v2416
      %v2431 = vpack.c.bf16 %v2418, %v2417
      %v2432 = vpack.c.bf16 %v2420, %v2419
      %v2433 = vpack.c.bf16 %v2422, %v2421
      %v2434 = vpack.c.bf16 %v2423, %v2423
      %v2435 = vpack.c.bf16 %v2425, %v2424
      %v2436 = vpack.c.bf16 %v2427, %v2426
      %v2437 = vpack.c.bf16 %v2429, %v2428
      %v2438 = vpack.c.bf16 %v2430, %v2430
      %2439 = vrot.lane.b32.xlu0 %v876, 96
      %v2440 = vpop.permute.xlu0 %2439
      %2441 = vrot.lane.b32.xlu0 %v877, 96
      %v2442 = vpop.permute.xlu0 %2441
      %2443 = vrot.lane.b32.xlu0 %v878, 96
      %v2444 = vpop.permute.xlu0 %2443
      %2445 = vrot.lane.b32.xlu0 %v879, 96
      %v2446 = vpop.permute.xlu0 %2445
      %v2451 = vsel %vm1085, %v2431, 0
      %v2454 = vsel %vm1085, %v2432, 0
      %v2457 = vsel %vm1085, %v2433, 0
      %v2460 = vsel %vm1085, %v2434, 0
      %v2463 = vsel %vm1276, %v2446, 0
      %2465 = vmatprep.subr.bf16.mxu0 0
      %2466 = vmatpush1.bf16.msra.mxu0 0
      %2467 = vmatprep.subr.bf16.mxu0 0
      %2468 = vmatpush1.bf16.msra.mxu0 0
      %2469 = vmatprep.subr.bf16.mxu0 0
      %2470 = vmatpush1.bf16.msra.mxu0 0
      %2471 = vmatprep.subr.bf16.mxu0 0
      %2472 = vmatpush1.bf16.msra.mxu0 0
      %2473 = vmatprep.subr.bf16.mxu0 0
      %2474 = vmatpush1.bf16.msra.mxu0 %v2463
      %2475 = vmatprep.subr.bf16.mxu0 0
      %2476 = vmatpush1.bf16.msra.mxu0 %v2444
      %2477 = vmatprep.subr.bf16.mxu0 0
      %2478 = vmatpush1.bf16.msra.mxu0 %v2442
      %2479 = vmatprep.subr.bf16.mxu0 0
      %2480 = vmatpush1.bf16.msra.mxu0 %v2440
      %2481 = vmatprep.subr.bf16.mxu0 0
      %2482 = vmatpush2.bf16.msra.mxu0 0
      %2483 = vmatprep.subr.bf16.mxu0 0
      %2484 = vmatpush2.bf16.msra.mxu0 0
      %2485 = vmatprep.subr.bf16.mxu0 0
      %2486 = vmatpush2.bf16.msra.mxu0 0
      %2487 = vmatprep.subr.bf16.mxu0 0
      %2488 = vmatpush2.bf16.msra.mxu0 0
      %2489 = vmatprep.subr.bf16.mxu0 0
      %2490 = vmatpush2.bf16.msra.mxu0 0
      %2491 = vmatprep.subr.bf16.mxu0 0
      %2492 = vmatpush2.bf16.msra.mxu0 0
      %2493 = vmatprep.subr.bf16.mxu0 0
      %2494 = vmatpush2.bf16.msra.mxu0 0
      %2495 = vmatprep.subr.bf16.mxu0 0
      %2496 = vmatpush2.bf16.msra.mxu0 0
      %2497 = vmatprep.mubr.bf16.mxu0 0
      %2498 = vmatmul.mubr.bf16.gmra.mxu0 %v2451
      %v2499 = vpop.f32.mrf.mxu0
      %v2500 = vadd.f32 0.0, %v2499
      %v2501 = vpop.f32.mrf.mxu0
      %v2502 = vpop.f32.mrf.mxu0
      %v2503 = vadd.f32 0.0, %v2502
      %v2504 = vpop.f32.mrf.mxu0
      %2505 = vmatprep.mubr.bf16.mxu0 0
      %2506 = vmatmul.mubr.bf16.gmra.mxu0 %v2454
      %v2507 = vpop.f32.mrf.mxu0
      %v2508 = vadd.f32 0.0, %v2507
      %v2509 = vpop.f32.mrf.mxu0
      %v2510 = vpop.f32.mrf.mxu0
      %v2511 = vadd.f32 0.0, %v2510
      %v2512 = vpop.f32.mrf.mxu0
      %2513 = vmatprep.mubr.bf16.mxu0 0
      %2514 = vmatmul.mubr.bf16.gmra.mxu0 %v2457
      %v2515 = vpop.f32.mrf.mxu0
      %v2516 = vadd.f32 0.0, %v2515
      %v2517 = vpop.f32.mrf.mxu0
      %v2518 = vpop.f32.mrf.mxu0
      %v2519 = vadd.f32 0.0, %v2518
      %v2520 = vpop.f32.mrf.mxu0
      %2521 = vmatprep.mubr.bf16.mxu0 0
      %2522 = vmatmul.mubr.bf16.gmra.mxu0 %v2460
      %v2523 = vpop.f32.mrf.mxu0
      %v2524 = vadd.f32 0.0, %v2523
      %v2525 = vpop.f32.mrf.mxu0
      %v2526 = vpop.f32.mrf.mxu0
      %v2527 = vpop.f32.mrf.mxu0
      %2528 = vdwg.mxu0
      %2529 = vrot.lane.b32.xlu0 %v880, 96
      %v2530 = vpop.permute.xlu0 %2529
      %2531 = vrot.lane.b32.xlu0 %v881, 96
      %v2532 = vpop.permute.xlu0 %2531
      %2533 = vrot.lane.b32.xlu0 %v882, 96
      %v2534 = vpop.permute.xlu0 %2533
      %2535 = vrot.lane.b32.xlu0 %v883, 96
      %v2536 = vpop.permute.xlu0 %2535
      %v2541 = vsel %vm1085, %v2435, 0
      %v2544 = vsel %vm1085, %v2436, 0
      %v2547 = vsel %vm1085, %v2437, 0
      %v2550 = vsel %vm1085, %v2438, 0
      %v2553 = vsel %vm1276, %v2536, 0
      %2555 = vmatprep.subr.bf16.mxu0 0
      %2556 = vmatpush1.bf16.msra.mxu0 0
      %2557 = vmatprep.subr.bf16.mxu0 0
      %2558 = vmatpush1.bf16.msra.mxu0 0
      %2559 = vmatprep.subr.bf16.mxu0 0
      %2560 = vmatpush1.bf16.msra.mxu0 0
      %2561 = vmatprep.subr.bf16.mxu0 0
      %2562 = vmatpush1.bf16.msra.mxu0 0
      %2563 = vmatprep.subr.bf16.mxu0 0
      %2564 = vmatpush1.bf16.msra.mxu0 %v2553
      %2565 = vmatprep.subr.bf16.mxu0 0
      %2566 = vmatpush1.bf16.msra.mxu0 %v2534
      %2567 = vmatprep.subr.bf16.mxu0 0
      %2568 = vmatpush1.bf16.msra.mxu0 %v2532
      %2569 = vmatprep.subr.bf16.mxu0 0
      %2570 = vmatpush1.bf16.msra.mxu0 %v2530
      %2571 = vmatprep.subr.bf16.mxu0 0
      %2572 = vmatpush2.bf16.msra.mxu0 0
      %2573 = vmatprep.subr.bf16.mxu0 0
      %2574 = vmatpush2.bf16.msra.mxu0 0
      %2575 = vmatprep.subr.bf16.mxu0 0
      %2576 = vmatpush2.bf16.msra.mxu0 0
      %2577 = vmatprep.subr.bf16.mxu0 0
      %2578 = vmatpush2.bf16.msra.mxu0 0
      %2579 = vmatprep.subr.bf16.mxu0 0
      %2580 = vmatpush2.bf16.msra.mxu0 0
      %2581 = vmatprep.subr.bf16.mxu0 0
      %2582 = vmatpush2.bf16.msra.mxu0 0
      %2583 = vmatprep.subr.bf16.mxu0 0
      %2584 = vmatpush2.bf16.msra.mxu0 0
      %2585 = vmatprep.subr.bf16.mxu0 0
      %2586 = vmatpush2.bf16.msra.mxu0 0
      %2587 = vmatprep.mubr.bf16.mxu0 0
      %2588 = vmatmul.mubr.bf16.gmra.mxu0 %v2541
      %v2589 = vpop.f32.mrf.mxu0
      %v2590 = vadd.f32 0.0, %v2589
      %v2591 = vpop.f32.mrf.mxu0
      %v2592 = vpop.f32.mrf.mxu0
      %v2593 = vadd.f32 0.0, %v2592
      %v2594 = vpop.f32.mrf.mxu0
      %2595 = vmatprep.mubr.bf16.mxu0 0
      %2596 = vmatmul.mubr.bf16.gmra.mxu0 %v2544
      %v2597 = vpop.f32.mrf.mxu0
      %v2598 = vadd.f32 0.0, %v2597
      %v2599 = vpop.f32.mrf.mxu0
      %v2600 = vpop.f32.mrf.mxu0
      %v2601 = vadd.f32 0.0, %v2600
      %v2602 = vpop.f32.mrf.mxu0
      %2603 = vmatprep.mubr.bf16.mxu0 0
      %2604 = vmatmul.mubr.bf16.gmra.mxu0 %v2547
      %v2605 = vpop.f32.mrf.mxu0
      %v2606 = vadd.f32 0.0, %v2605
      %v2607 = vpop.f32.mrf.mxu0
      %v2608 = vpop.f32.mrf.mxu0
      %v2609 = vadd.f32 0.0, %v2608
      %v2610 = vpop.f32.mrf.mxu0
      %2611 = vmatprep.mubr.bf16.mxu0 0
      %2612 = vmatmul.mubr.bf16.gmra.mxu0 %v2550
      %v2613 = vpop.f32.mrf.mxu0
      %v2614 = vadd.f32 0.0, %v2613
      %v2615 = vpop.f32.mrf.mxu0
      %v2616 = vpop.f32.mrf.mxu0
      %v2617 = vpop.f32.mrf.mxu0
      %2618 = vdwg.mxu0
      %2619 = vrot.lane.b32.xlu0 %v860, 80
      %v2620 = vpop.permute.xlu0 %2619
      %2621 = vrot.lane.b32.xlu0 %v861, 80
      %v2622 = vpop.permute.xlu0 %2621
      %2623 = vrot.lane.b32.xlu0 %v862, 80
      %v2624 = vpop.permute.xlu0 %2623
      %2625 = vrot.lane.b32.xlu0 %v863, 80
      %v2626 = vpop.permute.xlu0 %2625
      %2627 = vrot.lane.b32.xlu0 %v868, 80
      %v2628 = vpop.permute.xlu0 %2627
      %2629 = vrot.lane.b32.xlu0 %v869, 80
      %v2630 = vpop.permute.xlu0 %2629
      %2631 = vrot.lane.b32.xlu0 %v870, 80
      %v2632 = vpop.permute.xlu0 %2631
      %2633 = vrot.lane.b32.xlu0 %v871, 80
      %v2634 = vpop.permute.xlu0 %2633
      %v2636 = vsel %vm887, %v2620, 0
      %v2639 = vsel %vm887, %v2622, 0
      %v2642 = vsel %vm887, %v2624, 0
      %v2645 = vsel %vm887, %v2626, 0
      %v2648 = vsel %vm887, %v2628, 0
      %v2651 = vsel %vm887, %v2630, 0
      %v2654 = vsel %vm887, %v2632, 0
      %v2657 = vsel %vm887, %v2634, 0
      %2659 = vmatprep.subr.bf16.mxu0 0
      %2660 = vmatpush1.bf16.xpose.msra.mxu0 0
      %2661 = vmatprep.subr.bf16.mxu0 0
      %2662 = vmatpush1.bf16.xpose.msra.mxu0 0
      %2663 = vmatprep.subr.bf16.mxu0 0
      %2664 = vmatpush1.bf16.xpose.msra.mxu0 0
      %2665 = vmatprep.subr.bf16.mxu0 0
      %2666 = vmatpush1.bf16.xpose.msra.mxu0 0
      %2667 = vmatprep.subr.bf16.mxu0 0
      %2668 = vmatpush1.bf16.xpose.msra.mxu0 %v2657
      %2669 = vmatprep.subr.bf16.mxu0 0
      %2670 = vmatpush1.bf16.xpose.msra.mxu0 %v2654
      %2671 = vmatprep.subr.bf16.mxu0 0
      %2672 = vmatpush1.bf16.xpose.msra.mxu0 %v2651
      %2673 = vmatprep.subr.bf16.mxu0 0
      %2674 = vmatpush1.bf16.xpose.msra.mxu0 %v2648
      %2675 = vmatprep.subr.bf16.mxu0 0
      %2676 = vmatpush2.bf16.xpose.msra.mxu0 0
      %2677 = vmatprep.subr.bf16.mxu0 0
      %2678 = vmatpush2.bf16.xpose.msra.mxu0 0
      %2679 = vmatprep.subr.bf16.mxu0 0
      %2680 = vmatpush2.bf16.xpose.msra.mxu0 0
      %2681 = vmatprep.subr.bf16.mxu0 0
      %2682 = vmatpush2.bf16.xpose.msra.mxu0 0
      %2683 = vmatprep.subr.bf16.mxu0 0
      %2684 = vmatpush2.bf16.xpose.msra.mxu0 0
      %2685 = vmatprep.subr.bf16.mxu0 0
      %2686 = vmatpush2.bf16.xpose.msra.mxu0 0
      %2687 = vmatprep.subr.bf16.mxu0 0
      %2688 = vmatpush2.bf16.xpose.msra.mxu0 0
      %2689 = vmatprep.subr.bf16.mxu0 0
      %2690 = vmatpush2.bf16.xpose.msra.mxu0 0
      %2691 = vmatprep.mubr.bf16.mxu0 0
      %2692 = vmatmul.mubr.bf16.gmra.mxu0 %v2636
      %v2693 = vpop.f32.mrf.mxu0
      %v2694 = vadd.f32 0.0, %v2693
      %v2695 = vpop.f32.mrf.mxu0
      %v2696 = vpop.f32.mrf.mxu0
      %v2697 = vadd.f32 0.0, %v2696
      %v2698 = vpop.f32.mrf.mxu0
      %2699 = vmatprep.mubr.bf16.mxu0 0
      %2700 = vmatmul.mubr.bf16.gmra.mxu0 %v2639
      %v2701 = vpop.f32.mrf.mxu0
      %v2702 = vadd.f32 0.0, %v2701
      %v2703 = vpop.f32.mrf.mxu0
      %v2704 = vpop.f32.mrf.mxu0
      %v2705 = vadd.f32 0.0, %v2704
      %v2706 = vpop.f32.mrf.mxu0
      %2707 = vmatprep.mubr.bf16.mxu0 0
      %2708 = vmatmul.mubr.bf16.gmra.mxu0 %v2642
      %v2709 = vpop.f32.mrf.mxu0
      %v2710 = vadd.f32 0.0, %v2709
      %v2711 = vpop.f32.mrf.mxu0
      %v2712 = vpop.f32.mrf.mxu0
      %v2713 = vadd.f32 0.0, %v2712
      %v2714 = vpop.f32.mrf.mxu0
      %2715 = vmatprep.mubr.bf16.mxu0 0
      %2716 = vmatmul.mubr.bf16.gmra.mxu0 %v2645
      %v2717 = vpop.f32.mrf.mxu0
      %v2718 = vadd.f32 0.0, %v2717
      %v2719 = vpop.f32.mrf.mxu0
      %v2720 = vpop.f32.mrf.mxu0
      %v2721 = vpop.f32.mrf.mxu0
      %2722 = vdwg.mxu0
      %2723 = vrot.lane.b32.xlu0 %v864, 80
      %v2724 = vpop.permute.xlu0 %2723
      %2725 = vrot.lane.b32.xlu0 %v865, 80
      %v2726 = vpop.permute.xlu0 %2725
      %2727 = vrot.lane.b32.xlu0 %v866, 80
      %v2728 = vpop.permute.xlu0 %2727
      %2729 = vrot.lane.b32.xlu0 %v867, 80
      %v2730 = vpop.permute.xlu0 %2729
      %2731 = vrot.lane.b32.xlu0 %v872, 80
      %v2732 = vpop.permute.xlu0 %2731
      %2733 = vrot.lane.b32.xlu0 %v873, 80
      %v2734 = vpop.permute.xlu0 %2733
      %2735 = vrot.lane.b32.xlu0 %v874, 80
      %v2736 = vpop.permute.xlu0 %2735
      %2737 = vrot.lane.b32.xlu0 %v875, 80
      %v2738 = vpop.permute.xlu0 %2737
      %v2740 = vsel %vm887, %v2724, 0
      %v2743 = vsel %vm887, %v2726, 0
      %v2746 = vsel %vm887, %v2728, 0
      %v2749 = vsel %vm887, %v2730, 0
      %v2752 = vsel %vm887, %v2732, 0
      %v2755 = vsel %vm887, %v2734, 0
      %v2758 = vsel %vm887, %v2736, 0
      %v2761 = vsel %vm887, %v2738, 0
      %2763 = vmatprep.subr.bf16.mxu0 0
      %2764 = vmatpush1.bf16.xpose.msra.mxu0 0
      %2765 = vmatprep.subr.bf16.mxu0 0
      %2766 = vmatpush1.bf16.xpose.msra.mxu0 0
      %2767 = vmatprep.subr.bf16.mxu0 0
      %2768 = vmatpush1.bf16.xpose.msra.mxu0 0
      %2769 = vmatprep.subr.bf16.mxu0 0
      %2770 = vmatpush1.bf16.xpose.msra.mxu0 0
      %2771 = vmatprep.subr.bf16.mxu0 0
      %2772 = vmatpush1.bf16.xpose.msra.mxu0 %v2761
      %2773 = vmatprep.subr.bf16.mxu0 0
      %2774 = vmatpush1.bf16.xpose.msra.mxu0 %v2758
      %2775 = vmatprep.subr.bf16.mxu0 0
      %2776 = vmatpush1.bf16.xpose.msra.mxu0 %v2755
      %2777 = vmatprep.subr.bf16.mxu0 0
      %2778 = vmatpush1.bf16.xpose.msra.mxu0 %v2752
      %2779 = vmatprep.subr.bf16.mxu0 0
      %2780 = vmatpush2.bf16.xpose.msra.mxu0 0
      %2781 = vmatprep.subr.bf16.mxu0 0
      %2782 = vmatpush2.bf16.xpose.msra.mxu0 0
      %2783 = vmatprep.subr.bf16.mxu0 0
      %2784 = vmatpush2.bf16.xpose.msra.mxu0 0
      %2785 = vmatprep.subr.bf16.mxu0 0
      %2786 = vmatpush2.bf16.xpose.msra.mxu0 0
      %2787 = vmatprep.subr.bf16.mxu0 0
      %2788 = vmatpush2.bf16.xpose.msra.mxu0 0
      %2789 = vmatprep.subr.bf16.mxu0 0
      %2790 = vmatpush2.bf16.xpose.msra.mxu0 0
      %2791 = vmatprep.subr.bf16.mxu0 0
      %2792 = vmatpush2.bf16.xpose.msra.mxu0 0
      %2793 = vmatprep.subr.bf16.mxu0 0
      %2794 = vmatpush2.bf16.xpose.msra.mxu0 0
      %2795 = vmatprep.mubr.bf16.mxu0 0
      %2796 = vmatmul.mubr.bf16.gmra.mxu0 %v2740
      %v2797 = vpop.f32.mrf.mxu0
      %v2798 = vadd.f32 0.0, %v2797
      %v2799 = vpop.f32.mrf.mxu0
      %v2800 = vpop.f32.mrf.mxu0
      %v2801 = vadd.f32 0.0, %v2800
      %v2802 = vpop.f32.mrf.mxu0
      %2803 = vmatprep.mubr.bf16.mxu0 0
      %2804 = vmatmul.mubr.bf16.gmra.mxu0 %v2743
      %v2805 = vpop.f32.mrf.mxu0
      %v2806 = vadd.f32 0.0, %v2805
      %v2807 = vpop.f32.mrf.mxu0
      %v2808 = vpop.f32.mrf.mxu0
      %v2809 = vadd.f32 0.0, %v2808
      %v2810 = vpop.f32.mrf.mxu0
      %2811 = vmatprep.mubr.bf16.mxu0 0
      %2812 = vmatmul.mubr.bf16.gmra.mxu0 %v2746
      %v2813 = vpop.f32.mrf.mxu0
      %v2814 = vadd.f32 0.0, %v2813
      %v2815 = vpop.f32.mrf.mxu0
      %v2816 = vpop.f32.mrf.mxu0
      %v2817 = vadd.f32 0.0, %v2816
      %v2818 = vpop.f32.mrf.mxu0
      %2819 = vmatprep.mubr.bf16.mxu0 0
      %2820 = vmatmul.mubr.bf16.gmra.mxu0 %v2749
      %v2821 = vpop.f32.mrf.mxu0
      %v2822 = vadd.f32 0.0, %v2821
      %v2823 = vpop.f32.mrf.mxu0
      %v2824 = vpop.f32.mrf.mxu0
      %v2825 = vpop.f32.mrf.mxu0
      %2826 = vdwg.mxu0
      %s2827 = scalar_lea.vmem %s3, 168
      %v2828 = vld [vmem:[%s2827] sm:$0xff]
      %v2829 = vld [vmem:[%s2827 + $0x8] sm:$0xff]
      %v2830 = vld [vmem:[%s2827 + $0x10] sm:$0xff]
      %v2831 = vld [vmem:[%s2827 + $0x18] sm:$0xff]
      %v2832 = vld [vmem:[%s2827 + $0x20] sm:$0xff]
      %v2833 = vld [vmem:[%s2827 + $0x28] sm:$0xff]
      %v2834 = vld [vmem:[%s2827 + $0x30] sm:$0xff]
      %v2835 = vmul.f32 %v2694, %v2828
      %v2836 = vmul.f32 %v2697, %v2829
      %v2837 = vmul.f32 %v2702, %v2830
      %v2838 = vmul.f32 %v2705, %v2831
      %v2839 = vmul.f32 %v2710, %v2832
      %v2840 = vmul.f32 %v2713, %v2833
      %v2841 = vmul.f32 %v2718, %v2834
      %v2842 = vmul.f32 %v2798, %v2828
      %v2843 = vmul.f32 %v2801, %v2829
      %v2844 = vmul.f32 %v2806, %v2830
      %v2845 = vmul.f32 %v2809, %v2831
      %v2846 = vmul.f32 %v2814, %v2832
      %v2847 = vmul.f32 %v2817, %v2833
      %v2848 = vmul.f32 %v2822, %v2834
      %v2849 = vsel %vm1085, %v2835, -inf
      %2850 = vmax.xlane.f32.xlu0 %v2849
      %v2851 = vpop.xlane.xlu0 %2850
      %v2852 = vsel %vm1085, %v2836, -inf
      %2853 = vmax.xlane.f32.xlu0 %v2852
      %v2854 = vpop.xlane.xlu0 %2853
      %v2855 = vsel %vm1085, %v2837, -inf
      %2856 = vmax.xlane.f32.xlu0 %v2855
      %v2857 = vpop.xlane.xlu0 %2856
      %v2858 = vsel %vm1085, %v2838, -inf
      %2859 = vmax.xlane.f32.xlu0 %v2858
      %v2860 = vpop.xlane.xlu0 %2859
      %v2861 = vsel %vm1085, %v2839, -inf
      %2862 = vmax.xlane.f32.xlu0 %v2861
      %v2863 = vpop.xlane.xlu0 %2862
      %v2864 = vsel %vm1085, %v2840, -inf
      %2865 = vmax.xlane.f32.xlu0 %v2864
      %v2866 = vpop.xlane.xlu0 %2865
      %v2867 = vsel %vm1085, %v2841, -inf
      %2868 = vmax.xlane.f32.xlu0 %v2867
      %v2869 = vpop.xlane.xlu0 %2868
      %v2870 = vsel %vm1085, %v2842, -inf
      %2871 = vmax.xlane.f32.xlu0 %v2870
      %v2872 = vpop.xlane.xlu0 %2871
      %v2873 = vsel %vm1085, %v2843, -inf
      %2874 = vmax.xlane.f32.xlu0 %v2873
      %v2875 = vpop.xlane.xlu0 %2874
      %v2876 = vsel %vm1085, %v2844, -inf
      %2877 = vmax.xlane.f32.xlu0 %v2876
      %v2878 = vpop.xlane.xlu0 %2877
      %v2879 = vsel %vm1085, %v2845, -inf
      %2880 = vmax.xlane.f32.xlu0 %v2879
      %v2881 = vpop.xlane.xlu0 %2880
      %v2882 = vsel %vm1085, %v2846, -inf
      %2883 = vmax.xlane.f32.xlu0 %v2882
      %v2884 = vpop.xlane.xlu0 %2883
      %v2885 = vsel %vm1085, %v2847, -inf
      %2886 = vmax.xlane.f32.xlu0 %v2885
      %v2887 = vpop.xlane.xlu0 %2886
      %v2888 = vsel %vm1085, %v2848, -inf
      %2889 = vmax.xlane.f32.xlu0 %v2888
      %v2890 = vpop.xlane.xlu0 %2889
      %v2891 = vsub.f32 %v2835, %v2851
      %v2892 = vsub.f32 %v2836, %v2854
      %v2893 = vsub.f32 %v2837, %v2857
      %v2894 = vsub.f32 %v2838, %v2860
      %v2895 = vsub.f32 %v2839, %v2863
      %v2896 = vsub.f32 %v2840, %v2866
      %v2897 = vsub.f32 %v2841, %v2869
      %v2898 = vsub.f32 %v2842, %v2872
      %v2899 = vsub.f32 %v2843, %v2875
      %v2900 = vsub.f32 %v2844, %v2878
      %v2901 = vsub.f32 %v2845, %v2881
      %v2902 = vsub.f32 %v2846, %v2884
      %v2903 = vsub.f32 %v2847, %v2887
      %v2904 = vsub.f32 %v2848, %v2890
      %v2905 = vmul.f32 %v2891, 1.442695
      %v2906 = vpow.pop %v2905
      %v2907 = vmul.f32 %v2892, 1.442695
      %v2908 = vpow.pop %v2907
      %v2909 = vmul.f32 %v2893, 1.442695
      %v2910 = vpow.pop %v2909
      %v2911 = vmul.f32 %v2894, 1.442695
      %v2912 = vpow.pop %v2911
      %v2913 = vmul.f32 %v2895, 1.442695
      %v2914 = vpow.pop %v2913
      %v2915 = vmul.f32 %v2896, 1.442695
      %v2916 = vpow.pop %v2915
      %v2917 = vmul.f32 %v2897, 1.442695
      %v2918 = vpow.pop %v2917
      %v2919 = vmul.f32 %v2898, 1.442695
      %v2920 = vpow.pop %v2919
      %v2921 = vmul.f32 %v2899, 1.442695
      %v2922 = vpow.pop %v2921
      %v2923 = vmul.f32 %v2900, 1.442695
      %v2924 = vpow.pop %v2923
      %v2925 = vmul.f32 %v2901, 1.442695
      %v2926 = vpow.pop %v2925
      %v2927 = vmul.f32 %v2902, 1.442695
      %v2928 = vpow.pop %v2927
      %v2929 = vmul.f32 %v2903, 1.442695
      %v2930 = vpow.pop %v2929
      %v2931 = vmul.f32 %v2904, 1.442695
      %v2932 = vpow.pop %v2931
      %v2933 = vsel %vm1171, %v2906, 0.0
      %v2934 = vsel %vm1171, %v2908, 0.0
      %v2935 = vsel %vm1171, %v2910, 0.0
      %v2936 = vsel %vm1171, %v2912, 0.0
      %v2937 = vsel %vm1171, %v2914, 0.0
      %v2938 = vsel %vm1171, %v2916, 0.0
      %v2939 = vsel %vm1171, %v2918, 0.0
      %v2940 = vsel %vm1171, %v2920, 0.0
      %v2941 = vsel %vm1171, %v2922, 0.0
      %v2942 = vsel %vm1171, %v2924, 0.0
      %v2943 = vsel %vm1171, %v2926, 0.0
      %v2944 = vsel %vm1171, %v2928, 0.0
      %v2945 = vsel %vm1171, %v2930, 0.0
      %v2946 = vsel %vm1171, %v2932, 0.0
      %v2947 = vsel %vm1085, %v2933, 0.0
      %2948 = vadd.xlane.f32.xlu0 %v2947
      %v2949 = vpop.xlane.xlu0 %2948
      %v2950 = vsel %vm1085, %v2934, 0.0
      %2951 = vadd.xlane.f32.xlu0 %v2950
      %v2952 = vpop.xlane.xlu0 %2951
      %v2953 = vsel %vm1085, %v2935, 0.0
      %2954 = vadd.xlane.f32.xlu0 %v2953
      %v2955 = vpop.xlane.xlu0 %2954
      %v2956 = vsel %vm1085, %v2936, 0.0
      %2957 = vadd.xlane.f32.xlu0 %v2956
      %v2958 = vpop.xlane.xlu0 %2957
      %v2959 = vsel %vm1085, %v2937, 0.0
      %2960 = vadd.xlane.f32.xlu0 %v2959
      %v2961 = vpop.xlane.xlu0 %2960
      %v2962 = vsel %vm1085, %v2938, 0.0
      %2963 = vadd.xlane.f32.xlu0 %v2962
      %v2964 = vpop.xlane.xlu0 %2963
      %v2965 = vsel %vm1085, %v2939, 0.0
      %2966 = vadd.xlane.f32.xlu0 %v2965
      %v2967 = vpop.xlane.xlu0 %2966
      %v2968 = vsel %vm1085, %v2940, 0.0
      %2969 = vadd.xlane.f32.xlu0 %v2968
      %v2970 = vpop.xlane.xlu0 %2969
      %v2971 = vsel %vm1085, %v2941, 0.0
      %2972 = vadd.xlane.f32.xlu0 %v2971
      %v2973 = vpop.xlane.xlu0 %2972
      %v2974 = vsel %vm1085, %v2942, 0.0
      %2975 = vadd.xlane.f32.xlu0 %v2974
      %v2976 = vpop.xlane.xlu0 %2975
      %v2977 = vsel %vm1085, %v2943, 0.0
      %2978 = vadd.xlane.f32.xlu0 %v2977
      %v2979 = vpop.xlane.xlu0 %2978
      %v2980 = vsel %vm1085, %v2944, 0.0
      %2981 = vadd.xlane.f32.xlu0 %v2980
      %v2982 = vpop.xlane.xlu0 %2981
      %v2983 = vsel %vm1085, %v2945, 0.0
      %2984 = vadd.xlane.f32.xlu0 %v2983
      %v2985 = vpop.xlane.xlu0 %2984
      %v2986 = vsel %vm1085, %v2946, 0.0
      %2987 = vadd.xlane.f32.xlu0 %v2986
      %v2988 = vpop.xlane.xlu0 %2987
      %v2989 = vrcp.pop %v2949
      %v2990 = vrcp.pop %v2952
      %v2991 = vrcp.pop %v2955
      %v2992 = vrcp.pop %v2958
      %v2993 = vrcp.pop %v2961
      %v2994 = vrcp.pop %v2964
      %v2995 = vrcp.pop %v2967
      %v2996 = vrcp.pop %v2970
      %v2997 = vrcp.pop %v2973
      %v2998 = vrcp.pop %v2976
      %v2999 = vrcp.pop %v2979
      %v3000 = vrcp.pop %v2982
      %v3001 = vrcp.pop %v2985
      %v3002 = vrcp.pop %v2988
      %v3003 = vmul.f32 %v2933, %v2989
      %v3004 = vmul.f32 %v2934, %v2990
      %v3005 = vmul.f32 %v2935, %v2991
      %v3006 = vmul.f32 %v2936, %v2992
      %v3007 = vmul.f32 %v2937, %v2993
      %v3008 = vmul.f32 %v2938, %v2994
      %v3009 = vmul.f32 %v2939, %v2995
      %v3010 = vmul.f32 %v2940, %v2996
      %v3011 = vmul.f32 %v2941, %v2997
      %v3012 = vmul.f32 %v2942, %v2998
      %v3013 = vmul.f32 %v2943, %v2999
      %v3014 = vmul.f32 %v2944, %v3000
      %v3015 = vmul.f32 %v2945, %v3001
      %v3016 = vmul.f32 %v2946, %v3002
      %v3017 = vpack.c.bf16 %v3004, %v3003
      %v3018 = vpack.c.bf16 %v3006, %v3005
      %v3019 = vpack.c.bf16 %v3008, %v3007
      %v3020 = vpack.c.bf16 %v3009, %v3009
      %v3021 = vpack.c.bf16 %v3011, %v3010
      %v3022 = vpack.c.bf16 %v3013, %v3012
      %v3023 = vpack.c.bf16 %v3015, %v3014
      %v3024 = vpack.c.bf16 %v3016, %v3016
      %3025 = vrot.lane.b32.xlu0 %v876, 80
      %v3026 = vpop.permute.xlu0 %3025
      %3027 = vrot.lane.b32.xlu0 %v877, 80
      %v3028 = vpop.permute.xlu0 %3027
      %3029 = vrot.lane.b32.xlu0 %v878, 80
      %v3030 = vpop.permute.xlu0 %3029
      %3031 = vrot.lane.b32.xlu0 %v879, 80
      %v3032 = vpop.permute.xlu0 %3031
      %v3037 = vsel %vm1085, %v3017, 0
      %v3040 = vsel %vm1085, %v3018, 0
      %v3043 = vsel %vm1085, %v3019, 0
      %v3046 = vsel %vm1085, %v3020, 0
      %v3049 = vsel %vm1276, %v3032, 0
      %3051 = vmatprep.subr.bf16.mxu0 0
      %3052 = vmatpush1.bf16.msra.mxu0 0
      %3053 = vmatprep.subr.bf16.mxu0 0
      %3054 = vmatpush1.bf16.msra.mxu0 0
      %3055 = vmatprep.subr.bf16.mxu0 0
      %3056 = vmatpush1.bf16.msra.mxu0 0
      %3057 = vmatprep.subr.bf16.mxu0 0
      %3058 = vmatpush1.bf16.msra.mxu0 0
      %3059 = vmatprep.subr.bf16.mxu0 0
      %3060 = vmatpush1.bf16.msra.mxu0 %v3049
      %3061 = vmatprep.subr.bf16.mxu0 0
      %3062 = vmatpush1.bf16.msra.mxu0 %v3030
      %3063 = vmatprep.subr.bf16.mxu0 0
      %3064 = vmatpush1.bf16.msra.mxu0 %v3028
      %3065 = vmatprep.subr.bf16.mxu0 0
      %3066 = vmatpush1.bf16.msra.mxu0 %v3026
      %3067 = vmatprep.subr.bf16.mxu0 0
      %3068 = vmatpush2.bf16.msra.mxu0 0
      %3069 = vmatprep.subr.bf16.mxu0 0
      %3070 = vmatpush2.bf16.msra.mxu0 0
      %3071 = vmatprep.subr.bf16.mxu0 0
      %3072 = vmatpush2.bf16.msra.mxu0 0
      %3073 = vmatprep.subr.bf16.mxu0 0
      %3074 = vmatpush2.bf16.msra.mxu0 0
      %3075 = vmatprep.subr.bf16.mxu0 0
      %3076 = vmatpush2.bf16.msra.mxu0 0
      %3077 = vmatprep.subr.bf16.mxu0 0
      %3078 = vmatpush2.bf16.msra.mxu0 0
      %3079 = vmatprep.subr.bf16.mxu0 0
      %3080 = vmatpush2.bf16.msra.mxu0 0
      %3081 = vmatprep.subr.bf16.mxu0 0
      %3082 = vmatpush2.bf16.msra.mxu0 0
      %3083 = vmatprep.mubr.bf16.mxu0 0
      %3084 = vmatmul.mubr.bf16.gmra.mxu0 %v3037
      %v3085 = vpop.f32.mrf.mxu0
      %v3086 = vadd.f32 0.0, %v3085
      %v3087 = vpop.f32.mrf.mxu0
      %v3088 = vpop.f32.mrf.mxu0
      %v3089 = vadd.f32 0.0, %v3088
      %v3090 = vpop.f32.mrf.mxu0
      %3091 = vmatprep.mubr.bf16.mxu0 0
      %3092 = vmatmul.mubr.bf16.gmra.mxu0 %v3040
      %v3093 = vpop.f32.mrf.mxu0
      %v3094 = vadd.f32 0.0, %v3093
      %v3095 = vpop.f32.mrf.mxu0
      %v3096 = vpop.f32.mrf.mxu0
      %v3097 = vadd.f32 0.0, %v3096
      %v3098 = vpop.f32.mrf.mxu0
      %3099 = vmatprep.mubr.bf16.mxu0 0
      %3100 = vmatmul.mubr.bf16.gmra.mxu0 %v3043
      %v3101 = vpop.f32.mrf.mxu0
      %v3102 = vadd.f32 0.0, %v3101
      %v3103 = vpop.f32.mrf.mxu0
      %v3104 = vpop.f32.mrf.mxu0
      %v3105 = vadd.f32 0.0, %v3104
      %v3106 = vpop.f32.mrf.mxu0
      %3107 = vmatprep.mubr.bf16.mxu0 0
      %3108 = vmatmul.mubr.bf16.gmra.mxu0 %v3046
      %v3109 = vpop.f32.mrf.mxu0
      %v3110 = vadd.f32 0.0, %v3109
      %v3111 = vpop.f32.mrf.mxu0
      %v3112 = vpop.f32.mrf.mxu0
      %v3113 = vpop.f32.mrf.mxu0
      %3114 = vdwg.mxu0
      %3115 = vrot.lane.b32.xlu0 %v880, 80
      %v3116 = vpop.permute.xlu0 %3115
      %3117 = vrot.lane.b32.xlu0 %v881, 80
      %v3118 = vpop.permute.xlu0 %3117
      %3119 = vrot.lane.b32.xlu0 %v882, 80
      %v3120 = vpop.permute.xlu0 %3119
      %3121 = vrot.lane.b32.xlu0 %v883, 80
      %v3122 = vpop.permute.xlu0 %3121
      %v3127 = vsel %vm1085, %v3021, 0
      %v3130 = vsel %vm1085, %v3022, 0
      %v3133 = vsel %vm1085, %v3023, 0
      %v3136 = vsel %vm1085, %v3024, 0
      %v3139 = vsel %vm1276, %v3122, 0
      %3141 = vmatprep.subr.bf16.mxu0 0
      %3142 = vmatpush1.bf16.msra.mxu0 0
      %3143 = vmatprep.subr.bf16.mxu0 0
      %3144 = vmatpush1.bf16.msra.mxu0 0
      %3145 = vmatprep.subr.bf16.mxu0 0
      %3146 = vmatpush1.bf16.msra.mxu0 0
      %3147 = vmatprep.subr.bf16.mxu0 0
      %3148 = vmatpush1.bf16.msra.mxu0 0
      %3149 = vmatprep.subr.bf16.mxu0 0
      %3150 = vmatpush1.bf16.msra.mxu0 %v3139
      %3151 = vmatprep.subr.bf16.mxu0 0
      %3152 = vmatpush1.bf16.msra.mxu0 %v3120
      %3153 = vmatprep.subr.bf16.mxu0 0
      %3154 = vmatpush1.bf16.msra.mxu0 %v3118
      %3155 = vmatprep.subr.bf16.mxu0 0
      %3156 = vmatpush1.bf16.msra.mxu0 %v3116
      %3157 = vmatprep.subr.bf16.mxu0 0
      %3158 = vmatpush2.bf16.msra.mxu0 0
      %3159 = vmatprep.subr.bf16.mxu0 0
      %3160 = vmatpush2.bf16.msra.mxu0 0
      %3161 = vmatprep.subr.bf16.mxu0 0
      %3162 = vmatpush2.bf16.msra.mxu0 0
      %3163 = vmatprep.subr.bf16.mxu0 0
      %3164 = vmatpush2.bf16.msra.mxu0 0
      %3165 = vmatprep.subr.bf16.mxu0 0
      %3166 = vmatpush2.bf16.msra.mxu0 0
      %3167 = vmatprep.subr.bf16.mxu0 0
      %3168 = vmatpush2.bf16.msra.mxu0 0
      %3169 = vmatprep.subr.bf16.mxu0 0
      %3170 = vmatpush2.bf16.msra.mxu0 0
      %3171 = vmatprep.subr.bf16.mxu0 0
      %3172 = vmatpush2.bf16.msra.mxu0 0
      %3173 = vmatprep.mubr.bf16.mxu0 0
      %3174 = vmatmul.mubr.bf16.gmra.mxu0 %v3127
      %v3175 = vpop.f32.mrf.mxu0
      %v3176 = vadd.f32 0.0, %v3175
      %v3177 = vpop.f32.mrf.mxu0
      %v3178 = vpop.f32.mrf.mxu0
      %v3179 = vadd.f32 0.0, %v3178
      %v3180 = vpop.f32.mrf.mxu0
      %3181 = vmatprep.mubr.bf16.mxu0 0
      %3182 = vmatmul.mubr.bf16.gmra.mxu0 %v3130
      %v3183 = vpop.f32.mrf.mxu0
      %v3184 = vadd.f32 0.0, %v3183
      %v3185 = vpop.f32.mrf.mxu0
      %v3186 = vpop.f32.mrf.mxu0
      %v3187 = vadd.f32 0.0, %v3186
      %v3188 = vpop.f32.mrf.mxu0
      %3189 = vmatprep.mubr.bf16.mxu0 0
      %3190 = vmatmul.mubr.bf16.gmra.mxu0 %v3133
      %v3191 = vpop.f32.mrf.mxu0
      %v3192 = vadd.f32 0.0, %v3191
      %v3193 = vpop.f32.mrf.mxu0
      %v3194 = vpop.f32.mrf.mxu0
      %v3195 = vadd.f32 0.0, %v3194
      %v3196 = vpop.f32.mrf.mxu0
      %3197 = vmatprep.mubr.bf16.mxu0 0
      %3198 = vmatmul.mubr.bf16.gmra.mxu0 %v3136
      %v3199 = vpop.f32.mrf.mxu0
      %v3200 = vadd.f32 0.0, %v3199
      %v3201 = vpop.f32.mrf.mxu0
      %v3202 = vpop.f32.mrf.mxu0
      %v3203 = vpop.f32.mrf.mxu0
      %3204 = vdwg.mxu0
      %3205 = vrot.lane.b32.xlu0 %v860, 64
      %v3206 = vpop.permute.xlu0 %3205
      %3207 = vrot.lane.b32.xlu0 %v861, 64
      %v3208 = vpop.permute.xlu0 %3207
      %3209 = vrot.lane.b32.xlu0 %v862, 64
      %v3210 = vpop.permute.xlu0 %3209
      %3211 = vrot.lane.b32.xlu0 %v863, 64
      %v3212 = vpop.permute.xlu0 %3211
      %3213 = vrot.lane.b32.xlu0 %v868, 64
      %v3214 = vpop.permute.xlu0 %3213
      %3215 = vrot.lane.b32.xlu0 %v869, 64
      %v3216 = vpop.permute.xlu0 %3215
      %3217 = vrot.lane.b32.xlu0 %v870, 64
      %v3218 = vpop.permute.xlu0 %3217
      %3219 = vrot.lane.b32.xlu0 %v871, 64
      %v3220 = vpop.permute.xlu0 %3219
      %v3222 = vsel %vm887, %v3206, 0
      %v3225 = vsel %vm887, %v3208, 0
      %v3228 = vsel %vm887, %v3210, 0
      %v3231 = vsel %vm887, %v3212, 0
      %v3234 = vsel %vm887, %v3214, 0
      %v3237 = vsel %vm887, %v3216, 0
      %v3240 = vsel %vm887, %v3218, 0
      %v3243 = vsel %vm887, %v3220, 0
      %3245 = vmatprep.subr.bf16.mxu0 0
      %3246 = vmatpush1.bf16.xpose.msra.mxu0 0
      %3247 = vmatprep.subr.bf16.mxu0 0
      %3248 = vmatpush1.bf16.xpose.msra.mxu0 0
      %3249 = vmatprep.subr.bf16.mxu0 0
      %3250 = vmatpush1.bf16.xpose.msra.mxu0 0
      %3251 = vmatprep.subr.bf16.mxu0 0
      %3252 = vmatpush1.bf16.xpose.msra.mxu0 0
      %3253 = vmatprep.subr.bf16.mxu0 0
      %3254 = vmatpush1.bf16.xpose.msra.mxu0 %v3243
      %3255 = vmatprep.subr.bf16.mxu0 0
      %3256 = vmatpush1.bf16.xpose.msra.mxu0 %v3240
      %3257 = vmatprep.subr.bf16.mxu0 0
      %3258 = vmatpush1.bf16.xpose.msra.mxu0 %v3237
      %3259 = vmatprep.subr.bf16.mxu0 0
      %3260 = vmatpush1.bf16.xpose.msra.mxu0 %v3234
      %3261 = vmatprep.subr.bf16.mxu0 0
      %3262 = vmatpush2.bf16.xpose.msra.mxu0 0
      %3263 = vmatprep.subr.bf16.mxu0 0
      %3264 = vmatpush2.bf16.xpose.msra.mxu0 0
      %3265 = vmatprep.subr.bf16.mxu0 0
      %3266 = vmatpush2.bf16.xpose.msra.mxu0 0
      %3267 = vmatprep.subr.bf16.mxu0 0
      %3268 = vmatpush2.bf16.xpose.msra.mxu0 0
      %3269 = vmatprep.subr.bf16.mxu0 0
      %3270 = vmatpush2.bf16.xpose.msra.mxu0 0
      %3271 = vmatprep.subr.bf16.mxu0 0
      %3272 = vmatpush2.bf16.xpose.msra.mxu0 0
      %3273 = vmatprep.subr.bf16.mxu0 0
      %3274 = vmatpush2.bf16.xpose.msra.mxu0 0
      %3275 = vmatprep.subr.bf16.mxu0 0
      %3276 = vmatpush2.bf16.xpose.msra.mxu0 0
      %3277 = vmatprep.mubr.bf16.mxu0 0
      %3278 = vmatmul.mubr.bf16.gmra.mxu0 %v3222
      %v3279 = vpop.f32.mrf.mxu0
      %v3280 = vadd.f32 0.0, %v3279
      %v3281 = vpop.f32.mrf.mxu0
      %v3282 = vpop.f32.mrf.mxu0
      %v3283 = vadd.f32 0.0, %v3282
      %v3284 = vpop.f32.mrf.mxu0
      %3285 = vmatprep.mubr.bf16.mxu0 0
      %3286 = vmatmul.mubr.bf16.gmra.mxu0 %v3225
      %v3287 = vpop.f32.mrf.mxu0
      %v3288 = vadd.f32 0.0, %v3287
      %v3289 = vpop.f32.mrf.mxu0
      %v3290 = vpop.f32.mrf.mxu0
      %v3291 = vadd.f32 0.0, %v3290
      %v3292 = vpop.f32.mrf.mxu0
      %3293 = vmatprep.mubr.bf16.mxu0 0
      %3294 = vmatmul.mubr.bf16.gmra.mxu0 %v3228
      %v3295 = vpop.f32.mrf.mxu0
      %v3296 = vadd.f32 0.0, %v3295
      %v3297 = vpop.f32.mrf.mxu0
      %v3298 = vpop.f32.mrf.mxu0
      %v3299 = vadd.f32 0.0, %v3298
      %v3300 = vpop.f32.mrf.mxu0
      %3301 = vmatprep.mubr.bf16.mxu0 0
      %3302 = vmatmul.mubr.bf16.gmra.mxu0 %v3231
      %v3303 = vpop.f32.mrf.mxu0
      %v3304 = vadd.f32 0.0, %v3303
      %v3305 = vpop.f32.mrf.mxu0
      %v3306 = vpop.f32.mrf.mxu0
      %v3307 = vpop.f32.mrf.mxu0
      %3308 = vdwg.mxu0
      %3309 = vrot.lane.b32.xlu0 %v864, 64
      %v3310 = vpop.permute.xlu0 %3309
      %3311 = vrot.lane.b32.xlu0 %v865, 64
      %v3312 = vpop.permute.xlu0 %3311
      %3313 = vrot.lane.b32.xlu0 %v866, 64
      %v3314 = vpop.permute.xlu0 %3313
      %3315 = vrot.lane.b32.xlu0 %v867, 64
      %v3316 = vpop.permute.xlu0 %3315
      %3317 = vrot.lane.b32.xlu0 %v872, 64
      %v3318 = vpop.permute.xlu0 %3317
      %3319 = vrot.lane.b32.xlu0 %v873, 64
      %v3320 = vpop.permute.xlu0 %3319
      %3321 = vrot.lane.b32.xlu0 %v874, 64
      %v3322 = vpop.permute.xlu0 %3321
      %3323 = vrot.lane.b32.xlu0 %v875, 64
      %v3324 = vpop.permute.xlu0 %3323
      %v3326 = vsel %vm887, %v3310, 0
      %v3329 = vsel %vm887, %v3312, 0
      %v3332 = vsel %vm887, %v3314, 0
      %v3335 = vsel %vm887, %v3316, 0
      %v3338 = vsel %vm887, %v3318, 0
      %v3341 = vsel %vm887, %v3320, 0
      %v3344 = vsel %vm887, %v3322, 0
      %v3347 = vsel %vm887, %v3324, 0
      %3349 = vmatprep.subr.bf16.mxu0 0
      %3350 = vmatpush1.bf16.xpose.msra.mxu0 0
      %3351 = vmatprep.subr.bf16.mxu0 0
      %3352 = vmatpush1.bf16.xpose.msra.mxu0 0
      %3353 = vmatprep.subr.bf16.mxu0 0
      %3354 = vmatpush1.bf16.xpose.msra.mxu0 0
      %3355 = vmatprep.subr.bf16.mxu0 0
      %3356 = vmatpush1.bf16.xpose.msra.mxu0 0
      %3357 = vmatprep.subr.bf16.mxu0 0
      %3358 = vmatpush1.bf16.xpose.msra.mxu0 %v3347
      %3359 = vmatprep.subr.bf16.mxu0 0
      %3360 = vmatpush1.bf16.xpose.msra.mxu0 %v3344
      %3361 = vmatprep.subr.bf16.mxu0 0
      %3362 = vmatpush1.bf16.xpose.msra.mxu0 %v3341
      %3363 = vmatprep.subr.bf16.mxu0 0
      %3364 = vmatpush1.bf16.xpose.msra.mxu0 %v3338
      %3365 = vmatprep.subr.bf16.mxu0 0
      %3366 = vmatpush2.bf16.xpose.msra.mxu0 0
      %3367 = vmatprep.subr.bf16.mxu0 0
      %3368 = vmatpush2.bf16.xpose.msra.mxu0 0
      %3369 = vmatprep.subr.bf16.mxu0 0
      %3370 = vmatpush2.bf16.xpose.msra.mxu0 0
      %3371 = vmatprep.subr.bf16.mxu0 0
      %3372 = vmatpush2.bf16.xpose.msra.mxu0 0
      %3373 = vmatprep.subr.bf16.mxu0 0
      %3374 = vmatpush2.bf16.xpose.msra.mxu0 0
      %3375 = vmatprep.subr.bf16.mxu0 0
      %3376 = vmatpush2.bf16.xpose.msra.mxu0 0
      %3377 = vmatprep.subr.bf16.mxu0 0
      %3378 = vmatpush2.bf16.xpose.msra.mxu0 0
      %3379 = vmatprep.subr.bf16.mxu0 0
      %3380 = vmatpush2.bf16.xpose.msra.mxu0 0
      %3381 = vmatprep.mubr.bf16.mxu0 0
      %3382 = vmatmul.mubr.bf16.gmra.mxu0 %v3326
      %v3383 = vpop.f32.mrf.mxu0
      %v3384 = vadd.f32 0.0, %v3383
      %v3385 = vpop.f32.mrf.mxu0
      %v3386 = vpop.f32.mrf.mxu0
      %v3387 = vadd.f32 0.0, %v3386
      %v3388 = vpop.f32.mrf.mxu0
      %3389 = vmatprep.mubr.bf16.mxu0 0
      %3390 = vmatmul.mubr.bf16.gmra.mxu0 %v3329
      %v3391 = vpop.f32.mrf.mxu0
      %v3392 = vadd.f32 0.0, %v3391
      %v3393 = vpop.f32.mrf.mxu0
      %v3394 = vpop.f32.mrf.mxu0
      %v3395 = vadd.f32 0.0, %v3394
      %v3396 = vpop.f32.mrf.mxu0
      %3397 = vmatprep.mubr.bf16.mxu0 0
      %3398 = vmatmul.mubr.bf16.gmra.mxu0 %v3332
      %v3399 = vpop.f32.mrf.mxu0
      %v3400 = vadd.f32 0.0, %v3399
      %v3401 = vpop.f32.mrf.mxu0
      %v3402 = vpop.f32.mrf.mxu0
      %v3403 = vadd.f32 0.0, %v3402
      %v3404 = vpop.f32.mrf.mxu0
      %3405 = vmatprep.mubr.bf16.mxu0 0
      %3406 = vmatmul.mubr.bf16.gmra.mxu0 %v3335
      %v3407 = vpop.f32.mrf.mxu0
      %v3408 = vadd.f32 0.0, %v3407
      %v3409 = vpop.f32.mrf.mxu0
      %v3410 = vpop.f32.mrf.mxu0
      %v3411 = vpop.f32.mrf.mxu0
      %3412 = vdwg.mxu0
      %s3413 = scalar_lea.vmem %s3, 224
      %v3414 = vld [vmem:[%s3413] sm:$0xff]
      %v3415 = vld [vmem:[%s3413 + $0x8] sm:$0xff]
      %v3416 = vld [vmem:[%s3413 + $0x10] sm:$0xff]
      %v3417 = vld [vmem:[%s3413 + $0x18] sm:$0xff]
      %v3418 = vld [vmem:[%s3413 + $0x20] sm:$0xff]
      %v3419 = vld [vmem:[%s3413 + $0x28] sm:$0xff]
      %v3420 = vld [vmem:[%s3413 + $0x30] sm:$0xff]
      %v3421 = vmul.f32 %v3280, %v3414
      %v3422 = vmul.f32 %v3283, %v3415
      %v3423 = vmul.f32 %v3288, %v3416
      %v3424 = vmul.f32 %v3291, %v3417
      %v3425 = vmul.f32 %v3296, %v3418
      %v3426 = vmul.f32 %v3299, %v3419
      %v3427 = vmul.f32 %v3304, %v3420
      %v3428 = vmul.f32 %v3384, %v3414
      %v3429 = vmul.f32 %v3387, %v3415
      %v3430 = vmul.f32 %v3392, %v3416
      %v3431 = vmul.f32 %v3395, %v3417
      %v3432 = vmul.f32 %v3400, %v3418
      %v3433 = vmul.f32 %v3403, %v3419
      %v3434 = vmul.f32 %v3408, %v3420
      %v3435 = vsel %vm1085, %v3421, -inf
      %3436 = vmax.xlane.f32.xlu0 %v3435
      %v3437 = vpop.xlane.xlu0 %3436
      %v3438 = vsel %vm1085, %v3422, -inf
      %3439 = vmax.xlane.f32.xlu0 %v3438
      %v3440 = vpop.xlane.xlu0 %3439
      %v3441 = vsel %vm1085, %v3423, -inf
      %3442 = vmax.xlane.f32.xlu0 %v3441
      %v3443 = vpop.xlane.xlu0 %3442
      %v3444 = vsel %vm1085, %v3424, -inf
      %3445 = vmax.xlane.f32.xlu0 %v3444
      %v3446 = vpop.xlane.xlu0 %3445
      %v3447 = vsel %vm1085, %v3425, -inf
      %3448 = vmax.xlane.f32.xlu0 %v3447
      %v3449 = vpop.xlane.xlu0 %3448
      %v3450 = vsel %vm1085, %v3426, -inf
      %3451 = vmax.xlane.f32.xlu0 %v3450
      %v3452 = vpop.xlane.xlu0 %3451
      %v3453 = vsel %vm1085, %v3427, -inf
      %3454 = vmax.xlane.f32.xlu0 %v3453
      %v3455 = vpop.xlane.xlu0 %3454
      %v3456 = vsel %vm1085, %v3428, -inf
      %3457 = vmax.xlane.f32.xlu0 %v3456
      %v3458 = vpop.xlane.xlu0 %3457
      %v3459 = vsel %vm1085, %v3429, -inf
      %3460 = vmax.xlane.f32.xlu0 %v3459
      %v3461 = vpop.xlane.xlu0 %3460
      %v3462 = vsel %vm1085, %v3430, -inf
      %3463 = vmax.xlane.f32.xlu0 %v3462
      %v3464 = vpop.xlane.xlu0 %3463
      %v3465 = vsel %vm1085, %v3431, -inf
      %3466 = vmax.xlane.f32.xlu0 %v3465
      %v3467 = vpop.xlane.xlu0 %3466
      %v3468 = vsel %vm1085, %v3432, -inf
      %3469 = vmax.xlane.f32.xlu0 %v3468
      %v3470 = vpop.xlane.xlu0 %3469
      %v3471 = vsel %vm1085, %v3433, -inf
      %3472 = vmax.xlane.f32.xlu0 %v3471
      %v3473 = vpop.xlane.xlu0 %3472
      %v3474 = vsel %vm1085, %v3434, -inf
      %3475 = vmax.xlane.f32.xlu0 %v3474
      %v3476 = vpop.xlane.xlu0 %3475
      %v3477 = vsub.f32 %v3421, %v3437
      %v3478 = vsub.f32 %v3422, %v3440
      %v3479 = vsub.f32 %v3423, %v3443
      %v3480 = vsub.f32 %v3424, %v3446
      %v3481 = vsub.f32 %v3425, %v3449
      %v3482 = vsub.f32 %v3426, %v3452
      %v3483 = vsub.f32 %v3427, %v3455
      %v3484 = vsub.f32 %v3428, %v3458
      %v3485 = vsub.f32 %v3429, %v3461
      %v3486 = vsub.f32 %v3430, %v3464
      %v3487 = vsub.f32 %v3431, %v3467
      %v3488 = vsub.f32 %v3432, %v3470
      %v3489 = vsub.f32 %v3433, %v3473
      %v3490 = vsub.f32 %v3434, %v3476
      %v3491 = vmul.f32 %v3477, 1.442695
      %v3492 = vpow.pop %v3491
      %v3493 = vmul.f32 %v3478, 1.442695
      %v3494 = vpow.pop %v3493
      %v3495 = vmul.f32 %v3479, 1.442695
      %v3496 = vpow.pop %v3495
      %v3497 = vmul.f32 %v3480, 1.442695
      %v3498 = vpow.pop %v3497
      %v3499 = vmul.f32 %v3481, 1.442695
      %v3500 = vpow.pop %v3499
      %v3501 = vmul.f32 %v3482, 1.442695
      %v3502 = vpow.pop %v3501
      %v3503 = vmul.f32 %v3483, 1.442695
      %v3504 = vpow.pop %v3503
      %v3505 = vmul.f32 %v3484, 1.442695
      %v3506 = vpow.pop %v3505
      %v3507 = vmul.f32 %v3485, 1.442695
      %v3508 = vpow.pop %v3507
      %v3509 = vmul.f32 %v3486, 1.442695
      %v3510 = vpow.pop %v3509
      %v3511 = vmul.f32 %v3487, 1.442695
      %v3512 = vpow.pop %v3511
      %v3513 = vmul.f32 %v3488, 1.442695
      %v3514 = vpow.pop %v3513
      %v3515 = vmul.f32 %v3489, 1.442695
      %v3516 = vpow.pop %v3515
      %v3517 = vmul.f32 %v3490, 1.442695
      %v3518 = vpow.pop %v3517
      %v3519 = vsel %vm1171, %v3492, 0.0
      %v3520 = vsel %vm1171, %v3494, 0.0
      %v3521 = vsel %vm1171, %v3496, 0.0
      %v3522 = vsel %vm1171, %v3498, 0.0
      %v3523 = vsel %vm1171, %v3500, 0.0
      %v3524 = vsel %vm1171, %v3502, 0.0
      %v3525 = vsel %vm1171, %v3504, 0.0
      %v3526 = vsel %vm1171, %v3506, 0.0
      %v3527 = vsel %vm1171, %v3508, 0.0
      %v3528 = vsel %vm1171, %v3510, 0.0
      %v3529 = vsel %vm1171, %v3512, 0.0
      %v3530 = vsel %vm1171, %v3514, 0.0
      %v3531 = vsel %vm1171, %v3516, 0.0
      %v3532 = vsel %vm1171, %v3518, 0.0
      %v3533 = vsel %vm1085, %v3519, 0.0
      %3534 = vadd.xlane.f32.xlu0 %v3533
      %v3535 = vpop.xlane.xlu0 %3534
      %v3536 = vsel %vm1085, %v3520, 0.0
      %3537 = vadd.xlane.f32.xlu0 %v3536
      %v3538 = vpop.xlane.xlu0 %3537
      %v3539 = vsel %vm1085, %v3521, 0.0
      %3540 = vadd.xlane.f32.xlu0 %v3539
      %v3541 = vpop.xlane.xlu0 %3540
      %v3542 = vsel %vm1085, %v3522, 0.0
      %3543 = vadd.xlane.f32.xlu0 %v3542
      %v3544 = vpop.xlane.xlu0 %3543
      %v3545 = vsel %vm1085, %v3523, 0.0
      %3546 = vadd.xlane.f32.xlu0 %v3545
      %v3547 = vpop.xlane.xlu0 %3546
      %v3548 = vsel %vm1085, %v3524, 0.0
      %3549 = vadd.xlane.f32.xlu0 %v3548
      %v3550 = vpop.xlane.xlu0 %3549
      %v3551 = vsel %vm1085, %v3525, 0.0
      %3552 = vadd.xlane.f32.xlu0 %v3551
      %v3553 = vpop.xlane.xlu0 %3552
      %v3554 = vsel %vm1085, %v3526, 0.0
      %3555 = vadd.xlane.f32.xlu0 %v3554
      %v3556 = vpop.xlane.xlu0 %3555
      %v3557 = vsel %vm1085, %v3527, 0.0
      %3558 = vadd.xlane.f32.xlu0 %v3557
      %v3559 = vpop.xlane.xlu0 %3558
      %v3560 = vsel %vm1085, %v3528, 0.0
      %3561 = vadd.xlane.f32.xlu0 %v3560
      %v3562 = vpop.xlane.xlu0 %3561
      %v3563 = vsel %vm1085, %v3529, 0.0
      %3564 = vadd.xlane.f32.xlu0 %v3563
      %v3565 = vpop.xlane.xlu0 %3564
      %v3566 = vsel %vm1085, %v3530, 0.0
      %3567 = vadd.xlane.f32.xlu0 %v3566
      %v3568 = vpop.xlane.xlu0 %3567
      %v3569 = vsel %vm1085, %v3531, 0.0
      %3570 = vadd.xlane.f32.xlu0 %v3569
      %v3571 = vpop.xlane.xlu0 %3570
      %v3572 = vsel %vm1085, %v3532, 0.0
      %3573 = vadd.xlane.f32.xlu0 %v3572
      %v3574 = vpop.xlane.xlu0 %3573
      %v3575 = vrcp.pop %v3535
      %v3576 = vrcp.pop %v3538
      %v3577 = vrcp.pop %v3541
      %v3578 = vrcp.pop %v3544
      %v3579 = vrcp.pop %v3547
      %v3580 = vrcp.pop %v3550
      %v3581 = vrcp.pop %v3553
      %v3582 = vrcp.pop %v3556
      %v3583 = vrcp.pop %v3559
      %v3584 = vrcp.pop %v3562
      %v3585 = vrcp.pop %v3565
      %v3586 = vrcp.pop %v3568
      %v3587 = vrcp.pop %v3571
      %v3588 = vrcp.pop %v3574
      %v3589 = vmul.f32 %v3519, %v3575
      %v3590 = vmul.f32 %v3520, %v3576
      %v3591 = vmul.f32 %v3521, %v3577
      %v3592 = vmul.f32 %v3522, %v3578
      %v3593 = vmul.f32 %v3523, %v3579
      %v3594 = vmul.f32 %v3524, %v3580
      %v3595 = vmul.f32 %v3525, %v3581
      %v3596 = vmul.f32 %v3526, %v3582
      %v3597 = vmul.f32 %v3527, %v3583
      %v3598 = vmul.f32 %v3528, %v3584
      %v3599 = vmul.f32 %v3529, %v3585
      %v3600 = vmul.f32 %v3530, %v3586
      %v3601 = vmul.f32 %v3531, %v3587
      %v3602 = vmul.f32 %v3532, %v3588
      %v3603 = vpack.c.bf16 %v3590, %v3589
      %v3604 = vpack.c.bf16 %v3592, %v3591
      %v3605 = vpack.c.bf16 %v3594, %v3593
      %v3606 = vpack.c.bf16 %v3595, %v3595
      %v3607 = vpack.c.bf16 %v3597, %v3596
      %v3608 = vpack.c.bf16 %v3599, %v3598
      %v3609 = vpack.c.bf16 %v3601, %v3600
      %v3610 = vpack.c.bf16 %v3602, %v3602
      %3611 = vrot.lane.b32.xlu0 %v876, 64
      %v3612 = vpop.permute.xlu0 %3611
      %3613 = vrot.lane.b32.xlu0 %v877, 64
      %v3614 = vpop.permute.xlu0 %3613
      %3615 = vrot.lane.b32.xlu0 %v878, 64
      %v3616 = vpop.permute.xlu0 %3615
      %3617 = vrot.lane.b32.xlu0 %v879, 64
      %v3618 = vpop.permute.xlu0 %3617
      %v3623 = vsel %vm1085, %v3603, 0
      %v3626 = vsel %vm1085, %v3604, 0
      %v3629 = vsel %vm1085, %v3605, 0
      %v3632 = vsel %vm1085, %v3606, 0
      %v3635 = vsel %vm1276, %v3618, 0
      %3637 = vmatprep.subr.bf16.mxu0 0
      %3638 = vmatpush1.bf16.msra.mxu0 0
      %3639 = vmatprep.subr.bf16.mxu0 0
      %3640 = vmatpush1.bf16.msra.mxu0 0
      %3641 = vmatprep.subr.bf16.mxu0 0
      %3642 = vmatpush1.bf16.msra.mxu0 0
      %3643 = vmatprep.subr.bf16.mxu0 0
      %3644 = vmatpush1.bf16.msra.mxu0 0
      %3645 = vmatprep.subr.bf16.mxu0 0
      %3646 = vmatpush1.bf16.msra.mxu0 %v3635
      %3647 = vmatprep.subr.bf16.mxu0 0
      %3648 = vmatpush1.bf16.msra.mxu0 %v3616
      %3649 = vmatprep.subr.bf16.mxu0 0
      %3650 = vmatpush1.bf16.msra.mxu0 %v3614
      %3651 = vmatprep.subr.bf16.mxu0 0
      %3652 = vmatpush1.bf16.msra.mxu0 %v3612
      %3653 = vmatprep.subr.bf16.mxu0 0
      %3654 = vmatpush2.bf16.msra.mxu0 0
      %3655 = vmatprep.subr.bf16.mxu0 0
      %3656 = vmatpush2.bf16.msra.mxu0 0
      %3657 = vmatprep.subr.bf16.mxu0 0
      %3658 = vmatpush2.bf16.msra.mxu0 0
      %3659 = vmatprep.subr.bf16.mxu0 0
      %3660 = vmatpush2.bf16.msra.mxu0 0
      %3661 = vmatprep.subr.bf16.mxu0 0
      %3662 = vmatpush2.bf16.msra.mxu0 0
      %3663 = vmatprep.subr.bf16.mxu0 0
      %3664 = vmatpush2.bf16.msra.mxu0 0
      %3665 = vmatprep.subr.bf16.mxu0 0
      %3666 = vmatpush2.bf16.msra.mxu0 0
      %3667 = vmatprep.subr.bf16.mxu0 0
      %3668 = vmatpush2.bf16.msra.mxu0 0
      %3669 = vmatprep.mubr.bf16.mxu0 0
      %3670 = vmatmul.mubr.bf16.gmra.mxu0 %v3623
      %v3671 = vpop.f32.mrf.mxu0
      %v3672 = vadd.f32 0.0, %v3671
      %v3673 = vpop.f32.mrf.mxu0
      %v3674 = vpop.f32.mrf.mxu0
      %v3675 = vadd.f32 0.0, %v3674
      %v3676 = vpop.f32.mrf.mxu0
      %3677 = vmatprep.mubr.bf16.mxu0 0
      %3678 = vmatmul.mubr.bf16.gmra.mxu0 %v3626
      %v3679 = vpop.f32.mrf.mxu0
      %v3680 = vadd.f32 0.0, %v3679
      %v3681 = vpop.f32.mrf.mxu0
      %v3682 = vpop.f32.mrf.mxu0
      %v3683 = vadd.f32 0.0, %v3682
      %v3684 = vpop.f32.mrf.mxu0
      %3685 = vmatprep.mubr.bf16.mxu0 0
      %3686 = vmatmul.mubr.bf16.gmra.mxu0 %v3629
      %v3687 = vpop.f32.mrf.mxu0
      %v3688 = vadd.f32 0.0, %v3687
      %v3689 = vpop.f32.mrf.mxu0
      %v3690 = vpop.f32.mrf.mxu0
      %v3691 = vadd.f32 0.0, %v3690
      %v3692 = vpop.f32.mrf.mxu0
      %3693 = vmatprep.mubr.bf16.mxu0 0
      %3694 = vmatmul.mubr.bf16.gmra.mxu0 %v3632
      %v3695 = vpop.f32.mrf.mxu0
      %v3696 = vadd.f32 0.0, %v3695
      %v3697 = vpop.f32.mrf.mxu0
      %v3698 = vpop.f32.mrf.mxu0
      %v3699 = vpop.f32.mrf.mxu0
      %3700 = vdwg.mxu0
      %3701 = vrot.lane.b32.xlu0 %v880, 64
      %v3702 = vpop.permute.xlu0 %3701
      %3703 = vrot.lane.b32.xlu0 %v881, 64
      %v3704 = vpop.permute.xlu0 %3703
      %3705 = vrot.lane.b32.xlu0 %v882, 64
      %v3706 = vpop.permute.xlu0 %3705
      %3707 = vrot.lane.b32.xlu0 %v883, 64
      %v3708 = vpop.permute.xlu0 %3707
      %v3713 = vsel %vm1085, %v3607, 0
      %v3716 = vsel %vm1085, %v3608, 0
      %v3719 = vsel %vm1085, %v3609, 0
      %v3722 = vsel %vm1085, %v3610, 0
      %v3725 = vsel %vm1276, %v3708, 0
      %3727 = vmatprep.subr.bf16.mxu0 0
      %3728 = vmatpush1.bf16.msra.mxu0 0
      %3729 = vmatprep.subr.bf16.mxu0 0
      %3730 = vmatpush1.bf16.msra.mxu0 0
      %3731 = vmatprep.subr.bf16.mxu0 0
      %3732 = vmatpush1.bf16.msra.mxu0 0
      %3733 = vmatprep.subr.bf16.mxu0 0
      %3734 = vmatpush1.bf16.msra.mxu0 0
      %3735 = vmatprep.subr.bf16.mxu0 0
      %3736 = vmatpush1.bf16.msra.mxu0 %v3725
      %3737 = vmatprep.subr.bf16.mxu0 0
      %3738 = vmatpush1.bf16.msra.mxu0 %v3706
      %3739 = vmatprep.subr.bf16.mxu0 0
      %3740 = vmatpush1.bf16.msra.mxu0 %v3704
      %3741 = vmatprep.subr.bf16.mxu0 0
      %3742 = vmatpush1.bf16.msra.mxu0 %v3702
      %3743 = vmatprep.subr.bf16.mxu0 0
      %3744 = vmatpush2.bf16.msra.mxu0 0
      %3745 = vmatprep.subr.bf16.mxu0 0
      %3746 = vmatpush2.bf16.msra.mxu0 0
      %3747 = vmatprep.subr.bf16.mxu0 0
      %3748 = vmatpush2.bf16.msra.mxu0 0
      %3749 = vmatprep.subr.bf16.mxu0 0
      %3750 = vmatpush2.bf16.msra.mxu0 0
      %3751 = vmatprep.subr.bf16.mxu0 0
      %3752 = vmatpush2.bf16.msra.mxu0 0
      %3753 = vmatprep.subr.bf16.mxu0 0
      %3754 = vmatpush2.bf16.msra.mxu0 0
      %3755 = vmatprep.subr.bf16.mxu0 0
      %3756 = vmatpush2.bf16.msra.mxu0 0
      %3757 = vmatprep.subr.bf16.mxu0 0
      %3758 = vmatpush2.bf16.msra.mxu0 0
      %3759 = vmatprep.mubr.bf16.mxu0 0
      %3760 = vmatmul.mubr.bf16.gmra.mxu0 %v3713
      %v3761 = vpop.f32.mrf.mxu0
      %v3762 = vadd.f32 0.0, %v3761
      %v3763 = vpop.f32.mrf.mxu0
      %v3764 = vpop.f32.mrf.mxu0
      %v3765 = vadd.f32 0.0, %v3764
      %v3766 = vpop.f32.mrf.mxu0
      %3767 = vmatprep.mubr.bf16.mxu0 0
      %3768 = vmatmul.mubr.bf16.gmra.mxu0 %v3716
      %v3769 = vpop.f32.mrf.mxu0
      %v3770 = vadd.f32 0.0, %v3769
      %v3771 = vpop.f32.mrf.mxu0
      %v3772 = vpop.f32.mrf.mxu0
      %v3773 = vadd.f32 0.0, %v3772
      %v3774 = vpop.f32.mrf.mxu0
      %3775 = vmatprep.mubr.bf16.mxu0 0
      %3776 = vmatmul.mubr.bf16.gmra.mxu0 %v3719
      %v3777 = vpop.f32.mrf.mxu0
      %v3778 = vadd.f32 0.0, %v3777
      %v3779 = vpop.f32.mrf.mxu0
      %v3780 = vpop.f32.mrf.mxu0
      %v3781 = vadd.f32 0.0, %v3780
      %v3782 = vpop.f32.mrf.mxu0
      %3783 = vmatprep.mubr.bf16.mxu0 0
      %3784 = vmatmul.mubr.bf16.gmra.mxu0 %v3722
      %v3785 = vpop.f32.mrf.mxu0
      %v3786 = vadd.f32 0.0, %v3785
      %v3787 = vpop.f32.mrf.mxu0
      %v3788 = vpop.f32.mrf.mxu0
      %v3789 = vpop.f32.mrf.mxu0
      %3790 = vdwg.mxu0
      %3791 = vrot.lane.b32.xlu0 %v860, 48
      %v3792 = vpop.permute.xlu0 %3791
      %3793 = vrot.lane.b32.xlu0 %v861, 48
      %v3794 = vpop.permute.xlu0 %3793
      %3795 = vrot.lane.b32.xlu0 %v862, 48
      %v3796 = vpop.permute.xlu0 %3795
      %3797 = vrot.lane.b32.xlu0 %v863, 48
      %v3798 = vpop.permute.xlu0 %3797
      %3799 = vrot.lane.b32.xlu0 %v868, 48
      %v3800 = vpop.permute.xlu0 %3799
      %3801 = vrot.lane.b32.xlu0 %v869, 48
      %v3802 = vpop.permute.xlu0 %3801
      %3803 = vrot.lane.b32.xlu0 %v870, 48
      %v3804 = vpop.permute.xlu0 %3803
      %3805 = vrot.lane.b32.xlu0 %v871, 48
      %v3806 = vpop.permute.xlu0 %3805
      %v3808 = vsel %vm887, %v3792, 0
      %v3811 = vsel %vm887, %v3794, 0
      %v3814 = vsel %vm887, %v3796, 0
      %v3817 = vsel %vm887, %v3798, 0
      %v3820 = vsel %vm887, %v3800, 0
      %v3823 = vsel %vm887, %v3802, 0
      %v3826 = vsel %vm887, %v3804, 0
      %v3829 = vsel %vm887, %v3806, 0
      %3831 = vmatprep.subr.bf16.mxu0 0
      %3832 = vmatpush1.bf16.xpose.msra.mxu0 0
      %3833 = vmatprep.subr.bf16.mxu0 0
      %3834 = vmatpush1.bf16.xpose.msra.mxu0 0
      %3835 = vmatprep.subr.bf16.mxu0 0
      %3836 = vmatpush1.bf16.xpose.msra.mxu0 0
      %3837 = vmatprep.subr.bf16.mxu0 0
      %3838 = vmatpush1.bf16.xpose.msra.mxu0 0
      %3839 = vmatprep.subr.bf16.mxu0 0
      %3840 = vmatpush1.bf16.xpose.msra.mxu0 %v3829
      %3841 = vmatprep.subr.bf16.mxu0 0
      %3842 = vmatpush1.bf16.xpose.msra.mxu0 %v3826
      %3843 = vmatprep.subr.bf16.mxu0 0
      %3844 = vmatpush1.bf16.xpose.msra.mxu0 %v3823
      %3845 = vmatprep.subr.bf16.mxu0 0
      %3846 = vmatpush1.bf16.xpose.msra.mxu0 %v3820
      %3847 = vmatprep.subr.bf16.mxu0 0
      %3848 = vmatpush2.bf16.xpose.msra.mxu0 0
      %3849 = vmatprep.subr.bf16.mxu0 0
      %3850 = vmatpush2.bf16.xpose.msra.mxu0 0
      %3851 = vmatprep.subr.bf16.mxu0 0
      %3852 = vmatpush2.bf16.xpose.msra.mxu0 0
      %3853 = vmatprep.subr.bf16.mxu0 0
      %3854 = vmatpush2.bf16.xpose.msra.mxu0 0
      %3855 = vmatprep.subr.bf16.mxu0 0
      %3856 = vmatpush2.bf16.xpose.msra.mxu0 0
      %3857 = vmatprep.subr.bf16.mxu0 0
      %3858 = vmatpush2.bf16.xpose.msra.mxu0 0
      %3859 = vmatprep.subr.bf16.mxu0 0
      %3860 = vmatpush2.bf16.xpose.msra.mxu0 0
      %3861 = vmatprep.subr.bf16.mxu0 0
      %3862 = vmatpush2.bf16.xpose.msra.mxu0 0
      %3863 = vmatprep.mubr.bf16.mxu0 0
      %3864 = vmatmul.mubr.bf16.gmra.mxu0 %v3808
      %v3865 = vpop.f32.mrf.mxu0
      %v3866 = vadd.f32 0.0, %v3865
      %v3867 = vpop.f32.mrf.mxu0
      %v3868 = vpop.f32.mrf.mxu0
      %v3869 = vadd.f32 0.0, %v3868
      %v3870 = vpop.f32.mrf.mxu0
      %3871 = vmatprep.mubr.bf16.mxu0 0
      %3872 = vmatmul.mubr.bf16.gmra.mxu0 %v3811
      %v3873 = vpop.f32.mrf.mxu0
      %v3874 = vadd.f32 0.0, %v3873
      %v3875 = vpop.f32.mrf.mxu0
      %v3876 = vpop.f32.mrf.mxu0
      %v3877 = vadd.f32 0.0, %v3876
      %v3878 = vpop.f32.mrf.mxu0
      %3879 = vmatprep.mubr.bf16.mxu0 0
      %3880 = vmatmul.mubr.bf16.gmra.mxu0 %v3814
      %v3881 = vpop.f32.mrf.mxu0
      %v3882 = vadd.f32 0.0, %v3881
      %v3883 = vpop.f32.mrf.mxu0
      %v3884 = vpop.f32.mrf.mxu0
      %v3885 = vadd.f32 0.0, %v3884
      %v3886 = vpop.f32.mrf.mxu0
      %3887 = vmatprep.mubr.bf16.mxu0 0
      %3888 = vmatmul.mubr.bf16.gmra.mxu0 %v3817
      %v3889 = vpop.f32.mrf.mxu0
      %v3890 = vadd.f32 0.0, %v3889
      %v3891 = vpop.f32.mrf.mxu0
      %v3892 = vpop.f32.mrf.mxu0
      %v3893 = vpop.f32.mrf.mxu0
      %3894 = vdwg.mxu0
      %3895 = vrot.lane.b32.xlu0 %v864, 48
      %v3896 = vpop.permute.xlu0 %3895
      %3897 = vrot.lane.b32.xlu0 %v865, 48
      %v3898 = vpop.permute.xlu0 %3897
      %3899 = vrot.lane.b32.xlu0 %v866, 48
      %v3900 = vpop.permute.xlu0 %3899
      %3901 = vrot.lane.b32.xlu0 %v867, 48
      %v3902 = vpop.permute.xlu0 %3901
      %3903 = vrot.lane.b32.xlu0 %v872, 48
      %v3904 = vpop.permute.xlu0 %3903
      %3905 = vrot.lane.b32.xlu0 %v873, 48
      %v3906 = vpop.permute.xlu0 %3905
      %3907 = vrot.lane.b32.xlu0 %v874, 48
      %v3908 = vpop.permute.xlu0 %3907
      %3909 = vrot.lane.b32.xlu0 %v875, 48
      %v3910 = vpop.permute.xlu0 %3909
      %v3912 = vsel %vm887, %v3896, 0
      %v3915 = vsel %vm887, %v3898, 0
      %v3918 = vsel %vm887, %v3900, 0
      %v3921 = vsel %vm887, %v3902, 0
      %v3924 = vsel %vm887, %v3904, 0
      %v3927 = vsel %vm887, %v3906, 0
      %v3930 = vsel %vm887, %v3908, 0
      %v3933 = vsel %vm887, %v3910, 0
      %3935 = vmatprep.subr.bf16.mxu0 0
      %3936 = vmatpush1.bf16.xpose.msra.mxu0 0
      %3937 = vmatprep.subr.bf16.mxu0 0
      %3938 = vmatpush1.bf16.xpose.msra.mxu0 0
      %3939 = vmatprep.subr.bf16.mxu0 0
      %3940 = vmatpush1.bf16.xpose.msra.mxu0 0
      %3941 = vmatprep.subr.bf16.mxu0 0
      %3942 = vmatpush1.bf16.xpose.msra.mxu0 0
      %3943 = vmatprep.subr.bf16.mxu0 0
      %3944 = vmatpush1.bf16.xpose.msra.mxu0 %v3933
      %3945 = vmatprep.subr.bf16.mxu0 0
      %3946 = vmatpush1.bf16.xpose.msra.mxu0 %v3930
      %3947 = vmatprep.subr.bf16.mxu0 0
      %3948 = vmatpush1.bf16.xpose.msra.mxu0 %v3927
      %3949 = vmatprep.subr.bf16.mxu0 0
      %3950 = vmatpush1.bf16.xpose.msra.mxu0 %v3924
      %3951 = vmatprep.subr.bf16.mxu0 0
      %3952 = vmatpush2.bf16.xpose.msra.mxu0 0
      %3953 = vmatprep.subr.bf16.mxu0 0
      %3954 = vmatpush2.bf16.xpose.msra.mxu0 0
      %3955 = vmatprep.subr.bf16.mxu0 0
      %3956 = vmatpush2.bf16.xpose.msra.mxu0 0
      %3957 = vmatprep.subr.bf16.mxu0 0
      %3958 = vmatpush2.bf16.xpose.msra.mxu0 0
      %3959 = vmatprep.subr.bf16.mxu0 0
      %3960 = vmatpush2.bf16.xpose.msra.mxu0 0
      %3961 = vmatprep.subr.bf16.mxu0 0
      %3962 = vmatpush2.bf16.xpose.msra.mxu0 0
      %3963 = vmatprep.subr.bf16.mxu0 0
      %3964 = vmatpush2.bf16.xpose.msra.mxu0 0
      %3965 = vmatprep.subr.bf16.mxu0 0
      %3966 = vmatpush2.bf16.xpose.msra.mxu0 0
      %3967 = vmatprep.mubr.bf16.mxu0 0
      %3968 = vmatmul.mubr.bf16.gmra.mxu0 %v3912
      %v3969 = vpop.f32.mrf.mxu0
      %v3970 = vadd.f32 0.0, %v3969
      %v3971 = vpop.f32.mrf.mxu0
      %v3972 = vpop.f32.mrf.mxu0
      %v3973 = vadd.f32 0.0, %v3972
      %v3974 = vpop.f32.mrf.mxu0
      %3975 = vmatprep.mubr.bf16.mxu0 0
      %3976 = vmatmul.mubr.bf16.gmra.mxu0 %v3915
      %v3977 = vpop.f32.mrf.mxu0
      %v3978 = vadd.f32 0.0, %v3977
      %v3979 = vpop.f32.mrf.mxu0
      %v3980 = vpop.f32.mrf.mxu0
      %v3981 = vadd.f32 0.0, %v3980
      %v3982 = vpop.f32.mrf.mxu0
      %3983 = vmatprep.mubr.bf16.mxu0 0
      %3984 = vmatmul.mubr.bf16.gmra.mxu0 %v3918
      %v3985 = vpop.f32.mrf.mxu0
      %v3986 = vadd.f32 0.0, %v3985
      %v3987 = vpop.f32.mrf.mxu0
      %v3988 = vpop.f32.mrf.mxu0
      %v3989 = vadd.f32 0.0, %v3988
      %v3990 = vpop.f32.mrf.mxu0
      %3991 = vmatprep.mubr.bf16.mxu0 0
      %3992 = vmatmul.mubr.bf16.gmra.mxu0 %v3921
      %v3993 = vpop.f32.mrf.mxu0
      %v3994 = vadd.f32 0.0, %v3993
      %v3995 = vpop.f32.mrf.mxu0
      %v3996 = vpop.f32.mrf.mxu0
      %v3997 = vpop.f32.mrf.mxu0
      %3998 = vdwg.mxu0
      %s3999 = scalar_lea.vmem %s3, 280
      %v4000 = vld [vmem:[%s3999] sm:$0xff]
      %v4001 = vld [vmem:[%s3999 + $0x8] sm:$0xff]
      %v4002 = vld [vmem:[%s3999 + $0x10] sm:$0xff]
      %v4003 = vld [vmem:[%s3999 + $0x18] sm:$0xff]
      %v4004 = vld [vmem:[%s3999 + $0x20] sm:$0xff]
      %v4005 = vld [vmem:[%s3999 + $0x28] sm:$0xff]
      %v4006 = vld [vmem:[%s3999 + $0x30] sm:$0xff]
      %v4007 = vmul.f32 %v3866, %v4000
      %v4008 = vmul.f32 %v3869, %v4001
      %v4009 = vmul.f32 %v3874, %v4002
      %v4010 = vmul.f32 %v3877, %v4003
      %v4011 = vmul.f32 %v3882, %v4004
      %v4012 = vmul.f32 %v3885, %v4005
      %v4013 = vmul.f32 %v3890, %v4006
      %v4014 = vmul.f32 %v3970, %v4000
      %v4015 = vmul.f32 %v3973, %v4001
      %v4016 = vmul.f32 %v3978, %v4002
      %v4017 = vmul.f32 %v3981, %v4003
      %v4018 = vmul.f32 %v3986, %v4004
      %v4019 = vmul.f32 %v3989, %v4005
      %v4020 = vmul.f32 %v3994, %v4006
      %v4021 = vsel %vm1085, %v4007, -inf
      %4022 = vmax.xlane.f32.xlu0 %v4021
      %v4023 = vpop.xlane.xlu0 %4022
      %v4024 = vsel %vm1085, %v4008, -inf
      %4025 = vmax.xlane.f32.xlu0 %v4024
      %v4026 = vpop.xlane.xlu0 %4025
      %v4027 = vsel %vm1085, %v4009, -inf
      %4028 = vmax.xlane.f32.xlu0 %v4027
      %v4029 = vpop.xlane.xlu0 %4028
      %v4030 = vsel %vm1085, %v4010, -inf
      %4031 = vmax.xlane.f32.xlu0 %v4030
      %v4032 = vpop.xlane.xlu0 %4031
      %v4033 = vsel %vm1085, %v4011, -inf
      %4034 = vmax.xlane.f32.xlu0 %v4033
      %v4035 = vpop.xlane.xlu0 %4034
      %v4036 = vsel %vm1085, %v4012, -inf
      %4037 = vmax.xlane.f32.xlu0 %v4036
      %v4038 = vpop.xlane.xlu0 %4037
      %v4039 = vsel %vm1085, %v4013, -inf
      %4040 = vmax.xlane.f32.xlu0 %v4039
      %v4041 = vpop.xlane.xlu0 %4040
      %v4042 = vsel %vm1085, %v4014, -inf
      %4043 = vmax.xlane.f32.xlu0 %v4042
      %v4044 = vpop.xlane.xlu0 %4043
      %v4045 = vsel %vm1085, %v4015, -inf
      %4046 = vmax.xlane.f32.xlu0 %v4045
      %v4047 = vpop.xlane.xlu0 %4046
      %v4048 = vsel %vm1085, %v4016, -inf
      %4049 = vmax.xlane.f32.xlu0 %v4048
      %v4050 = vpop.xlane.xlu0 %4049
      %v4051 = vsel %vm1085, %v4017, -inf
      %4052 = vmax.xlane.f32.xlu0 %v4051
      %v4053 = vpop.xlane.xlu0 %4052
      %v4054 = vsel %vm1085, %v4018, -inf
      %4055 = vmax.xlane.f32.xlu0 %v4054
      %v4056 = vpop.xlane.xlu0 %4055
      %v4057 = vsel %vm1085, %v4019, -inf
      %4058 = vmax.xlane.f32.xlu0 %v4057
      %v4059 = vpop.xlane.xlu0 %4058
      %v4060 = vsel %vm1085, %v4020, -inf
      %4061 = vmax.xlane.f32.xlu0 %v4060
      %v4062 = vpop.xlane.xlu0 %4061
      %v4063 = vsub.f32 %v4007, %v4023
      %v4064 = vsub.f32 %v4008, %v4026
      %v4065 = vsub.f32 %v4009, %v4029
      %v4066 = vsub.f32 %v4010, %v4032
      %v4067 = vsub.f32 %v4011, %v4035
      %v4068 = vsub.f32 %v4012, %v4038
      %v4069 = vsub.f32 %v4013, %v4041
      %v4070 = vsub.f32 %v4014, %v4044
      %v4071 = vsub.f32 %v4015, %v4047
      %v4072 = vsub.f32 %v4016, %v4050
      %v4073 = vsub.f32 %v4017, %v4053
      %v4074 = vsub.f32 %v4018, %v4056
      %v4075 = vsub.f32 %v4019, %v4059
      %v4076 = vsub.f32 %v4020, %v4062
      %v4077 = vmul.f32 %v4063, 1.442695
      %v4078 = vpow.pop %v4077
      %v4079 = vmul.f32 %v4064, 1.442695
      %v4080 = vpow.pop %v4079
      %v4081 = vmul.f32 %v4065, 1.442695
      %v4082 = vpow.pop %v4081
      %v4083 = vmul.f32 %v4066, 1.442695
      %v4084 = vpow.pop %v4083
      %v4085 = vmul.f32 %v4067, 1.442695
      %v4086 = vpow.pop %v4085
      %v4087 = vmul.f32 %v4068, 1.442695
      %v4088 = vpow.pop %v4087
      %v4089 = vmul.f32 %v4069, 1.442695
      %v4090 = vpow.pop %v4089
      %v4091 = vmul.f32 %v4070, 1.442695
      %v4092 = vpow.pop %v4091
      %v4093 = vmul.f32 %v4071, 1.442695
      %v4094 = vpow.pop %v4093
      %v4095 = vmul.f32 %v4072, 1.442695
      %v4096 = vpow.pop %v4095
      %v4097 = vmul.f32 %v4073, 1.442695
      %v4098 = vpow.pop %v4097
      %v4099 = vmul.f32 %v4074, 1.442695
      %v4100 = vpow.pop %v4099
      %v4101 = vmul.f32 %v4075, 1.442695
      %v4102 = vpow.pop %v4101
      %v4103 = vmul.f32 %v4076, 1.442695
      %v4104 = vpow.pop %v4103
      %v4105 = vsel %vm1171, %v4078, 0.0
      %v4106 = vsel %vm1171, %v4080, 0.0
      %v4107 = vsel %vm1171, %v4082, 0.0
      %v4108 = vsel %vm1171, %v4084, 0.0
      %v4109 = vsel %vm1171, %v4086, 0.0
      %v4110 = vsel %vm1171, %v4088, 0.0
      %v4111 = vsel %vm1171, %v4090, 0.0
      %v4112 = vsel %vm1171, %v4092, 0.0
      %v4113 = vsel %vm1171, %v4094, 0.0
      %v4114 = vsel %vm1171, %v4096, 0.0
      %v4115 = vsel %vm1171, %v4098, 0.0
      %v4116 = vsel %vm1171, %v4100, 0.0
      %v4117 = vsel %vm1171, %v4102, 0.0
      %v4118 = vsel %vm1171, %v4104, 0.0
      %v4119 = vsel %vm1085, %v4105, 0.0
      %4120 = vadd.xlane.f32.xlu0 %v4119
      %v4121 = vpop.xlane.xlu0 %4120
      %v4122 = vsel %vm1085, %v4106, 0.0
      %4123 = vadd.xlane.f32.xlu0 %v4122
      %v4124 = vpop.xlane.xlu0 %4123
      %v4125 = vsel %vm1085, %v4107, 0.0
      %4126 = vadd.xlane.f32.xlu0 %v4125
      %v4127 = vpop.xlane.xlu0 %4126
      %v4128 = vsel %vm1085, %v4108, 0.0
      %4129 = vadd.xlane.f32.xlu0 %v4128
      %v4130 = vpop.xlane.xlu0 %4129
      %v4131 = vsel %vm1085, %v4109, 0.0
      %4132 = vadd.xlane.f32.xlu0 %v4131
      %v4133 = vpop.xlane.xlu0 %4132
      %v4134 = vsel %vm1085, %v4110, 0.0
      %4135 = vadd.xlane.f32.xlu0 %v4134
      %v4136 = vpop.xlane.xlu0 %4135
      %v4137 = vsel %vm1085, %v4111, 0.0
      %4138 = vadd.xlane.f32.xlu0 %v4137
      %v4139 = vpop.xlane.xlu0 %4138
      %v4140 = vsel %vm1085, %v4112, 0.0
      %4141 = vadd.xlane.f32.xlu0 %v4140
      %v4142 = vpop.xlane.xlu0 %4141
      %v4143 = vsel %vm1085, %v4113, 0.0
      %4144 = vadd.xlane.f32.xlu0 %v4143
      %v4145 = vpop.xlane.xlu0 %4144
      %v4146 = vsel %vm1085, %v4114, 0.0
      %4147 = vadd.xlane.f32.xlu0 %v4146
      %v4148 = vpop.xlane.xlu0 %4147
      %v4149 = vsel %vm1085, %v4115, 0.0
      %4150 = vadd.xlane.f32.xlu0 %v4149
      %v4151 = vpop.xlane.xlu0 %4150
      %v4152 = vsel %vm1085, %v4116, 0.0
      %4153 = vadd.xlane.f32.xlu0 %v4152
      %v4154 = vpop.xlane.xlu0 %4153
      %v4155 = vsel %vm1085, %v4117, 0.0
      %4156 = vadd.xlane.f32.xlu0 %v4155
      %v4157 = vpop.xlane.xlu0 %4156
      %v4158 = vsel %vm1085, %v4118, 0.0
      %4159 = vadd.xlane.f32.xlu0 %v4158
      %v4160 = vpop.xlane.xlu0 %4159
      %v4161 = vrcp.pop %v4121
      %v4162 = vrcp.pop %v4124
      %v4163 = vrcp.pop %v4127
      %v4164 = vrcp.pop %v4130
      %v4165 = vrcp.pop %v4133
      %v4166 = vrcp.pop %v4136
      %v4167 = vrcp.pop %v4139
      %v4168 = vrcp.pop %v4142
      %v4169 = vrcp.pop %v4145
      %v4170 = vrcp.pop %v4148
      %v4171 = vrcp.pop %v4151
      %v4172 = vrcp.pop %v4154
      %v4173 = vrcp.pop %v4157
      %v4174 = vrcp.pop %v4160
      %v4175 = vmul.f32 %v4105, %v4161
      %v4176 = vmul.f32 %v4106, %v4162
      %v4177 = vmul.f32 %v4107, %v4163
      %v4178 = vmul.f32 %v4108, %v4164
      %v4179 = vmul.f32 %v4109, %v4165
      %v4180 = vmul.f32 %v4110, %v4166
      %v4181 = vmul.f32 %v4111, %v4167
      %v4182 = vmul.f32 %v4112, %v4168
      %v4183 = vmul.f32 %v4113, %v4169
      %v4184 = vmul.f32 %v4114, %v4170
      %v4185 = vmul.f32 %v4115, %v4171
      %v4186 = vmul.f32 %v4116, %v4172
      %v4187 = vmul.f32 %v4117, %v4173
      %v4188 = vmul.f32 %v4118, %v4174
      %v4189 = vpack.c.bf16 %v4176, %v4175
      %v4190 = vpack.c.bf16 %v4178, %v4177
      %v4191 = vpack.c.bf16 %v4180, %v4179
      %v4192 = vpack.c.bf16 %v4181, %v4181
      %v4193 = vpack.c.bf16 %v4183, %v4182
      %v4194 = vpack.c.bf16 %v4185, %v4184
      %v4195 = vpack.c.bf16 %v4187, %v4186
      %v4196 = vpack.c.bf16 %v4188, %v4188
      %4197 = vrot.lane.b32.xlu0 %v876, 48
      %v4198 = vpop.permute.xlu0 %4197
      %4199 = vrot.lane.b32.xlu0 %v877, 48
      %v4200 = vpop.permute.xlu0 %4199
      %4201 = vrot.lane.b32.xlu0 %v878, 48
      %v4202 = vpop.permute.xlu0 %4201
      %4203 = vrot.lane.b32.xlu0 %v879, 48
      %v4204 = vpop.permute.xlu0 %4203
      %v4209 = vsel %vm1085, %v4189, 0
      %v4212 = vsel %vm1085, %v4190, 0
      %v4215 = vsel %vm1085, %v4191, 0
      %v4218 = vsel %vm1085, %v4192, 0
      %v4221 = vsel %vm1276, %v4204, 0
      %4223 = vmatprep.subr.bf16.mxu0 0
      %4224 = vmatpush1.bf16.msra.mxu0 0
      %4225 = vmatprep.subr.bf16.mxu0 0
      %4226 = vmatpush1.bf16.msra.mxu0 0
      %4227 = vmatprep.subr.bf16.mxu0 0
      %4228 = vmatpush1.bf16.msra.mxu0 0
      %4229 = vmatprep.subr.bf16.mxu0 0
      %4230 = vmatpush1.bf16.msra.mxu0 0
      %4231 = vmatprep.subr.bf16.mxu0 0
      %4232 = vmatpush1.bf16.msra.mxu0 %v4221
      %4233 = vmatprep.subr.bf16.mxu0 0
      %4234 = vmatpush1.bf16.msra.mxu0 %v4202
      %4235 = vmatprep.subr.bf16.mxu0 0
      %4236 = vmatpush1.bf16.msra.mxu0 %v4200
      %4237 = vmatprep.subr.bf16.mxu0 0
      %4238 = vmatpush1.bf16.msra.mxu0 %v4198
      %4239 = vmatprep.subr.bf16.mxu0 0
      %4240 = vmatpush2.bf16.msra.mxu0 0
      %4241 = vmatprep.subr.bf16.mxu0 0
      %4242 = vmatpush2.bf16.msra.mxu0 0
      %4243 = vmatprep.subr.bf16.mxu0 0
      %4244 = vmatpush2.bf16.msra.mxu0 0
      %4245 = vmatprep.subr.bf16.mxu0 0
      %4246 = vmatpush2.bf16.msra.mxu0 0
      %4247 = vmatprep.subr.bf16.mxu0 0
      %4248 = vmatpush2.bf16.msra.mxu0 0
      %4249 = vmatprep.subr.bf16.mxu0 0
      %4250 = vmatpush2.bf16.msra.mxu0 0
      %4251 = vmatprep.subr.bf16.mxu0 0
      %4252 = vmatpush2.bf16.msra.mxu0 0
      %4253 = vmatprep.subr.bf16.mxu0 0
      %4254 = vmatpush2.bf16.msra.mxu0 0
      %4255 = vmatprep.mubr.bf16.mxu0 0
      %4256 = vmatmul.mubr.bf16.gmra.mxu0 %v4209
      %v4257 = vpop.f32.mrf.mxu0
      %v4258 = vadd.f32 0.0, %v4257
      %v4259 = vpop.f32.mrf.mxu0
      %v4260 = vpop.f32.mrf.mxu0
      %v4261 = vadd.f32 0.0, %v4260
      %v4262 = vpop.f32.mrf.mxu0
      %4263 = vmatprep.mubr.bf16.mxu0 0
      %4264 = vmatmul.mubr.bf16.gmra.mxu0 %v4212
      %v4265 = vpop.f32.mrf.mxu0
      %v4266 = vadd.f32 0.0, %v4265
      %v4267 = vpop.f32.mrf.mxu0
      %v4268 = vpop.f32.mrf.mxu0
      %v4269 = vadd.f32 0.0, %v4268
      %v4270 = vpop.f32.mrf.mxu0
      %4271 = vmatprep.mubr.bf16.mxu0 0
      %4272 = vmatmul.mubr.bf16.gmra.mxu0 %v4215
      %v4273 = vpop.f32.mrf.mxu0
      %v4274 = vadd.f32 0.0, %v4273
      %v4275 = vpop.f32.mrf.mxu0
      %v4276 = vpop.f32.mrf.mxu0
      %v4277 = vadd.f32 0.0, %v4276
      %v4278 = vpop.f32.mrf.mxu0
      %4279 = vmatprep.mubr.bf16.mxu0 0
      %4280 = vmatmul.mubr.bf16.gmra.mxu0 %v4218
      %v4281 = vpop.f32.mrf.mxu0
      %v4282 = vadd.f32 0.0, %v4281
      %v4283 = vpop.f32.mrf.mxu0
      %v4284 = vpop.f32.mrf.mxu0
      %v4285 = vpop.f32.mrf.mxu0
      %4286 = vdwg.mxu0
      %4287 = vrot.lane.b32.xlu0 %v880, 48
      %v4288 = vpop.permute.xlu0 %4287
      %4289 = vrot.lane.b32.xlu0 %v881, 48
      %v4290 = vpop.permute.xlu0 %4289
      %4291 = vrot.lane.b32.xlu0 %v882, 48
      %v4292 = vpop.permute.xlu0 %4291
      %4293 = vrot.lane.b32.xlu0 %v883, 48
      %v4294 = vpop.permute.xlu0 %4293
      %v4299 = vsel %vm1085, %v4193, 0
      %v4302 = vsel %vm1085, %v4194, 0
      %v4305 = vsel %vm1085, %v4195, 0
      %v4308 = vsel %vm1085, %v4196, 0
      %v4311 = vsel %vm1276, %v4294, 0
      %4313 = vmatprep.subr.bf16.mxu0 0
      %4314 = vmatpush1.bf16.msra.mxu0 0
      %4315 = vmatprep.subr.bf16.mxu0 0
      %4316 = vmatpush1.bf16.msra.mxu0 0
      %4317 = vmatprep.subr.bf16.mxu0 0
      %4318 = vmatpush1.bf16.msra.mxu0 0
      %4319 = vmatprep.subr.bf16.mxu0 0
      %4320 = vmatpush1.bf16.msra.mxu0 0
      %4321 = vmatprep.subr.bf16.mxu0 0
      %4322 = vmatpush1.bf16.msra.mxu0 %v4311
      %4323 = vmatprep.subr.bf16.mxu0 0
      %4324 = vmatpush1.bf16.msra.mxu0 %v4292
      %4325 = vmatprep.subr.bf16.mxu0 0
      %4326 = vmatpush1.bf16.msra.mxu0 %v4290
      %4327 = vmatprep.subr.bf16.mxu0 0
      %4328 = vmatpush1.bf16.msra.mxu0 %v4288
      %4329 = vmatprep.subr.bf16.mxu0 0
      %4330 = vmatpush2.bf16.msra.mxu0 0
      %4331 = vmatprep.subr.bf16.mxu0 0
      %4332 = vmatpush2.bf16.msra.mxu0 0
      %4333 = vmatprep.subr.bf16.mxu0 0
      %4334 = vmatpush2.bf16.msra.mxu0 0
      %4335 = vmatprep.subr.bf16.mxu0 0
      %4336 = vmatpush2.bf16.msra.mxu0 0
      %4337 = vmatprep.subr.bf16.mxu0 0
      %4338 = vmatpush2.bf16.msra.mxu0 0
      %4339 = vmatprep.subr.bf16.mxu0 0
      %4340 = vmatpush2.bf16.msra.mxu0 0
      %4341 = vmatprep.subr.bf16.mxu0 0
      %4342 = vmatpush2.bf16.msra.mxu0 0
      %4343 = vmatprep.subr.bf16.mxu0 0
      %4344 = vmatpush2.bf16.msra.mxu0 0
      %4345 = vmatprep.mubr.bf16.mxu0 0
      %4346 = vmatmul.mubr.bf16.gmra.mxu0 %v4299
      %v4347 = vpop.f32.mrf.mxu0
      %v4348 = vadd.f32 0.0, %v4347
      %v4349 = vpop.f32.mrf.mxu0
      %v4350 = vpop.f32.mrf.mxu0
      %v4351 = vadd.f32 0.0, %v4350
      %v4352 = vpop.f32.mrf.mxu0
      %4353 = vmatprep.mubr.bf16.mxu0 0
      %4354 = vmatmul.mubr.bf16.gmra.mxu0 %v4302
      %v4355 = vpop.f32.mrf.mxu0
      %v4356 = vadd.f32 0.0, %v4355
      %v4357 = vpop.f32.mrf.mxu0
      %v4358 = vpop.f32.mrf.mxu0
      %v4359 = vadd.f32 0.0, %v4358
      %v4360 = vpop.f32.mrf.mxu0
      %4361 = vmatprep.mubr.bf16.mxu0 0
      %4362 = vmatmul.mubr.bf16.gmra.mxu0 %v4305
      %v4363 = vpop.f32.mrf.mxu0
      %v4364 = vadd.f32 0.0, %v4363
      %v4365 = vpop.f32.mrf.mxu0
      %v4366 = vpop.f32.mrf.mxu0
      %v4367 = vadd.f32 0.0, %v4366
      %v4368 = vpop.f32.mrf.mxu0
      %4369 = vmatprep.mubr.bf16.mxu0 0
      %4370 = vmatmul.mubr.bf16.gmra.mxu0 %v4308
      %v4371 = vpop.f32.mrf.mxu0
      %v4372 = vadd.f32 0.0, %v4371
      %v4373 = vpop.f32.mrf.mxu0
      %v4374 = vpop.f32.mrf.mxu0
      %v4375 = vpop.f32.mrf.mxu0
      %4376 = vdwg.mxu0
      %4377 = vrot.lane.b32.xlu0 %v860, 32
      %v4378 = vpop.permute.xlu0 %4377
      %4379 = vrot.lane.b32.xlu0 %v861, 32
      %v4380 = vpop.permute.xlu0 %4379
      %4381 = vrot.lane.b32.xlu0 %v862, 32
      %v4382 = vpop.permute.xlu0 %4381
      %4383 = vrot.lane.b32.xlu0 %v863, 32
      %v4384 = vpop.permute.xlu0 %4383
      %4385 = vrot.lane.b32.xlu0 %v868, 32
      %v4386 = vpop.permute.xlu0 %4385
      %4387 = vrot.lane.b32.xlu0 %v869, 32
      %v4388 = vpop.permute.xlu0 %4387
      %4389 = vrot.lane.b32.xlu0 %v870, 32
      %v4390 = vpop.permute.xlu0 %4389
      %4391 = vrot.lane.b32.xlu0 %v871, 32
      %v4392 = vpop.permute.xlu0 %4391
      %v4394 = vsel %vm887, %v4378, 0
      %v4397 = vsel %vm887, %v4380, 0
      %v4400 = vsel %vm887, %v4382, 0
      %v4403 = vsel %vm887, %v4384, 0
      %v4406 = vsel %vm887, %v4386, 0
      %v4409 = vsel %vm887, %v4388, 0
      %v4412 = vsel %vm887, %v4390, 0
      %v4415 = vsel %vm887, %v4392, 0
      %4417 = vmatprep.subr.bf16.mxu0 0
      %4418 = vmatpush1.bf16.xpose.msra.mxu0 0
      %4419 = vmatprep.subr.bf16.mxu0 0
      %4420 = vmatpush1.bf16.xpose.msra.mxu0 0
      %4421 = vmatprep.subr.bf16.mxu0 0
      %4422 = vmatpush1.bf16.xpose.msra.mxu0 0
      %4423 = vmatprep.subr.bf16.mxu0 0
      %4424 = vmatpush1.bf16.xpose.msra.mxu0 0
      %4425 = vmatprep.subr.bf16.mxu0 0
      %4426 = vmatpush1.bf16.xpose.msra.mxu0 %v4415
      %4427 = vmatprep.subr.bf16.mxu0 0
      %4428 = vmatpush1.bf16.xpose.msra.mxu0 %v4412
      %4429 = vmatprep.subr.bf16.mxu0 0
      %4430 = vmatpush1.bf16.xpose.msra.mxu0 %v4409
      %4431 = vmatprep.subr.bf16.mxu0 0
      %4432 = vmatpush1.bf16.xpose.msra.mxu0 %v4406
      %4433 = vmatprep.subr.bf16.mxu0 0
      %4434 = vmatpush2.bf16.xpose.msra.mxu0 0
      %4435 = vmatprep.subr.bf16.mxu0 0
      %4436 = vmatpush2.bf16.xpose.msra.mxu0 0
      %4437 = vmatprep.subr.bf16.mxu0 0
      %4438 = vmatpush2.bf16.xpose.msra.mxu0 0
      %4439 = vmatprep.subr.bf16.mxu0 0
      %4440 = vmatpush2.bf16.xpose.msra.mxu0 0
      %4441 = vmatprep.subr.bf16.mxu0 0
      %4442 = vmatpush2.bf16.xpose.msra.mxu0 0
      %4443 = vmatprep.subr.bf16.mxu0 0
      %4444 = vmatpush2.bf16.xpose.msra.mxu0 0
      %4445 = vmatprep.subr.bf16.mxu0 0
      %4446 = vmatpush2.bf16.xpose.msra.mxu0 0
      %4447 = vmatprep.subr.bf16.mxu0 0
      %4448 = vmatpush2.bf16.xpose.msra.mxu0 0
      %4449 = vmatprep.mubr.bf16.mxu0 0
      %4450 = vmatmul.mubr.bf16.gmra.mxu0 %v4394
      %v4451 = vpop.f32.mrf.mxu0
      %v4452 = vadd.f32 0.0, %v4451
      %v4453 = vpop.f32.mrf.mxu0
      %v4454 = vpop.f32.mrf.mxu0
      %v4455 = vadd.f32 0.0, %v4454
      %v4456 = vpop.f32.mrf.mxu0
      %4457 = vmatprep.mubr.bf16.mxu0 0
      %4458 = vmatmul.mubr.bf16.gmra.mxu0 %v4397
      %v4459 = vpop.f32.mrf.mxu0
      %v4460 = vadd.f32 0.0, %v4459
      %v4461 = vpop.f32.mrf.mxu0
      %v4462 = vpop.f32.mrf.mxu0
      %v4463 = vadd.f32 0.0, %v4462
      %v4464 = vpop.f32.mrf.mxu0
      %4465 = vmatprep.mubr.bf16.mxu0 0
      %4466 = vmatmul.mubr.bf16.gmra.mxu0 %v4400
      %v4467 = vpop.f32.mrf.mxu0
      %v4468 = vadd.f32 0.0, %v4467
      %v4469 = vpop.f32.mrf.mxu0
      %v4470 = vpop.f32.mrf.mxu0
      %v4471 = vadd.f32 0.0, %v4470
      %v4472 = vpop.f32.mrf.mxu0
      %4473 = vmatprep.mubr.bf16.mxu0 0
      %4474 = vmatmul.mubr.bf16.gmra.mxu0 %v4403
      %v4475 = vpop.f32.mrf.mxu0
      %v4476 = vadd.f32 0.0, %v4475
      %v4477 = vpop.f32.mrf.mxu0
      %v4478 = vpop.f32.mrf.mxu0
      %v4479 = vpop.f32.mrf.mxu0
      %4480 = vdwg.mxu0
      %4481 = vrot.lane.b32.xlu0 %v864, 32
      %v4482 = vpop.permute.xlu0 %4481
      %4483 = vrot.lane.b32.xlu0 %v865, 32
      %v4484 = vpop.permute.xlu0 %4483
      %4485 = vrot.lane.b32.xlu0 %v866, 32
      %v4486 = vpop.permute.xlu0 %4485
      %4487 = vrot.lane.b32.xlu0 %v867, 32
      %v4488 = vpop.permute.xlu0 %4487
      %4489 = vrot.lane.b32.xlu0 %v872, 32
      %v4490 = vpop.permute.xlu0 %4489
      %4491 = vrot.lane.b32.xlu0 %v873, 32
      %v4492 = vpop.permute.xlu0 %4491
      %4493 = vrot.lane.b32.xlu0 %v874, 32
      %v4494 = vpop.permute.xlu0 %4493
      %4495 = vrot.lane.b32.xlu0 %v875, 32
      %v4496 = vpop.permute.xlu0 %4495
      %v4498 = vsel %vm887, %v4482, 0
      %v4501 = vsel %vm887, %v4484, 0
      %v4504 = vsel %vm887, %v4486, 0
      %v4507 = vsel %vm887, %v4488, 0
      %v4510 = vsel %vm887, %v4490, 0
      %v4513 = vsel %vm887, %v4492, 0
      %v4516 = vsel %vm887, %v4494, 0
      %v4519 = vsel %vm887, %v4496, 0
      %4521 = vmatprep.subr.bf16.mxu0 0
      %4522 = vmatpush1.bf16.xpose.msra.mxu0 0
      %4523 = vmatprep.subr.bf16.mxu0 0
      %4524 = vmatpush1.bf16.xpose.msra.mxu0 0
      %4525 = vmatprep.subr.bf16.mxu0 0
      %4526 = vmatpush1.bf16.xpose.msra.mxu0 0
      %4527 = vmatprep.subr.bf16.mxu0 0
      %4528 = vmatpush1.bf16.xpose.msra.mxu0 0
      %4529 = vmatprep.subr.bf16.mxu0 0
      %4530 = vmatpush1.bf16.xpose.msra.mxu0 %v4519
      %4531 = vmatprep.subr.bf16.mxu0 0
      %4532 = vmatpush1.bf16.xpose.msra.mxu0 %v4516
      %4533 = vmatprep.subr.bf16.mxu0 0
      %4534 = vmatpush1.bf16.xpose.msra.mxu0 %v4513
      %4535 = vmatprep.subr.bf16.mxu0 0
      %4536 = vmatpush1.bf16.xpose.msra.mxu0 %v4510
      %4537 = vmatprep.subr.bf16.mxu0 0
      %4538 = vmatpush2.bf16.xpose.msra.mxu0 0
      %4539 = vmatprep.subr.bf16.mxu0 0
      %4540 = vmatpush2.bf16.xpose.msra.mxu0 0
      %4541 = vmatprep.subr.bf16.mxu0 0
      %4542 = vmatpush2.bf16.xpose.msra.mxu0 0
      %4543 = vmatprep.subr.bf16.mxu0 0
      %4544 = vmatpush2.bf16.xpose.msra.mxu0 0
      %4545 = vmatprep.subr.bf16.mxu0 0
      %4546 = vmatpush2.bf16.xpose.msra.mxu0 0
      %4547 = vmatprep.subr.bf16.mxu0 0
      %4548 = vmatpush2.bf16.xpose.msra.mxu0 0
      %4549 = vmatprep.subr.bf16.mxu0 0
      %4550 = vmatpush2.bf16.xpose.msra.mxu0 0
      %4551 = vmatprep.subr.bf16.mxu0 0
      %4552 = vmatpush2.bf16.xpose.msra.mxu0 0
      %4553 = vmatprep.mubr.bf16.mxu0 0
      %4554 = vmatmul.mubr.bf16.gmra.mxu0 %v4498
      %v4555 = vpop.f32.mrf.mxu0
      %v4556 = vadd.f32 0.0, %v4555
      %v4557 = vpop.f32.mrf.mxu0
      %v4558 = vpop.f32.mrf.mxu0
      %v4559 = vadd.f32 0.0, %v4558
      %v4560 = vpop.f32.mrf.mxu0
      %4561 = vmatprep.mubr.bf16.mxu0 0
      %4562 = vmatmul.mubr.bf16.gmra.mxu0 %v4501
      %v4563 = vpop.f32.mrf.mxu0
      %v4564 = vadd.f32 0.0, %v4563
      %v4565 = vpop.f32.mrf.mxu0
      %v4566 = vpop.f32.mrf.mxu0
      %v4567 = vadd.f32 0.0, %v4566
      %v4568 = vpop.f32.mrf.mxu0
      %4569 = vmatprep.mubr.bf16.mxu0 0
      %4570 = vmatmul.mubr.bf16.gmra.mxu0 %v4504
      %v4571 = vpop.f32.mrf.mxu0
      %v4572 = vadd.f32 0.0, %v4571
      %v4573 = vpop.f32.mrf.mxu0
      %v4574 = vpop.f32.mrf.mxu0
      %v4575 = vadd.f32 0.0, %v4574
      %v4576 = vpop.f32.mrf.mxu0
      %4577 = vmatprep.mubr.bf16.mxu0 0
      %4578 = vmatmul.mubr.bf16.gmra.mxu0 %v4507
      %v4579 = vpop.f32.mrf.mxu0
      %v4580 = vadd.f32 0.0, %v4579
      %v4581 = vpop.f32.mrf.mxu0
      %v4582 = vpop.f32.mrf.mxu0
      %v4583 = vpop.f32.mrf.mxu0
      %4584 = vdwg.mxu0
      %s4585 = scalar_lea.vmem %s3, 336
      %v4586 = vld [vmem:[%s4585] sm:$0xff]
      %v4587 = vld [vmem:[%s4585 + $0x8] sm:$0xff]
      %v4588 = vld [vmem:[%s4585 + $0x10] sm:$0xff]
      %v4589 = vld [vmem:[%s4585 + $0x18] sm:$0xff]
      %v4590 = vld [vmem:[%s4585 + $0x20] sm:$0xff]
      %v4591 = vld [vmem:[%s4585 + $0x28] sm:$0xff]
      %v4592 = vld [vmem:[%s4585 + $0x30] sm:$0xff]
      %v4593 = vmul.f32 %v4452, %v4586
      %v4594 = vmul.f32 %v4455, %v4587
      %v4595 = vmul.f32 %v4460, %v4588
      %v4596 = vmul.f32 %v4463, %v4589
      %v4597 = vmul.f32 %v4468, %v4590
      %v4598 = vmul.f32 %v4471, %v4591
      %v4599 = vmul.f32 %v4476, %v4592
      %v4600 = vmul.f32 %v4556, %v4586
      %v4601 = vmul.f32 %v4559, %v4587
      %v4602 = vmul.f32 %v4564, %v4588
      %v4603 = vmul.f32 %v4567, %v4589
      %v4604 = vmul.f32 %v4572, %v4590
      %v4605 = vmul.f32 %v4575, %v4591
      %v4606 = vmul.f32 %v4580, %v4592
      %v4607 = vsel %vm1085, %v4593, -inf
      %4608 = vmax.xlane.f32.xlu0 %v4607
      %v4609 = vpop.xlane.xlu0 %4608
      %v4610 = vsel %vm1085, %v4594, -inf
      %4611 = vmax.xlane.f32.xlu0 %v4610
      %v4612 = vpop.xlane.xlu0 %4611
      %v4613 = vsel %vm1085, %v4595, -inf
      %4614 = vmax.xlane.f32.xlu0 %v4613
      %v4615 = vpop.xlane.xlu0 %4614
      %v4616 = vsel %vm1085, %v4596, -inf
      %4617 = vmax.xlane.f32.xlu0 %v4616
      %v4618 = vpop.xlane.xlu0 %4617
      %v4619 = vsel %vm1085, %v4597, -inf
      %4620 = vmax.xlane.f32.xlu0 %v4619
      %v4621 = vpop.xlane.xlu0 %4620
      %v4622 = vsel %vm1085, %v4598, -inf
      %4623 = vmax.xlane.f32.xlu0 %v4622
      %v4624 = vpop.xlane.xlu0 %4623
      %v4625 = vsel %vm1085, %v4599, -inf
      %4626 = vmax.xlane.f32.xlu0 %v4625
      %v4627 = vpop.xlane.xlu0 %4626
      %v4628 = vsel %vm1085, %v4600, -inf
      %4629 = vmax.xlane.f32.xlu0 %v4628
      %v4630 = vpop.xlane.xlu0 %4629
      %v4631 = vsel %vm1085, %v4601, -inf
      %4632 = vmax.xlane.f32.xlu0 %v4631
      %v4633 = vpop.xlane.xlu0 %4632
      %v4634 = vsel %vm1085, %v4602, -inf
      %4635 = vmax.xlane.f32.xlu0 %v4634
      %v4636 = vpop.xlane.xlu0 %4635
      %v4637 = vsel %vm1085, %v4603, -inf
      %4638 = vmax.xlane.f32.xlu0 %v4637
      %v4639 = vpop.xlane.xlu0 %4638
      %v4640 = vsel %vm1085, %v4604, -inf
      %4641 = vmax.xlane.f32.xlu0 %v4640
      %v4642 = vpop.xlane.xlu0 %4641
      %v4643 = vsel %vm1085, %v4605, -inf
      %4644 = vmax.xlane.f32.xlu0 %v4643
      %v4645 = vpop.xlane.xlu0 %4644
      %v4646 = vsel %vm1085, %v4606, -inf
      %4647 = vmax.xlane.f32.xlu0 %v4646
      %v4648 = vpop.xlane.xlu0 %4647
      %v4649 = vsub.f32 %v4593, %v4609
      %v4650 = vsub.f32 %v4594, %v4612
      %v4651 = vsub.f32 %v4595, %v4615
      %v4652 = vsub.f32 %v4596, %v4618
      %v4653 = vsub.f32 %v4597, %v4621
      %v4654 = vsub.f32 %v4598, %v4624
      %v4655 = vsub.f32 %v4599, %v4627
      %v4656 = vsub.f32 %v4600, %v4630
      %v4657 = vsub.f32 %v4601, %v4633
      %v4658 = vsub.f32 %v4602, %v4636
      %v4659 = vsub.f32 %v4603, %v4639
      %v4660 = vsub.f32 %v4604, %v4642
      %v4661 = vsub.f32 %v4605, %v4645
      %v4662 = vsub.f32 %v4606, %v4648
      %v4663 = vmul.f32 %v4649, 1.442695
      %v4664 = vpow.pop %v4663
      %v4665 = vmul.f32 %v4650, 1.442695
      %v4666 = vpow.pop %v4665
      %v4667 = vmul.f32 %v4651, 1.442695
      %v4668 = vpow.pop %v4667
      %v4669 = vmul.f32 %v4652, 1.442695
      %v4670 = vpow.pop %v4669
      %v4671 = vmul.f32 %v4653, 1.442695
      %v4672 = vpow.pop %v4671
      %v4673 = vmul.f32 %v4654, 1.442695
      %v4674 = vpow.pop %v4673
      %v4675 = vmul.f32 %v4655, 1.442695
      %v4676 = vpow.pop %v4675
      %v4677 = vmul.f32 %v4656, 1.442695
      %v4678 = vpow.pop %v4677
      %v4679 = vmul.f32 %v4657, 1.442695
      %v4680 = vpow.pop %v4679
      %v4681 = vmul.f32 %v4658, 1.442695
      %v4682 = vpow.pop %v4681
      %v4683 = vmul.f32 %v4659, 1.442695
      %v4684 = vpow.pop %v4683
      %v4685 = vmul.f32 %v4660, 1.442695
      %v4686 = vpow.pop %v4685
      %v4687 = vmul.f32 %v4661, 1.442695
      %v4688 = vpow.pop %v4687
      %v4689 = vmul.f32 %v4662, 1.442695
      %v4690 = vpow.pop %v4689
      %v4691 = vsel %vm1171, %v4664, 0.0
      %v4692 = vsel %vm1171, %v4666, 0.0
      %v4693 = vsel %vm1171, %v4668, 0.0
      %v4694 = vsel %vm1171, %v4670, 0.0
      %v4695 = vsel %vm1171, %v4672, 0.0
      %v4696 = vsel %vm1171, %v4674, 0.0
      %v4697 = vsel %vm1171, %v4676, 0.0
      %v4698 = vsel %vm1171, %v4678, 0.0
      %v4699 = vsel %vm1171, %v4680, 0.0
      %v4700 = vsel %vm1171, %v4682, 0.0
      %v4701 = vsel %vm1171, %v4684, 0.0
      %v4702 = vsel %vm1171, %v4686, 0.0
      %v4703 = vsel %vm1171, %v4688, 0.0
      %v4704 = vsel %vm1171, %v4690, 0.0
      %v4705 = vsel %vm1085, %v4691, 0.0
      %4706 = vadd.xlane.f32.xlu0 %v4705
      %v4707 = vpop.xlane.xlu0 %4706
      %v4708 = vsel %vm1085, %v4692, 0.0
      %4709 = vadd.xlane.f32.xlu0 %v4708
      %v4710 = vpop.xlane.xlu0 %4709
      %v4711 = vsel %vm1085, %v4693, 0.0
      %4712 = vadd.xlane.f32.xlu0 %v4711
      %v4713 = vpop.xlane.xlu0 %4712
      %v4714 = vsel %vm1085, %v4694, 0.0
      %4715 = vadd.xlane.f32.xlu0 %v4714
      %v4716 = vpop.xlane.xlu0 %4715
      %v4717 = vsel %vm1085, %v4695, 0.0
      %4718 = vadd.xlane.f32.xlu0 %v4717
      %v4719 = vpop.xlane.xlu0 %4718
      %v4720 = vsel %vm1085, %v4696, 0.0
      %4721 = vadd.xlane.f32.xlu0 %v4720
      %v4722 = vpop.xlane.xlu0 %4721
      %v4723 = vsel %vm1085, %v4697, 0.0
      %4724 = vadd.xlane.f32.xlu0 %v4723
      %v4725 = vpop.xlane.xlu0 %4724
      %v4726 = vsel %vm1085, %v4698, 0.0
      %4727 = vadd.xlane.f32.xlu0 %v4726
      %v4728 = vpop.xlane.xlu0 %4727
      %v4729 = vsel %vm1085, %v4699, 0.0
      %4730 = vadd.xlane.f32.xlu0 %v4729
      %v4731 = vpop.xlane.xlu0 %4730
      %v4732 = vsel %vm1085, %v4700, 0.0
      %4733 = vadd.xlane.f32.xlu0 %v4732
      %v4734 = vpop.xlane.xlu0 %4733
      %v4735 = vsel %vm1085, %v4701, 0.0
      %4736 = vadd.xlane.f32.xlu0 %v4735
      %v4737 = vpop.xlane.xlu0 %4736
      %v4738 = vsel %vm1085, %v4702, 0.0
      %4739 = vadd.xlane.f32.xlu0 %v4738
      %v4740 = vpop.xlane.xlu0 %4739
      %v4741 = vsel %vm1085, %v4703, 0.0
      %4742 = vadd.xlane.f32.xlu0 %v4741
      %v4743 = vpop.xlane.xlu0 %4742
      %v4744 = vsel %vm1085, %v4704, 0.0
      %4745 = vadd.xlane.f32.xlu0 %v4744
      %v4746 = vpop.xlane.xlu0 %4745
      %v4747 = vrcp.pop %v4707
      %v4748 = vrcp.pop %v4710
      %v4749 = vrcp.pop %v4713
      %v4750 = vrcp.pop %v4716
      %v4751 = vrcp.pop %v4719
      %v4752 = vrcp.pop %v4722
      %v4753 = vrcp.pop %v4725
      %v4754 = vrcp.pop %v4728
      %v4755 = vrcp.pop %v4731
      %v4756 = vrcp.pop %v4734
      %v4757 = vrcp.pop %v4737
      %v4758 = vrcp.pop %v4740
      %v4759 = vrcp.pop %v4743
      %v4760 = vrcp.pop %v4746
      %v4761 = vmul.f32 %v4691, %v4747
      %v4762 = vmul.f32 %v4692, %v4748
      %v4763 = vmul.f32 %v4693, %v4749
      %v4764 = vmul.f32 %v4694, %v4750
      %v4765 = vmul.f32 %v4695, %v4751
      %v4766 = vmul.f32 %v4696, %v4752
      %v4767 = vmul.f32 %v4697, %v4753
      %v4768 = vmul.f32 %v4698, %v4754
      %v4769 = vmul.f32 %v4699, %v4755
      %v4770 = vmul.f32 %v4700, %v4756
      %v4771 = vmul.f32 %v4701, %v4757
      %v4772 = vmul.f32 %v4702, %v4758
      %v4773 = vmul.f32 %v4703, %v4759
      %v4774 = vmul.f32 %v4704, %v4760
      %v4775 = vpack.c.bf16 %v4762, %v4761
      %v4776 = vpack.c.bf16 %v4764, %v4763
      %v4777 = vpack.c.bf16 %v4766, %v4765
      %v4778 = vpack.c.bf16 %v4767, %v4767
      %v4779 = vpack.c.bf16 %v4769, %v4768
      %v4780 = vpack.c.bf16 %v4771, %v4770
      %v4781 = vpack.c.bf16 %v4773, %v4772
      %v4782 = vpack.c.bf16 %v4774, %v4774
      %4783 = vrot.lane.b32.xlu0 %v876, 32
      %v4784 = vpop.permute.xlu0 %4783
      %4785 = vrot.lane.b32.xlu0 %v877, 32
      %v4786 = vpop.permute.xlu0 %4785
      %4787 = vrot.lane.b32.xlu0 %v878, 32
      %v4788 = vpop.permute.xlu0 %4787
      %4789 = vrot.lane.b32.xlu0 %v879, 32
      %v4790 = vpop.permute.xlu0 %4789
      %v4795 = vsel %vm1085, %v4775, 0
      %v4798 = vsel %vm1085, %v4776, 0
      %v4801 = vsel %vm1085, %v4777, 0
      %v4804 = vsel %vm1085, %v4778, 0
      %v4807 = vsel %vm1276, %v4790, 0
      %4809 = vmatprep.subr.bf16.mxu0 0
      %4810 = vmatpush1.bf16.msra.mxu0 0
      %4811 = vmatprep.subr.bf16.mxu0 0
      %4812 = vmatpush1.bf16.msra.mxu0 0
      %4813 = vmatprep.subr.bf16.mxu0 0
      %4814 = vmatpush1.bf16.msra.mxu0 0
      %4815 = vmatprep.subr.bf16.mxu0 0
      %4816 = vmatpush1.bf16.msra.mxu0 0
      %4817 = vmatprep.subr.bf16.mxu0 0
      %4818 = vmatpush1.bf16.msra.mxu0 %v4807
      %4819 = vmatprep.subr.bf16.mxu0 0
      %4820 = vmatpush1.bf16.msra.mxu0 %v4788
      %4821 = vmatprep.subr.bf16.mxu0 0
      %4822 = vmatpush1.bf16.msra.mxu0 %v4786
      %4823 = vmatprep.subr.bf16.mxu0 0
      %4824 = vmatpush1.bf16.msra.mxu0 %v4784
      %4825 = vmatprep.subr.bf16.mxu0 0
      %4826 = vmatpush2.bf16.msra.mxu0 0
      %4827 = vmatprep.subr.bf16.mxu0 0
      %4828 = vmatpush2.bf16.msra.mxu0 0
      %4829 = vmatprep.subr.bf16.mxu0 0
      %4830 = vmatpush2.bf16.msra.mxu0 0
      %4831 = vmatprep.subr.bf16.mxu0 0
      %4832 = vmatpush2.bf16.msra.mxu0 0
      %4833 = vmatprep.subr.bf16.mxu0 0
      %4834 = vmatpush2.bf16.msra.mxu0 0
      %4835 = vmatprep.subr.bf16.mxu0 0
      %4836 = vmatpush2.bf16.msra.mxu0 0
      %4837 = vmatprep.subr.bf16.mxu0 0
      %4838 = vmatpush2.bf16.msra.mxu0 0
      %4839 = vmatprep.subr.bf16.mxu0 0
      %4840 = vmatpush2.bf16.msra.mxu0 0
      %4841 = vmatprep.mubr.bf16.mxu0 0
      %4842 = vmatmul.mubr.bf16.gmra.mxu0 %v4795
      %v4843 = vpop.f32.mrf.mxu0
      %v4844 = vadd.f32 0.0, %v4843
      %v4845 = vpop.f32.mrf.mxu0
      %v4846 = vpop.f32.mrf.mxu0
      %v4847 = vadd.f32 0.0, %v4846
      %v4848 = vpop.f32.mrf.mxu0
      %4849 = vmatprep.mubr.bf16.mxu0 0
      %4850 = vmatmul.mubr.bf16.gmra.mxu0 %v4798
      %v4851 = vpop.f32.mrf.mxu0
      %v4852 = vadd.f32 0.0, %v4851
      %v4853 = vpop.f32.mrf.mxu0
      %v4854 = vpop.f32.mrf.mxu0
      %v4855 = vadd.f32 0.0, %v4854
      %v4856 = vpop.f32.mrf.mxu0
      %4857 = vmatprep.mubr.bf16.mxu0 0
      %4858 = vmatmul.mubr.bf16.gmra.mxu0 %v4801
      %v4859 = vpop.f32.mrf.mxu0
      %v4860 = vadd.f32 0.0, %v4859
      %v4861 = vpop.f32.mrf.mxu0
      %v4862 = vpop.f32.mrf.mxu0
      %v4863 = vadd.f32 0.0, %v4862
      %v4864 = vpop.f32.mrf.mxu0
      %4865 = vmatprep.mubr.bf16.mxu0 0
      %4866 = vmatmul.mubr.bf16.gmra.mxu0 %v4804
      %v4867 = vpop.f32.mrf.mxu0
      %v4868 = vadd.f32 0.0, %v4867
      %v4869 = vpop.f32.mrf.mxu0
      %v4870 = vpop.f32.mrf.mxu0
      %v4871 = vpop.f32.mrf.mxu0
      %4872 = vdwg.mxu0
      %4873 = vrot.lane.b32.xlu0 %v880, 32
      %v4874 = vpop.permute.xlu0 %4873
      %4875 = vrot.lane.b32.xlu0 %v881, 32
      %v4876 = vpop.permute.xlu0 %4875
      %4877 = vrot.lane.b32.xlu0 %v882, 32
      %v4878 = vpop.permute.xlu0 %4877
      %4879 = vrot.lane.b32.xlu0 %v883, 32
      %v4880 = vpop.permute.xlu0 %4879
      %v4885 = vsel %vm1085, %v4779, 0
      %v4888 = vsel %vm1085, %v4780, 0
      %v4891 = vsel %vm1085, %v4781, 0
      %v4894 = vsel %vm1085, %v4782, 0
      %v4897 = vsel %vm1276, %v4880, 0
      %4899 = vmatprep.subr.bf16.mxu0 0
      %4900 = vmatpush1.bf16.msra.mxu0 0
      %4901 = vmatprep.subr.bf16.mxu0 0
      %4902 = vmatpush1.bf16.msra.mxu0 0
      %4903 = vmatprep.subr.bf16.mxu0 0
      %4904 = vmatpush1.bf16.msra.mxu0 0
      %4905 = vmatprep.subr.bf16.mxu0 0
      %4906 = vmatpush1.bf16.msra.mxu0 0
      %4907 = vmatprep.subr.bf16.mxu0 0
      %4908 = vmatpush1.bf16.msra.mxu0 %v4897
      %4909 = vmatprep.subr.bf16.mxu0 0
      %4910 = vmatpush1.bf16.msra.mxu0 %v4878
      %4911 = vmatprep.subr.bf16.mxu0 0
      %4912 = vmatpush1.bf16.msra.mxu0 %v4876
      %4913 = vmatprep.subr.bf16.mxu0 0
      %4914 = vmatpush1.bf16.msra.mxu0 %v4874
      %4915 = vmatprep.subr.bf16.mxu0 0
      %4916 = vmatpush2.bf16.msra.mxu0 0
      %4917 = vmatprep.subr.bf16.mxu0 0
      %4918 = vmatpush2.bf16.msra.mxu0 0
      %4919 = vmatprep.subr.bf16.mxu0 0
      %4920 = vmatpush2.bf16.msra.mxu0 0
      %4921 = vmatprep.subr.bf16.mxu0 0
      %4922 = vmatpush2.bf16.msra.mxu0 0
      %4923 = vmatprep.subr.bf16.mxu0 0
      %4924 = vmatpush2.bf16.msra.mxu0 0
      %4925 = vmatprep.subr.bf16.mxu0 0
      %4926 = vmatpush2.bf16.msra.mxu0 0
      %4927 = vmatprep.subr.bf16.mxu0 0
      %4928 = vmatpush2.bf16.msra.mxu0 0
      %4929 = vmatprep.subr.bf16.mxu0 0
      %4930 = vmatpush2.bf16.msra.mxu0 0
      %4931 = vmatprep.mubr.bf16.mxu0 0
      %4932 = vmatmul.mubr.bf16.gmra.mxu0 %v4885
      %v4933 = vpop.f32.mrf.mxu0
      %v4934 = vadd.f32 0.0, %v4933
      %v4935 = vpop.f32.mrf.mxu0
      %v4936 = vpop.f32.mrf.mxu0
      %v4937 = vadd.f32 0.0, %v4936
      %v4938 = vpop.f32.mrf.mxu0
      %4939 = vmatprep.mubr.bf16.mxu0 0
      %4940 = vmatmul.mubr.bf16.gmra.mxu0 %v4888
      %v4941 = vpop.f32.mrf.mxu0
      %v4942 = vadd.f32 0.0, %v4941
      %v4943 = vpop.f32.mrf.mxu0
      %v4944 = vpop.f32.mrf.mxu0
      %v4945 = vadd.f32 0.0, %v4944
      %v4946 = vpop.f32.mrf.mxu0
      %4947 = vmatprep.mubr.bf16.mxu0 0
      %4948 = vmatmul.mubr.bf16.gmra.mxu0 %v4891
      %v4949 = vpop.f32.mrf.mxu0
      %v4950 = vadd.f32 0.0, %v4949
      %v4951 = vpop.f32.mrf.mxu0
      %v4952 = vpop.f32.mrf.mxu0
      %v4953 = vadd.f32 0.0, %v4952
      %v4954 = vpop.f32.mrf.mxu0
      %4955 = vmatprep.mubr.bf16.mxu0 0
      %4956 = vmatmul.mubr.bf16.gmra.mxu0 %v4894
      %v4957 = vpop.f32.mrf.mxu0
      %v4958 = vadd.f32 0.0, %v4957
      %v4959 = vpop.f32.mrf.mxu0
      %v4960 = vpop.f32.mrf.mxu0
      %v4961 = vpop.f32.mrf.mxu0
      %4962 = vdwg.mxu0
      %4963 = vrot.lane.b32.xlu0 %v860, 16
      %v4964 = vpop.permute.xlu0 %4963
      %4965 = vrot.lane.b32.xlu0 %v861, 16
      %v4966 = vpop.permute.xlu0 %4965
      %4967 = vrot.lane.b32.xlu0 %v862, 16
      %v4968 = vpop.permute.xlu0 %4967
      %4969 = vrot.lane.b32.xlu0 %v863, 16
      %v4970 = vpop.permute.xlu0 %4969
      %4971 = vrot.lane.b32.xlu0 %v868, 16
      %v4972 = vpop.permute.xlu0 %4971
      %4973 = vrot.lane.b32.xlu0 %v869, 16
      %v4974 = vpop.permute.xlu0 %4973
      %4975 = vrot.lane.b32.xlu0 %v870, 16
      %v4976 = vpop.permute.xlu0 %4975
      %4977 = vrot.lane.b32.xlu0 %v871, 16
      %v4978 = vpop.permute.xlu0 %4977
      %v4980 = vsel %vm887, %v4964, 0
      %v4983 = vsel %vm887, %v4966, 0
      %v4986 = vsel %vm887, %v4968, 0
      %v4989 = vsel %vm887, %v4970, 0
      %v4992 = vsel %vm887, %v4972, 0
      %v4995 = vsel %vm887, %v4974, 0
      %v4998 = vsel %vm887, %v4976, 0
      %v5001 = vsel %vm887, %v4978, 0
      %5003 = vmatprep.subr.bf16.mxu0 0
      %5004 = vmatpush1.bf16.xpose.msra.mxu0 0
      %5005 = vmatprep.subr.bf16.mxu0 0
      %5006 = vmatpush1.bf16.xpose.msra.mxu0 0
      %5007 = vmatprep.subr.bf16.mxu0 0
      %5008 = vmatpush1.bf16.xpose.msra.mxu0 0
      %5009 = vmatprep.subr.bf16.mxu0 0
      %5010 = vmatpush1.bf16.xpose.msra.mxu0 0
      %5011 = vmatprep.subr.bf16.mxu0 0
      %5012 = vmatpush1.bf16.xpose.msra.mxu0 %v5001
      %5013 = vmatprep.subr.bf16.mxu0 0
      %5014 = vmatpush1.bf16.xpose.msra.mxu0 %v4998
      %5015 = vmatprep.subr.bf16.mxu0 0
      %5016 = vmatpush1.bf16.xpose.msra.mxu0 %v4995
      %5017 = vmatprep.subr.bf16.mxu0 0
      %5018 = vmatpush1.bf16.xpose.msra.mxu0 %v4992
      %5019 = vmatprep.subr.bf16.mxu0 0
      %5020 = vmatpush2.bf16.xpose.msra.mxu0 0
      %5021 = vmatprep.subr.bf16.mxu0 0
      %5022 = vmatpush2.bf16.xpose.msra.mxu0 0
      %5023 = vmatprep.subr.bf16.mxu0 0
      %5024 = vmatpush2.bf16.xpose.msra.mxu0 0
      %5025 = vmatprep.subr.bf16.mxu0 0
      %5026 = vmatpush2.bf16.xpose.msra.mxu0 0
      %5027 = vmatprep.subr.bf16.mxu0 0
      %5028 = vmatpush2.bf16.xpose.msra.mxu0 0
      %5029 = vmatprep.subr.bf16.mxu0 0
      %5030 = vmatpush2.bf16.xpose.msra.mxu0 0
      %5031 = vmatprep.subr.bf16.mxu0 0
      %5032 = vmatpush2.bf16.xpose.msra.mxu0 0
      %5033 = vmatprep.subr.bf16.mxu0 0
      %5034 = vmatpush2.bf16.xpose.msra.mxu0 0
      %5035 = vmatprep.mubr.bf16.mxu0 0
      %5036 = vmatmul.mubr.bf16.gmra.mxu0 %v4980
      %v5037 = vpop.f32.mrf.mxu0
      %v5038 = vadd.f32 0.0, %v5037
      %v5039 = vpop.f32.mrf.mxu0
      %v5040 = vpop.f32.mrf.mxu0
      %v5041 = vadd.f32 0.0, %v5040
      %v5042 = vpop.f32.mrf.mxu0
      %5043 = vmatprep.mubr.bf16.mxu0 0
      %5044 = vmatmul.mubr.bf16.gmra.mxu0 %v4983
      %v5045 = vpop.f32.mrf.mxu0
      %v5046 = vadd.f32 0.0, %v5045
      %v5047 = vpop.f32.mrf.mxu0
      %v5048 = vpop.f32.mrf.mxu0
      %v5049 = vadd.f32 0.0, %v5048
      %v5050 = vpop.f32.mrf.mxu0
      %5051 = vmatprep.mubr.bf16.mxu0 0
      %5052 = vmatmul.mubr.bf16.gmra.mxu0 %v4986
      %v5053 = vpop.f32.mrf.mxu0
      %v5054 = vadd.f32 0.0, %v5053
      %v5055 = vpop.f32.mrf.mxu0
      %v5056 = vpop.f32.mrf.mxu0
      %v5057 = vadd.f32 0.0, %v5056
      %v5058 = vpop.f32.mrf.mxu0
      %5059 = vmatprep.mubr.bf16.mxu0 0
      %5060 = vmatmul.mubr.bf16.gmra.mxu0 %v4989
      %v5061 = vpop.f32.mrf.mxu0
      %v5062 = vadd.f32 0.0, %v5061
      %v5063 = vpop.f32.mrf.mxu0
      %v5064 = vpop.f32.mrf.mxu0
      %v5065 = vpop.f32.mrf.mxu0
      %5066 = vdwg.mxu0
      %5067 = vrot.lane.b32.xlu0 %v864, 16
      %v5068 = vpop.permute.xlu0 %5067
      %5069 = vrot.lane.b32.xlu0 %v865, 16
      %v5070 = vpop.permute.xlu0 %5069
      %5071 = vrot.lane.b32.xlu0 %v866, 16
      %v5072 = vpop.permute.xlu0 %5071
      %5073 = vrot.lane.b32.xlu0 %v867, 16
      %v5074 = vpop.permute.xlu0 %5073
      %5075 = vrot.lane.b32.xlu0 %v872, 16
      %v5076 = vpop.permute.xlu0 %5075
      %5077 = vrot.lane.b32.xlu0 %v873, 16
      %v5078 = vpop.permute.xlu0 %5077
      %5079 = vrot.lane.b32.xlu0 %v874, 16
      %v5080 = vpop.permute.xlu0 %5079
      %5081 = vrot.lane.b32.xlu0 %v875, 16
      %v5082 = vpop.permute.xlu0 %5081
      %v5084 = vsel %vm887, %v5068, 0
      %v5087 = vsel %vm887, %v5070, 0
      %v5090 = vsel %vm887, %v5072, 0
      %v5093 = vsel %vm887, %v5074, 0
      %v5096 = vsel %vm887, %v5076, 0
      %v5099 = vsel %vm887, %v5078, 0
      %v5102 = vsel %vm887, %v5080, 0
      %v5105 = vsel %vm887, %v5082, 0
      %5107 = vmatprep.subr.bf16.mxu0 0
      %5108 = vmatpush1.bf16.xpose.msra.mxu0 0
      %5109 = vmatprep.subr.bf16.mxu0 0
      %5110 = vmatpush1.bf16.xpose.msra.mxu0 0
      %5111 = vmatprep.subr.bf16.mxu0 0
      %5112 = vmatpush1.bf16.xpose.msra.mxu0 0
      %5113 = vmatprep.subr.bf16.mxu0 0
      %5114 = vmatpush1.bf16.xpose.msra.mxu0 0
      %5115 = vmatprep.subr.bf16.mxu0 0
      %5116 = vmatpush1.bf16.xpose.msra.mxu0 %v5105
      %5117 = vmatprep.subr.bf16.mxu0 0
      %5118 = vmatpush1.bf16.xpose.msra.mxu0 %v5102
      %5119 = vmatprep.subr.bf16.mxu0 0
      %5120 = vmatpush1.bf16.xpose.msra.mxu0 %v5099
      %5121 = vmatprep.subr.bf16.mxu0 0
      %5122 = vmatpush1.bf16.xpose.msra.mxu0 %v5096
      %5123 = vmatprep.subr.bf16.mxu0 0
      %5124 = vmatpush2.bf16.xpose.msra.mxu0 0
      %5125 = vmatprep.subr.bf16.mxu0 0
      %5126 = vmatpush2.bf16.xpose.msra.mxu0 0
      %5127 = vmatprep.subr.bf16.mxu0 0
      %5128 = vmatpush2.bf16.xpose.msra.mxu0 0
      %5129 = vmatprep.subr.bf16.mxu0 0
      %5130 = vmatpush2.bf16.xpose.msra.mxu0 0
      %5131 = vmatprep.subr.bf16.mxu0 0
      %5132 = vmatpush2.bf16.xpose.msra.mxu0 0
      %5133 = vmatprep.subr.bf16.mxu0 0
      %5134 = vmatpush2.bf16.xpose.msra.mxu0 0
      %5135 = vmatprep.subr.bf16.mxu0 0
      %5136 = vmatpush2.bf16.xpose.msra.mxu0 0
      %5137 = vmatprep.subr.bf16.mxu0 0
      %5138 = vmatpush2.bf16.xpose.msra.mxu0 0
      %5139 = vmatprep.mubr.bf16.mxu0 0
      %5140 = vmatmul.mubr.bf16.gmra.mxu0 %v5084
      %v5141 = vpop.f32.mrf.mxu0
      %v5142 = vadd.f32 0.0, %v5141
      %v5143 = vpop.f32.mrf.mxu0
      %v5144 = vpop.f32.mrf.mxu0
      %v5145 = vadd.f32 0.0, %v5144
      %v5146 = vpop.f32.mrf.mxu0
      %5147 = vmatprep.mubr.bf16.mxu0 0
      %5148 = vmatmul.mubr.bf16.gmra.mxu0 %v5087
      %v5149 = vpop.f32.mrf.mxu0
      %v5150 = vadd.f32 0.0, %v5149
      %v5151 = vpop.f32.mrf.mxu0
      %v5152 = vpop.f32.mrf.mxu0
      %v5153 = vadd.f32 0.0, %v5152
      %v5154 = vpop.f32.mrf.mxu0
      %5155 = vmatprep.mubr.bf16.mxu0 0
      %5156 = vmatmul.mubr.bf16.gmra.mxu0 %v5090
      %v5157 = vpop.f32.mrf.mxu0
      %v5158 = vadd.f32 0.0, %v5157
      %v5159 = vpop.f32.mrf.mxu0
      %v5160 = vpop.f32.mrf.mxu0
      %v5161 = vadd.f32 0.0, %v5160
      %v5162 = vpop.f32.mrf.mxu0
      %5163 = vmatprep.mubr.bf16.mxu0 0
      %5164 = vmatmul.mubr.bf16.gmra.mxu0 %v5093
      %v5165 = vpop.f32.mrf.mxu0
      %v5166 = vadd.f32 0.0, %v5165
      %v5167 = vpop.f32.mrf.mxu0
      %v5168 = vpop.f32.mrf.mxu0
      %v5169 = vpop.f32.mrf.mxu0
      %5170 = vdwg.mxu0
      %s5171 = scalar_lea.vmem %s3, 392
      %v5172 = vld [vmem:[%s5171] sm:$0xff]
      %v5173 = vld [vmem:[%s5171 + $0x8] sm:$0xff]
      %v5174 = vld [vmem:[%s5171 + $0x10] sm:$0xff]
      %v5175 = vld [vmem:[%s5171 + $0x18] sm:$0xff]
      %v5176 = vld [vmem:[%s5171 + $0x20] sm:$0xff]
      %v5177 = vld [vmem:[%s5171 + $0x28] sm:$0xff]
      %v5178 = vld [vmem:[%s5171 + $0x30] sm:$0xff]
      %v5179 = vmul.f32 %v5038, %v5172
      %v5180 = vmul.f32 %v5041, %v5173
      %v5181 = vmul.f32 %v5046, %v5174
      %v5182 = vmul.f32 %v5049, %v5175
      %v5183 = vmul.f32 %v5054, %v5176
      %v5184 = vmul.f32 %v5057, %v5177
      %v5185 = vmul.f32 %v5062, %v5178
      %v5186 = vmul.f32 %v5142, %v5172
      %v5187 = vmul.f32 %v5145, %v5173
      %v5188 = vmul.f32 %v5150, %v5174
      %v5189 = vmul.f32 %v5153, %v5175
      %v5190 = vmul.f32 %v5158, %v5176
      %v5191 = vmul.f32 %v5161, %v5177
      %v5192 = vmul.f32 %v5166, %v5178
      %v5193 = vsel %vm1085, %v5179, -inf
      %5194 = vmax.xlane.f32.xlu0 %v5193
      %v5195 = vpop.xlane.xlu0 %5194
      %v5196 = vsel %vm1085, %v5180, -inf
      %5197 = vmax.xlane.f32.xlu0 %v5196
      %v5198 = vpop.xlane.xlu0 %5197
      %v5199 = vsel %vm1085, %v5181, -inf
      %5200 = vmax.xlane.f32.xlu0 %v5199
      %v5201 = vpop.xlane.xlu0 %5200
      %v5202 = vsel %vm1085, %v5182, -inf
      %5203 = vmax.xlane.f32.xlu0 %v5202
      %v5204 = vpop.xlane.xlu0 %5203
      %v5205 = vsel %vm1085, %v5183, -inf
      %5206 = vmax.xlane.f32.xlu0 %v5205
      %v5207 = vpop.xlane.xlu0 %5206
      %v5208 = vsel %vm1085, %v5184, -inf
      %5209 = vmax.xlane.f32.xlu0 %v5208
      %v5210 = vpop.xlane.xlu0 %5209
      %v5211 = vsel %vm1085, %v5185, -inf
      %5212 = vmax.xlane.f32.xlu0 %v5211
      %v5213 = vpop.xlane.xlu0 %5212
      %v5214 = vsel %vm1085, %v5186, -inf
      %5215 = vmax.xlane.f32.xlu0 %v5214
      %v5216 = vpop.xlane.xlu0 %5215
      %v5217 = vsel %vm1085, %v5187, -inf
      %5218 = vmax.xlane.f32.xlu0 %v5217
      %v5219 = vpop.xlane.xlu0 %5218
      %v5220 = vsel %vm1085, %v5188, -inf
      %5221 = vmax.xlane.f32.xlu0 %v5220
      %v5222 = vpop.xlane.xlu0 %5221
      %v5223 = vsel %vm1085, %v5189, -inf
      %5224 = vmax.xlane.f32.xlu0 %v5223
      %v5225 = vpop.xlane.xlu0 %5224
      %v5226 = vsel %vm1085, %v5190, -inf
      %5227 = vmax.xlane.f32.xlu0 %v5226
      %v5228 = vpop.xlane.xlu0 %5227
      %v5229 = vsel %vm1085, %v5191, -inf
      %5230 = vmax.xlane.f32.xlu0 %v5229
      %v5231 = vpop.xlane.xlu0 %5230
      %v5232 = vsel %vm1085, %v5192, -inf
      %5233 = vmax.xlane.f32.xlu0 %v5232
      %v5234 = vpop.xlane.xlu0 %5233
      %v5235 = vsub.f32 %v5179, %v5195
      %v5236 = vsub.f32 %v5180, %v5198
      %v5237 = vsub.f32 %v5181, %v5201
      %v5238 = vsub.f32 %v5182, %v5204
      %v5239 = vsub.f32 %v5183, %v5207
      %v5240 = vsub.f32 %v5184, %v5210
      %v5241 = vsub.f32 %v5185, %v5213
      %v5242 = vsub.f32 %v5186, %v5216
      %v5243 = vsub.f32 %v5187, %v5219
      %v5244 = vsub.f32 %v5188, %v5222
      %v5245 = vsub.f32 %v5189, %v5225
      %v5246 = vsub.f32 %v5190, %v5228
      %v5247 = vsub.f32 %v5191, %v5231
      %v5248 = vsub.f32 %v5192, %v5234
      %v5249 = vmul.f32 %v5235, 1.442695
      %v5250 = vpow.pop %v5249
      %v5251 = vmul.f32 %v5236, 1.442695
      %v5252 = vpow.pop %v5251
      %v5253 = vmul.f32 %v5237, 1.442695
      %v5254 = vpow.pop %v5253
      %v5255 = vmul.f32 %v5238, 1.442695
      %v5256 = vpow.pop %v5255
      %v5257 = vmul.f32 %v5239, 1.442695
      %v5258 = vpow.pop %v5257
      %v5259 = vmul.f32 %v5240, 1.442695
      %v5260 = vpow.pop %v5259
      %v5261 = vmul.f32 %v5241, 1.442695
      %v5262 = vpow.pop %v5261
      %v5263 = vmul.f32 %v5242, 1.442695
      %v5264 = vpow.pop %v5263
      %v5265 = vmul.f32 %v5243, 1.442695
      %v5266 = vpow.pop %v5265
      %v5267 = vmul.f32 %v5244, 1.442695
      %v5268 = vpow.pop %v5267
      %v5269 = vmul.f32 %v5245, 1.442695
      %v5270 = vpow.pop %v5269
      %v5271 = vmul.f32 %v5246, 1.442695
      %v5272 = vpow.pop %v5271
      %v5273 = vmul.f32 %v5247, 1.442695
      %v5274 = vpow.pop %v5273
      %v5275 = vmul.f32 %v5248, 1.442695
      %v5276 = vpow.pop %v5275
      %v5277 = vsel %vm1171, %v5250, 0.0
      %v5278 = vsel %vm1171, %v5252, 0.0
      %v5279 = vsel %vm1171, %v5254, 0.0
      %v5280 = vsel %vm1171, %v5256, 0.0
      %v5281 = vsel %vm1171, %v5258, 0.0
      %v5282 = vsel %vm1171, %v5260, 0.0
      %v5283 = vsel %vm1171, %v5262, 0.0
      %v5284 = vsel %vm1171, %v5264, 0.0
      %v5285 = vsel %vm1171, %v5266, 0.0
      %v5286 = vsel %vm1171, %v5268, 0.0
      %v5287 = vsel %vm1171, %v5270, 0.0
      %v5288 = vsel %vm1171, %v5272, 0.0
      %v5289 = vsel %vm1171, %v5274, 0.0
      %v5290 = vsel %vm1171, %v5276, 0.0
      %v5291 = vsel %vm1085, %v5277, 0.0
      %5292 = vadd.xlane.f32.xlu0 %v5291
      %v5293 = vpop.xlane.xlu0 %5292
      %v5294 = vsel %vm1085, %v5278, 0.0
      %5295 = vadd.xlane.f32.xlu0 %v5294
      %v5296 = vpop.xlane.xlu0 %5295
      %v5297 = vsel %vm1085, %v5279, 0.0
      %5298 = vadd.xlane.f32.xlu0 %v5297
      %v5299 = vpop.xlane.xlu0 %5298
      %v5300 = vsel %vm1085, %v5280, 0.0
      %5301 = vadd.xlane.f32.xlu0 %v5300
      %v5302 = vpop.xlane.xlu0 %5301
      %v5303 = vsel %vm1085, %v5281, 0.0
      %5304 = vadd.xlane.f32.xlu0 %v5303
      %v5305 = vpop.xlane.xlu0 %5304
      %v5306 = vsel %vm1085, %v5282, 0.0
      %5307 = vadd.xlane.f32.xlu0 %v5306
      %v5308 = vpop.xlane.xlu0 %5307
      %v5309 = vsel %vm1085, %v5283, 0.0
      %5310 = vadd.xlane.f32.xlu0 %v5309
      %v5311 = vpop.xlane.xlu0 %5310
      %v5312 = vsel %vm1085, %v5284, 0.0
      %5313 = vadd.xlane.f32.xlu0 %v5312
      %v5314 = vpop.xlane.xlu0 %5313
      %v5315 = vsel %vm1085, %v5285, 0.0
      %5316 = vadd.xlane.f32.xlu0 %v5315
      %v5317 = vpop.xlane.xlu0 %5316
      %v5318 = vsel %vm1085, %v5286, 0.0
      %5319 = vadd.xlane.f32.xlu0 %v5318
      %v5320 = vpop.xlane.xlu0 %5319
      %v5321 = vsel %vm1085, %v5287, 0.0
      %5322 = vadd.xlane.f32.xlu0 %v5321
      %v5323 = vpop.xlane.xlu0 %5322
      %v5324 = vsel %vm1085, %v5288, 0.0
      %5325 = vadd.xlane.f32.xlu0 %v5324
      %v5326 = vpop.xlane.xlu0 %5325
      %v5327 = vsel %vm1085, %v5289, 0.0
      %5328 = vadd.xlane.f32.xlu0 %v5327
      %v5329 = vpop.xlane.xlu0 %5328
      %v5330 = vsel %vm1085, %v5290, 0.0
      %5331 = vadd.xlane.f32.xlu0 %v5330
      %v5332 = vpop.xlane.xlu0 %5331
      %v5333 = vrcp.pop %v5293
      %v5334 = vrcp.pop %v5296
      %v5335 = vrcp.pop %v5299
      %v5336 = vrcp.pop %v5302
      %v5337 = vrcp.pop %v5305
      %v5338 = vrcp.pop %v5308
      %v5339 = vrcp.pop %v5311
      %v5340 = vrcp.pop %v5314
      %v5341 = vrcp.pop %v5317
      %v5342 = vrcp.pop %v5320
      %v5343 = vrcp.pop %v5323
      %v5344 = vrcp.pop %v5326
      %v5345 = vrcp.pop %v5329
      %v5346 = vrcp.pop %v5332
      %v5347 = vmul.f32 %v5277, %v5333
      %v5348 = vmul.f32 %v5278, %v5334
      %v5349 = vmul.f32 %v5279, %v5335
      %v5350 = vmul.f32 %v5280, %v5336
      %v5351 = vmul.f32 %v5281, %v5337
      %v5352 = vmul.f32 %v5282, %v5338
      %v5353 = vmul.f32 %v5283, %v5339
      %v5354 = vmul.f32 %v5284, %v5340
      %v5355 = vmul.f32 %v5285, %v5341
      %v5356 = vmul.f32 %v5286, %v5342
      %v5357 = vmul.f32 %v5287, %v5343
      %v5358 = vmul.f32 %v5288, %v5344
      %v5359 = vmul.f32 %v5289, %v5345
      %v5360 = vmul.f32 %v5290, %v5346
      %v5361 = vpack.c.bf16 %v5348, %v5347
      %v5362 = vpack.c.bf16 %v5350, %v5349
      %v5363 = vpack.c.bf16 %v5352, %v5351
      %v5364 = vpack.c.bf16 %v5353, %v5353
      %v5365 = vpack.c.bf16 %v5355, %v5354
      %v5366 = vpack.c.bf16 %v5357, %v5356
      %v5367 = vpack.c.bf16 %v5359, %v5358
      %v5368 = vpack.c.bf16 %v5360, %v5360
      %5369 = vrot.lane.b32.xlu0 %v876, 16
      %v5370 = vpop.permute.xlu0 %5369
      %5371 = vrot.lane.b32.xlu0 %v877, 16
      %v5372 = vpop.permute.xlu0 %5371
      %5373 = vrot.lane.b32.xlu0 %v878, 16
      %v5374 = vpop.permute.xlu0 %5373
      %5375 = vrot.lane.b32.xlu0 %v879, 16
      %v5376 = vpop.permute.xlu0 %5375
      %v5381 = vsel %vm1085, %v5361, 0
      %v5384 = vsel %vm1085, %v5362, 0
      %v5387 = vsel %vm1085, %v5363, 0
      %v5390 = vsel %vm1085, %v5364, 0
      %v5393 = vsel %vm1276, %v5376, 0
      %5395 = vmatprep.subr.bf16.mxu0 0
      %5396 = vmatpush1.bf16.msra.mxu0 0
      %5397 = vmatprep.subr.bf16.mxu0 0
      %5398 = vmatpush1.bf16.msra.mxu0 0
      %5399 = vmatprep.subr.bf16.mxu0 0
      %5400 = vmatpush1.bf16.msra.mxu0 0
      %5401 = vmatprep.subr.bf16.mxu0 0
      %5402 = vmatpush1.bf16.msra.mxu0 0
      %5403 = vmatprep.subr.bf16.mxu0 0
      %5404 = vmatpush1.bf16.msra.mxu0 %v5393
      %5405 = vmatprep.subr.bf16.mxu0 0
      %5406 = vmatpush1.bf16.msra.mxu0 %v5374
      %5407 = vmatprep.subr.bf16.mxu0 0
      %5408 = vmatpush1.bf16.msra.mxu0 %v5372
      %5409 = vmatprep.subr.bf16.mxu0 0
      %5410 = vmatpush1.bf16.msra.mxu0 %v5370
      %5411 = vmatprep.subr.bf16.mxu0 0
      %5412 = vmatpush2.bf16.msra.mxu0 0
      %5413 = vmatprep.subr.bf16.mxu0 0
      %5414 = vmatpush2.bf16.msra.mxu0 0
      %5415 = vmatprep.subr.bf16.mxu0 0
      %5416 = vmatpush2.bf16.msra.mxu0 0
      %5417 = vmatprep.subr.bf16.mxu0 0
      %5418 = vmatpush2.bf16.msra.mxu0 0
      %5419 = vmatprep.subr.bf16.mxu0 0
      %5420 = vmatpush2.bf16.msra.mxu0 0
      %5421 = vmatprep.subr.bf16.mxu0 0
      %5422 = vmatpush2.bf16.msra.mxu0 0
      %5423 = vmatprep.subr.bf16.mxu0 0
      %5424 = vmatpush2.bf16.msra.mxu0 0
      %5425 = vmatprep.subr.bf16.mxu0 0
      %5426 = vmatpush2.bf16.msra.mxu0 0
      %5427 = vmatprep.mubr.bf16.mxu0 0
      %5428 = vmatmul.mubr.bf16.gmra.mxu0 %v5381
      %v5429 = vpop.f32.mrf.mxu0
      %v5430 = vadd.f32 0.0, %v5429
      %v5431 = vpop.f32.mrf.mxu0
      %v5432 = vpop.f32.mrf.mxu0
      %v5433 = vadd.f32 0.0, %v5432
      %v5434 = vpop.f32.mrf.mxu0
      %5435 = vmatprep.mubr.bf16.mxu0 0
      %5436 = vmatmul.mubr.bf16.gmra.mxu0 %v5384
      %v5437 = vpop.f32.mrf.mxu0
      %v5438 = vadd.f32 0.0, %v5437
      %v5439 = vpop.f32.mrf.mxu0
      %v5440 = vpop.f32.mrf.mxu0
      %v5441 = vadd.f32 0.0, %v5440
      %v5442 = vpop.f32.mrf.mxu0
      %5443 = vmatprep.mubr.bf16.mxu0 0
      %5444 = vmatmul.mubr.bf16.gmra.mxu0 %v5387
      %v5445 = vpop.f32.mrf.mxu0
      %v5446 = vadd.f32 0.0, %v5445
      %v5447 = vpop.f32.mrf.mxu0
      %v5448 = vpop.f32.mrf.mxu0
      %v5449 = vadd.f32 0.0, %v5448
      %v5450 = vpop.f32.mrf.mxu0
      %5451 = vmatprep.mubr.bf16.mxu0 0
      %5452 = vmatmul.mubr.bf16.gmra.mxu0 %v5390
      %v5453 = vpop.f32.mrf.mxu0
      %v5454 = vadd.f32 0.0, %v5453
      %v5455 = vpop.f32.mrf.mxu0
      %v5456 = vpop.f32.mrf.mxu0
      %v5457 = vpop.f32.mrf.mxu0
      %5458 = vdwg.mxu0
      %5459 = vrot.lane.b32.xlu0 %v880, 16
      %v5460 = vpop.permute.xlu0 %5459
      %5461 = vrot.lane.b32.xlu0 %v881, 16
      %v5462 = vpop.permute.xlu0 %5461
      %5463 = vrot.lane.b32.xlu0 %v882, 16
      %v5464 = vpop.permute.xlu0 %5463
      %5465 = vrot.lane.b32.xlu0 %v883, 16
      %v5466 = vpop.permute.xlu0 %5465
      %v5471 = vsel %vm1085, %v5365, 0
      %v5474 = vsel %vm1085, %v5366, 0
      %v5477 = vsel %vm1085, %v5367, 0
      %v5480 = vsel %vm1085, %v5368, 0
      %v5483 = vsel %vm1276, %v5466, 0
      %5485 = vmatprep.subr.bf16.mxu0 0
      %5486 = vmatpush1.bf16.msra.mxu0 0
      %5487 = vmatprep.subr.bf16.mxu0 0
      %5488 = vmatpush1.bf16.msra.mxu0 0
      %5489 = vmatprep.subr.bf16.mxu0 0
      %5490 = vmatpush1.bf16.msra.mxu0 0
      %5491 = vmatprep.subr.bf16.mxu0 0
      %5492 = vmatpush1.bf16.msra.mxu0 0
      %5493 = vmatprep.subr.bf16.mxu0 0
      %5494 = vmatpush1.bf16.msra.mxu0 %v5483
      %5495 = vmatprep.subr.bf16.mxu0 0
      %5496 = vmatpush1.bf16.msra.mxu0 %v5464
      %5497 = vmatprep.subr.bf16.mxu0 0
      %5498 = vmatpush1.bf16.msra.mxu0 %v5462
      %5499 = vmatprep.subr.bf16.mxu0 0
      %5500 = vmatpush1.bf16.msra.mxu0 %v5460
      %5501 = vmatprep.subr.bf16.mxu0 0
      %5502 = vmatpush2.bf16.msra.mxu0 0
      %5503 = vmatprep.subr.bf16.mxu0 0
      %5504 = vmatpush2.bf16.msra.mxu0 0
      %5505 = vmatprep.subr.bf16.mxu0 0
      %5506 = vmatpush2.bf16.msra.mxu0 0
      %5507 = vmatprep.subr.bf16.mxu0 0
      %5508 = vmatpush2.bf16.msra.mxu0 0
      %5509 = vmatprep.subr.bf16.mxu0 0
      %5510 = vmatpush2.bf16.msra.mxu0 0
      %5511 = vmatprep.subr.bf16.mxu0 0
      %5512 = vmatpush2.bf16.msra.mxu0 0
      %5513 = vmatprep.subr.bf16.mxu0 0
      %5514 = vmatpush2.bf16.msra.mxu0 0
      %5515 = vmatprep.subr.bf16.mxu0 0
      %5516 = vmatpush2.bf16.msra.mxu0 0
      %5517 = vmatprep.mubr.bf16.mxu0 0
      %5518 = vmatmul.mubr.bf16.gmra.mxu0 %v5471
      %v5519 = vpop.f32.mrf.mxu0
      %v5520 = vadd.f32 0.0, %v5519
      %v5521 = vpop.f32.mrf.mxu0
      %v5522 = vpop.f32.mrf.mxu0
      %v5523 = vadd.f32 0.0, %v5522
      %v5524 = vpop.f32.mrf.mxu0
      %5525 = vmatprep.mubr.bf16.mxu0 0
      %5526 = vmatmul.mubr.bf16.gmra.mxu0 %v5474
      %v5527 = vpop.f32.mrf.mxu0
      %v5528 = vadd.f32 0.0, %v5527
      %v5529 = vpop.f32.mrf.mxu0
      %v5530 = vpop.f32.mrf.mxu0
      %v5531 = vadd.f32 0.0, %v5530
      %v5532 = vpop.f32.mrf.mxu0
      %5533 = vmatprep.mubr.bf16.mxu0 0
      %5534 = vmatmul.mubr.bf16.gmra.mxu0 %v5477
      %v5535 = vpop.f32.mrf.mxu0
      %v5536 = vadd.f32 0.0, %v5535
      %v5537 = vpop.f32.mrf.mxu0
      %v5538 = vpop.f32.mrf.mxu0
      %v5539 = vadd.f32 0.0, %v5538
      %v5540 = vpop.f32.mrf.mxu0
      %5541 = vmatprep.mubr.bf16.mxu0 0
      %5542 = vmatmul.mubr.bf16.gmra.mxu0 %v5480
      %v5543 = vpop.f32.mrf.mxu0
      %v5544 = vadd.f32 0.0, %v5543
      %v5545 = vpop.f32.mrf.mxu0
      %v5546 = vpop.f32.mrf.mxu0
      %v5547 = vpop.f32.mrf.mxu0
      %5548 = vdwg.mxu0
      %5563 = vrot.lane.b32.xlu0 %v1910, 16
      %v5564 = vpop.permute.xlu0 %5563
      %5565 = vrot.lane.b32.xlu0 %v1913, 16
      %v5566 = vpop.permute.xlu0 %5565
      %5567 = vrot.lane.b32.xlu0 %v1918, 16
      %v5568 = vpop.permute.xlu0 %5567
      %5569 = vrot.lane.b32.xlu0 %v1921, 16
      %v5570 = vpop.permute.xlu0 %5569
      %5571 = vrot.lane.b32.xlu0 %v1926, 16
      %v5572 = vpop.permute.xlu0 %5571
      %5573 = vrot.lane.b32.xlu0 %v1929, 16
      %v5574 = vpop.permute.xlu0 %5573
      %5575 = vrot.lane.b32.xlu0 %v1934, 16
      %v5576 = vpop.permute.xlu0 %5575
      %5577 = vrot.lane.b32.xlu0 %v2004, 16
      %v5578 = vpop.permute.xlu0 %5577
      %5579 = vrot.lane.b32.xlu0 %v2007, 16
      %v5580 = vpop.permute.xlu0 %5579
      %5581 = vrot.lane.b32.xlu0 %v2012, 16
      %v5582 = vpop.permute.xlu0 %5581
      %5583 = vrot.lane.b32.xlu0 %v2015, 16
      %v5584 = vpop.permute.xlu0 %5583
      %5585 = vrot.lane.b32.xlu0 %v2020, 16
      %v5586 = vpop.permute.xlu0 %5585
      %5587 = vrot.lane.b32.xlu0 %v2023, 16
      %v5588 = vpop.permute.xlu0 %5587
      %5589 = vrot.lane.b32.xlu0 %v2028, 16
      %v5590 = vpop.permute.xlu0 %5589
      %5619 = vrot.lane.b32.xlu0 %v2500, 32
      %v5620 = vpop.permute.xlu0 %5619
      %5621 = vrot.lane.b32.xlu0 %v2503, 32
      %v5622 = vpop.permute.xlu0 %5621
      %5623 = vrot.lane.b32.xlu0 %v2508, 32
      %v5624 = vpop.permute.xlu0 %5623
      %5625 = vrot.lane.b32.xlu0 %v2511, 32
      %v5626 = vpop.permute.xlu0 %5625
      %5627 = vrot.lane.b32.xlu0 %v2516, 32
      %v5628 = vpop.permute.xlu0 %5627
      %5629 = vrot.lane.b32.xlu0 %v2519, 32
      %v5630 = vpop.permute.xlu0 %5629
      %5631 = vrot.lane.b32.xlu0 %v2524, 32
      %v5632 = vpop.permute.xlu0 %5631
      %5633 = vrot.lane.b32.xlu0 %v2590, 32
      %v5634 = vpop.permute.xlu0 %5633
      %5635 = vrot.lane.b32.xlu0 %v2593, 32
      %v5636 = vpop.permute.xlu0 %5635
      %5637 = vrot.lane.b32.xlu0 %v2598, 32
      %v5638 = vpop.permute.xlu0 %5637
      %5639 = vrot.lane.b32.xlu0 %v2601, 32
      %v5640 = vpop.permute.xlu0 %5639
      %5641 = vrot.lane.b32.xlu0 %v2606, 32
      %v5642 = vpop.permute.xlu0 %5641
      %5643 = vrot.lane.b32.xlu0 %v2609, 32
      %v5644 = vpop.permute.xlu0 %5643
      %5645 = vrot.lane.b32.xlu0 %v2614, 32
      %v5646 = vpop.permute.xlu0 %5645
      %5675 = vrot.lane.b32.xlu0 %v3086, 48
      %v5676 = vpop.permute.xlu0 %5675
      %5677 = vrot.lane.b32.xlu0 %v3089, 48
      %v5678 = vpop.permute.xlu0 %5677
      %5679 = vrot.lane.b32.xlu0 %v3094, 48
      %v5680 = vpop.permute.xlu0 %5679
      %5681 = vrot.lane.b32.xlu0 %v3097, 48
      %v5682 = vpop.permute.xlu0 %5681
      %5683 = vrot.lane.b32.xlu0 %v3102, 48
      %v5684 = vpop.permute.xlu0 %5683
      %5685 = vrot.lane.b32.xlu0 %v3105, 48
      %v5686 = vpop.permute.xlu0 %5685
      %5687 = vrot.lane.b32.xlu0 %v3110, 48
      %v5688 = vpop.permute.xlu0 %5687
      %5689 = vrot.lane.b32.xlu0 %v3176, 48
      %v5690 = vpop.permute.xlu0 %5689
      %5691 = vrot.lane.b32.xlu0 %v3179, 48
      %v5692 = vpop.permute.xlu0 %5691
      %5693 = vrot.lane.b32.xlu0 %v3184, 48
      %v5694 = vpop.permute.xlu0 %5693
      %5695 = vrot.lane.b32.xlu0 %v3187, 48
      %v5696 = vpop.permute.xlu0 %5695
      %5697 = vrot.lane.b32.xlu0 %v3192, 48
      %v5698 = vpop.permute.xlu0 %5697
      %5699 = vrot.lane.b32.xlu0 %v3195, 48
      %v5700 = vpop.permute.xlu0 %5699
      %5701 = vrot.lane.b32.xlu0 %v3200, 48
      %v5702 = vpop.permute.xlu0 %5701
      %5731 = vrot.lane.b32.xlu0 %v3672, 64
      %v5732 = vpop.permute.xlu0 %5731
      %5733 = vrot.lane.b32.xlu0 %v3675, 64
      %v5734 = vpop.permute.xlu0 %5733
      %5735 = vrot.lane.b32.xlu0 %v3680, 64
      %v5736 = vpop.permute.xlu0 %5735
      %5737 = vrot.lane.b32.xlu0 %v3683, 64
      %v5738 = vpop.permute.xlu0 %5737
      %5739 = vrot.lane.b32.xlu0 %v3688, 64
      %v5740 = vpop.permute.xlu0 %5739
      %5741 = vrot.lane.b32.xlu0 %v3691, 64
      %v5742 = vpop.permute.xlu0 %5741
      %5743 = vrot.lane.b32.xlu0 %v3696, 64
      %v5744 = vpop.permute.xlu0 %5743
      %5745 = vrot.lane.b32.xlu0 %v3762, 64
      %v5746 = vpop.permute.xlu0 %5745
      %5747 = vrot.lane.b32.xlu0 %v3765, 64
      %v5748 = vpop.permute.xlu0 %5747
      %5749 = vrot.lane.b32.xlu0 %v3770, 64
      %v5750 = vpop.permute.xlu0 %5749
      %5751 = vrot.lane.b32.xlu0 %v3773, 64
      %v5752 = vpop.permute.xlu0 %5751
      %5753 = vrot.lane.b32.xlu0 %v3778, 64
      %v5754 = vpop.permute.xlu0 %5753
      %5755 = vrot.lane.b32.xlu0 %v3781, 64
      %v5756 = vpop.permute.xlu0 %5755
      %5757 = vrot.lane.b32.xlu0 %v3786, 64
      %v5758 = vpop.permute.xlu0 %5757
      %5787 = vrot.lane.b32.xlu0 %v4258, 80
      %v5788 = vpop.permute.xlu0 %5787
      %5789 = vrot.lane.b32.xlu0 %v4261, 80
      %v5790 = vpop.permute.xlu0 %5789
      %5791 = vrot.lane.b32.xlu0 %v4266, 80
      %v5792 = vpop.permute.xlu0 %5791
      %5793 = vrot.lane.b32.xlu0 %v4269, 80
      %v5794 = vpop.permute.xlu0 %5793
      %5795 = vrot.lane.b32.xlu0 %v4274, 80
      %v5796 = vpop.permute.xlu0 %5795
      %5797 = vrot.lane.b32.xlu0 %v4277, 80
      %v5798 = vpop.permute.xlu0 %5797
      %5799 = vrot.lane.b32.xlu0 %v4282, 80
      %v5800 = vpop.permute.xlu0 %5799
      %5801 = vrot.lane.b32.xlu0 %v4348, 80
      %v5802 = vpop.permute.xlu0 %5801
      %5803 = vrot.lane.b32.xlu0 %v4351, 80
      %v5804 = vpop.permute.xlu0 %5803
      %5805 = vrot.lane.b32.xlu0 %v4356, 80
      %v5806 = vpop.permute.xlu0 %5805
      %5807 = vrot.lane.b32.xlu0 %v4359, 80
      %v5808 = vpop.permute.xlu0 %5807
      %5809 = vrot.lane.b32.xlu0 %v4364, 80
      %v5810 = vpop.permute.xlu0 %5809
      %5811 = vrot.lane.b32.xlu0 %v4367, 80
      %v5812 = vpop.permute.xlu0 %5811
      %5813 = vrot.lane.b32.xlu0 %v4372, 80
      %v5814 = vpop.permute.xlu0 %5813
      %5843 = vrot.lane.b32.xlu0 %v4844, 96
      %v5844 = vpop.permute.xlu0 %5843
      %5845 = vrot.lane.b32.xlu0 %v4847, 96
      %v5846 = vpop.permute.xlu0 %5845
      %5847 = vrot.lane.b32.xlu0 %v4852, 96
      %v5848 = vpop.permute.xlu0 %5847
      %5849 = vrot.lane.b32.xlu0 %v4855, 96
      %v5850 = vpop.permute.xlu0 %5849
      %5851 = vrot.lane.b32.xlu0 %v4860, 96
      %v5852 = vpop.permute.xlu0 %5851
      %5853 = vrot.lane.b32.xlu0 %v4863, 96
      %v5854 = vpop.permute.xlu0 %5853
      %5855 = vrot.lane.b32.xlu0 %v4868, 96
      %v5856 = vpop.permute.xlu0 %5855
      %5857 = vrot.lane.b32.xlu0 %v4934, 96
      %v5858 = vpop.permute.xlu0 %5857
      %5859 = vrot.lane.b32.xlu0 %v4937, 96
      %v5860 = vpop.permute.xlu0 %5859
      %5861 = vrot.lane.b32.xlu0 %v4942, 96
      %v5862 = vpop.permute.xlu0 %5861
      %5863 = vrot.lane.b32.xlu0 %v4945, 96
      %v5864 = vpop.permute.xlu0 %5863
      %5865 = vrot.lane.b32.xlu0 %v4950, 96
      %v5866 = vpop.permute.xlu0 %5865
      %5867 = vrot.lane.b32.xlu0 %v4953, 96
      %v5868 = vpop.permute.xlu0 %5867
      %5869 = vrot.lane.b32.xlu0 %v4958, 96
      %v5870 = vpop.permute.xlu0 %5869
      %5899 = vrot.lane.b32.xlu0 %v5430, 112
      %v5900 = vpop.permute.xlu0 %5899
      %5901 = vrot.lane.b32.xlu0 %v5433, 112
      %v5902 = vpop.permute.xlu0 %5901
      %5903 = vrot.lane.b32.xlu0 %v5438, 112
      %v5904 = vpop.permute.xlu0 %5903
      %5905 = vrot.lane.b32.xlu0 %v5441, 112
      %v5906 = vpop.permute.xlu0 %5905
      %5907 = vrot.lane.b32.xlu0 %v5446, 112
      %v5908 = vpop.permute.xlu0 %5907
      %5909 = vrot.lane.b32.xlu0 %v5449, 112
      %v5910 = vpop.permute.xlu0 %5909
      %5911 = vrot.lane.b32.xlu0 %v5454, 112
      %v5912 = vpop.permute.xlu0 %5911
      %5913 = vrot.lane.b32.xlu0 %v5520, 112
      %v5914 = vpop.permute.xlu0 %5913
      %5915 = vrot.lane.b32.xlu0 %v5523, 112
      %v5916 = vpop.permute.xlu0 %5915
      %5917 = vrot.lane.b32.xlu0 %v5528, 112
      %v5918 = vpop.permute.xlu0 %5917
      %5919 = vrot.lane.b32.xlu0 %v5531, 112
      %v5920 = vpop.permute.xlu0 %5919
      %5921 = vrot.lane.b32.xlu0 %v5536, 112
      %v5922 = vpop.permute.xlu0 %5921
      %5923 = vrot.lane.b32.xlu0 %v5539, 112
      %v5924 = vpop.permute.xlu0 %5923
      %5925 = vrot.lane.b32.xlu0 %v5544, 112
      %v5926 = vpop.permute.xlu0 %5925
      %v5941 = vsel %vm887, %v1315, %v5564
      %v5942 = vsel %vm887, %v1318, %v5566
      %v5943 = vsel %vm887, %v1323, %v5568
      %v5944 = vsel %vm887, %v1326, %v5570
      %v5945 = vsel %vm887, %v1331, %v5572
      %v5946 = vsel %vm887, %v1334, %v5574
      %v5947 = vsel %vm887, %v1339, %v5576
      %v5948 = vsel %vm887, %v1394, %v5578
      %v5949 = vsel %vm887, %v1397, %v5580
      %v5950 = vsel %vm887, %v1402, %v5582
      %v5951 = vsel %vm887, %v1405, %v5584
      %v5952 = vsel %vm887, %v1410, %v5586
      %v5953 = vsel %vm887, %v1413, %v5588
      %v5954 = vsel %vm887, %v1418, %v5590
      %vm5955 = vcmask 261120
      %v5956 = vsel %vm5955, %v5941, %v5620
      %v5957 = vsel %vm5955, %v5942, %v5622
      %v5958 = vsel %vm5955, %v5943, %v5624
      %v5959 = vsel %vm5955, %v5944, %v5626
      %v5960 = vsel %vm5955, %v5945, %v5628
      %v5961 = vsel %vm5955, %v5946, %v5630
      %v5962 = vsel %vm5955, %v5947, %v5632
      %v5963 = vsel %vm5955, %v5948, %v5634
      %v5964 = vsel %vm5955, %v5949, %v5636
      %v5965 = vsel %vm5955, %v5950, %v5638
      %v5966 = vsel %vm5955, %v5951, %v5640
      %v5967 = vsel %vm5955, %v5952, %v5642
      %v5968 = vsel %vm5955, %v5953, %v5644
      %v5969 = vsel %vm5955, %v5954, %v5646
      %vm5970 = vcmask 392192
      %v5971 = vsel %vm5970, %v5956, %v5676
      %v5972 = vsel %vm5970, %v5957, %v5678
      %v5973 = vsel %vm5970, %v5958, %v5680
      %v5974 = vsel %vm5970, %v5959, %v5682
      %v5975 = vsel %vm5970, %v5960, %v5684
      %v5976 = vsel %vm5970, %v5961, %v5686
      %v5977 = vsel %vm5970, %v5962, %v5688
      %v5978 = vsel %vm5970, %v5963, %v5690
      %v5979 = vsel %vm5970, %v5964, %v5692
      %v5980 = vsel %vm5970, %v5965, %v5694
      %v5981 = vsel %vm5970, %v5966, %v5696
      %v5982 = vsel %vm5970, %v5967, %v5698
      %v5983 = vsel %vm5970, %v5968, %v5700
      %v5984 = vsel %vm5970, %v5969, %v5702
      %v5985 = vsel %vm413, %v5971, %v5732
      %v5986 = vsel %vm413, %v5972, %v5734
      %v5987 = vsel %vm413, %v5973, %v5736
      %v5988 = vsel %vm413, %v5974, %v5738
      %v5989 = vsel %vm413, %v5975, %v5740
      %v5990 = vsel %vm413, %v5976, %v5742
      %v5991 = vsel %vm413, %v5977, %v5744
      %v5992 = vsel %vm413, %v5978, %v5746
      %v5993 = vsel %vm413, %v5979, %v5748
      %v5994 = vsel %vm413, %v5980, %v5750
      %v5995 = vsel %vm413, %v5981, %v5752
      %v5996 = vsel %vm413, %v5982, %v5754
      %v5997 = vsel %vm413, %v5983, %v5756
      %v5998 = vsel %vm413, %v5984, %v5758
      %vm5999 = vcmask 654336
      %v6000 = vsel %vm5999, %v5985, %v5788
      %v6001 = vsel %vm5999, %v5986, %v5790
      %v6002 = vsel %vm5999, %v5987, %v5792
      %v6003 = vsel %vm5999, %v5988, %v5794
      %v6004 = vsel %vm5999, %v5989, %v5796
      %v6005 = vsel %vm5999, %v5990, %v5798
      %v6006 = vsel %vm5999, %v5991, %v5800
      %v6007 = vsel %vm5999, %v5992, %v5802
      %v6008 = vsel %vm5999, %v5993, %v5804
      %v6009 = vsel %vm5999, %v5994, %v5806
      %v6010 = vsel %vm5999, %v5995, %v5808
      %v6011 = vsel %vm5999, %v5996, %v5810
      %v6012 = vsel %vm5999, %v5997, %v5812
      %v6013 = vsel %vm5999, %v5998, %v5814
      %vm6014 = vcmask 785408
      %v6015 = vsel %vm6014, %v6000, %v5844
      %v6016 = vsel %vm6014, %v6001, %v5846
      %v6017 = vsel %vm6014, %v6002, %v5848
      %v6018 = vsel %vm6014, %v6003, %v5850
      %v6019 = vsel %vm6014, %v6004, %v5852
      %v6020 = vsel %vm6014, %v6005, %v5854
      %v6021 = vsel %vm6014, %v6006, %v5856
      %v6022 = vsel %vm6014, %v6007, %v5858
      %v6023 = vsel %vm6014, %v6008, %v5860
      %v6024 = vsel %vm6014, %v6009, %v5862
      %v6025 = vsel %vm6014, %v6010, %v5864
      %v6026 = vsel %vm6014, %v6011, %v5866
      %v6027 = vsel %vm6014, %v6012, %v5868
      %v6028 = vsel %vm6014, %v6013, %v5870
      %vm6029 = vcmask 916480
      %v6030 = vsel %vm6029, %v6015, %v5900
      %v6031 = vsel %vm6029, %v6016, %v5902
      %v6032 = vsel %vm6029, %v6017, %v5904
      %v6033 = vsel %vm6029, %v6018, %v5906
      %v6034 = vsel %vm6029, %v6019, %v5908
      %v6035 = vsel %vm6029, %v6020, %v5910
      %v6036 = vsel %vm6029, %v6021, %v5912
      %v6037 = vsel %vm6029, %v6022, %v5914
      %v6038 = vsel %vm6029, %v6023, %v5916
      %v6039 = vsel %vm6029, %v6024, %v5918
      %v6040 = vsel %vm6029, %v6025, %v5920
      %v6041 = vsel %vm6029, %v6026, %v5922
      %v6042 = vsel %vm6029, %v6027, %v5924
      %v6043 = vsel %vm6029, %v6028, %v5926
      %v6044 = vpack.c.bf16 %v6031, %v6030
      %v6045 = vpack.c.bf16 %v6033, %v6032
      %v6046 = vpack.c.bf16 %v6035, %v6034
      %v6047 = vpack.c.bf16 %v6037, %v6036
      %v6048 = vpack.c.bf16 %v6039, %v6038
      %v6049 = vpack.c.bf16 %v6041, %v6040
      %v6050 = vpack.c.bf16 %v6043, %v6042
      %v6051 = vld [vmem:[%s6] sm:$0xf]
      %v6052 = vld [vmem:[%s6 + $0x4] sm:$0xf]
      %v6053 = vld [vmem:[%s6 + $0x8] sm:$0xf]
      %v6054 = vld [vmem:[%s6 + $0xc] sm:$0xf]
      %v6055 = vld [vmem:[%s6 + $0x10] sm:$0xf]
      %v6056 = vld [vmem:[%s6 + $0x14] sm:$0xf]
      %v6057 = vld [vmem:[%s6 + $0x18] sm:$0xf]
      %v6058 = vld [vmem:[%s6 + $0x1c] sm:$0xf]
      %v6059 = vld [vmem:[%s6 + $0x20] sm:$0xf]
      %v6060 = vld [vmem:[%s6 + $0x24] sm:$0xf]
      %v6061 = vld [vmem:[%s6 + $0x28] sm:$0xf]
      %v6062 = vld [vmem:[%s6 + $0x2c] sm:$0xf]
      %v6063 = vld [vmem:[%s6 + $0x30] sm:$0xf]
      %v6064 = vld [vmem:[%s6 + $0x34] sm:$0xf]
      %v6065 = vld [vmem:[%s6 + $0x38] sm:$0xf]
      %v6066 = vld [vmem:[%s6 + $0x3c] sm:$0xf]
      %v6067 = vlaneseq
      %v6068 = vshrl.u32 %v6067, 7
      %v6069 = vsub.s32 0, %v6068
      %v6070 = vrot.slane %v355, %v6069
      %v6087 = vunpack.c.l.b16 %v6051
      %v6088 = vunpack.c.l.b16 %v6052
      %v6089 = vunpack.c.l.b16 %v6053
      %v6090 = vunpack.c.l.b16 %v6054
      %v6091 = vunpack.c.l.b16 %v6055
      %v6092 = vunpack.c.l.b16 %v6056
      %v6093 = vunpack.c.l.b16 %v6057
      %v6094 = vunpack.c.l.b16 %v6058
      %v6095 = vunpack.c.l.b16 %v6059
      %v6096 = vunpack.c.l.b16 %v6060
      %v6097 = vunpack.c.l.b16 %v6061
      %v6098 = vunpack.c.l.b16 %v6062
      %v6099 = vunpack.c.l.b16 %v6063
      %v6100 = vunpack.c.l.b16 %v6064
      %v6101 = vunpack.c.l.b16 %v6065
      %v6102 = vunpack.c.l.b16 %v6066
      %v6103 = vpack.c.b16 %v6088, %v6087
      %v6104 = vpack.c.b16 %v6090, %v6089
      %v6105 = vpack.c.b16 %v6092, %v6091
      %v6106 = vpack.c.b16 %v6094, %v6093
      %v6107 = vpack.c.b16 %v6096, %v6095
      %v6108 = vpack.c.b16 %v6098, %v6097
      %v6109 = vpack.c.b16 %v6100, %v6099
      %v6110 = vpack.c.b16 %v6102, %v6101
      %6119 = vmatprep.subr.bf16.mxu0 0
      %6120 = vmatpush1.bf16.msra.mxu0 %v6110
      %6121 = vmatprep.subr.bf16.mxu0 0
      %6122 = vmatpush1.bf16.msra.mxu0 %v6109
      %6123 = vmatprep.subr.bf16.mxu0 0
      %6124 = vmatpush1.bf16.msra.mxu0 %v6108
      %6125 = vmatprep.subr.bf16.mxu0 0
      %6126 = vmatpush1.bf16.msra.mxu0 %v6107
      %6127 = vmatprep.subr.bf16.mxu0 0
      %6128 = vmatpush1.bf16.msra.mxu0 %v6106
      %6129 = vmatprep.subr.bf16.mxu0 0
      %6130 = vmatpush1.bf16.msra.mxu0 %v6105
      %6131 = vmatprep.subr.bf16.mxu0 0
      %6132 = vmatpush1.bf16.msra.mxu0 %v6104
      %6133 = vmatprep.subr.bf16.mxu0 0
      %6134 = vmatpush1.bf16.msra.mxu0 %v6103
      %6135 = vmatprep.subr.bf16.mxu0 0
      %6136 = vmatpush2.bf16.msra.mxu0 0
      %6137 = vmatprep.subr.bf16.mxu0 0
      %6138 = vmatpush2.bf16.msra.mxu0 0
      %6139 = vmatprep.subr.bf16.mxu0 0
      %6140 = vmatpush2.bf16.msra.mxu0 0
      %6141 = vmatprep.subr.bf16.mxu0 0
      %6142 = vmatpush2.bf16.msra.mxu0 0
      %6143 = vmatprep.subr.bf16.mxu0 0
      %6144 = vmatpush2.bf16.msra.mxu0 0
      %6145 = vmatprep.subr.bf16.mxu0 0
      %6146 = vmatpush2.bf16.msra.mxu0 0
      %6147 = vmatprep.subr.bf16.mxu0 0
      %6148 = vmatpush2.bf16.msra.mxu0 0
      %6149 = vmatprep.subr.bf16.mxu0 0
      %6150 = vmatpush2.bf16.msra.mxu0 0
      %6151 = vmatprep.mubr.bf16.mxu0 0
      %6152 = vmatmul.mubr.bf16.gmra.mxu0 %v6044
      %v6153 = vpop.f32.mrf.mxu0
      %v6154 = vadd.f32 %v6070, %v6153
      %v6155 = vpop.f32.mrf.mxu0
      %v6156 = vpop.f32.mrf.mxu0
      %v6157 = vadd.f32 %v6070, %v6156
      %v6158 = vpop.f32.mrf.mxu0
      %6159 = vmatprep.mubr.bf16.mxu0 0
      %6160 = vmatmul.mubr.bf16.gmra.mxu0 %v6045
      %v6161 = vpop.f32.mrf.mxu0
      %v6162 = vadd.f32 %v6070, %v6161
      %v6163 = vpop.f32.mrf.mxu0
      %v6164 = vpop.f32.mrf.mxu0
      %v6165 = vadd.f32 %v6070, %v6164
      %v6166 = vpop.f32.mrf.mxu0
      %6167 = vmatprep.mubr.bf16.mxu0 0
      %6168 = vmatmul.mubr.bf16.gmra.mxu0 %v6046
      %v6169 = vpop.f32.mrf.mxu0
      %v6170 = vadd.f32 %v6070, %v6169
      %v6171 = vpop.f32.mrf.mxu0
      %v6172 = vpop.f32.mrf.mxu0
      %v6173 = vadd.f32 %v6070, %v6172
      %v6174 = vpop.f32.mrf.mxu0
      %6175 = vmatprep.mubr.bf16.mxu0 0
      %6176 = vmatmul.mubr.bf16.gmra.mxu0 %v6047
      %v6177 = vpop.f32.mrf.mxu0
      %v6178 = vadd.f32 %v6070, %v6177
      %v6179 = vpop.f32.mrf.mxu0
      %v6180 = vpop.f32.mrf.mxu0
      %v6181 = vadd.f32 %v6070, %v6180
      %v6182 = vpop.f32.mrf.mxu0
      %6183 = vmatprep.mubr.bf16.mxu0 0
      %6184 = vmatmul.mubr.bf16.gmra.mxu0 %v6048
      %v6185 = vpop.f32.mrf.mxu0
      %v6186 = vadd.f32 %v6070, %v6185
      %v6187 = vpop.f32.mrf.mxu0
      %v6188 = vpop.f32.mrf.mxu0
      %v6189 = vadd.f32 %v6070, %v6188
      %v6190 = vpop.f32.mrf.mxu0
      %6191 = vmatprep.mubr.bf16.mxu0 0
      %6192 = vmatmul.mubr.bf16.gmra.mxu0 %v6049
      %v6193 = vpop.f32.mrf.mxu0
      %v6194 = vadd.f32 %v6070, %v6193
      %v6195 = vpop.f32.mrf.mxu0
      %v6196 = vpop.f32.mrf.mxu0
      %v6197 = vadd.f32 %v6070, %v6196
      %v6198 = vpop.f32.mrf.mxu0
      %6199 = vmatprep.mubr.bf16.mxu0 0
      %6200 = vmatmul.mubr.bf16.gmra.mxu0 %v6050
      %v6201 = vpop.f32.mrf.mxu0
      %v6202 = vadd.f32 %v6070, %v6201
      %v6203 = vpop.f32.mrf.mxu0
      %v6204 = vpop.f32.mrf.mxu0
      %v6205 = vadd.f32 %v6070, %v6204
      %v6206 = vpop.f32.mrf.mxu0
      %6207 = vdwg.mxu0
      %v6208 = vadd.f32 %v356, %v6154
      %v6209 = vadd.f32 %v357, %v6157
      %v6210 = vadd.f32 %v358, %v6162
      %v6211 = vadd.f32 %v359, %v6165
      %v6212 = vadd.f32 %v360, %v6170
      %v6213 = vadd.f32 %v361, %v6173
      %v6214 = vadd.f32 %v362, %v6178
      %v6215 = vadd.f32 %v363, %v6181
      %v6216 = vadd.f32 %v364, %v6186
      %v6217 = vadd.f32 %v365, %v6189
      %v6218 = vadd.f32 %v366, %v6194
      %v6219 = vadd.f32 %v367, %v6197
      %v6220 = vadd.f32 %v368, %v6202
      %v6221 = vadd.f32 %v369, %v6205
      %v6222 = vsel %vm413, %v6208, 0.0
      %6223 = vadd.xlane.f32.xlu0 %v6222
      %v6224 = vpop.xlane.xlu0 %6223
      %v6225 = vsel %vm413, %v6209, 0.0
      %6226 = vadd.xlane.f32.xlu0 %v6225
      %v6227 = vpop.xlane.xlu0 %6226
      %v6228 = vsel %vm413, %v6210, 0.0
      %6229 = vadd.xlane.f32.xlu0 %v6228
      %v6230 = vpop.xlane.xlu0 %6229
      %v6231 = vsel %vm413, %v6211, 0.0
      %6232 = vadd.xlane.f32.xlu0 %v6231
      %v6233 = vpop.xlane.xlu0 %6232
      %v6234 = vsel %vm413, %v6212, 0.0
      %6235 = vadd.xlane.f32.xlu0 %v6234
      %v6236 = vpop.xlane.xlu0 %6235
      %v6237 = vsel %vm413, %v6213, 0.0
      %6238 = vadd.xlane.f32.xlu0 %v6237
      %v6239 = vpop.xlane.xlu0 %6238
      %v6240 = vsel %vm413, %v6214, 0.0
      %6241 = vadd.xlane.f32.xlu0 %v6240
      %v6242 = vpop.xlane.xlu0 %6241
      %v6243 = vsel %vm413, %v6215, 0.0
      %6244 = vadd.xlane.f32.xlu0 %v6243
      %v6245 = vpop.xlane.xlu0 %6244
      %v6246 = vsel %vm413, %v6216, 0.0
      %6247 = vadd.xlane.f32.xlu0 %v6246
      %v6248 = vpop.xlane.xlu0 %6247
      %v6249 = vsel %vm413, %v6217, 0.0
      %6250 = vadd.xlane.f32.xlu0 %v6249
      %v6251 = vpop.xlane.xlu0 %6250
      %v6252 = vsel %vm413, %v6218, 0.0
      %6253 = vadd.xlane.f32.xlu0 %v6252
      %v6254 = vpop.xlane.xlu0 %6253
      %v6255 = vsel %vm413, %v6219, 0.0
      %6256 = vadd.xlane.f32.xlu0 %v6255
      %v6257 = vpop.xlane.xlu0 %6256
      %v6258 = vsel %vm413, %v6220, 0.0
      %6259 = vadd.xlane.f32.xlu0 %v6258
      %v6260 = vpop.xlane.xlu0 %6259
      %v6261 = vsel %vm413, %v6221, 0.0
      %6262 = vadd.xlane.f32.xlu0 %v6261
      %v6263 = vpop.xlane.xlu0 %6262
      %v6264 = vrcp.pop 64.0
      %v6265 = vmul.f32 %v6224, %v6264
      %v6266 = vmul.f32 %v6227, %v6264
      %v6267 = vmul.f32 %v6230, %v6264
      %v6268 = vmul.f32 %v6233, %v6264
      %v6269 = vmul.f32 %v6236, %v6264
      %v6270 = vmul.f32 %v6239, %v6264
      %v6271 = vmul.f32 %v6242, %v6264
      %v6272 = vmul.f32 %v6245, %v6264
      %v6273 = vmul.f32 %v6248, %v6264
      %v6274 = vmul.f32 %v6251, %v6264
      %v6275 = vmul.f32 %v6254, %v6264
      %v6276 = vmul.f32 %v6257, %v6264
      %v6277 = vmul.f32 %v6260, %v6264
      %v6278 = vmul.f32 %v6263, %v6264
      %v6279 = vsub.f32 %v6208, %v6265
      %v6280 = vsub.f32 %v6209, %v6266
      %v6281 = vsub.f32 %v6210, %v6267
      %v6282 = vsub.f32 %v6211, %v6268
      %v6283 = vsub.f32 %v6212, %v6269
      %v6284 = vsub.f32 %v6213, %v6270
      %v6285 = vsub.f32 %v6214, %v6271
      %v6286 = vsub.f32 %v6215, %v6272
      %v6287 = vsub.f32 %v6216, %v6273
      %v6288 = vsub.f32 %v6217, %v6274
      %v6289 = vsub.f32 %v6218, %v6275
      %v6290 = vsub.f32 %v6219, %v6276
      %v6291 = vsub.f32 %v6220, %v6277
      %v6292 = vsub.f32 %v6221, %v6278
      %v6293 = vmul.f32 %v6279, %v6279
      %v6294 = vmul.f32 %v6280, %v6280
      %v6295 = vmul.f32 %v6281, %v6281
      %v6296 = vmul.f32 %v6282, %v6282
      %v6297 = vmul.f32 %v6283, %v6283
      %v6298 = vmul.f32 %v6284, %v6284
      %v6299 = vmul.f32 %v6285, %v6285
      %v6300 = vmul.f32 %v6286, %v6286
      %v6301 = vmul.f32 %v6287, %v6287
      %v6302 = vmul.f32 %v6288, %v6288
      %v6303 = vmul.f32 %v6289, %v6289
      %v6304 = vmul.f32 %v6290, %v6290
      %v6305 = vmul.f32 %v6291, %v6291
      %v6306 = vmul.f32 %v6292, %v6292
      %v6307 = vsel %vm413, %v6293, 0.0
      %6308 = vadd.xlane.f32.xlu0 %v6307
      %v6309 = vpop.xlane.xlu0 %6308
      %v6310 = vsel %vm413, %v6294, 0.0
      %6311 = vadd.xlane.f32.xlu0 %v6310
      %v6312 = vpop.xlane.xlu0 %6311
      %v6313 = vsel %vm413, %v6295, 0.0
      %6314 = vadd.xlane.f32.xlu0 %v6313
      %v6315 = vpop.xlane.xlu0 %6314
      %v6316 = vsel %vm413, %v6296, 0.0
      %6317 = vadd.xlane.f32.xlu0 %v6316
      %v6318 = vpop.xlane.xlu0 %6317
      %v6319 = vsel %vm413, %v6297, 0.0
      %6320 = vadd.xlane.f32.xlu0 %v6319
      %v6321 = vpop.xlane.xlu0 %6320
      %v6322 = vsel %vm413, %v6298, 0.0
      %6323 = vadd.xlane.f32.xlu0 %v6322
      %v6324 = vpop.xlane.xlu0 %6323
      %v6325 = vsel %vm413, %v6299, 0.0
      %6326 = vadd.xlane.f32.xlu0 %v6325
      %v6327 = vpop.xlane.xlu0 %6326
      %v6328 = vsel %vm413, %v6300, 0.0
      %6329 = vadd.xlane.f32.xlu0 %v6328
      %v6330 = vpop.xlane.xlu0 %6329
      %v6331 = vsel %vm413, %v6301, 0.0
      %6332 = vadd.xlane.f32.xlu0 %v6331
      %v6333 = vpop.xlane.xlu0 %6332
      %v6334 = vsel %vm413, %v6302, 0.0
      %6335 = vadd.xlane.f32.xlu0 %v6334
      %v6336 = vpop.xlane.xlu0 %6335
      %v6337 = vsel %vm413, %v6303, 0.0
      %6338 = vadd.xlane.f32.xlu0 %v6337
      %v6339 = vpop.xlane.xlu0 %6338
      %v6340 = vsel %vm413, %v6304, 0.0
      %6341 = vadd.xlane.f32.xlu0 %v6340
      %v6342 = vpop.xlane.xlu0 %6341
      %v6343 = vsel %vm413, %v6305, 0.0
      %6344 = vadd.xlane.f32.xlu0 %v6343
      %v6345 = vpop.xlane.xlu0 %6344
      %v6346 = vsel %vm413, %v6306, 0.0
      %6347 = vadd.xlane.f32.xlu0 %v6346
      %v6348 = vpop.xlane.xlu0 %6347
      %v6349 = vmul.f32 %v6309, %v6264
      %v6350 = vmul.f32 %v6312, %v6264
      %v6351 = vmul.f32 %v6315, %v6264
      %v6352 = vmul.f32 %v6318, %v6264
      %v6353 = vmul.f32 %v6321, %v6264
      %v6354 = vmul.f32 %v6324, %v6264
      %v6355 = vmul.f32 %v6327, %v6264
      %v6356 = vmul.f32 %v6330, %v6264
      %v6357 = vmul.f32 %v6333, %v6264
      %v6358 = vmul.f32 %v6336, %v6264
      %v6359 = vmul.f32 %v6339, %v6264
      %v6360 = vmul.f32 %v6342, %v6264
      %v6361 = vmul.f32 %v6345, %v6264
      %v6362 = vmul.f32 %v6348, %v6264
      %v6363 = vadd.f32 %v6349, 1e-05
      %v6364 = vadd.f32 %v6350, 1e-05
      %v6365 = vadd.f32 %v6351, 1e-05
      %v6366 = vadd.f32 %v6352, 1e-05
      %v6367 = vadd.f32 %v6353, 1e-05
      %v6368 = vadd.f32 %v6354, 1e-05
      %v6369 = vadd.f32 %v6355, 1e-05
      %v6370 = vadd.f32 %v6356, 1e-05
      %v6371 = vadd.f32 %v6357, 1e-05
      %v6372 = vadd.f32 %v6358, 1e-05
      %v6373 = vadd.f32 %v6359, 1e-05
      %v6374 = vadd.f32 %v6360, 1e-05
      %v6375 = vadd.f32 %v6361, 1e-05
      %v6376 = vadd.f32 %v6362, 1e-05
      %v6377 = vrsqrt.pop %v6363
      %v6378 = vrsqrt.pop %v6364
      %v6379 = vrsqrt.pop %v6365
      %v6380 = vrsqrt.pop %v6366
      %v6381 = vrsqrt.pop %v6367
      %v6382 = vrsqrt.pop %v6368
      %v6383 = vrsqrt.pop %v6369
      %v6384 = vrsqrt.pop %v6370
      %v6385 = vrsqrt.pop %v6371
      %v6386 = vrsqrt.pop %v6372
      %v6387 = vrsqrt.pop %v6373
      %v6388 = vrsqrt.pop %v6374
      %v6389 = vrsqrt.pop %v6375
      %v6390 = vrsqrt.pop %v6376
      %v6391 = vmul.f32 %v6279, %v6377
      %v6392 = vmul.f32 %v6280, %v6378
      %v6393 = vmul.f32 %v6281, %v6379
      %v6394 = vmul.f32 %v6282, %v6380
      %v6395 = vmul.f32 %v6283, %v6381
      %v6396 = vmul.f32 %v6284, %v6382
      %v6397 = vmul.f32 %v6285, %v6383
      %v6398 = vmul.f32 %v6286, %v6384
      %v6399 = vmul.f32 %v6287, %v6385
      %v6400 = vmul.f32 %v6288, %v6386
      %v6401 = vmul.f32 %v6289, %v6387
      %v6402 = vmul.f32 %v6290, %v6388
      %v6403 = vmul.f32 %v6291, %v6389
      %v6404 = vmul.f32 %v6292, %v6390
      %v6405 = vlaneseq
      %v6406 = vshrl.u32 %v6405, 7
      %v6407 = vsub.s32 1, %v6406
      %v6408 = vrot.slane %v355, %v6407
      %v6409 = vmul.f32 %v6391, %v6408
      %v6410 = vmul.f32 %v6392, %v6408
      %v6411 = vmul.f32 %v6393, %v6408
      %v6412 = vmul.f32 %v6394, %v6408
      %v6413 = vmul.f32 %v6395, %v6408
      %v6414 = vmul.f32 %v6396, %v6408
      %v6415 = vmul.f32 %v6397, %v6408
      %v6416 = vmul.f32 %v6398, %v6408
      %v6417 = vmul.f32 %v6399, %v6408
      %v6418 = vmul.f32 %v6400, %v6408
      %v6419 = vmul.f32 %v6401, %v6408
      %v6420 = vmul.f32 %v6402, %v6408
      %v6421 = vmul.f32 %v6403, %v6408
      %v6422 = vmul.f32 %v6404, %v6408
      %v6423 = vlaneseq
      %v6424 = vshrl.u32 %v6423, 7
      %v6425 = vsub.s32 2, %v6424
      %v6426 = vrot.slane %v355, %v6425
      %v6427 = vadd.f32 %v6409, %v6426
      %v6428 = vadd.f32 %v6410, %v6426
      %v6429 = vadd.f32 %v6411, %v6426
      %v6430 = vadd.f32 %v6412, %v6426
      %v6431 = vadd.f32 %v6413, %v6426
      %v6432 = vadd.f32 %v6414, %v6426
      %v6433 = vadd.f32 %v6415, %v6426
      %v6434 = vadd.f32 %v6416, %v6426
      %v6435 = vadd.f32 %v6417, %v6426
      %v6436 = vadd.f32 %v6418, %v6426
      %v6437 = vadd.f32 %v6419, %v6426
      %v6438 = vadd.f32 %v6420, %v6426
      %v6439 = vadd.f32 %v6421, %v6426
      %v6440 = vadd.f32 %v6422, %v6426
      %6441 = vst.msk [vmem:[%s351] sm:$0xff] %vm413, %v6427
      %6442 = vst.msk [vmem:[%s351 + $0x8] sm:$0xff] %vm413, %v6428
      %6443 = vst.msk [vmem:[%s351 + $0x10] sm:$0xff] %vm413, %v6429
      %6444 = vst.msk [vmem:[%s351 + $0x18] sm:$0xff] %vm413, %v6430
      %6445 = vst.msk [vmem:[%s351 + $0x20] sm:$0xff] %vm413, %v6431
      %6446 = vst.msk [vmem:[%s351 + $0x28] sm:$0xff] %vm413, %v6432
      %6447 = vst.msk [vmem:[%s351 + $0x30] sm:$0xff] %vm413, %v6433
      %6448 = vst.msk [vmem:[%s351 + $0x38] sm:$0xff] %vm413, %v6434
      %6449 = vst.msk [vmem:[%s351 + $0x40] sm:$0xff] %vm413, %v6435
      %6450 = vst.msk [vmem:[%s351 + $0x48] sm:$0xff] %vm413, %v6436
      %6451 = vst.msk [vmem:[%s351 + $0x50] sm:$0xff] %vm413, %v6437
      %6452 = vst.msk [vmem:[%s351 + $0x58] sm:$0xff] %vm413, %v6438
      %6453 = vst.msk [vmem:[%s351 + $0x60] sm:$0xff] %vm413, %v6439
      %6454 = vst.msk [vmem:[%s351 + $0x68] sm:$0xff] %vm413, %v6440
      %s6455 = smul.u32 14, %s19
      %p6456 = scmp.lt.s32.totalorder %s6455, 41
      %s6457 = scalar_select %p6456, %s6455, 41
      %s6458 = smul.addr %s6457, 8
      %s6459 = scalar_lea.vmem %s8, %s6458
      // Predicated region
      $region53: #{multi_head_dilate_attention.1} parent=51 // pred_check
        %p6460 = pneg %p220
      $region54: #{multi_head_dilate_attention.1} parent=51 // pred_check_branch
        %6462 = sbr.rel (%p6460) target = $region56
      $region55: #{multi_head_dilate_attention.1} parent=51 // pred_region
        %s6463 = smul.u32 14, %s19
      $region56: #{multi_head_dilate_attention.1} parent=51 // pred_fallthru
        _
    $region52: #{multi_head_dilate_attention.1} parent=5 // pred_fallthru
      _
    %p6464 = scmp.le.s32.totalorder 2, %s14
    // Predicated region
    $region57: #{multi_head_dilate_attention.1} parent=5 // pred_check
      %p6465 = pneg %p6464
    $region58: #{multi_head_dilate_attention.1} parent=5 // pred_check_branch
      %6467 = sbr.rel (%p6465) target = $region60
    $region59: #{multi_head_dilate_attention.1} parent=5 // pred_region
      %s6468 = ssub.s32 %s14, 2
      // Predicated region
      $region61: #{multi_head_dilate_attention.1} parent=59 // pred_check
        %p6469 = pneg %p226
      $region62: #{multi_head_dilate_attention.1} parent=59 // pred_check_branch
        %6471 = sbr.rel (%p6469) target = $region64
      $region63: #{multi_head_dilate_attention.1} parent=59 // pred_region
        %s6472 = smul.u32 14, %s20
        %p6473 = scmp.lt.s32.totalorder %s6472, 41
        %s6474 = scalar_select %p6473, %s6472, 41
        %s6475 = smul.addr %s6474, 8
        %s6476 = scalar_lea.vmem %s8, %s6475
      $region64: #{multi_head_dilate_attention.1} parent=59 // pred_fallthru
        _
    $region60: #{multi_head_dilate_attention.1} parent=5 // pred_fallthru
      _
  $region6: #{multi_head_dilate_attention.1} parent=0 // loop_footer
    %s18 = sadd.s32 1, %s14
  $region7: #{multi_head_dilate_attention.1} parent=0 // loop_footer_branch
    %13 = sbr.rel target = $region3
  $region8: #{multi_head_dilate_attention.1} parent=0 // loop_exit
    _

</llo_original>
